<compile_context>
chip_gen: v6e
topology: v6e:2x2x1
jax: 0.10.0
libtpu: 0.0.40
codegen_flags: <defaults>
</compile_context>

<pallas_src>
import jax
import jax.numpy as jnp
import numpy as np
from jax import lax
from jax.experimental import pallas as pl
from jax.experimental.pallas import tpu as pltpu

EPS = 1e-5


def _pad_rows(W):
    # zero-halo rows above/below the flattened image; >= W+1 and sublane-aligned
    return ((W + 1 + 7) // 8) * 8


# ----------------------------- fused Pallas kernel -----------------------------

def _make_dense_block_kernel(num_layers, H, W, growth):
    HW = H * W
    PAD = _pad_rows(W)

    def kernel(*refs):
        # ---- unpack (must mirror the arg order built in dense_block_forward) ----
        it = iter(refs)
        x_ref = next(it)                       # (HW, Cin) f32
        ml_ref = next(it)                      # (HW, 1) tap validity: w > 0
        mr_ref = next(it)                      # (HW, 1) tap validity: w < W-1
        layers = []
        for l in range(num_layers):
            nb = l + 1
            s1 = [next(it) for _ in range(nb)]     # BN1 scale, split per block
            t1 = [next(it) for _ in range(nb)]     # BN1 shift, split per block
            w1 = [next(it) for _ in range(nb)]     # 1x1 weight rows, per block (bf16)
            s2, t2p, w2, b2 = next(it), next(it), next(it), next(it)
            layers.append((s1, t1, w1, s2, t2p, w2, b2))
        wf = [next(it) for _ in range(num_layers + 1)]   # final 1x1 weight, per block
        sf, tfp = next(it), next(it)
        o_ref = next(it)                       # (HW, Cout) output
        pad_ref = next(it)                     # VMEM scratch (HW + 2*PAD, 4*growth)

        col_masks = (ml_ref[...], None, mr_ref[...])

        # zero the halo rows once per image; interior is overwritten every layer
        c4w = pad_ref.shape[1]
        pad_ref[0:PAD, :] = jnp.zeros((PAD, c4w), jnp.float32)
        pad_ref[PAD + HW:2 * PAD + HW, :] = jnp.zeros((PAD, c4w), jnp.float32)

        # dense feature map: VMEM-resident list of channel blocks (never hits HBM)
        blocks = [x_ref[...]]

        for (s1, t1, w1, s2, t2p, w2, b2) in layers:
            c4 = w1[0].shape[-1]

            # BN1 -> ReLU -> 1x1 conv (bias folded into t2p), accumulated per block
            y = None
            for blk, s_b, t_b, w_b in zip(blocks, s1, t1, w1):
                a = jnp.maximum(blk * s_b[...] + t_b[...], 0.0)
                d = jnp.dot(a.astype(jnp.bfloat16), w_b[...],
                            preferred_element_type=jnp.float32)
                y = d if y is None else y + d
            # BN2 -> ReLU
            mid = jnp.maximum(y * s2[...] + t2p[...], 0.0)           # (HW, c4) f32

            # 3x3 conv (padding=1) as 9 shifted-row matmuls on the flattened image
            pad_ref[PAD:PAD + HW, :] = mid
            acc = jnp.broadcast_to(b2[...], (HW, growth))            # bias init
            for dx in range(3):
                part = None
                for dy in range(3):
                    k = dy * 3 + dx
                    off = PAD + (dy - 1) * W + (dx - 1)
                    sh = pad_ref[off:off + HW, :].astype(jnp.bfloat16)
                    d = jnp.dot(sh, w2[k * c4:(k + 1) * c4, :],
                                preferred_element_type=jnp.float32)
                    part = d if part is None else part + d
                if col_masks[dx] is not None:        # zero the wrapped columns
                    part = part * col_masks[dx]
                acc = acc + part
            blocks.append(acc)                       # "dense concat"

        # final 1x1 conv (bias folded into tfp) -> BN -> ReLU
        yf = None
        for blk, w_b in zip(blocks, wf):
            d = jnp.dot(blk.astype(jnp.bfloat16), w_b[...],
                        preferred_element_type=jnp.float32)
            yf = d if yf is None else yf + d
        o_ref[...] = jnp.maximum(yf * sf[...] + tfp[...], 0.0)

    return kernel


# ----------------------------- wrapper -----------------------------

def _full_spec(a):
    nd = a.ndim
    return pl.BlockSpec(a.shape, lambda n, _nd=nd: (0,) * _nd)


def dense_block_forward(x_nhwc, params):
    N, H, W, cin = x_nhwc.shape
    HW = H * W
    layers = params["layers"]
    num_layers = len(layers)
    growth = layers[0]["w2_hwio"].shape[-1]
    c4 = layers[0]["w1"].shape[1]
    cout = params["wf"].shape[1]
    PAD = _pad_rows(W)
    bf16 = jnp.bfloat16

    args, in_specs = [], []

    def add(a):
        args.append(a)
        in_specs.append(_full_spec(a))

    # input image, flattened to (N, H*W, Cin); one image per grid step
    args.append(x_nhwc.reshape(N, HW, cin))
    in_specs.append(pl.BlockSpec((None, HW, cin), lambda n: (n, 0, 0)))

    # column-validity masks for the left/right 3x3 taps (host-built, tiny)
    col = np.arange(HW) % W
    add(jnp.asarray(col > 0, jnp.float32).reshape(HW, 1))
    add(jnp.asarray(col < W - 1, jnp.float32).reshape(HW, 1))

    widths = [cin]
    for lp in layers:
        # split BN1 params and the 1x1 weight rows per existing channel block
        off = 0
        s1_p, t1_p, w1_p = [], [], []
        for wdt in widths:
            s1_p.append(lp["s1"][off:off + wdt].reshape(1, wdt))
            t1_p.append(lp["t1"][off:off + wdt].reshape(1, wdt))
            w1_p.append(lp["w1"][off:off + wdt, :].astype(bf16))
            off += wdt
        for p in s1_p: add(p)
        for p in t1_p: add(p)
        for p in w1_p: add(p)
        add(lp["s2"].reshape(1, -1))
        add((lp["b1"] * lp["s2"] + lp["t2"]).reshape(1, -1))         # folded bias
        add(lp["w2_hwio"].reshape(9 * c4, growth).astype(bf16))      # (dy,dx,c) rows
        add(lp["b2"].reshape(1, -1))
        widths = widths + [growth]

    off = 0
    for wdt in widths:
        add(params["wf"][off:off + wdt, :].astype(bf16))
        off += wdt
    add(params["sf"].reshape(1, -1))
    add((params["bf"] * params["sf"] + params["tf"]).reshape(1, -1))  # folded bias

    kernel = _make_dense_block_kernel(num_layers, H, W, growth)
    out = pl.pallas_call(
        kernel,
        out_shape=jax.ShapeDtypeStruct((N, HW, cout), jnp.float32),
        grid=(N,),
        in_specs=in_specs,
        out_specs=pl.BlockSpec((None, HW, cout), lambda n: (n, 0, 0)),
        scratch_shapes=[pltpu.VMEM((HW + 2 * PAD, c4), jnp.float32)],
        compiler_params=pltpu.CompilerParams(
            dimension_semantics=("parallel",)),
    )(*args)
    return out.reshape(N, H, W, cout)


# ----------------------------- deterministic parameter init -----------------------------

def _init_bn(key, c):
    k1, k2, k3, k4 = jax.random.split(key, 4)
    gamma = jax.random.uniform(k1, (c,), jnp.float32, 0.5, 1.5)
    beta = jax.random.normal(k2, (c,), jnp.float32) * 0.1
    mean = jax.random.normal(k3, (c,), jnp.float32) * 0.1
    var = jax.random.uniform(k4, (c,), jnp.float32, 0.5, 1.5)
    scale = gamma / jnp.sqrt(var + EPS)
    shift = beta - mean * scale
    return scale, shift


def init_params(key, num_layers, in_channels, growth_rate, out_channels):
    layers = []
    cur = in_channels
    for _ in range(num_layers):
        key, kbn1, kw1, kb1, kbn2, kw2, kb2 = jax.random.split(key, 7)
        c4 = 4 * growth_rate
        s1, t1 = _init_bn(kbn1, cur)
        w1 = jax.random.normal(kw1, (cur, c4), jnp.float32) * 0.1
        b1 = jax.random.normal(kb1, (c4,), jnp.float32) * 0.1
        s2, t2 = _init_bn(kbn2, c4)
        w2 = jax.random.normal(kw2, (3, 3, c4, growth_rate), jnp.float32) * 0.1
        b2 = jax.random.normal(kb2, (growth_rate,), jnp.float32) * 0.1
        layers.append(dict(s1=s1, t1=t1, w1=w1, b1=b1, s2=s2, t2=t2,
                           w2_hwio=w2, b2=b2))
        cur += growth_rate
    key, kwf, kbf, kbnf = jax.random.split(key, 4)
    wf = jax.random.normal(kwf, (cur, out_channels), jnp.float32) * 0.1
    bf = jax.random.normal(kbf, (out_channels,), jnp.float32) * 0.1
    sf, tf = _init_bn(kbnf, out_channels)
    return dict(layers=layers, wf=wf, bf=bf, sf=sf, tf=tf)


# ----------------------------- pure-JAX reference (f32) -----------------------------

def ref_forward(x_nhwc, params):
    x = x_nhwc
    for lp in params["layers"]:
        a = jnp.maximum(x * lp["s1"] + lp["t1"], 0.0)
        o = jnp.einsum('nhwc,cd->nhwd', a, lp["w1"]) + lp["b1"]
        a2 = jnp.maximum(o * lp["s2"] + lp["t2"], 0.0)
        o2 = lax.conv_general_dilated(
            a2, lp["w2_hwio"], (1, 1), 'SAME',
            dimension_numbers=('NHWC', 'HWIO', 'NHWC')) + lp["b2"]
        x = jnp.concatenate([x, o2], axis=-1)
    y = jnp.einsum('nhwc,cd->nhwd', x, params["wf"]) + params["bf"]
    return jnp.maximum(y * params["sf"] + params["tf"], 0.0)


# ----------------------------- main -----------------------------

if __name__ == "__main__":
    key = jax.random.PRNGKey(0)
    kx, kp = jax.random.split(key)

    # DenseBlock(num_layers=2, in_channels=4, growth_rate=4, out_channels=8)
    N, Cin, H, W = 2, 4, 16, 16
    num_layers, growth_rate, out_channels = 2, 4, 8

    x_nchw = jax.random.normal(kx, (N, Cin, H, W), jnp.float32)   # PyTorch NCHW input
    x_nhwc = jnp.transpose(x_nchw, (0, 2, 3, 1))                  # kernel layout NHWC

    params = init_params(kp, num_layers, Cin, growth_rate, out_channels)

    y = dense_block_forward(x_nhwc, params)
    y = jax.block_until_ready(y)

    y_ref = ref_forward(x_nhwc, params)
    # bf16 matmul operands with f32 accumulation -> loosened tolerance vs f32 ref
    np.testing.assert_allclose(np.asarray(y), np.asarray(y_ref), rtol=3e-2, atol=3e-2)

    print("KERNEL_OK")
</pallas_src>

<mosaic_0001>
module attributes {stable_mosaic.version = 11 : i64} {
  func.func @kernel(%arg0: i32, %arg1: memref<1x256x4xf32, #tpu.memory_space<vmem>>, %arg2: memref<256x1xf32, #tpu.memory_space<vmem>>, %arg3: memref<256x1xf32, #tpu.memory_space<vmem>>, %arg4: memref<1x4xf32, #tpu.memory_space<vmem>>, %arg5: memref<1x4xf32, #tpu.memory_space<vmem>>, %arg6: memref<4x16xbf16, #tpu.memory_space<vmem>>, %arg7: memref<1x16xf32, #tpu.memory_space<vmem>>, %arg8: memref<1x16xf32, #tpu.memory_space<vmem>>, %arg9: memref<144x4xbf16, #tpu.memory_space<vmem>>, %arg10: memref<1x4xf32, #tpu.memory_space<vmem>>, %arg11: memref<1x4xf32, #tpu.memory_space<vmem>>, %arg12: memref<1x4xf32, #tpu.memory_space<vmem>>, %arg13: memref<1x4xf32, #tpu.memory_space<vmem>>, %arg14: memref<1x4xf32, #tpu.memory_space<vmem>>, %arg15: memref<4x16xbf16, #tpu.memory_space<vmem>>, %arg16: memref<4x16xbf16, #tpu.memory_space<vmem>>, %arg17: memref<1x16xf32, #tpu.memory_space<vmem>>, %arg18: memref<1x16xf32, #tpu.memory_space<vmem>>, %arg19: memref<144x4xbf16, #tpu.memory_space<vmem>>, %arg20: memref<1x4xf32, #tpu.memory_space<vmem>>, %arg21: memref<4x8xbf16, #tpu.memory_space<vmem>>, %arg22: memref<4x8xbf16, #tpu.memory_space<vmem>>, %arg23: memref<4x8xbf16, #tpu.memory_space<vmem>>, %arg24: memref<1x8xf32, #tpu.memory_space<vmem>>, %arg25: memref<1x8xf32, #tpu.memory_space<vmem>>, %arg26: memref<1x256x8xf32, #tpu.memory_space<vmem>>, %arg27: memref<304x16xf32, #tpu.memory_space<vmem>>) attributes {dimension_semantics = [#tpu.dimension_semantics<parallel>], iteration_bounds = array<i64: 2>, scalar_prefetch = 0 : i64, scratch_operands = 1 : i64, tpu.core_type = #tpu.core_type<tc>, window_params = [{transform_indices = @transform_0, window_bounds = array<i64: 1, 256, 4>}, {pipeline_mode = #tpu.pipeline_mode<synchronous>, transform_indices = @transform_1, window_bounds = array<i64: 256, 1>}, {pipeline_mode = #tpu.pipeline_mode<synchronous>, transform_indices = @transform_2, window_bounds = array<i64: 256, 1>}, {pipeline_mode = #tpu.pipeline_mode<synchronous>, transform_indices = @transform_3, window_bounds = array<i64: 1, 4>}, {pipeline_mode = #tpu.pipeline_mode<synchronous>, transform_indices = @transform_4, window_bounds = array<i64: 1, 4>}, {pipeline_mode = #tpu.pipeline_mode<synchronous>, transform_indices = @transform_5, window_bounds = array<i64: 4, 16>}, {pipeline_mode = #tpu.pipeline_mode<synchronous>, transform_indices = @transform_6, window_bounds = array<i64: 1, 16>}, {pipeline_mode = #tpu.pipeline_mode<synchronous>, transform_indices = @transform_7, window_bounds = array<i64: 1, 16>}, {pipeline_mode = #tpu.pipeline_mode<synchronous>, transform_indices = @transform_8, window_bounds = array<i64: 144, 4>}, {pipeline_mode = #tpu.pipeline_mode<synchronous>, transform_indices = @transform_9, window_bounds = array<i64: 1, 4>}, {pipeline_mode = #tpu.pipeline_mode<synchronous>, transform_indices = @transform_10, window_bounds = array<i64: 1, 4>}, {pipeline_mode = #tpu.pipeline_mode<synchronous>, transform_indices = @transform_11, window_bounds = array<i64: 1, 4>}, {pipeline_mode = #tpu.pipeline_mode<synchronous>, transform_indices = @transform_12, window_bounds = array<i64: 1, 4>}, {pipeline_mode = #tpu.pipeline_mode<synchronous>, transform_indices = @transform_13, window_bounds = array<i64: 1, 4>}, {pipeline_mode = #tpu.pipeline_mode<synchronous>, transform_indices = @transform_14, window_bounds = array<i64: 4, 16>}, {pipeline_mode = #tpu.pipeline_mode<synchronous>, transform_indices = @transform_15, window_bounds = array<i64: 4, 16>}, {pipeline_mode = #tpu.pipeline_mode<synchronous>, transform_indices = @transform_16, window_bounds = array<i64: 1, 16>}, {pipeline_mode = #tpu.pipeline_mode<synchronous>, transform_indices = @transform_17, window_bounds = array<i64: 1, 16>}, {pipeline_mode = #tpu.pipeline_mode<synchronous>, transform_indices = @transform_18, window_bounds = array<i64: 144, 4>}, {pipeline_mode = #tpu.pipeline_mode<synchronous>, transform_indices = @transform_19, window_bounds = array<i64: 1, 4>}, {pipeline_mode = #tpu.pipeline_mode<synchronous>, transform_indices = @transform_20, window_bounds = array<i64: 4, 8>}, {pipeline_mode = #tpu.pipeline_mode<synchronous>, transform_indices = @transform_21, window_bounds = array<i64: 4, 8>}, {pipeline_mode = #tpu.pipeline_mode<synchronous>, transform_indices = @transform_22, window_bounds = array<i64: 4, 8>}, {pipeline_mode = #tpu.pipeline_mode<synchronous>, transform_indices = @transform_23, window_bounds = array<i64: 1, 8>}, {pipeline_mode = #tpu.pipeline_mode<synchronous>, transform_indices = @transform_24, window_bounds = array<i64: 1, 8>}, {transform_indices = @transform_25, window_bounds = array<i64: 1, 256, 8>}]} {
    %c0 = arith.constant 0 : index
    %c0_0 = arith.constant 0 : index
    %0 = vector.load %arg2[%c0, %c0_0] : memref<256x1xf32, #tpu.memory_space<vmem>>, vector<256x1xf32>
    %c0_1 = arith.constant 0 : index
    %c0_2 = arith.constant 0 : index
    %1 = vector.load %arg3[%c0_1, %c0_2] : memref<256x1xf32, #tpu.memory_space<vmem>>, vector<256x1xf32>
    %cst = arith.constant 0.000000e+00 : f32
    %2 = vector.broadcast %cst : f32 to vector<24x16xf32>
    %c0_3 = arith.constant 0 : index
    %c0_4 = arith.constant 0 : index
    %3 = vector.load %arg27[%c0_3, %c0_4] : memref<304x16xf32, #tpu.memory_space<vmem>>, vector<24x16xf32>
    tpu.vector_store %arg27[%c0_3, %c0_4], %2 {strides = array<i32>} : memref<304x16xf32, #tpu.memory_space<vmem>>, vector<24x16xf32>,
    %cst_5 = arith.constant 0.000000e+00 : f32
    %4 = vector.broadcast %cst_5 : f32 to vector<24x16xf32>
    %c280 = arith.constant 280 : index
    %c0_6 = arith.constant 0 : index
    %5 = vector.load %arg27[%c280, %c0_6] : memref<304x16xf32, #tpu.memory_space<vmem>>, vector<24x16xf32>
    tpu.vector_store %arg27[%c280, %c0_6], %4 {strides = array<i32>} : memref<304x16xf32, #tpu.memory_space<vmem>>, vector<24x16xf32>,
    %c0_7 = arith.constant 0 : index
    %c0_8 = arith.constant 0 : index
    %c0_9 = arith.constant 0 : index
    %6 = vector.load %arg1[%c0_7, %c0_8, %c0_9] : memref<1x256x4xf32, #tpu.memory_space<vmem>>, vector<1x256x4xf32>
    %7 = vector.shape_cast %6 : vector<1x256x4xf32> to vector<256x4xf32>
    %c0_10 = arith.constant 0 : index
    %c0_11 = arith.constant 0 : index
    %8 = vector.load %arg4[%c0_10, %c0_11] : memref<1x4xf32, #tpu.memory_space<vmem>>, vector<1x4xf32>
    %9 = vector.broadcast %8 : vector<1x4xf32> to vector<256x4xf32>
    %10 = arith.mulf %7, %9 : vector<256x4xf32>
    %c0_12 = arith.constant 0 : index
    %c0_13 = arith.constant 0 : index
    %11 = vector.load %arg5[%c0_12, %c0_13] : memref<1x4xf32, #tpu.memory_space<vmem>>, vector<1x4xf32>
    %12 = vector.broadcast %11 : vector<1x4xf32> to vector<256x4xf32>
    %13 = arith.addf %10, %12 : vector<256x4xf32>
    %cst_14 = arith.constant 0.000000e+00 : f32
    %14 = vector.broadcast %cst_14 : f32 to vector<256x4xf32>
    %15 = arith.maximumf %13, %14 : vector<256x4xf32>
    %16 = arith.truncf %15 : vector<256x4xf32> to vector<256x4xbf16>
    %c0_15 = arith.constant 0 : index
    %c0_16 = arith.constant 0 : index
    %17 = vector.load %arg6[%c0_15, %c0_16] : memref<4x16xbf16, #tpu.memory_space<vmem>>, vector<4x16xbf16>
    %cst_17 = arith.constant dense<0.000000e+00> : vector<256x16xf32>
    %18 = tpu.matmul %16, %17, %cst_17 {dimension_numbers = #tpu.dot_dimension_numbers<[1], [0], [0], [1], [0, 0, 1, 1], [], []>} : vector<256x4xbf16>, vector<4x16xbf16>, vector<256x16xf32> -> vector<256x16xf32>
    %c0_18 = arith.constant 0 : index
    %c0_19 = arith.constant 0 : index
    %19 = vector.load %arg7[%c0_18, %c0_19] : memref<1x16xf32, #tpu.memory_space<vmem>>, vector<1x16xf32>
    %20 = vector.broadcast %19 : vector<1x16xf32> to vector<256x16xf32>
    %21 = arith.mulf %18, %20 : vector<256x16xf32>
    %c0_20 = arith.constant 0 : index
    %c0_21 = arith.constant 0 : index
    %22 = vector.load %arg8[%c0_20, %c0_21] : memref<1x16xf32, #tpu.memory_space<vmem>>, vector<1x16xf32>
    %23 = vector.broadcast %22 : vector<1x16xf32> to vector<256x16xf32>
    %24 = arith.addf %21, %23 : vector<256x16xf32>
    %cst_22 = arith.constant 0.000000e+00 : f32
    %25 = vector.broadcast %cst_22 : f32 to vector<256x16xf32>
    %26 = arith.maximumf %24, %25 : vector<256x16xf32>
    %c24 = arith.constant 24 : index
    %c0_23 = arith.constant 0 : index
    %27 = vector.load %arg27[%c24, %c0_23] : memref<304x16xf32, #tpu.memory_space<vmem>>, vector<256x16xf32>
    tpu.vector_store %arg27[%c24, %c0_23], %26 {strides = array<i32>} : memref<304x16xf32, #tpu.memory_space<vmem>>, vector<256x16xf32>,
    %c0_24 = arith.constant 0 : index
    %c0_25 = arith.constant 0 : index
    %28 = vector.load %arg10[%c0_24, %c0_25] : memref<1x4xf32, #tpu.memory_space<vmem>>, vector<1x4xf32>
    %29 = vector.shape_cast %28 : vector<1x4xf32> to vector<1x4xf32>
    %30 = vector.broadcast %29 : vector<1x4xf32> to vector<256x4xf32>
    %c7 = arith.constant 7 : index
    %c0_26 = arith.constant 0 : index
    %31 = vector.load %arg27[%c7, %c0_26] : memref<304x16xf32, #tpu.memory_space<vmem>>, vector<256x16xf32>
    %32 = arith.truncf %31 : vector<256x16xf32> to vector<256x16xbf16>
    %c0_27 = arith.constant 0 : index
    %c0_28 = arith.constant 0 : index
    %33 = vector.load %arg9[%c0_27, %c0_28] : memref<144x4xbf16, #tpu.memory_space<vmem>>, vector<16x4xbf16>
    %cst_29 = arith.constant dense<0.000000e+00> : vector<256x4xf32>
    %34 = tpu.matmul %32, %33, %cst_29 {dimension_numbers = #tpu.dot_dimension_numbers<[1], [0], [0], [1], [0, 0, 1, 1], [], []>} : vector<256x16xbf16>, vector<16x4xbf16>, vector<256x4xf32> -> vector<256x4xf32>
    %c23 = arith.constant 23 : index
    %c0_30 = arith.constant 0 : index
    %35 = vector.load %arg27[%c23, %c0_30] : memref<304x16xf32, #tpu.memory_space<vmem>>, vector<256x16xf32>
    %36 = arith.truncf %35 : vector<256x16xf32> to vector<256x16xbf16>
    %c48 = arith.constant 48 : index
    %c0_31 = arith.constant 0 : index
    %37 = vector.load %arg9[%c48, %c0_31] : memref<144x4xbf16, #tpu.memory_space<vmem>>, vector<16x4xbf16>
    %cst_32 = arith.constant dense<0.000000e+00> : vector<256x4xf32>
    %38 = tpu.matmul %36, %37, %cst_32 {dimension_numbers = #tpu.dot_dimension_numbers<[1], [0], [0], [1], [0, 0, 1, 1], [], []>} : vector<256x16xbf16>, vector<16x4xbf16>, vector<256x4xf32> -> vector<256x4xf32>
    %39 = arith.addf %34, %38 : vector<256x4xf32>
    %c39 = arith.constant 39 : index
    %c0_33 = arith.constant 0 : index
    %40 = vector.load %arg27[%c39, %c0_33] : memref<304x16xf32, #tpu.memory_space<vmem>>, vector<256x16xf32>
    %41 = arith.truncf %40 : vector<256x16xf32> to vector<256x16xbf16>
    %c96 = arith.constant 96 : index
    %c0_34 = arith.constant 0 : index
    %42 = vector.load %arg9[%c96, %c0_34] : memref<144x4xbf16, #tpu.memory_space<vmem>>, vector<16x4xbf16>
    %cst_35 = arith.constant dense<0.000000e+00> : vector<256x4xf32>
    %43 = tpu.matmul %41, %42, %cst_35 {dimension_numbers = #tpu.dot_dimension_numbers<[1], [0], [0], [1], [0, 0, 1, 1], [], []>} : vector<256x16xbf16>, vector<16x4xbf16>, vector<256x4xf32> -> vector<256x4xf32>
    %44 = arith.addf %39, %43 : vector<256x4xf32>
    %45 = vector.broadcast %0 : vector<256x1xf32> to vector<256x4xf32>
    %46 = arith.mulf %44, %45 : vector<256x4xf32>
    %47 = arith.addf %30, %46 : vector<256x4xf32>
    %c8 = arith.constant 8 : index
    %c0_36 = arith.constant 0 : index
    %48 = vector.load %arg27[%c8, %c0_36] : memref<304x16xf32, #tpu.memory_space<vmem>>, vector<256x16xf32>
    %49 = arith.truncf %48 : vector<256x16xf32> to vector<256x16xbf16>
    %c16 = arith.constant 16 : index
    %c0_37 = arith.constant 0 : index
    %50 = vector.load %arg9[%c16, %c0_37] : memref<144x4xbf16, #tpu.memory_space<vmem>>, vector<16x4xbf16>
    %cst_38 = arith.constant dense<0.000000e+00> : vector<256x4xf32>
    %51 = tpu.matmul %49, %50, %cst_38 {dimension_numbers = #tpu.dot_dimension_numbers<[1], [0], [0], [1], [0, 0, 1, 1], [], []>} : vector<256x16xbf16>, vector<16x4xbf16>, vector<256x4xf32> -> vector<256x4xf32>
    %c24_39 = arith.constant 24 : index
    %c0_40 = arith.constant 0 : index
    %52 = vector.load %arg27[%c24_39, %c0_40] : memref<304x16xf32, #tpu.memory_space<vmem>>, vector<256x16xf32>
    %53 = arith.truncf %52 : vector<256x16xf32> to vector<256x16xbf16>
    %c64 = arith.constant 64 : index
    %c0_41 = arith.constant 0 : index
    %54 = vector.load %arg9[%c64, %c0_41] : memref<144x4xbf16, #tpu.memory_space<vmem>>, vector<16x4xbf16>
    %cst_42 = arith.constant dense<0.000000e+00> : vector<256x4xf32>
    %55 = tpu.matmul %53, %54, %cst_42 {dimension_numbers = #tpu.dot_dimension_numbers<[1], [0], [0], [1], [0, 0, 1, 1], [], []>} : vector<256x16xbf16>, vector<16x4xbf16>, vector<256x4xf32> -> vector<256x4xf32>
    %56 = arith.addf %51, %55 : vector<256x4xf32>
    %c40 = arith.constant 40 : index
    %c0_43 = arith.constant 0 : index
    %57 = vector.load %arg27[%c40, %c0_43] : memref<304x16xf32, #tpu.memory_space<vmem>>, vector<256x16xf32>
    %58 = arith.truncf %57 : vector<256x16xf32> to vector<256x16xbf16>
    %c112 = arith.constant 112 : index
    %c0_44 = arith.constant 0 : index
    %59 = vector.load %arg9[%c112, %c0_44] : memref<144x4xbf16, #tpu.memory_space<vmem>>, vector<16x4xbf16>
    %cst_45 = arith.constant dense<0.000000e+00> : vector<256x4xf32>
    %60 = tpu.matmul %58, %59, %cst_45 {dimension_numbers = #tpu.dot_dimension_numbers<[1], [0], [0], [1], [0, 0, 1, 1], [], []>} : vector<256x16xbf16>, vector<16x4xbf16>, vector<256x4xf32> -> vector<256x4xf32>
    %61 = arith.addf %56, %60 : vector<256x4xf32>
    %62 = arith.addf %47, %61 : vector<256x4xf32>
    %c9 = arith.constant 9 : index
    %c0_46 = arith.constant 0 : index
    %63 = vector.load %arg27[%c9, %c0_46] : memref<304x16xf32, #tpu.memory_space<vmem>>, vector<256x16xf32>
    %64 = arith.truncf %63 : vector<256x16xf32> to vector<256x16xbf16>
    %c32 = arith.constant 32 : index
    %c0_47 = arith.constant 0 : index
    %65 = vector.load %arg9[%c32, %c0_47] : memref<144x4xbf16, #tpu.memory_space<vmem>>, vector<16x4xbf16>
    %cst_48 = arith.constant dense<0.000000e+00> : vector<256x4xf32>
    %66 = tpu.matmul %64, %65, %cst_48 {dimension_numbers = #tpu.dot_dimension_numbers<[1], [0], [0], [1], [0, 0, 1, 1], [], []>} : vector<256x16xbf16>, vector<16x4xbf16>, vector<256x4xf32> -> vector<256x4xf32>
    %c25 = arith.constant 25 : index
    %c0_49 = arith.constant 0 : index
    %67 = vector.load %arg27[%c25, %c0_49] : memref<304x16xf32, #tpu.memory_space<vmem>>, vector<256x16xf32>
    %68 = arith.truncf %67 : vector<256x16xf32> to vector<256x16xbf16>
    %c80 = arith.constant 80 : index
    %c0_50 = arith.constant 0 : index
    %69 = vector.load %arg9[%c80, %c0_50] : memref<144x4xbf16, #tpu.memory_space<vmem>>, vector<16x4xbf16>
    %cst_51 = arith.constant dense<0.000000e+00> : vector<256x4xf32>
    %70 = tpu.matmul %68, %69, %cst_51 {dimension_numbers = #tpu.dot_dimension_numbers<[1], [0], [0], [1], [0, 0, 1, 1], [], []>} : vector<256x16xbf16>, vector<16x4xbf16>, vector<256x4xf32> -> vector<256x4xf32>
    %71 = arith.addf %66, %70 : vector<256x4xf32>
    %c41 = arith.constant 41 : index
    %c0_52 = arith.constant 0 : index
    %72 = vector.load %arg27[%c41, %c0_52] : memref<304x16xf32, #tpu.memory_space<vmem>>, vector<256x16xf32>
    %73 = arith.truncf %72 : vector<256x16xf32> to vector<256x16xbf16>
    %c128 = arith.constant 128 : index
    %c0_53 = arith.constant 0 : index
    %74 = vector.load %arg9[%c128, %c0_53] : memref<144x4xbf16, #tpu.memory_space<vmem>>, vector<16x4xbf16>
    %cst_54 = arith.constant dense<0.000000e+00> : vector<256x4xf32>
    %75 = tpu.matmul %73, %74, %cst_54 {dimension_numbers = #tpu.dot_dimension_numbers<[1], [0], [0], [1], [0, 0, 1, 1], [], []>} : vector<256x16xbf16>, vector<16x4xbf16>, vector<256x4xf32> -> vector<256x4xf32>
    %76 = arith.addf %71, %75 : vector<256x4xf32>
    %77 = vector.broadcast %1 : vector<256x1xf32> to vector<256x4xf32>
    %78 = arith.mulf %76, %77 : vector<256x4xf32>
    %79 = arith.addf %62, %78 : vector<256x4xf32>
    %c0_55 = arith.constant 0 : index
    %c0_56 = arith.constant 0 : index
    %80 = vector.load %arg11[%c0_55, %c0_56] : memref<1x4xf32, #tpu.memory_space<vmem>>, vector<1x4xf32>
    %81 = vector.broadcast %80 : vector<1x4xf32> to vector<256x4xf32>
    %82 = arith.mulf %7, %81 : vector<256x4xf32>
    %c0_57 = arith.constant 0 : index
    %c0_58 = arith.constant 0 : index
    %83 = vector.load %arg13[%c0_57, %c0_58] : memref<1x4xf32, #tpu.memory_space<vmem>>, vector<1x4xf32>
    %84 = vector.broadcast %83 : vector<1x4xf32> to vector<256x4xf32>
    %85 = arith.addf %82, %84 : vector<256x4xf32>
    %cst_59 = arith.constant 0.000000e+00 : f32
    %86 = vector.broadcast %cst_59 : f32 to vector<256x4xf32>
    %87 = arith.maximumf %85, %86 : vector<256x4xf32>
    %88 = arith.truncf %87 : vector<256x4xf32> to vector<256x4xbf16>
    %c0_60 = arith.constant 0 : index
    %c0_61 = arith.constant 0 : index
    %89 = vector.load %arg15[%c0_60, %c0_61] : memref<4x16xbf16, #tpu.memory_space<vmem>>, vector<4x16xbf16>
    %cst_62 = arith.constant dense<0.000000e+00> : vector<256x16xf32>
    %90 = tpu.matmul %88, %89, %cst_62 {dimension_numbers = #tpu.dot_dimension_numbers<[1], [0], [0], [1], [0, 0, 1, 1], [], []>} : vector<256x4xbf16>, vector<4x16xbf16>, vector<256x16xf32> -> vector<256x16xf32>
    %c0_63 = arith.constant 0 : index
    %c0_64 = arith.constant 0 : index
    %91 = vector.load %arg12[%c0_63, %c0_64] : memref<1x4xf32, #tpu.memory_space<vmem>>, vector<1x4xf32>
    %92 = vector.broadcast %91 : vector<1x4xf32> to vector<256x4xf32>
    %93 = arith.mulf %79, %92 : vector<256x4xf32>
    %c0_65 = arith.constant 0 : index
    %c0_66 = arith.constant 0 : index
    %94 = vector.load %arg14[%c0_65, %c0_66] : memref<1x4xf32, #tpu.memory_space<vmem>>, vector<1x4xf32>
    %95 = vector.broadcast %94 : vector<1x4xf32> to vector<256x4xf32>
    %96 = arith.addf %93, %95 : vector<256x4xf32>
    %cst_67 = arith.constant 0.000000e+00 : f32
    %97 = vector.broadcast %cst_67 : f32 to vector<256x4xf32>
    %98 = arith.maximumf %96, %97 : vector<256x4xf32>
    %99 = arith.truncf %98 : vector<256x4xf32> to vector<256x4xbf16>
    %c0_68 = arith.constant 0 : index
    %c0_69 = arith.constant 0 : index
    %100 = vector.load %arg16[%c0_68, %c0_69] : memref<4x16xbf16, #tpu.memory_space<vmem>>, vector<4x16xbf16>
    %cst_70 = arith.constant dense<0.000000e+00> : vector<256x16xf32>
    %101 = tpu.matmul %99, %100, %cst_70 {dimension_numbers = #tpu.dot_dimension_numbers<[1], [0], [0], [1], [0, 0, 1, 1], [], []>} : vector<256x4xbf16>, vector<4x16xbf16>, vector<256x16xf32> -> vector<256x16xf32>
    %102 = arith.addf %90, %101 : vector<256x16xf32>
    %c0_71 = arith.constant 0 : index
    %c0_72 = arith.constant 0 : index
    %103 = vector.load %arg17[%c0_71, %c0_72] : memref<1x16xf32, #tpu.memory_space<vmem>>, vector<1x16xf32>
    %104 = vector.broadcast %103 : vector<1x16xf32> to vector<256x16xf32>
    %105 = arith.mulf %102, %104 : vector<256x16xf32>
    %c0_73 = arith.constant 0 : index
    %c0_74 = arith.constant 0 : index
    %106 = vector.load %arg18[%c0_73, %c0_74] : memref<1x16xf32, #tpu.memory_space<vmem>>, vector<1x16xf32>
    %107 = vector.broadcast %106 : vector<1x16xf32> to vector<256x16xf32>
    %108 = arith.addf %105, %107 : vector<256x16xf32>
    %cst_75 = arith.constant 0.000000e+00 : f32
    %109 = vector.broadcast %cst_75 : f32 to vector<256x16xf32>
    %110 = arith.maximumf %108, %109 : vector<256x16xf32>
    %c24_76 = arith.constant 24 : index
    %c0_77 = arith.constant 0 : index
    %111 = vector.load %arg27[%c24_76, %c0_77] : memref<304x16xf32, #tpu.memory_space<vmem>>, vector<256x16xf32>
    tpu.vector_store %arg27[%c24_76, %c0_77], %110 {strides = array<i32>} : memref<304x16xf32, #tpu.memory_space<vmem>>, vector<256x16xf32>,
    %c0_78 = arith.constant 0 : index
    %c0_79 = arith.constant 0 : index
    %112 = vector.load %arg20[%c0_78, %c0_79] : memref<1x4xf32, #tpu.memory_space<vmem>>, vector<1x4xf32>
    %113 = vector.shape_cast %112 : vector<1x4xf32> to vector<1x4xf32>
    %114 = vector.broadcast %113 : vector<1x4xf32> to vector<256x4xf32>
    %c7_80 = arith.constant 7 : index
    %c0_81 = arith.constant 0 : index
    %115 = vector.load %arg27[%c7_80, %c0_81] : memref<304x16xf32, #tpu.memory_space<vmem>>, vector<256x16xf32>
    %116 = arith.truncf %115 : vector<256x16xf32> to vector<256x16xbf16>
    %c0_82 = arith.constant 0 : index
    %c0_83 = arith.constant 0 : index
    %117 = vector.load %arg19[%c0_82, %c0_83] : memref<144x4xbf16, #tpu.memory_space<vmem>>, vector<16x4xbf16>
    %cst_84 = arith.constant dense<0.000000e+00> : vector<256x4xf32>
    %118 = tpu.matmul %116, %117, %cst_84 {dimension_numbers = #tpu.dot_dimension_numbers<[1], [0], [0], [1], [0, 0, 1, 1], [], []>} : vector<256x16xbf16>, vector<16x4xbf16>, vector<256x4xf32> -> vector<256x4xf32>
    %c23_85 = arith.constant 23 : index
    %c0_86 = arith.constant 0 : index
    %119 = vector.load %arg27[%c23_85, %c0_86] : memref<304x16xf32, #tpu.memory_space<vmem>>, vector<256x16xf32>
    %120 = arith.truncf %119 : vector<256x16xf32> to vector<256x16xbf16>
    %c48_87 = arith.constant 48 : index
    %c0_88 = arith.constant 0 : index
    %121 = vector.load %arg19[%c48_87, %c0_88] : memref<144x4xbf16, #tpu.memory_space<vmem>>, vector<16x4xbf16>
    %cst_89 = arith.constant dense<0.000000e+00> : vector<256x4xf32>
    %122 = tpu.matmul %120, %121, %cst_89 {dimension_numbers = #tpu.dot_dimension_numbers<[1], [0], [0], [1], [0, 0, 1, 1], [], []>} : vector<256x16xbf16>, vector<16x4xbf16>, vector<256x4xf32> -> vector<256x4xf32>
    %123 = arith.addf %118, %122 : vector<256x4xf32>
    %c39_90 = arith.constant 39 : index
    %c0_91 = arith.constant 0 : index
    %124 = vector.load %arg27[%c39_90, %c0_91] : memref<304x16xf32, #tpu.memory_space<vmem>>, vector<256x16xf32>
    %125 = arith.truncf %124 : vector<256x16xf32> to vector<256x16xbf16>
    %c96_92 = arith.constant 96 : index
    %c0_93 = arith.constant 0 : index
    %126 = vector.load %arg19[%c96_92, %c0_93] : memref<144x4xbf16, #tpu.memory_space<vmem>>, vector<16x4xbf16>
    %cst_94 = arith.constant dense<0.000000e+00> : vector<256x4xf32>
    %127 = tpu.matmul %125, %126, %cst_94 {dimension_numbers = #tpu.dot_dimension_numbers<[1], [0], [0], [1], [0, 0, 1, 1], [], []>} : vector<256x16xbf16>, vector<16x4xbf16>, vector<256x4xf32> -> vector<256x4xf32>
    %128 = arith.addf %123, %127 : vector<256x4xf32>
    %129 = vector.broadcast %0 : vector<256x1xf32> to vector<256x4xf32>
    %130 = arith.mulf %128, %129 : vector<256x4xf32>
    %131 = arith.addf %114, %130 : vector<256x4xf32>
    %c8_95 = arith.constant 8 : index
    %c0_96 = arith.constant 0 : index
    %132 = vector.load %arg27[%c8_95, %c0_96] : memref<304x16xf32, #tpu.memory_space<vmem>>, vector<256x16xf32>
    %133 = arith.truncf %132 : vector<256x16xf32> to vector<256x16xbf16>
    %c16_97 = arith.constant 16 : index
    %c0_98 = arith.constant 0 : index
    %134 = vector.load %arg19[%c16_97, %c0_98] : memref<144x4xbf16, #tpu.memory_space<vmem>>, vector<16x4xbf16>
    %cst_99 = arith.constant dense<0.000000e+00> : vector<256x4xf32>
    %135 = tpu.matmul %133, %134, %cst_99 {dimension_numbers = #tpu.dot_dimension_numbers<[1], [0], [0], [1], [0, 0, 1, 1], [], []>} : vector<256x16xbf16>, vector<16x4xbf16>, vector<256x4xf32> -> vector<256x4xf32>
    %c24_100 = arith.constant 24 : index
    %c0_101 = arith.constant 0 : index
    %136 = vector.load %arg27[%c24_100, %c0_101] : memref<304x16xf32, #tpu.memory_space<vmem>>, vector<256x16xf32>
    %137 = arith.truncf %136 : vector<256x16xf32> to vector<256x16xbf16>
    %c64_102 = arith.constant 64 : index
    %c0_103 = arith.constant 0 : index
    %138 = vector.load %arg19[%c64_102, %c0_103] : memref<144x4xbf16, #tpu.memory_space<vmem>>, vector<16x4xbf16>
    %cst_104 = arith.constant dense<0.000000e+00> : vector<256x4xf32>
    %139 = tpu.matmul %137, %138, %cst_104 {dimension_numbers = #tpu.dot_dimension_numbers<[1], [0], [0], [1], [0, 0, 1, 1], [], []>} : vector<256x16xbf16>, vector<16x4xbf16>, vector<256x4xf32> -> vector<256x4xf32>
    %140 = arith.addf %135, %139 : vector<256x4xf32>
    %c40_105 = arith.constant 40 : index
    %c0_106 = arith.constant 0 : index
    %141 = vector.load %arg27[%c40_105, %c0_106] : memref<304x16xf32, #tpu.memory_space<vmem>>, vector<256x16xf32>
    %142 = arith.truncf %141 : vector<256x16xf32> to vector<256x16xbf16>
    %c112_107 = arith.constant 112 : index
    %c0_108 = arith.constant 0 : index
    %143 = vector.load %arg19[%c112_107, %c0_108] : memref<144x4xbf16, #tpu.memory_space<vmem>>, vector<16x4xbf16>
    %cst_109 = arith.constant dense<0.000000e+00> : vector<256x4xf32>
    %144 = tpu.matmul %142, %143, %cst_109 {dimension_numbers = #tpu.dot_dimension_numbers<[1], [0], [0], [1], [0, 0, 1, 1], [], []>} : vector<256x16xbf16>, vector<16x4xbf16>, vector<256x4xf32> -> vector<256x4xf32>
    %145 = arith.addf %140, %144 : vector<256x4xf32>
    %146 = arith.addf %131, %145 : vector<256x4xf32>
    %c9_110 = arith.constant 9 : index
    %c0_111 = arith.constant 0 : index
    %147 = vector.load %arg27[%c9_110, %c0_111] : memref<304x16xf32, #tpu.memory_space<vmem>>, vector<256x16xf32>
    %148 = arith.truncf %147 : vector<256x16xf32> to vector<256x16xbf16>
    %c32_112 = arith.constant 32 : index
    %c0_113 = arith.constant 0 : index
    %149 = vector.load %arg19[%c32_112, %c0_113] : memref<144x4xbf16, #tpu.memory_space<vmem>>, vector<16x4xbf16>
    %cst_114 = arith.constant dense<0.000000e+00> : vector<256x4xf32>
    %150 = tpu.matmul %148, %149, %cst_114 {dimension_numbers = #tpu.dot_dimension_numbers<[1], [0], [0], [1], [0, 0, 1, 1], [], []>} : vector<256x16xbf16>, vector<16x4xbf16>, vector<256x4xf32> -> vector<256x4xf32>
    %c25_115 = arith.constant 25 : index
    %c0_116 = arith.constant 0 : index
    %151 = vector.load %arg27[%c25_115, %c0_116] : memref<304x16xf32, #tpu.memory_space<vmem>>, vector<256x16xf32>
    %152 = arith.truncf %151 : vector<256x16xf32> to vector<256x16xbf16>
    %c80_117 = arith.constant 80 : index
    %c0_118 = arith.constant 0 : index
    %153 = vector.load %arg19[%c80_117, %c0_118] : memref<144x4xbf16, #tpu.memory_space<vmem>>, vector<16x4xbf16>
    %cst_119 = arith.constant dense<0.000000e+00> : vector<256x4xf32>
    %154 = tpu.matmul %152, %153, %cst_119 {dimension_numbers = #tpu.dot_dimension_numbers<[1], [0], [0], [1], [0, 0, 1, 1], [], []>} : vector<256x16xbf16>, vector<16x4xbf16>, vector<256x4xf32> -> vector<256x4xf32>
    %155 = arith.addf %150, %154 : vector<256x4xf32>
    %c41_120 = arith.constant 41 : index
    %c0_121 = arith.constant 0 : index
    %156 = vector.load %arg27[%c41_120, %c0_121] : memref<304x16xf32, #tpu.memory_space<vmem>>, vector<256x16xf32>
    %157 = arith.truncf %156 : vector<256x16xf32> to vector<256x16xbf16>
    %c128_122 = arith.constant 128 : index
    %c0_123 = arith.constant 0 : index
    %158 = vector.load %arg19[%c128_122, %c0_123] : memref<144x4xbf16, #tpu.memory_space<vmem>>, vector<16x4xbf16>
    %cst_124 = arith.constant dense<0.000000e+00> : vector<256x4xf32>
    %159 = tpu.matmul %157, %158, %cst_124 {dimension_numbers = #tpu.dot_dimension_numbers<[1], [0], [0], [1], [0, 0, 1, 1], [], []>} : vector<256x16xbf16>, vector<16x4xbf16>, vector<256x4xf32> -> vector<256x4xf32>
    %160 = arith.addf %155, %159 : vector<256x4xf32>
    %161 = vector.broadcast %1 : vector<256x1xf32> to vector<256x4xf32>
    %162 = arith.mulf %160, %161 : vector<256x4xf32>
    %163 = arith.addf %146, %162 : vector<256x4xf32>
    %164 = arith.truncf %7 : vector<256x4xf32> to vector<256x4xbf16>
    %c0_125 = arith.constant 0 : index
    %c0_126 = arith.constant 0 : index
    %165 = vector.load %arg21[%c0_125, %c0_126] : memref<4x8xbf16, #tpu.memory_space<vmem>>, vector<4x8xbf16>
    %cst_127 = arith.constant dense<0.000000e+00> : vector<256x8xf32>
    %166 = tpu.matmul %164, %165, %cst_127 {dimension_numbers = #tpu.dot_dimension_numbers<[1], [0], [0], [1], [0, 0, 1, 1], [], []>} : vector<256x4xbf16>, vector<4x8xbf16>, vector<256x8xf32> -> vector<256x8xf32>
    %167 = arith.truncf %79 : vector<256x4xf32> to vector<256x4xbf16>
    %c0_128 = arith.constant 0 : index
    %c0_129 = arith.constant 0 : index
    %168 = vector.load %arg22[%c0_128, %c0_129] : memref<4x8xbf16, #tpu.memory_space<vmem>>, vector<4x8xbf16>
    %cst_130 = arith.constant dense<0.000000e+00> : vector<256x8xf32>
    %169 = tpu.matmul %167, %168, %cst_130 {dimension_numbers = #tpu.dot_dimension_numbers<[1], [0], [0], [1], [0, 0, 1, 1], [], []>} : vector<256x4xbf16>, vector<4x8xbf16>, vector<256x8xf32> -> vector<256x8xf32>
    %170 = arith.addf %166, %169 : vector<256x8xf32>
    %171 = arith.truncf %163 : vector<256x4xf32> to vector<256x4xbf16>
    %c0_131 = arith.constant 0 : index
    %c0_132 = arith.constant 0 : index
    %172 = vector.load %arg23[%c0_131, %c0_132] : memref<4x8xbf16, #tpu.memory_space<vmem>>, vector<4x8xbf16>
    %cst_133 = arith.constant dense<0.000000e+00> : vector<256x8xf32>
    %173 = tpu.matmul %171, %172, %cst_133 {dimension_numbers = #tpu.dot_dimension_numbers<[1], [0], [0], [1], [0, 0, 1, 1], [], []>} : vector<256x4xbf16>, vector<4x8xbf16>, vector<256x8xf32> -> vector<256x8xf32>
    %174 = arith.addf %170, %173 : vector<256x8xf32>
    %c0_134 = arith.constant 0 : index
    %c0_135 = arith.constant 0 : index
    %175 = vector.load %arg24[%c0_134, %c0_135] : memref<1x8xf32, #tpu.memory_space<vmem>>, vector<1x8xf32>
    %176 = vector.broadcast %175 : vector<1x8xf32> to vector<256x8xf32>
    %177 = arith.mulf %174, %176 : vector<256x8xf32>
    %c0_136 = arith.constant 0 : index
    %c0_137 = arith.constant 0 : index
    %178 = vector.load %arg25[%c0_136, %c0_137] : memref<1x8xf32, #tpu.memory_space<vmem>>, vector<1x8xf32>
    %179 = vector.broadcast %178 : vector<1x8xf32> to vector<256x8xf32>
    %180 = arith.addf %177, %179 : vector<256x8xf32>
    %cst_138 = arith.constant 0.000000e+00 : f32
    %181 = vector.broadcast %cst_138 : f32 to vector<256x8xf32>
    %182 = arith.maximumf %180, %181 : vector<256x8xf32>
    %c0_139 = arith.constant 0 : index
    %c0_140 = arith.constant 0 : index
    %c0_141 = arith.constant 0 : index
    %183 = vector.load %arg26[%c0_139, %c0_140, %c0_141] : memref<1x256x8xf32, #tpu.memory_space<vmem>>, vector<1x256x8xf32>
    %184 = vector.shape_cast %183 : vector<1x256x8xf32> to vector<256x8xf32>
    %185 = vector.shape_cast %182 : vector<256x8xf32> to vector<1x256x8xf32>
    tpu.vector_store %arg26[%c0_139, %c0_140, %c0_141], %185 {strides = array<i32>} : memref<1x256x8xf32, #tpu.memory_space<vmem>>, vector<1x256x8xf32>,
    return
  }
  func.func @transform_0(%arg0: i32) -> (i32, i32, i32) {
    %c0_i32 = arith.constant 0 : i32
    %c0_i32_0 = arith.constant 0 : i32
    %c0_i32_1 = arith.constant 0 : i32
    return %arg0, %c0_i32, %c0_i32_0 : i32, i32, i32
  }
  func.func @transform_1(%arg0: i32) -> (i32, i32) {
    %c0_i32 = arith.constant 0 : i32
    %c0_i32_0 = arith.constant 0 : i32
    %c0_i32_1 = arith.constant 0 : i32
    return %c0_i32, %c0_i32_0 : i32, i32
  }
  func.func @transform_2(%arg0: i32) -> (i32, i32) {
    %c0_i32 = arith.constant 0 : i32
    %c0_i32_0 = arith.constant 0 : i32
    %c0_i32_1 = arith.constant 0 : i32
    return %c0_i32, %c0_i32_0 : i32, i32
  }
  func.func @transform_3(%arg0: i32) -> (i32, i32) {
    %c0_i32 = arith.constant 0 : i32
    %c0_i32_0 = arith.constant 0 : i32
    %c0_i32_1 = arith.constant 0 : i32
    return %c0_i32, %c0_i32_0 : i32, i32
  }
  func.func @transform_4(%arg0: i32) -> (i32, i32) {
    %c0_i32 = arith.constant 0 : i32
    %c0_i32_0 = arith.constant 0 : i32
    %c0_i32_1 = arith.constant 0 : i32
    return %c0_i32, %c0_i32_0 : i32, i32
  }
  func.func @transform_5(%arg0: i32) -> (i32, i32) {
    %c0_i32 = arith.constant 0 : i32
    %c0_i32_0 = arith.constant 0 : i32
    %c0_i32_1 = arith.constant 0 : i32
    return %c0_i32, %c0_i32_0 : i32, i32
  }
  func.func @transform_6(%arg0: i32) -> (i32, i32) {
    %c0_i32 = arith.constant 0 : i32
    %c0_i32_0 = arith.constant 0 : i32
    %c0_i32_1 = arith.constant 0 : i32
    return %c0_i32, %c0_i32_0 : i32, i32
  }
  func.func @transform_7(%arg0: i32) -> (i32, i32) {
    %c0_i32 = arith.constant 0 : i32
    %c0_i32_0 = arith.constant 0 : i32
    %c0_i32_1 = arith.constant 0 : i32
    return %c0_i32, %c0_i32_0 : i32, i32
  }
  func.func @transform_8(%arg0: i32) -> (i32, i32) {
    %c0_i32 = arith.constant 0 : i32
    %c0_i32_0 = arith.constant 0 : i32
    %c0_i32_1 = arith.constant 0 : i32
    return %c0_i32, %c0_i32_0 : i32, i32
  }
  func.func @transform_9(%arg0: i32) -> (i32, i32) {
    %c0_i32 = arith.constant 0 : i32
    %c0_i32_0 = arith.constant 0 : i32
    %c0_i32_1 = arith.constant 0 : i32
    return %c0_i32, %c0_i32_0 : i32, i32
  }
  func.func @transform_10(%arg0: i32) -> (i32, i32) {
    %c0_i32 = arith.constant 0 : i32
    %c0_i32_0 = arith.constant 0 : i32
    %c0_i32_1 = arith.constant 0 : i32
    return %c0_i32, %c0_i32_0 : i32, i32
  }
  func.func @transform_11(%arg0: i32) -> (i32, i32) {
    %c0_i32 = arith.constant 0 : i32
    %c0_i32_0 = arith.constant 0 : i32
    %c0_i32_1 = arith.constant 0 : i32
    return %c0_i32, %c0_i32_0 : i32, i32
  }
  func.func @transform_12(%arg0: i32) -> (i32, i32) {
    %c0_i32 = arith.constant 0 : i32
    %c0_i32_0 = arith.constant 0 : i32
    %c0_i32_1 = arith.constant 0 : i32
    return %c0_i32, %c0_i32_0 : i32, i32
  }
  func.func @transform_13(%arg0: i32) -> (i32, i32) {
    %c0_i32 = arith.constant 0 : i32
    %c0_i32_0 = arith.constant 0 : i32
    %c0_i32_1 = arith.constant 0 : i32
    return %c0_i32, %c0_i32_0 : i32, i32
  }
  func.func @transform_14(%arg0: i32) -> (i32, i32) {
    %c0_i32 = arith.constant 0 : i32
    %c0_i32_0 = arith.constant 0 : i32
    %c0_i32_1 = arith.constant 0 : i32
    return %c0_i32, %c0_i32_0 : i32, i32
  }
  func.func @transform_15(%arg0: i32) -> (i32, i32) {
    %c0_i32 = arith.constant 0 : i32
    %c0_i32_0 = arith.constant 0 : i32
    %c0_i32_1 = arith.constant 0 : i32
    return %c0_i32, %c0_i32_0 : i32, i32
  }
  func.func @transform_16(%arg0: i32) -> (i32, i32) {
    %c0_i32 = arith.constant 0 : i32
    %c0_i32_0 = arith.constant 0 : i32
    %c0_i32_1 = arith.constant 0 : i32
    return %c0_i32, %c0_i32_0 : i32, i32
  }
  func.func @transform_17(%arg0: i32) -> (i32, i32) {
    %c0_i32 = arith.constant 0 : i32
    %c0_i32_0 = arith.constant 0 : i32
    %c0_i32_1 = arith.constant 0 : i32
    return %c0_i32, %c0_i32_0 : i32, i32
  }
  func.func @transform_18(%arg0: i32) -> (i32, i32) {
    %c0_i32 = arith.constant 0 : i32
    %c0_i32_0 = arith.constant 0 : i32
    %c0_i32_1 = arith.constant 0 : i32
    return %c0_i32, %c0_i32_0 : i32, i32
  }
  func.func @transform_19(%arg0: i32) -> (i32, i32) {
    %c0_i32 = arith.constant 0 : i32
    %c0_i32_0 = arith.constant 0 : i32
    %c0_i32_1 = arith.constant 0 : i32
    return %c0_i32, %c0_i32_0 : i32, i32
  }
  func.func @transform_20(%arg0: i32) -> (i32, i32) {
    %c0_i32 = arith.constant 0 : i32
    %c0_i32_0 = arith.constant 0 : i32
    %c0_i32_1 = arith.constant 0 : i32
    return %c0_i32, %c0_i32_0 : i32, i32
  }
  func.func @transform_21(%arg0: i32) -> (i32, i32) {
    %c0_i32 = arith.constant 0 : i32
    %c0_i32_0 = arith.constant 0 : i32
    %c0_i32_1 = arith.constant 0 : i32
    return %c0_i32, %c0_i32_0 : i32, i32
  }
  func.func @transform_22(%arg0: i32) -> (i32, i32) {
    %c0_i32 = arith.constant 0 : i32
    %c0_i32_0 = arith.constant 0 : i32
    %c0_i32_1 = arith.constant 0 : i32
    return %c0_i32, %c0_i32_0 : i32, i32
  }
  func.func @transform_23(%arg0: i32) -> (i32, i32) {
    %c0_i32 = arith.constant 0 : i32
    %c0_i32_0 = arith.constant 0 : i32
    %c0_i32_1 = arith.constant 0 : i32
    return %c0_i32, %c0_i32_0 : i32, i32
  }
  func.func @transform_24(%arg0: i32) -> (i32, i32) {
    %c0_i32 = arith.constant 0 : i32
    %c0_i32_0 = arith.constant 0 : i32
    %c0_i32_1 = arith.constant 0 : i32
    return %c0_i32, %c0_i32_0 : i32, i32
  }
  func.func @transform_25(%arg0: i32) -> (i32, i32, i32) {
    %c0_i32 = arith.constant 0 : i32
    %c0_i32_0 = arith.constant 0 : i32
    %c0_i32_1 = arith.constant 0 : i32
    return %arg0, %c0_i32, %c0_i32_0 : i32, i32, i32
  }
}

</mosaic_0001>

<llo_original>
// kernel: tpu_custom_call.1
$region0: #{tpu_custom_call.1}
  #allocation0 [shape = 'u32[]', space=smem, size = 0x4, offset = 0x4, fixed_abs, tag = 'smem constant byte address 0x4 - core index']
  #allocation1 [shape = 'u32[144,128]{1,0:T(1,128)}', space=vmem, size = 0x12000, scoped, tag = 'internal scratch']
  #allocation2 [shape = 'f32[304,16]{1,0:T(8,128)}', space=vmem, size = 0x26000, scoped, tag = 'scratch operand']
  %s0 = inlined_call_operand.vmem [shape: f32[2,256,4], index: 0, kind: input, shape index: {}]
  %s1 = inlined_call_operand.vmem [shape: f32[256,1], index: 1, kind: input, shape index: {}]
  %s2 = inlined_call_operand.vmem [shape: f32[256,1], index: 2, kind: input, shape index: {}]
  %s3 = inlined_call_operand.vmem [shape: f32[1,4], index: 3, kind: input, shape index: {}]
  %s4 = inlined_call_operand.vmem [shape: f32[1,4], index: 4, kind: input, shape index: {}]
  %s5 = inlined_call_operand.vmem [shape: bf16[4,16], index: 5, kind: input, shape index: {}]
  %s6 = inlined_call_operand.vmem [shape: f32[1,16], index: 6, kind: input, shape index: {}]
  %s7 = inlined_call_operand.vmem [shape: f32[1,16], index: 7, kind: input, shape index: {}]
  %s8 = inlined_call_operand.vmem [shape: bf16[144,4], index: 8, kind: input, shape index: {}]
  %s9 = inlined_call_operand.vmem [shape: f32[1,4], index: 9, kind: input, shape index: {}]
  %s10 = inlined_call_operand.vmem [shape: f32[1,4], index: 10, kind: input, shape index: {}]
  %s11 = inlined_call_operand.vmem [shape: f32[1,4], index: 11, kind: input, shape index: {}]
  %s12 = inlined_call_operand.vmem [shape: f32[1,4], index: 12, kind: input, shape index: {}]
  %s13 = inlined_call_operand.vmem [shape: f32[1,4], index: 13, kind: input, shape index: {}]
  %s14 = inlined_call_operand.vmem [shape: bf16[4,16], index: 14, kind: input, shape index: {}]
  %s15 = inlined_call_operand.vmem [shape: bf16[4,16], index: 15, kind: input, shape index: {}]
  %s16 = inlined_call_operand.vmem [shape: f32[1,16], index: 16, kind: input, shape index: {}]
  %s17 = inlined_call_operand.vmem [shape: f32[1,16], index: 17, kind: input, shape index: {}]
  %s18 = inlined_call_operand.vmem [shape: bf16[144,4], index: 18, kind: input, shape index: {}]
  %s19 = inlined_call_operand.vmem [shape: f32[1,4], index: 19, kind: input, shape index: {}]
  %s20 = inlined_call_operand.vmem [shape: bf16[4,8], index: 20, kind: input, shape index: {}]
  %s21 = inlined_call_operand.vmem [shape: bf16[4,8], index: 21, kind: input, shape index: {}]
  %s22 = inlined_call_operand.vmem [shape: bf16[4,8], index: 22, kind: input, shape index: {}]
  %s23 = inlined_call_operand.vmem [shape: f32[1,8], index: 23, kind: input, shape index: {}]
  %s24 = inlined_call_operand.vmem [shape: f32[1,8], index: 24, kind: input, shape index: {}]
  %s25 = inlined_call_operand.vmem [shape: f32[2,256,8], index: 25, kind: output, shape index: {}]
  %s26 = sld [smem:[#allocation0]]
  $region133: #{tpu_custom_call.1} parent=0
    _
  %s28 = ssub.s32 1, %s26
  %s29 = scalar_select 0, %s28, %s26
  loop: start=0, step=1, limit=4
  $region2: #{tpu_custom_call.1} parent=0 // loop_pre_header
    _
  $region3: #{tpu_custom_call.1} parent=0 // loop_header
    %s31 = sphi 0, %s35
    %p32 = scmp.ge.s32.totalorder %s31, 4
    %s41 = sphi 0, %s43
    %s44 = sphi 0, %s41
    %s45 = sphi 0, %s44
    %s61 = sphi 0, %s45
    %s65 = sphi 0, %s65
    %s67 = sphi 0, %s65
    %s68 = sphi 0, %s67
    %s82 = sphi 0, %s68
    %s86 = sphi 0, %s86
    %s88 = sphi 0, %s86
    %s89 = sphi 0, %s88
    %s103 = sphi 0, %s89
    %s107 = sphi 0, %s107
    %s109 = sphi 0, %s107
    %s110 = sphi 0, %s109
    %s124 = sphi 0, %s110
    %s128 = sphi 0, %s128
    %s130 = sphi 0, %s128
    %s131 = sphi 0, %s130
    %s145 = sphi 0, %s131
    %s149 = sphi 0, %s149
    %s151 = sphi 0, %s149
    %s152 = sphi 0, %s151
    %s166 = sphi 0, %s152
    %s170 = sphi 0, %s170
    %s172 = sphi 0, %s170
    %s173 = sphi 0, %s172
    %s187 = sphi 0, %s173
    %s191 = sphi 0, %s191
    %s193 = sphi 0, %s191
    %s194 = sphi 0, %s193
    %s208 = sphi 0, %s194
    %s212 = sphi 0, %s212
    %s214 = sphi 0, %s212
    %s215 = sphi 0, %s214
    %s229 = sphi 0, %s215
    %s233 = sphi 0, %s233
    %s235 = sphi 0, %s233
    %s236 = sphi 0, %s235
    %s250 = sphi 0, %s236
    %s254 = sphi 0, %s254
    %s256 = sphi 0, %s254
    %s257 = sphi 0, %s256
    %s271 = sphi 0, %s257
    %s275 = sphi 0, %s275
    %s277 = sphi 0, %s275
    %s278 = sphi 0, %s277
    %s292 = sphi 0, %s278
    %s296 = sphi 0, %s296
    %s298 = sphi 0, %s296
    %s299 = sphi 0, %s298
    %s313 = sphi 0, %s299
    %s317 = sphi 0, %s317
    %s319 = sphi 0, %s317
    %s320 = sphi 0, %s319
    %s334 = sphi 0, %s320
    %s338 = sphi 0, %s338
    %s340 = sphi 0, %s338
    %s341 = sphi 0, %s340
    %s355 = sphi 0, %s341
    %s359 = sphi 0, %s359
    %s361 = sphi 0, %s359
    %s362 = sphi 0, %s361
    %s376 = sphi 0, %s362
    %s380 = sphi 0, %s380
    %s382 = sphi 0, %s380
    %s383 = sphi 0, %s382
    %s397 = sphi 0, %s383
    %s401 = sphi 0, %s401
    %s403 = sphi 0, %s401
    %s404 = sphi 0, %s403
    %s418 = sphi 0, %s404
    %s422 = sphi 0, %s422
    %s424 = sphi 0, %s422
    %s425 = sphi 0, %s424
    %s439 = sphi 0, %s425
    %s443 = sphi 0, %s443
    %s445 = sphi 0, %s443
    %s446 = sphi 0, %s445
    %s460 = sphi 0, %s446
    %s464 = sphi 0, %s464
    %s466 = sphi 0, %s464
    %s467 = sphi 0, %s466
    %s481 = sphi 0, %s467
    %s485 = sphi 0, %s485
    %s487 = sphi 0, %s485
    %s488 = sphi 0, %s487
    %s502 = sphi 0, %s488
    %s506 = sphi 0, %s506
    %s508 = sphi 0, %s506
    %s509 = sphi 0, %s508
    %s523 = sphi 0, %s509
    %s527 = sphi 0, %s527
    %s529 = sphi 0, %s527
    %s530 = sphi 0, %s529
    %s544 = sphi 0, %s530
    %s548 = sphi 0, %s548
    %s550 = sphi 0, %s548
    %s551 = sphi 0, %s550
    %s565 = sphi 0, %s551
    %s571 = sphi 0, %s573
    %s574 = sphi 0, %s571
    %s575 = sphi 0, %s574
    %s591 = sphi 0, %s575
  $region4: #{tpu_custom_call.1} parent=0 // loop_header_branch
    %34 = sbr.rel (%p32) target = $region8
  $region5: #{tpu_custom_call.1} parent=0 // loop_body
    %s36 = ssub.s32 %s31, 1
    %s37 = ssub.s32 %s31, 2
    %s38 = sadd.s32 %s31, 1
    %s39 = ssub.s32 %s31, %s38
    %p40 = scmp.eq.s32.totalorder %s39, 0
    %s42 = sadd.s32 %s41, 1
    %s43 = scalar_select %p40, %s41, %s42
    %p46 = pneg %p40
    %p47 = scmp.eq.s32.totalorder %s31, 1
    %p48 = por %p46, %p47
    %p49 = scmp.ne.s32.totalorder %s41, %s44
    %p50 = scmp.eq.s32.totalorder %s31, 0
    %p51 = por %p49, %p50
    %p52 = scmp.ne.s32.totalorder %s41, %s44
    %p53 = scmp.eq.s32.totalorder %s36, 1
    %p54 = por %p52, %p53
    %p55 = scmp.ne.s32.totalorder %s44, %s45
    %p56 = scmp.eq.s32.totalorder %s36, 0
    %p57 = por %p55, %p56
    %p58 = scmp.ne.s32.totalorder %s44, %s45
    %p59 = scmp.eq.s32.totalorder %s37, 1
    %p60 = por %p58, %p59
    %p62 = scmp.ne.s32.totalorder %s45, %s61
    %p63 = scmp.eq.s32.totalorder %s37, 0
    %p64 = por %p62, %p63
    %s66 = sadd.s32 %s65, 1
    %p69 = scmp.eq.s32.totalorder %s31, 1
    %p70 = scmp.ne.s32.totalorder %s65, %s67
    %p71 = scmp.eq.s32.totalorder %s31, 0
    %p72 = por %p70, %p71
    %p73 = scmp.ne.s32.totalorder %s65, %s67
    %p74 = scmp.eq.s32.totalorder %s36, 1
    %p75 = por %p73, %p74
    %p76 = scmp.ne.s32.totalorder %s67, %s68
    %p77 = scmp.eq.s32.totalorder %s36, 0
    %p78 = por %p76, %p77
    %p79 = scmp.ne.s32.totalorder %s67, %s68
    %p80 = scmp.eq.s32.totalorder %s37, 1
    %p81 = por %p79, %p80
    %p83 = scmp.ne.s32.totalorder %s68, %s82
    %p84 = scmp.eq.s32.totalorder %s37, 0
    %p85 = por %p83, %p84
    %s87 = sadd.s32 %s86, 1
    %p90 = scmp.eq.s32.totalorder %s31, 1
    %p91 = scmp.ne.s32.totalorder %s86, %s88
    %p92 = scmp.eq.s32.totalorder %s31, 0
    %p93 = por %p91, %p92
    %p94 = scmp.ne.s32.totalorder %s86, %s88
    %p95 = scmp.eq.s32.totalorder %s36, 1
    %p96 = por %p94, %p95
    %p97 = scmp.ne.s32.totalorder %s88, %s89
    %p98 = scmp.eq.s32.totalorder %s36, 0
    %p99 = por %p97, %p98
    %p100 = scmp.ne.s32.totalorder %s88, %s89
    %p101 = scmp.eq.s32.totalorder %s37, 1
    %p102 = por %p100, %p101
    %p104 = scmp.ne.s32.totalorder %s89, %s103
    %p105 = scmp.eq.s32.totalorder %s37, 0
    %p106 = por %p104, %p105
    %s108 = sadd.s32 %s107, 1
    %p111 = scmp.eq.s32.totalorder %s31, 1
    %p112 = scmp.ne.s32.totalorder %s107, %s109
    %p113 = scmp.eq.s32.totalorder %s31, 0
    %p114 = por %p112, %p113
    %p115 = scmp.ne.s32.totalorder %s107, %s109
    %p116 = scmp.eq.s32.totalorder %s36, 1
    %p117 = por %p115, %p116
    %p118 = scmp.ne.s32.totalorder %s109, %s110
    %p119 = scmp.eq.s32.totalorder %s36, 0
    %p120 = por %p118, %p119
    %p121 = scmp.ne.s32.totalorder %s109, %s110
    %p122 = scmp.eq.s32.totalorder %s37, 1
    %p123 = por %p121, %p122
    %p125 = scmp.ne.s32.totalorder %s110, %s124
    %p126 = scmp.eq.s32.totalorder %s37, 0
    %p127 = por %p125, %p126
    %s129 = sadd.s32 %s128, 1
    %p132 = scmp.eq.s32.totalorder %s31, 1
    %p133 = scmp.ne.s32.totalorder %s128, %s130
    %p134 = scmp.eq.s32.totalorder %s31, 0
    %p135 = por %p133, %p134
    %p136 = scmp.ne.s32.totalorder %s128, %s130
    %p137 = scmp.eq.s32.totalorder %s36, 1
    %p138 = por %p136, %p137
    %p139 = scmp.ne.s32.totalorder %s130, %s131
    %p140 = scmp.eq.s32.totalorder %s36, 0
    %p141 = por %p139, %p140
    %p142 = scmp.ne.s32.totalorder %s130, %s131
    %p143 = scmp.eq.s32.totalorder %s37, 1
    %p144 = por %p142, %p143
    %p146 = scmp.ne.s32.totalorder %s131, %s145
    %p147 = scmp.eq.s32.totalorder %s37, 0
    %p148 = por %p146, %p147
    %s150 = sadd.s32 %s149, 1
    %p153 = scmp.eq.s32.totalorder %s31, 1
    %p154 = scmp.ne.s32.totalorder %s149, %s151
    %p155 = scmp.eq.s32.totalorder %s31, 0
    %p156 = por %p154, %p155
    %p157 = scmp.ne.s32.totalorder %s149, %s151
    %p158 = scmp.eq.s32.totalorder %s36, 1
    %p159 = por %p157, %p158
    %p160 = scmp.ne.s32.totalorder %s151, %s152
    %p161 = scmp.eq.s32.totalorder %s36, 0
    %p162 = por %p160, %p161
    %p163 = scmp.ne.s32.totalorder %s151, %s152
    %p164 = scmp.eq.s32.totalorder %s37, 1
    %p165 = por %p163, %p164
    %p167 = scmp.ne.s32.totalorder %s152, %s166
    %p168 = scmp.eq.s32.totalorder %s37, 0
    %p169 = por %p167, %p168
    %s171 = sadd.s32 %s170, 1
    %p174 = scmp.eq.s32.totalorder %s31, 1
    %p175 = scmp.ne.s32.totalorder %s170, %s172
    %p176 = scmp.eq.s32.totalorder %s31, 0
    %p177 = por %p175, %p176
    %p178 = scmp.ne.s32.totalorder %s170, %s172
    %p179 = scmp.eq.s32.totalorder %s36, 1
    %p180 = por %p178, %p179
    %p181 = scmp.ne.s32.totalorder %s172, %s173
    %p182 = scmp.eq.s32.totalorder %s36, 0
    %p183 = por %p181, %p182
    %p184 = scmp.ne.s32.totalorder %s172, %s173
    %p185 = scmp.eq.s32.totalorder %s37, 1
    %p186 = por %p184, %p185
    %p188 = scmp.ne.s32.totalorder %s173, %s187
    %p189 = scmp.eq.s32.totalorder %s37, 0
    %p190 = por %p188, %p189
    %s192 = sadd.s32 %s191, 1
    %p195 = scmp.eq.s32.totalorder %s31, 1
    %p196 = scmp.ne.s32.totalorder %s191, %s193
    %p197 = scmp.eq.s32.totalorder %s31, 0
    %p198 = por %p196, %p197
    %p199 = scmp.ne.s32.totalorder %s191, %s193
    %p200 = scmp.eq.s32.totalorder %s36, 1
    %p201 = por %p199, %p200
    %p202 = scmp.ne.s32.totalorder %s193, %s194
    %p203 = scmp.eq.s32.totalorder %s36, 0
    %p204 = por %p202, %p203
    %p205 = scmp.ne.s32.totalorder %s193, %s194
    %p206 = scmp.eq.s32.totalorder %s37, 1
    %p207 = por %p205, %p206
    %p209 = scmp.ne.s32.totalorder %s194, %s208
    %p210 = scmp.eq.s32.totalorder %s37, 0
    %p211 = por %p209, %p210
    %s213 = sadd.s32 %s212, 1
    %p216 = scmp.eq.s32.totalorder %s31, 1
    %p217 = scmp.ne.s32.totalorder %s212, %s214
    %p218 = scmp.eq.s32.totalorder %s31, 0
    %p219 = por %p217, %p218
    %p220 = scmp.ne.s32.totalorder %s212, %s214
    %p221 = scmp.eq.s32.totalorder %s36, 1
    %p222 = por %p220, %p221
    %p223 = scmp.ne.s32.totalorder %s214, %s215
    %p224 = scmp.eq.s32.totalorder %s36, 0
    %p225 = por %p223, %p224
    %p226 = scmp.ne.s32.totalorder %s214, %s215
    %p227 = scmp.eq.s32.totalorder %s37, 1
    %p228 = por %p226, %p227
    %p230 = scmp.ne.s32.totalorder %s215, %s229
    %p231 = scmp.eq.s32.totalorder %s37, 0
    %p232 = por %p230, %p231
    %s234 = sadd.s32 %s233, 1
    %p237 = scmp.eq.s32.totalorder %s31, 1
    %p238 = scmp.ne.s32.totalorder %s233, %s235
    %p239 = scmp.eq.s32.totalorder %s31, 0
    %p240 = por %p238, %p239
    %p241 = scmp.ne.s32.totalorder %s233, %s235
    %p242 = scmp.eq.s32.totalorder %s36, 1
    %p243 = por %p241, %p242
    %p244 = scmp.ne.s32.totalorder %s235, %s236
    %p245 = scmp.eq.s32.totalorder %s36, 0
    %p246 = por %p244, %p245
    %p247 = scmp.ne.s32.totalorder %s235, %s236
    %p248 = scmp.eq.s32.totalorder %s37, 1
    %p249 = por %p247, %p248
    %p251 = scmp.ne.s32.totalorder %s236, %s250
    %p252 = scmp.eq.s32.totalorder %s37, 0
    %p253 = por %p251, %p252
    %s255 = sadd.s32 %s254, 1
    %p258 = scmp.eq.s32.totalorder %s31, 1
    %p259 = scmp.ne.s32.totalorder %s254, %s256
    %p260 = scmp.eq.s32.totalorder %s31, 0
    %p261 = por %p259, %p260
    %p262 = scmp.ne.s32.totalorder %s254, %s256
    %p263 = scmp.eq.s32.totalorder %s36, 1
    %p264 = por %p262, %p263
    %p265 = scmp.ne.s32.totalorder %s256, %s257
    %p266 = scmp.eq.s32.totalorder %s36, 0
    %p267 = por %p265, %p266
    %p268 = scmp.ne.s32.totalorder %s256, %s257
    %p269 = scmp.eq.s32.totalorder %s37, 1
    %p270 = por %p268, %p269
    %p272 = scmp.ne.s32.totalorder %s257, %s271
    %p273 = scmp.eq.s32.totalorder %s37, 0
    %p274 = por %p272, %p273
    %s276 = sadd.s32 %s275, 1
    %p279 = scmp.eq.s32.totalorder %s31, 1
    %p280 = scmp.ne.s32.totalorder %s275, %s277
    %p281 = scmp.eq.s32.totalorder %s31, 0
    %p282 = por %p280, %p281
    %p283 = scmp.ne.s32.totalorder %s275, %s277
    %p284 = scmp.eq.s32.totalorder %s36, 1
    %p285 = por %p283, %p284
    %p286 = scmp.ne.s32.totalorder %s277, %s278
    %p287 = scmp.eq.s32.totalorder %s36, 0
    %p288 = por %p286, %p287
    %p289 = scmp.ne.s32.totalorder %s277, %s278
    %p290 = scmp.eq.s32.totalorder %s37, 1
    %p291 = por %p289, %p290
    %p293 = scmp.ne.s32.totalorder %s278, %s292
    %p294 = scmp.eq.s32.totalorder %s37, 0
    %p295 = por %p293, %p294
    %s297 = sadd.s32 %s296, 1
    %p300 = scmp.eq.s32.totalorder %s31, 1
    %p301 = scmp.ne.s32.totalorder %s296, %s298
    %p302 = scmp.eq.s32.totalorder %s31, 0
    %p303 = por %p301, %p302
    %p304 = scmp.ne.s32.totalorder %s296, %s298
    %p305 = scmp.eq.s32.totalorder %s36, 1
    %p306 = por %p304, %p305
    %p307 = scmp.ne.s32.totalorder %s298, %s299
    %p308 = scmp.eq.s32.totalorder %s36, 0
    %p309 = por %p307, %p308
    %p310 = scmp.ne.s32.totalorder %s298, %s299
    %p311 = scmp.eq.s32.totalorder %s37, 1
    %p312 = por %p310, %p311
    %p314 = scmp.ne.s32.totalorder %s299, %s313
    %p315 = scmp.eq.s32.totalorder %s37, 0
    %p316 = por %p314, %p315
    %s318 = sadd.s32 %s317, 1
    %p321 = scmp.eq.s32.totalorder %s31, 1
    %p322 = scmp.ne.s32.totalorder %s317, %s319
    %p323 = scmp.eq.s32.totalorder %s31, 0
    %p324 = por %p322, %p323
    %p325 = scmp.ne.s32.totalorder %s317, %s319
    %p326 = scmp.eq.s32.totalorder %s36, 1
    %p327 = por %p325, %p326
    %p328 = scmp.ne.s32.totalorder %s319, %s320
    %p329 = scmp.eq.s32.totalorder %s36, 0
    %p330 = por %p328, %p329
    %p331 = scmp.ne.s32.totalorder %s319, %s320
    %p332 = scmp.eq.s32.totalorder %s37, 1
    %p333 = por %p331, %p332
    %p335 = scmp.ne.s32.totalorder %s320, %s334
    %p336 = scmp.eq.s32.totalorder %s37, 0
    %p337 = por %p335, %p336
    %s339 = sadd.s32 %s338, 1
    %p342 = scmp.eq.s32.totalorder %s31, 1
    %p343 = scmp.ne.s32.totalorder %s338, %s340
    %p344 = scmp.eq.s32.totalorder %s31, 0
    %p345 = por %p343, %p344
    %p346 = scmp.ne.s32.totalorder %s338, %s340
    %p347 = scmp.eq.s32.totalorder %s36, 1
    %p348 = por %p346, %p347
    %p349 = scmp.ne.s32.totalorder %s340, %s341
    %p350 = scmp.eq.s32.totalorder %s36, 0
    %p351 = por %p349, %p350
    %p352 = scmp.ne.s32.totalorder %s340, %s341
    %p353 = scmp.eq.s32.totalorder %s37, 1
    %p354 = por %p352, %p353
    %p356 = scmp.ne.s32.totalorder %s341, %s355
    %p357 = scmp.eq.s32.totalorder %s37, 0
    %p358 = por %p356, %p357
    %s360 = sadd.s32 %s359, 1
    %p363 = scmp.eq.s32.totalorder %s31, 1
    %p364 = scmp.ne.s32.totalorder %s359, %s361
    %p365 = scmp.eq.s32.totalorder %s31, 0
    %p366 = por %p364, %p365
    %p367 = scmp.ne.s32.totalorder %s359, %s361
    %p368 = scmp.eq.s32.totalorder %s36, 1
    %p369 = por %p367, %p368
    %p370 = scmp.ne.s32.totalorder %s361, %s362
    %p371 = scmp.eq.s32.totalorder %s36, 0
    %p372 = por %p370, %p371
    %p373 = scmp.ne.s32.totalorder %s361, %s362
    %p374 = scmp.eq.s32.totalorder %s37, 1
    %p375 = por %p373, %p374
    %p377 = scmp.ne.s32.totalorder %s362, %s376
    %p378 = scmp.eq.s32.totalorder %s37, 0
    %p379 = por %p377, %p378
    %s381 = sadd.s32 %s380, 1
    %p384 = scmp.eq.s32.totalorder %s31, 1
    %p385 = scmp.ne.s32.totalorder %s380, %s382
    %p386 = scmp.eq.s32.totalorder %s31, 0
    %p387 = por %p385, %p386
    %p388 = scmp.ne.s32.totalorder %s380, %s382
    %p389 = scmp.eq.s32.totalorder %s36, 1
    %p390 = por %p388, %p389
    %p391 = scmp.ne.s32.totalorder %s382, %s383
    %p392 = scmp.eq.s32.totalorder %s36, 0
    %p393 = por %p391, %p392
    %p394 = scmp.ne.s32.totalorder %s382, %s383
    %p395 = scmp.eq.s32.totalorder %s37, 1
    %p396 = por %p394, %p395
    %p398 = scmp.ne.s32.totalorder %s383, %s397
    %p399 = scmp.eq.s32.totalorder %s37, 0
    %p400 = por %p398, %p399
    %s402 = sadd.s32 %s401, 1
    %p405 = scmp.eq.s32.totalorder %s31, 1
    %p406 = scmp.ne.s32.totalorder %s401, %s403
    %p407 = scmp.eq.s32.totalorder %s31, 0
    %p408 = por %p406, %p407
    %p409 = scmp.ne.s32.totalorder %s401, %s403
    %p410 = scmp.eq.s32.totalorder %s36, 1
    %p411 = por %p409, %p410
    %p412 = scmp.ne.s32.totalorder %s403, %s404
    %p413 = scmp.eq.s32.totalorder %s36, 0
    %p414 = por %p412, %p413
    %p415 = scmp.ne.s32.totalorder %s403, %s404
    %p416 = scmp.eq.s32.totalorder %s37, 1
    %p417 = por %p415, %p416
    %p419 = scmp.ne.s32.totalorder %s404, %s418
    %p420 = scmp.eq.s32.totalorder %s37, 0
    %p421 = por %p419, %p420
    %s423 = sadd.s32 %s422, 1
    %p426 = scmp.eq.s32.totalorder %s31, 1
    %p427 = scmp.ne.s32.totalorder %s422, %s424
    %p428 = scmp.eq.s32.totalorder %s31, 0
    %p429 = por %p427, %p428
    %p430 = scmp.ne.s32.totalorder %s422, %s424
    %p431 = scmp.eq.s32.totalorder %s36, 1
    %p432 = por %p430, %p431
    %p433 = scmp.ne.s32.totalorder %s424, %s425
    %p434 = scmp.eq.s32.totalorder %s36, 0
    %p435 = por %p433, %p434
    %p436 = scmp.ne.s32.totalorder %s424, %s425
    %p437 = scmp.eq.s32.totalorder %s37, 1
    %p438 = por %p436, %p437
    %p440 = scmp.ne.s32.totalorder %s425, %s439
    %p441 = scmp.eq.s32.totalorder %s37, 0
    %p442 = por %p440, %p441
    %s444 = sadd.s32 %s443, 1
    %p447 = scmp.eq.s32.totalorder %s31, 1
    %p448 = scmp.ne.s32.totalorder %s443, %s445
    %p449 = scmp.eq.s32.totalorder %s31, 0
    %p450 = por %p448, %p449
    %p451 = scmp.ne.s32.totalorder %s443, %s445
    %p452 = scmp.eq.s32.totalorder %s36, 1
    %p453 = por %p451, %p452
    %p454 = scmp.ne.s32.totalorder %s445, %s446
    %p455 = scmp.eq.s32.totalorder %s36, 0
    %p456 = por %p454, %p455
    %p457 = scmp.ne.s32.totalorder %s445, %s446
    %p458 = scmp.eq.s32.totalorder %s37, 1
    %p459 = por %p457, %p458
    %p461 = scmp.ne.s32.totalorder %s446, %s460
    %p462 = scmp.eq.s32.totalorder %s37, 0
    %p463 = por %p461, %p462
    %s465 = sadd.s32 %s464, 1
    %p468 = scmp.eq.s32.totalorder %s31, 1
    %p469 = scmp.ne.s32.totalorder %s464, %s466
    %p470 = scmp.eq.s32.totalorder %s31, 0
    %p471 = por %p469, %p470
    %p472 = scmp.ne.s32.totalorder %s464, %s466
    %p473 = scmp.eq.s32.totalorder %s36, 1
    %p474 = por %p472, %p473
    %p475 = scmp.ne.s32.totalorder %s466, %s467
    %p476 = scmp.eq.s32.totalorder %s36, 0
    %p477 = por %p475, %p476
    %p478 = scmp.ne.s32.totalorder %s466, %s467
    %p479 = scmp.eq.s32.totalorder %s37, 1
    %p480 = por %p478, %p479
    %p482 = scmp.ne.s32.totalorder %s467, %s481
    %p483 = scmp.eq.s32.totalorder %s37, 0
    %p484 = por %p482, %p483
    %s486 = sadd.s32 %s485, 1
    %p489 = scmp.eq.s32.totalorder %s31, 1
    %p490 = scmp.ne.s32.totalorder %s485, %s487
    %p491 = scmp.eq.s32.totalorder %s31, 0
    %p492 = por %p490, %p491
    %p493 = scmp.ne.s32.totalorder %s485, %s487
    %p494 = scmp.eq.s32.totalorder %s36, 1
    %p495 = por %p493, %p494
    %p496 = scmp.ne.s32.totalorder %s487, %s488
    %p497 = scmp.eq.s32.totalorder %s36, 0
    %p498 = por %p496, %p497
    %p499 = scmp.ne.s32.totalorder %s487, %s488
    %p500 = scmp.eq.s32.totalorder %s37, 1
    %p501 = por %p499, %p500
    %p503 = scmp.ne.s32.totalorder %s488, %s502
    %p504 = scmp.eq.s32.totalorder %s37, 0
    %p505 = por %p503, %p504
    %s507 = sadd.s32 %s506, 1
    %p510 = scmp.eq.s32.totalorder %s31, 1
    %p511 = scmp.ne.s32.totalorder %s506, %s508
    %p512 = scmp.eq.s32.totalorder %s31, 0
    %p513 = por %p511, %p512
    %p514 = scmp.ne.s32.totalorder %s506, %s508
    %p515 = scmp.eq.s32.totalorder %s36, 1
    %p516 = por %p514, %p515
    %p517 = scmp.ne.s32.totalorder %s508, %s509
    %p518 = scmp.eq.s32.totalorder %s36, 0
    %p519 = por %p517, %p518
    %p520 = scmp.ne.s32.totalorder %s508, %s509
    %p521 = scmp.eq.s32.totalorder %s37, 1
    %p522 = por %p520, %p521
    %p524 = scmp.ne.s32.totalorder %s509, %s523
    %p525 = scmp.eq.s32.totalorder %s37, 0
    %p526 = por %p524, %p525
    %s528 = sadd.s32 %s527, 1
    %p531 = scmp.eq.s32.totalorder %s31, 1
    %p532 = scmp.ne.s32.totalorder %s527, %s529
    %p533 = scmp.eq.s32.totalorder %s31, 0
    %p534 = por %p532, %p533
    %p535 = scmp.ne.s32.totalorder %s527, %s529
    %p536 = scmp.eq.s32.totalorder %s36, 1
    %p537 = por %p535, %p536
    %p538 = scmp.ne.s32.totalorder %s529, %s530
    %p539 = scmp.eq.s32.totalorder %s36, 0
    %p540 = por %p538, %p539
    %p541 = scmp.ne.s32.totalorder %s529, %s530
    %p542 = scmp.eq.s32.totalorder %s37, 1
    %p543 = por %p541, %p542
    %p545 = scmp.ne.s32.totalorder %s530, %s544
    %p546 = scmp.eq.s32.totalorder %s37, 0
    %p547 = por %p545, %p546
    %s549 = sadd.s32 %s548, 1
    %p552 = scmp.eq.s32.totalorder %s31, 1
    %p553 = scmp.ne.s32.totalorder %s548, %s550
    %p554 = scmp.eq.s32.totalorder %s31, 0
    %p555 = por %p553, %p554
    %p556 = scmp.ne.s32.totalorder %s548, %s550
    %p557 = scmp.eq.s32.totalorder %s36, 1
    %p558 = por %p556, %p557
    %p559 = scmp.ne.s32.totalorder %s550, %s551
    %p560 = scmp.eq.s32.totalorder %s36, 0
    %p561 = por %p559, %p560
    %p562 = scmp.ne.s32.totalorder %s550, %s551
    %p563 = scmp.eq.s32.totalorder %s37, 1
    %p564 = por %p562, %p563
    %p566 = scmp.ne.s32.totalorder %s551, %s565
    %p567 = scmp.eq.s32.totalorder %s37, 0
    %p568 = por %p566, %p567
    %s569 = ssub.s32 %s31, %s38
    %p570 = scmp.eq.s32.totalorder %s569, 0
    %s572 = sadd.s32 %s571, 1
    %s573 = scalar_select %p570, %s571, %s572
    %p576 = pneg %p570
    %p577 = scmp.eq.s32.totalorder %s31, 1
    %p578 = por %p576, %p577
    %p579 = scmp.ne.s32.totalorder %s571, %s574
    %p580 = scmp.eq.s32.totalorder %s31, 0
    %p581 = por %p579, %p580
    %p582 = scmp.ne.s32.totalorder %s571, %s574
    %p583 = scmp.eq.s32.totalorder %s36, 1
    %p584 = por %p582, %p583
    %p585 = scmp.ne.s32.totalorder %s574, %s575
    %p586 = scmp.eq.s32.totalorder %s36, 0
    %p587 = por %p585, %p586
    %p588 = scmp.ne.s32.totalorder %s574, %s575
    %p589 = scmp.eq.s32.totalorder %s37, 1
    %p590 = por %p588, %p589
    %p592 = scmp.ne.s32.totalorder %s575, %s591
    %p593 = scmp.eq.s32.totalorder %s37, 0
    %p594 = por %p592, %p593
    %p595 = scmp.le.s32.totalorder 1, %s31
    %p596 = scmp.lt.s32.totalorder %s31, 3
    %p597 = pnand %p595, %p596
    %p598 = pneg %p597
    // Predicated region
    $region9: #{tpu_custom_call.1} parent=5 // pred_check
      _
    $region10: #{tpu_custom_call.1} parent=5 // pred_check_branch
      %600 = sbr.rel (%p597) target = $region12
    $region11: #{tpu_custom_call.1} parent=5 // pred_region
      %s601 = ssub.s32 %s31, 1
      // Predicated region
      $region13: #{tpu_custom_call.1} parent=11 // pred_check
        %p602 = pneg %p78
      $region14: #{tpu_custom_call.1} parent=11 // pred_check_branch
        %604 = sbr.rel (%p602) target = $region16
      $region15: #{tpu_custom_call.1} parent=11 // pred_region
        _
      $region16: #{tpu_custom_call.1} parent=11 // pred_fallthru
        _
      // Predicated region
      $region17: #{tpu_custom_call.1} parent=11 // pred_check
        %p605 = pneg %p99
      $region18: #{tpu_custom_call.1} parent=11 // pred_check_branch
        %607 = sbr.rel (%p605) target = $region20
      $region19: #{tpu_custom_call.1} parent=11 // pred_region
        _
      $region20: #{tpu_custom_call.1} parent=11 // pred_fallthru
        _
      // Predicated region
      $region21: #{tpu_custom_call.1} parent=11 // pred_check
        %p608 = pneg %p120
      $region22: #{tpu_custom_call.1} parent=11 // pred_check_branch
        %610 = sbr.rel (%p608) target = $region24
      $region23: #{tpu_custom_call.1} parent=11 // pred_region
        _
      $region24: #{tpu_custom_call.1} parent=11 // pred_fallthru
        _
      // Predicated region
      $region25: #{tpu_custom_call.1} parent=11 // pred_check
        %p611 = pneg %p141
      $region26: #{tpu_custom_call.1} parent=11 // pred_check_branch
        %613 = sbr.rel (%p611) target = $region28
      $region27: #{tpu_custom_call.1} parent=11 // pred_region
        _
      $region28: #{tpu_custom_call.1} parent=11 // pred_fallthru
        _
      // Predicated region
      $region29: #{tpu_custom_call.1} parent=11 // pred_check
        %p614 = pneg %p162
      $region30: #{tpu_custom_call.1} parent=11 // pred_check_branch
        %616 = sbr.rel (%p614) target = $region32
      $region31: #{tpu_custom_call.1} parent=11 // pred_region
        _
      $region32: #{tpu_custom_call.1} parent=11 // pred_fallthru
        _
      // Predicated region
      $region33: #{tpu_custom_call.1} parent=11 // pred_check
        %p617 = pneg %p183
      $region34: #{tpu_custom_call.1} parent=11 // pred_check_branch
        %619 = sbr.rel (%p617) target = $region36
      $region35: #{tpu_custom_call.1} parent=11 // pred_region
        _
      $region36: #{tpu_custom_call.1} parent=11 // pred_fallthru
        _
      // Predicated region
      $region37: #{tpu_custom_call.1} parent=11 // pred_check
        %p620 = pneg %p204
      $region38: #{tpu_custom_call.1} parent=11 // pred_check_branch
        %622 = sbr.rel (%p620) target = $region40
      $region39: #{tpu_custom_call.1} parent=11 // pred_region
        _
      $region40: #{tpu_custom_call.1} parent=11 // pred_fallthru
        _
      // Predicated region
      $region41: #{tpu_custom_call.1} parent=11 // pred_check
        %p623 = pneg %p225
      $region42: #{tpu_custom_call.1} parent=11 // pred_check_branch
        %625 = sbr.rel (%p623) target = $region44
      $region43: #{tpu_custom_call.1} parent=11 // pred_region
        _
      $region44: #{tpu_custom_call.1} parent=11 // pred_fallthru
        _
      // Predicated region
      $region45: #{tpu_custom_call.1} parent=11 // pred_check
        %p626 = pneg %p246
      $region46: #{tpu_custom_call.1} parent=11 // pred_check_branch
        %628 = sbr.rel (%p626) target = $region48
      $region47: #{tpu_custom_call.1} parent=11 // pred_region
        _
      $region48: #{tpu_custom_call.1} parent=11 // pred_fallthru
        _
      // Predicated region
      $region49: #{tpu_custom_call.1} parent=11 // pred_check
        %p629 = pneg %p267
      $region50: #{tpu_custom_call.1} parent=11 // pred_check_branch
        %631 = sbr.rel (%p629) target = $region52
      $region51: #{tpu_custom_call.1} parent=11 // pred_region
        _
      $region52: #{tpu_custom_call.1} parent=11 // pred_fallthru
        _
      // Predicated region
      $region53: #{tpu_custom_call.1} parent=11 // pred_check
        %p632 = pneg %p288
      $region54: #{tpu_custom_call.1} parent=11 // pred_check_branch
        %634 = sbr.rel (%p632) target = $region56
      $region55: #{tpu_custom_call.1} parent=11 // pred_region
        _
      $region56: #{tpu_custom_call.1} parent=11 // pred_fallthru
        _
      // Predicated region
      $region57: #{tpu_custom_call.1} parent=11 // pred_check
        %p635 = pneg %p309
      $region58: #{tpu_custom_call.1} parent=11 // pred_check_branch
        %637 = sbr.rel (%p635) target = $region60
      $region59: #{tpu_custom_call.1} parent=11 // pred_region
        _
      $region60: #{tpu_custom_call.1} parent=11 // pred_fallthru
        _
      // Predicated region
      $region61: #{tpu_custom_call.1} parent=11 // pred_check
        %p638 = pneg %p330
      $region62: #{tpu_custom_call.1} parent=11 // pred_check_branch
        %640 = sbr.rel (%p638) target = $region64
      $region63: #{tpu_custom_call.1} parent=11 // pred_region
        _
      $region64: #{tpu_custom_call.1} parent=11 // pred_fallthru
        _
      // Predicated region
      $region65: #{tpu_custom_call.1} parent=11 // pred_check
        %p641 = pneg %p351
      $region66: #{tpu_custom_call.1} parent=11 // pred_check_branch
        %643 = sbr.rel (%p641) target = $region68
      $region67: #{tpu_custom_call.1} parent=11 // pred_region
        _
      $region68: #{tpu_custom_call.1} parent=11 // pred_fallthru
        _
      // Predicated region
      $region69: #{tpu_custom_call.1} parent=11 // pred_check
        %p644 = pneg %p372
      $region70: #{tpu_custom_call.1} parent=11 // pred_check_branch
        %646 = sbr.rel (%p644) target = $region72
      $region71: #{tpu_custom_call.1} parent=11 // pred_region
        _
      $region72: #{tpu_custom_call.1} parent=11 // pred_fallthru
        _
      // Predicated region
      $region73: #{tpu_custom_call.1} parent=11 // pred_check
        %p647 = pneg %p393
      $region74: #{tpu_custom_call.1} parent=11 // pred_check_branch
        %649 = sbr.rel (%p647) target = $region76
      $region75: #{tpu_custom_call.1} parent=11 // pred_region
        _
      $region76: #{tpu_custom_call.1} parent=11 // pred_fallthru
        _
      // Predicated region
      $region77: #{tpu_custom_call.1} parent=11 // pred_check
        %p650 = pneg %p414
      $region78: #{tpu_custom_call.1} parent=11 // pred_check_branch
        %652 = sbr.rel (%p650) target = $region80
      $region79: #{tpu_custom_call.1} parent=11 // pred_region
        _
      $region80: #{tpu_custom_call.1} parent=11 // pred_fallthru
        _
      // Predicated region
      $region81: #{tpu_custom_call.1} parent=11 // pred_check
        %p653 = pneg %p435
      $region82: #{tpu_custom_call.1} parent=11 // pred_check_branch
        %655 = sbr.rel (%p653) target = $region84
      $region83: #{tpu_custom_call.1} parent=11 // pred_region
        _
      $region84: #{tpu_custom_call.1} parent=11 // pred_fallthru
        _
      // Predicated region
      $region85: #{tpu_custom_call.1} parent=11 // pred_check
        %p656 = pneg %p456
      $region86: #{tpu_custom_call.1} parent=11 // pred_check_branch
        %658 = sbr.rel (%p656) target = $region88
      $region87: #{tpu_custom_call.1} parent=11 // pred_region
        _
      $region88: #{tpu_custom_call.1} parent=11 // pred_fallthru
        _
      // Predicated region
      $region89: #{tpu_custom_call.1} parent=11 // pred_check
        %p659 = pneg %p477
      $region90: #{tpu_custom_call.1} parent=11 // pred_check_branch
        %661 = sbr.rel (%p659) target = $region92
      $region91: #{tpu_custom_call.1} parent=11 // pred_region
        _
      $region92: #{tpu_custom_call.1} parent=11 // pred_fallthru
        _
      // Predicated region
      $region93: #{tpu_custom_call.1} parent=11 // pred_check
        %p662 = pneg %p498
      $region94: #{tpu_custom_call.1} parent=11 // pred_check_branch
        %664 = sbr.rel (%p662) target = $region96
      $region95: #{tpu_custom_call.1} parent=11 // pred_region
        _
      $region96: #{tpu_custom_call.1} parent=11 // pred_fallthru
        _
      // Predicated region
      $region97: #{tpu_custom_call.1} parent=11 // pred_check
        %p665 = pneg %p519
      $region98: #{tpu_custom_call.1} parent=11 // pred_check_branch
        %667 = sbr.rel (%p665) target = $region100
      $region99: #{tpu_custom_call.1} parent=11 // pred_region
        _
      $region100: #{tpu_custom_call.1} parent=11 // pred_fallthru
        _
      // Predicated region
      $region101: #{tpu_custom_call.1} parent=11 // pred_check
        %p668 = pneg %p540
      $region102: #{tpu_custom_call.1} parent=11 // pred_check_branch
        %670 = sbr.rel (%p668) target = $region104
      $region103: #{tpu_custom_call.1} parent=11 // pred_region
        _
      $region104: #{tpu_custom_call.1} parent=11 // pred_fallthru
        _
      // Predicated region
      $region105: #{tpu_custom_call.1} parent=11 // pred_check
        %p671 = pneg %p561
      $region106: #{tpu_custom_call.1} parent=11 // pred_check_branch
        %673 = sbr.rel (%p671) target = $region108
      $region107: #{tpu_custom_call.1} parent=11 // pred_region
        _
      $region108: #{tpu_custom_call.1} parent=11 // pred_fallthru
        _
    $region12: #{tpu_custom_call.1} parent=5 // pred_fallthru
      _
    %p674 = scmp.lt.s32.totalorder %s31, 2
    // Predicated region
    $region109: #{tpu_custom_call.1} parent=5 // pred_check
      %p675 = pneg %p674
    $region110: #{tpu_custom_call.1} parent=5 // pred_check_branch
      %677 = sbr.rel (%p675) target = $region112
    $region111: #{tpu_custom_call.1} parent=5 // pred_region
      // Predicated region
      $region113: #{tpu_custom_call.1} parent=111 // pred_check
        %p678 = pneg %p51
      $region114: #{tpu_custom_call.1} parent=111 // pred_check_branch
        %680 = sbr.rel (%p678) target = $region116
      $region115: #{tpu_custom_call.1} parent=111 // pred_region
        %p681 = scmp.lt.s32.totalorder %s31, 1
        %s682 = scalar_select %p681, %s31, 1
        %s683 = smul.addr %s682, 32
        %s684 = smul.addr %s683, 8
        %s685 = scalar_lea.vmem %s0, %s684
      $region116: #{tpu_custom_call.1} parent=111 // pred_fallthru
        _
    $region112: #{tpu_custom_call.1} parent=5 // pred_fallthru
      _
    %p686 = scmp.le.s32.totalorder 1, %s31
    %p687 = scmp.lt.s32.totalorder %s31, 3
    %p688 = pnand %p686, %p687
    %p689 = pneg %p688
    // Predicated region
    $region117: #{tpu_custom_call.1} parent=5 // pred_check
      _
    $region118: #{tpu_custom_call.1} parent=5 // pred_check_branch
      %691 = sbr.rel (%p688) target = $region120
    $region119: #{tpu_custom_call.1} parent=5 // pred_region
      %s692 = ssub.s32 %s31, 1
      %p693 = scmp.lt.s32.totalorder %s36, 1
      %s694 = scalar_select %p693, %s36, 1
      %s695 = smul.addr %s694, 32
      %s696 = smul.addr %s695, 8
      %s697 = scalar_lea.vmem %s0, %s696
      %p698 = pneg %p57
      %p699 = pneg %p54
      %p700 = pneg %p78
      %p701 = pneg %p75
      %p702 = pneg %p99
      %p703 = pneg %p96
      %p704 = pneg %p120
      %p705 = pneg %p117
      %p706 = pneg %p141
      %p707 = pneg %p138
      %p708 = pneg %p162
      %p709 = pneg %p159
      %p710 = pneg %p183
      %p711 = pneg %p180
      %p712 = pneg %p204
      %p713 = pneg %p201
      %p714 = pneg %p225
      %p715 = pneg %p222
      %p716 = pneg %p246
      %p717 = pneg %p243
      %p718 = pneg %p267
      %p719 = pneg %p264
      %p720 = pneg %p288
      %p721 = pneg %p285
      %p722 = pneg %p309
      %p723 = pneg %p306
      %p724 = pneg %p330
      %p725 = pneg %p327
      %p726 = pneg %p351
      %p727 = pneg %p348
      %p728 = pneg %p372
      %p729 = pneg %p369
      %p730 = pneg %p393
      %p731 = pneg %p390
      %p732 = pneg %p414
      %p733 = pneg %p411
      %p734 = pneg %p435
      %p735 = pneg %p432
      %p736 = pneg %p456
      %p737 = pneg %p453
      %p738 = pneg %p477
      %p739 = pneg %p474
      %p740 = pneg %p498
      %p741 = pneg %p495
      %p742 = pneg %p519
      %p743 = pneg %p516
      %p744 = pneg %p540
      %p745 = pneg %p537
      %p746 = pneg %p561
      %p747 = pneg %p558
      %p748 = pneg %p587
      %p749 = pneg %p584
      %p750 = scmp.lt.s32.totalorder %s36, 1
      %s751 = scalar_select %p750, %s36, 1
      %s752 = smul.addr %s751, 32
      %s753 = smul.addr %s752, 8
      %s754 = scalar_lea.vmem %s25, %s753
      %p755 = scmp.lt.s32.totalorder %s36, 1
      %s756 = scalar_select %p755, %s36, 1
      %s757 = smul.addr %s756, 32
      %s758 = smul.addr %s757, 8
      %s759 = scalar_lea.vmem %s0, %s758
      %p760 = scmp.lt.s32.totalorder %s36, 1
      %s761 = scalar_select %p760, %s36, 1
      %s762 = smul.addr %s761, 32
      %s763 = smul.addr %s762, 8
      %s764 = scalar_lea.vmem %s25, %s763
      %v766 = vld [vmem:[%s1] sm:$0xff]
      %v767 = vld [vmem:[%s1 + $0x8] sm:$0xff]
      %v768 = vld [vmem:[%s1 + $0x10] sm:$0xff]
      %v769 = vld [vmem:[%s1 + $0x18] sm:$0xff]
      %v770 = vld [vmem:[%s1 + $0x20] sm:$0xff]
      %v771 = vld [vmem:[%s1 + $0x28] sm:$0xff]
      %v772 = vld [vmem:[%s1 + $0x30] sm:$0xff]
      %v773 = vld [vmem:[%s1 + $0x38] sm:$0xff]
      %v774 = vld [vmem:[%s1 + $0x40] sm:$0xff]
      %v775 = vld [vmem:[%s1 + $0x48] sm:$0xff]
      %v776 = vld [vmem:[%s1 + $0x50] sm:$0xff]
      %v777 = vld [vmem:[%s1 + $0x58] sm:$0xff]
      %v778 = vld [vmem:[%s1 + $0x60] sm:$0xff]
      %v779 = vld [vmem:[%s1 + $0x68] sm:$0xff]
      %v780 = vld [vmem:[%s1 + $0x70] sm:$0xff]
      %v781 = vld [vmem:[%s1 + $0x78] sm:$0xff]
      %v782 = vld [vmem:[%s1 + $0x80] sm:$0xff]
      %v783 = vld [vmem:[%s1 + $0x88] sm:$0xff]
      %v784 = vld [vmem:[%s1 + $0x90] sm:$0xff]
      %v785 = vld [vmem:[%s1 + $0x98] sm:$0xff]
      %v786 = vld [vmem:[%s1 + $0xa0] sm:$0xff]
      %v787 = vld [vmem:[%s1 + $0xa8] sm:$0xff]
      %v788 = vld [vmem:[%s1 + $0xb0] sm:$0xff]
      %v789 = vld [vmem:[%s1 + $0xb8] sm:$0xff]
      %v790 = vld [vmem:[%s1 + $0xc0] sm:$0xff]
      %v791 = vld [vmem:[%s1 + $0xc8] sm:$0xff]
      %v792 = vld [vmem:[%s1 + $0xd0] sm:$0xff]
      %v793 = vld [vmem:[%s1 + $0xd8] sm:$0xff]
      %v794 = vld [vmem:[%s1 + $0xe0] sm:$0xff]
      %v795 = vld [vmem:[%s1 + $0xe8] sm:$0xff]
      %v796 = vld [vmem:[%s1 + $0xf0] sm:$0xff]
      %v797 = vld [vmem:[%s1 + $0xf8] sm:$0xff]
      %v798 = vld [vmem:[%s2] sm:$0xff]
      %v799 = vld [vmem:[%s2 + $0x8] sm:$0xff]
      %v800 = vld [vmem:[%s2 + $0x10] sm:$0xff]
      %v801 = vld [vmem:[%s2 + $0x18] sm:$0xff]
      %v802 = vld [vmem:[%s2 + $0x20] sm:$0xff]
      %v803 = vld [vmem:[%s2 + $0x28] sm:$0xff]
      %v804 = vld [vmem:[%s2 + $0x30] sm:$0xff]
      %v805 = vld [vmem:[%s2 + $0x38] sm:$0xff]
      %v806 = vld [vmem:[%s2 + $0x40] sm:$0xff]
      %v807 = vld [vmem:[%s2 + $0x48] sm:$0xff]
      %v808 = vld [vmem:[%s2 + $0x50] sm:$0xff]
      %v809 = vld [vmem:[%s2 + $0x58] sm:$0xff]
      %v810 = vld [vmem:[%s2 + $0x60] sm:$0xff]
      %v811 = vld [vmem:[%s2 + $0x68] sm:$0xff]
      %v812 = vld [vmem:[%s2 + $0x70] sm:$0xff]
      %v813 = vld [vmem:[%s2 + $0x78] sm:$0xff]
      %v814 = vld [vmem:[%s2 + $0x80] sm:$0xff]
      %v815 = vld [vmem:[%s2 + $0x88] sm:$0xff]
      %v816 = vld [vmem:[%s2 + $0x90] sm:$0xff]
      %v817 = vld [vmem:[%s2 + $0x98] sm:$0xff]
      %v818 = vld [vmem:[%s2 + $0xa0] sm:$0xff]
      %v819 = vld [vmem:[%s2 + $0xa8] sm:$0xff]
      %v820 = vld [vmem:[%s2 + $0xb0] sm:$0xff]
      %v821 = vld [vmem:[%s2 + $0xb8] sm:$0xff]
      %v822 = vld [vmem:[%s2 + $0xc0] sm:$0xff]
      %v823 = vld [vmem:[%s2 + $0xc8] sm:$0xff]
      %v824 = vld [vmem:[%s2 + $0xd0] sm:$0xff]
      %v825 = vld [vmem:[%s2 + $0xd8] sm:$0xff]
      %v826 = vld [vmem:[%s2 + $0xe0] sm:$0xff]
      %v827 = vld [vmem:[%s2 + $0xe8] sm:$0xff]
      %v828 = vld [vmem:[%s2 + $0xf0] sm:$0xff]
      %v829 = vld [vmem:[%s2 + $0xf8] sm:$0xff]
      %vm830 = vcmask 130048
      %831 = vst.msk [vmem:[#allocation2] sm:$0xff] %vm830, 0.0
      %832 = vst.msk [vmem:[#allocation2 + $0x8] sm:$0xff] %vm830, 0.0
      %833 = vst.msk [vmem:[#allocation2 + $0x10] sm:$0xff] %vm830, 0.0
      %834 = vst.msk [vmem:[#allocation2 + $0x118] sm:$0xff] %vm830, 0.0
      %835 = vst.msk [vmem:[#allocation2 + $0x120] sm:$0xff] %vm830, 0.0
      %836 = vst.msk [vmem:[#allocation2 + $0x128] sm:$0xff] %vm830, 0.0
      %v837 = vld [vmem:[%s759] sm:$0xff]
      %v838 = vld [vmem:[%s759 + $0x8] sm:$0xff]
      %v839 = vld [vmem:[%s759 + $0x10] sm:$0xff]
      %v840 = vld [vmem:[%s759 + $0x18] sm:$0xff]
      %v841 = vld [vmem:[%s759 + $0x20] sm:$0xff]
      %v842 = vld [vmem:[%s759 + $0x28] sm:$0xff]
      %v843 = vld [vmem:[%s759 + $0x30] sm:$0xff]
      %v844 = vld [vmem:[%s759 + $0x38] sm:$0xff]
      %v845 = vld [vmem:[%s759 + $0x40] sm:$0xff]
      %v846 = vld [vmem:[%s759 + $0x48] sm:$0xff]
      %v847 = vld [vmem:[%s759 + $0x50] sm:$0xff]
      %v848 = vld [vmem:[%s759 + $0x58] sm:$0xff]
      %v849 = vld [vmem:[%s759 + $0x60] sm:$0xff]
      %v850 = vld [vmem:[%s759 + $0x68] sm:$0xff]
      %v851 = vld [vmem:[%s759 + $0x70] sm:$0xff]
      %v852 = vld [vmem:[%s759 + $0x78] sm:$0xff]
      %v853 = vld [vmem:[%s759 + $0x80] sm:$0xff]
      %v854 = vld [vmem:[%s759 + $0x88] sm:$0xff]
      %v855 = vld [vmem:[%s759 + $0x90] sm:$0xff]
      %v856 = vld [vmem:[%s759 + $0x98] sm:$0xff]
      %v857 = vld [vmem:[%s759 + $0xa0] sm:$0xff]
      %v858 = vld [vmem:[%s759 + $0xa8] sm:$0xff]
      %v859 = vld [vmem:[%s759 + $0xb0] sm:$0xff]
      %v860 = vld [vmem:[%s759 + $0xb8] sm:$0xff]
      %v861 = vld [vmem:[%s759 + $0xc0] sm:$0xff]
      %v862 = vld [vmem:[%s759 + $0xc8] sm:$0xff]
      %v863 = vld [vmem:[%s759 + $0xd0] sm:$0xff]
      %v864 = vld [vmem:[%s759 + $0xd8] sm:$0xff]
      %v865 = vld [vmem:[%s759 + $0xe0] sm:$0xff]
      %v866 = vld [vmem:[%s759 + $0xe8] sm:$0xff]
      %v867 = vld [vmem:[%s759 + $0xf0] sm:$0xff]
      %v868 = vld [vmem:[%s759 + $0xf8] sm:$0xff]
      %v869 = vld [vmem:[%s3] sm:$0x1]
      %v871 = vlaneseq
      %v872 = vshrl.u32 %v871, 7
      %v873 = vsub.s32 0, %v872
      %v874 = vrot.slane %v869, %v873
      %v876 = vmul.f32 %v837, %v874
      %v877 = vmul.f32 %v838, %v874
      %v878 = vmul.f32 %v839, %v874
      %v879 = vmul.f32 %v840, %v874
      %v880 = vmul.f32 %v841, %v874
      %v881 = vmul.f32 %v842, %v874
      %v882 = vmul.f32 %v843, %v874
      %v883 = vmul.f32 %v844, %v874
      %v884 = vmul.f32 %v845, %v874
      %v885 = vmul.f32 %v846, %v874
      %v886 = vmul.f32 %v847, %v874
      %v887 = vmul.f32 %v848, %v874
      %v888 = vmul.f32 %v849, %v874
      %v889 = vmul.f32 %v850, %v874
      %v890 = vmul.f32 %v851, %v874
      %v891 = vmul.f32 %v852, %v874
      %v892 = vmul.f32 %v853, %v874
      %v893 = vmul.f32 %v854, %v874
      %v894 = vmul.f32 %v855, %v874
      %v895 = vmul.f32 %v856, %v874
      %v896 = vmul.f32 %v857, %v874
      %v897 = vmul.f32 %v858, %v874
      %v898 = vmul.f32 %v859, %v874
      %v899 = vmul.f32 %v860, %v874
      %v900 = vmul.f32 %v861, %v874
      %v901 = vmul.f32 %v862, %v874
      %v902 = vmul.f32 %v863, %v874
      %v903 = vmul.f32 %v864, %v874
      %v904 = vmul.f32 %v865, %v874
      %v905 = vmul.f32 %v866, %v874
      %v906 = vmul.f32 %v867, %v874
      %v907 = vmul.f32 %v868, %v874
      %v908 = vld [vmem:[%s4] sm:$0x1]
      %v910 = vlaneseq
      %v911 = vshrl.u32 %v910, 7
      %v912 = vsub.s32 0, %v911
      %v913 = vrot.slane %v908, %v912
      %v915 = vadd.f32 %v876, %v913
      %v916 = vadd.f32 %v877, %v913
      %v917 = vadd.f32 %v878, %v913
      %v918 = vadd.f32 %v879, %v913
      %v919 = vadd.f32 %v880, %v913
      %v920 = vadd.f32 %v881, %v913
      %v921 = vadd.f32 %v882, %v913
      %v922 = vadd.f32 %v883, %v913
      %v923 = vadd.f32 %v884, %v913
      %v924 = vadd.f32 %v885, %v913
      %v925 = vadd.f32 %v886, %v913
      %v926 = vadd.f32 %v887, %v913
      %v927 = vadd.f32 %v888, %v913
      %v928 = vadd.f32 %v889, %v913
      %v929 = vadd.f32 %v890, %v913
      %v930 = vadd.f32 %v891, %v913
      %v931 = vadd.f32 %v892, %v913
      %v932 = vadd.f32 %v893, %v913
      %v933 = vadd.f32 %v894, %v913
      %v934 = vadd.f32 %v895, %v913
      %v935 = vadd.f32 %v896, %v913
      %v936 = vadd.f32 %v897, %v913
      %v937 = vadd.f32 %v898, %v913
      %v938 = vadd.f32 %v899, %v913
      %v939 = vadd.f32 %v900, %v913
      %v940 = vadd.f32 %v901, %v913
      %v941 = vadd.f32 %v902, %v913
      %v942 = vadd.f32 %v903, %v913
      %v943 = vadd.f32 %v904, %v913
      %v944 = vadd.f32 %v905, %v913
      %v945 = vadd.f32 %v906, %v913
      %v946 = vadd.f32 %v907, %v913
      %v947 = vmax.f32 %v915, 0.0
      %v948 = vmax.f32 %v916, 0.0
      %v949 = vmax.f32 %v917, 0.0
      %v950 = vmax.f32 %v918, 0.0
      %v951 = vmax.f32 %v919, 0.0
      %v952 = vmax.f32 %v920, 0.0
      %v953 = vmax.f32 %v921, 0.0
      %v954 = vmax.f32 %v922, 0.0
      %v955 = vmax.f32 %v923, 0.0
      %v956 = vmax.f32 %v924, 0.0
      %v957 = vmax.f32 %v925, 0.0
      %v958 = vmax.f32 %v926, 0.0
      %v959 = vmax.f32 %v927, 0.0
      %v960 = vmax.f32 %v928, 0.0
      %v961 = vmax.f32 %v929, 0.0
      %v962 = vmax.f32 %v930, 0.0
      %v963 = vmax.f32 %v931, 0.0
      %v964 = vmax.f32 %v932, 0.0
      %v965 = vmax.f32 %v933, 0.0
      %v966 = vmax.f32 %v934, 0.0
      %v967 = vmax.f32 %v935, 0.0
      %v968 = vmax.f32 %v936, 0.0
      %v969 = vmax.f32 %v937, 0.0
      %v970 = vmax.f32 %v938, 0.0
      %v971 = vmax.f32 %v939, 0.0
      %v972 = vmax.f32 %v940, 0.0
      %v973 = vmax.f32 %v941, 0.0
      %v974 = vmax.f32 %v942, 0.0
      %v975 = vmax.f32 %v943, 0.0
      %v976 = vmax.f32 %v944, 0.0
      %v977 = vmax.f32 %v945, 0.0
      %v978 = vmax.f32 %v946, 0.0
      %v979 = vpack.c.bf16 %v948, %v947
      %v980 = vpack.c.bf16 %v950, %v949
      %v981 = vpack.c.bf16 %v952, %v951
      %v982 = vpack.c.bf16 %v954, %v953
      %v983 = vpack.c.bf16 %v956, %v955
      %v984 = vpack.c.bf16 %v958, %v957
      %v985 = vpack.c.bf16 %v960, %v959
      %v986 = vpack.c.bf16 %v962, %v961
      %v987 = vpack.c.bf16 %v964, %v963
      %v988 = vpack.c.bf16 %v966, %v965
      %v989 = vpack.c.bf16 %v968, %v967
      %v990 = vpack.c.bf16 %v970, %v969
      %v991 = vpack.c.bf16 %v972, %v971
      %v992 = vpack.c.bf16 %v974, %v973
      %v993 = vpack.c.bf16 %v976, %v975
      %v994 = vpack.c.bf16 %v978, %v977
      %v995 = vld [vmem:[%s5] sm:$0x3]
      %vm996 = vcmask 31744
      %v998 = vsel %vm996, %v979, 0
      %v1001 = vsel %vm996, %v980, 0
      %v1004 = vsel %vm996, %v981, 0
      %v1007 = vsel %vm996, %v982, 0
      %v1010 = vsel %vm996, %v983, 0
      %v1013 = vsel %vm996, %v984, 0
      %v1016 = vsel %vm996, %v985, 0
      %v1019 = vsel %vm996, %v986, 0
      %v1022 = vsel %vm996, %v987, 0
      %v1025 = vsel %vm996, %v988, 0
      %v1028 = vsel %vm996, %v989, 0
      %v1031 = vsel %vm996, %v990, 0
      %v1034 = vsel %vm996, %v991, 0
      %v1037 = vsel %vm996, %v992, 0
      %v1040 = vsel %vm996, %v993, 0
      %v1043 = vsel %vm996, %v994, 0
      %vm1045 = vcmask 1041408
      %v1047 = vsel %vm1045, %v995, 0
      %1049 = vmatprep.subr.bf16.mxu0 0
      %1050 = vmatpush1.bf16.msra.mxu0 0
      %1051 = vmatprep.subr.bf16.mxu0 0
      %1052 = vmatpush1.bf16.msra.mxu0 0
      %1053 = vmatprep.subr.bf16.mxu0 0
      %1054 = vmatpush1.bf16.msra.mxu0 0
      %1055 = vmatprep.subr.bf16.mxu0 0
      %1056 = vmatpush1.bf16.msra.mxu0 0
      %1057 = vmatprep.subr.bf16.mxu0 0
      %1058 = vmatpush1.bf16.msra.mxu0 0
      %1059 = vmatprep.subr.bf16.mxu0 0
      %1060 = vmatpush1.bf16.msra.mxu0 0
      %1061 = vmatprep.subr.bf16.mxu0 0
      %1062 = vmatpush1.bf16.msra.mxu0 0
      %1063 = vmatprep.subr.bf16.mxu0 0
      %1064 = vmatpush1.bf16.msra.mxu0 %v1047
      %1065 = vmatprep.subr.bf16.mxu0 0
      %1066 = vmatpush2.bf16.msra.mxu0 0
      %1067 = vmatprep.subr.bf16.mxu0 0
      %1068 = vmatpush2.bf16.msra.mxu0 0
      %1069 = vmatprep.subr.bf16.mxu0 0
      %1070 = vmatpush2.bf16.msra.mxu0 0
      %1071 = vmatprep.subr.bf16.mxu0 0
      %1072 = vmatpush2.bf16.msra.mxu0 0
      %1073 = vmatprep.subr.bf16.mxu0 0
      %1074 = vmatpush2.bf16.msra.mxu0 0
      %1075 = vmatprep.subr.bf16.mxu0 0
      %1076 = vmatpush2.bf16.msra.mxu0 0
      %1077 = vmatprep.subr.bf16.mxu0 0
      %1078 = vmatpush2.bf16.msra.mxu0 0
      %1079 = vmatprep.subr.bf16.mxu0 0
      %1080 = vmatpush2.bf16.msra.mxu0 0
      %1081 = vmatprep.mubr.bf16.mxu0 0
      %1082 = vmatmul.mubr.bf16.gmra.mxu0 %v998
      %v1083 = vpop.f32.mrf.mxu0
      %v1084 = vadd.f32 0.0, %v1083
      %v1085 = vpop.f32.mrf.mxu0
      %v1086 = vpop.f32.mrf.mxu0
      %v1087 = vadd.f32 0.0, %v1086
      %v1088 = vpop.f32.mrf.mxu0
      %1089 = vmatprep.mubr.bf16.mxu0 0
      %1090 = vmatmul.mubr.bf16.gmra.mxu0 %v1001
      %v1091 = vpop.f32.mrf.mxu0
      %v1092 = vadd.f32 0.0, %v1091
      %v1093 = vpop.f32.mrf.mxu0
      %v1094 = vpop.f32.mrf.mxu0
      %v1095 = vadd.f32 0.0, %v1094
      %v1096 = vpop.f32.mrf.mxu0
      %1097 = vmatprep.mubr.bf16.mxu0 0
      %1098 = vmatmul.mubr.bf16.gmra.mxu0 %v1004
      %v1099 = vpop.f32.mrf.mxu0
      %v1100 = vadd.f32 0.0, %v1099
      %v1101 = vpop.f32.mrf.mxu0
      %v1102 = vpop.f32.mrf.mxu0
      %v1103 = vadd.f32 0.0, %v1102
      %v1104 = vpop.f32.mrf.mxu0
      %1105 = vmatprep.mubr.bf16.mxu0 0
      %1106 = vmatmul.mubr.bf16.gmra.mxu0 %v1007
      %v1107 = vpop.f32.mrf.mxu0
      %v1108 = vadd.f32 0.0, %v1107
      %v1109 = vpop.f32.mrf.mxu0
      %v1110 = vpop.f32.mrf.mxu0
      %v1111 = vadd.f32 0.0, %v1110
      %v1112 = vpop.f32.mrf.mxu0
      %1113 = vmatprep.mubr.bf16.mxu0 0
      %1114 = vmatmul.mubr.bf16.gmra.mxu0 %v1010
      %v1115 = vpop.f32.mrf.mxu0
      %v1116 = vadd.f32 0.0, %v1115
      %v1117 = vpop.f32.mrf.mxu0
      %v1118 = vpop.f32.mrf.mxu0
      %v1119 = vadd.f32 0.0, %v1118
      %v1120 = vpop.f32.mrf.mxu0
      %1121 = vmatprep.mubr.bf16.mxu0 0
      %1122 = vmatmul.mubr.bf16.gmra.mxu0 %v1013
      %v1123 = vpop.f32.mrf.mxu0
      %v1124 = vadd.f32 0.0, %v1123
      %v1125 = vpop.f32.mrf.mxu0
      %v1126 = vpop.f32.mrf.mxu0
      %v1127 = vadd.f32 0.0, %v1126
      %v1128 = vpop.f32.mrf.mxu0
      %1129 = vmatprep.mubr.bf16.mxu0 0
      %1130 = vmatmul.mubr.bf16.gmra.mxu0 %v1016
      %v1131 = vpop.f32.mrf.mxu0
      %v1132 = vadd.f32 0.0, %v1131
      %v1133 = vpop.f32.mrf.mxu0
      %v1134 = vpop.f32.mrf.mxu0
      %v1135 = vadd.f32 0.0, %v1134
      %v1136 = vpop.f32.mrf.mxu0
      %1137 = vmatprep.mubr.bf16.mxu0 0
      %1138 = vmatmul.mubr.bf16.gmra.mxu0 %v1019
      %v1139 = vpop.f32.mrf.mxu0
      %v1140 = vadd.f32 0.0, %v1139
      %v1141 = vpop.f32.mrf.mxu0
      %v1142 = vpop.f32.mrf.mxu0
      %v1143 = vadd.f32 0.0, %v1142
      %v1144 = vpop.f32.mrf.mxu0
      %1145 = vmatprep.mubr.bf16.mxu0 0
      %1146 = vmatmul.mubr.bf16.gmra.mxu0 %v1022
      %v1147 = vpop.f32.mrf.mxu0
      %v1148 = vadd.f32 0.0, %v1147
      %v1149 = vpop.f32.mrf.mxu0
      %v1150 = vpop.f32.mrf.mxu0
      %v1151 = vadd.f32 0.0, %v1150
      %v1152 = vpop.f32.mrf.mxu0
      %1153 = vmatprep.mubr.bf16.mxu0 0
      %1154 = vmatmul.mubr.bf16.gmra.mxu0 %v1025
      %v1155 = vpop.f32.mrf.mxu0
      %v1156 = vadd.f32 0.0, %v1155
      %v1157 = vpop.f32.mrf.mxu0
      %v1158 = vpop.f32.mrf.mxu0
      %v1159 = vadd.f32 0.0, %v1158
      %v1160 = vpop.f32.mrf.mxu0
      %1161 = vmatprep.mubr.bf16.mxu0 0
      %1162 = vmatmul.mubr.bf16.gmra.mxu0 %v1028
      %v1163 = vpop.f32.mrf.mxu0
      %v1164 = vadd.f32 0.0, %v1163
      %v1165 = vpop.f32.mrf.mxu0
      %v1166 = vpop.f32.mrf.mxu0
      %v1167 = vadd.f32 0.0, %v1166
      %v1168 = vpop.f32.mrf.mxu0
      %1169 = vmatprep.mubr.bf16.mxu0 0
      %1170 = vmatmul.mubr.bf16.gmra.mxu0 %v1031
      %v1171 = vpop.f32.mrf.mxu0
      %v1172 = vadd.f32 0.0, %v1171
      %v1173 = vpop.f32.mrf.mxu0
      %v1174 = vpop.f32.mrf.mxu0
      %v1175 = vadd.f32 0.0, %v1174
      %v1176 = vpop.f32.mrf.mxu0
      %1177 = vmatprep.mubr.bf16.mxu0 0
      %1178 = vmatmul.mubr.bf16.gmra.mxu0 %v1034
      %v1179 = vpop.f32.mrf.mxu0
      %v1180 = vadd.f32 0.0, %v1179
      %v1181 = vpop.f32.mrf.mxu0
      %v1182 = vpop.f32.mrf.mxu0
      %v1183 = vadd.f32 0.0, %v1182
      %v1184 = vpop.f32.mrf.mxu0
      %1185 = vmatprep.mubr.bf16.mxu0 0
      %1186 = vmatmul.mubr.bf16.gmra.mxu0 %v1037
      %v1187 = vpop.f32.mrf.mxu0
      %v1188 = vadd.f32 0.0, %v1187
      %v1189 = vpop.f32.mrf.mxu0
      %v1190 = vpop.f32.mrf.mxu0
      %v1191 = vadd.f32 0.0, %v1190
      %v1192 = vpop.f32.mrf.mxu0
      %1193 = vmatprep.mubr.bf16.mxu0 0
      %1194 = vmatmul.mubr.bf16.gmra.mxu0 %v1040
      %v1195 = vpop.f32.mrf.mxu0
      %v1196 = vadd.f32 0.0, %v1195
      %v1197 = vpop.f32.mrf.mxu0
      %v1198 = vpop.f32.mrf.mxu0
      %v1199 = vadd.f32 0.0, %v1198
      %v1200 = vpop.f32.mrf.mxu0
      %1201 = vmatprep.mubr.bf16.mxu0 0
      %1202 = vmatmul.mubr.bf16.gmra.mxu0 %v1043
      %v1203 = vpop.f32.mrf.mxu0
      %v1204 = vadd.f32 0.0, %v1203
      %v1205 = vpop.f32.mrf.mxu0
      %v1206 = vpop.f32.mrf.mxu0
      %v1207 = vadd.f32 0.0, %v1206
      %v1208 = vpop.f32.mrf.mxu0
      %1209 = vdwg.mxu0
      %v1210 = vld [vmem:[%s6] sm:$0x1]
      %v1212 = vlaneseq
      %v1213 = vshrl.u32 %v1212, 7
      %v1214 = vsub.s32 0, %v1213
      %v1215 = vrot.slane %v1210, %v1214
      %v1217 = vmul.f32 %v1084, %v1215
      %v1218 = vmul.f32 %v1087, %v1215
      %v1219 = vmul.f32 %v1092, %v1215
      %v1220 = vmul.f32 %v1095, %v1215
      %v1221 = vmul.f32 %v1100, %v1215
      %v1222 = vmul.f32 %v1103, %v1215
      %v1223 = vmul.f32 %v1108, %v1215
      %v1224 = vmul.f32 %v1111, %v1215
      %v1225 = vmul.f32 %v1116, %v1215
      %v1226 = vmul.f32 %v1119, %v1215
      %v1227 = vmul.f32 %v1124, %v1215
      %v1228 = vmul.f32 %v1127, %v1215
      %v1229 = vmul.f32 %v1132, %v1215
      %v1230 = vmul.f32 %v1135, %v1215
      %v1231 = vmul.f32 %v1140, %v1215
      %v1232 = vmul.f32 %v1143, %v1215
      %v1233 = vmul.f32 %v1148, %v1215
      %v1234 = vmul.f32 %v1151, %v1215
      %v1235 = vmul.f32 %v1156, %v1215
      %v1236 = vmul.f32 %v1159, %v1215
      %v1237 = vmul.f32 %v1164, %v1215
      %v1238 = vmul.f32 %v1167, %v1215
      %v1239 = vmul.f32 %v1172, %v1215
      %v1240 = vmul.f32 %v1175, %v1215
      %v1241 = vmul.f32 %v1180, %v1215
      %v1242 = vmul.f32 %v1183, %v1215
      %v1243 = vmul.f32 %v1188, %v1215
      %v1244 = vmul.f32 %v1191, %v1215
      %v1245 = vmul.f32 %v1196, %v1215
      %v1246 = vmul.f32 %v1199, %v1215
      %v1247 = vmul.f32 %v1204, %v1215
      %v1248 = vmul.f32 %v1207, %v1215
      %v1249 = vld [vmem:[%s7] sm:$0x1]
      %v1251 = vlaneseq
      %v1252 = vshrl.u32 %v1251, 7
      %v1253 = vsub.s32 0, %v1252
      %v1254 = vrot.slane %v1249, %v1253
      %v1256 = vadd.f32 %v1217, %v1254
      %v1257 = vadd.f32 %v1218, %v1254
      %v1258 = vadd.f32 %v1219, %v1254
      %v1259 = vadd.f32 %v1220, %v1254
      %v1260 = vadd.f32 %v1221, %v1254
      %v1261 = vadd.f32 %v1222, %v1254
      %v1262 = vadd.f32 %v1223, %v1254
      %v1263 = vadd.f32 %v1224, %v1254
      %v1264 = vadd.f32 %v1225, %v1254
      %v1265 = vadd.f32 %v1226, %v1254
      %v1266 = vadd.f32 %v1227, %v1254
      %v1267 = vadd.f32 %v1228, %v1254
      %v1268 = vadd.f32 %v1229, %v1254
      %v1269 = vadd.f32 %v1230, %v1254
      %v1270 = vadd.f32 %v1231, %v1254
      %v1271 = vadd.f32 %v1232, %v1254
      %v1272 = vadd.f32 %v1233, %v1254
      %v1273 = vadd.f32 %v1234, %v1254
      %v1274 = vadd.f32 %v1235, %v1254
      %v1275 = vadd.f32 %v1236, %v1254
      %v1276 = vadd.f32 %v1237, %v1254
      %v1277 = vadd.f32 %v1238, %v1254
      %v1278 = vadd.f32 %v1239, %v1254
      %v1279 = vadd.f32 %v1240, %v1254
      %v1280 = vadd.f32 %v1241, %v1254
      %v1281 = vadd.f32 %v1242, %v1254
      %v1282 = vadd.f32 %v1243, %v1254
      %v1283 = vadd.f32 %v1244, %v1254
      %v1284 = vadd.f32 %v1245, %v1254
      %v1285 = vadd.f32 %v1246, %v1254
      %v1286 = vadd.f32 %v1247, %v1254
      %v1287 = vadd.f32 %v1248, %v1254
      %v1288 = vmax.f32 %v1256, 0.0
      %v1289 = vmax.f32 %v1257, 0.0
      %v1290 = vmax.f32 %v1258, 0.0
      %v1291 = vmax.f32 %v1259, 0.0
      %v1292 = vmax.f32 %v1260, 0.0
      %v1293 = vmax.f32 %v1261, 0.0
      %v1294 = vmax.f32 %v1262, 0.0
      %v1295 = vmax.f32 %v1263, 0.0
      %v1296 = vmax.f32 %v1264, 0.0
      %v1297 = vmax.f32 %v1265, 0.0
      %v1298 = vmax.f32 %v1266, 0.0
      %v1299 = vmax.f32 %v1267, 0.0
      %v1300 = vmax.f32 %v1268, 0.0
      %v1301 = vmax.f32 %v1269, 0.0
      %v1302 = vmax.f32 %v1270, 0.0
      %v1303 = vmax.f32 %v1271, 0.0
      %v1304 = vmax.f32 %v1272, 0.0
      %v1305 = vmax.f32 %v1273, 0.0
      %v1306 = vmax.f32 %v1274, 0.0
      %v1307 = vmax.f32 %v1275, 0.0
      %v1308 = vmax.f32 %v1276, 0.0
      %v1309 = vmax.f32 %v1277, 0.0
      %v1310 = vmax.f32 %v1278, 0.0
      %v1311 = vmax.f32 %v1279, 0.0
      %v1312 = vmax.f32 %v1280, 0.0
      %v1313 = vmax.f32 %v1281, 0.0
      %v1314 = vmax.f32 %v1282, 0.0
      %v1315 = vmax.f32 %v1283, 0.0
      %v1316 = vmax.f32 %v1284, 0.0
      %v1317 = vmax.f32 %v1285, 0.0
      %v1318 = vmax.f32 %v1286, 0.0
      %v1319 = vmax.f32 %v1287, 0.0
      %1320 = vst.msk [vmem:[#allocation2 + $0x18] sm:$0xff] %vm830, %v1288
      %1321 = vst.msk [vmem:[#allocation2 + $0x20] sm:$0xff] %vm830, %v1289
      %1322 = vst.msk [vmem:[#allocation2 + $0x28] sm:$0xff] %vm830, %v1290
      %1323 = vst.msk [vmem:[#allocation2 + $0x30] sm:$0xff] %vm830, %v1291
      %1324 = vst.msk [vmem:[#allocation2 + $0x38] sm:$0xff] %vm830, %v1292
      %1325 = vst.msk [vmem:[#allocation2 + $0x40] sm:$0xff] %vm830, %v1293
      %1326 = vst.msk [vmem:[#allocation2 + $0x48] sm:$0xff] %vm830, %v1294
      %1327 = vst.msk [vmem:[#allocation2 + $0x50] sm:$0xff] %vm830, %v1295
      %1328 = vst.msk [vmem:[#allocation2 + $0x58] sm:$0xff] %vm830, %v1296
      %1329 = vst.msk [vmem:[#allocation2 + $0x60] sm:$0xff] %vm830, %v1297
      %1330 = vst.msk [vmem:[#allocation2 + $0x68] sm:$0xff] %vm830, %v1298
      %1331 = vst.msk [vmem:[#allocation2 + $0x70] sm:$0xff] %vm830, %v1299
      %1332 = vst.msk [vmem:[#allocation2 + $0x78] sm:$0xff] %vm830, %v1300
      %1333 = vst.msk [vmem:[#allocation2 + $0x80] sm:$0xff] %vm830, %v1301
      %1334 = vst.msk [vmem:[#allocation2 + $0x88] sm:$0xff] %vm830, %v1302
      %1335 = vst.msk [vmem:[#allocation2 + $0x90] sm:$0xff] %vm830, %v1303
      %1336 = vst.msk [vmem:[#allocation2 + $0x98] sm:$0xff] %vm830, %v1304
      %1337 = vst.msk [vmem:[#allocation2 + $0xa0] sm:$0xff] %vm830, %v1305
      %1338 = vst.msk [vmem:[#allocation2 + $0xa8] sm:$0xff] %vm830, %v1306
      %1339 = vst.msk [vmem:[#allocation2 + $0xb0] sm:$0xff] %vm830, %v1307
      %1340 = vst.msk [vmem:[#allocation2 + $0xb8] sm:$0xff] %vm830, %v1308
      %1341 = vst.msk [vmem:[#allocation2 + $0xc0] sm:$0xff] %vm830, %v1309
      %1342 = vst.msk [vmem:[#allocation2 + $0xc8] sm:$0xff] %vm830, %v1310
      %1343 = vst.msk [vmem:[#allocation2 + $0xd0] sm:$0xff] %vm830, %v1311
      %1344 = vst.msk [vmem:[#allocation2 + $0xd8] sm:$0xff] %vm830, %v1312
      %1345 = vst.msk [vmem:[#allocation2 + $0xe0] sm:$0xff] %vm830, %v1313
      %1346 = vst.msk [vmem:[#allocation2 + $0xe8] sm:$0xff] %vm830, %v1314
      %1347 = vst.msk [vmem:[#allocation2 + $0xf0] sm:$0xff] %vm830, %v1315
      %1348 = vst.msk [vmem:[#allocation2 + $0xf8] sm:$0xff] %vm830, %v1316
      %1349 = vst.msk [vmem:[#allocation2 + $0x100] sm:$0xff] %vm830, %v1317
      %1350 = vst.msk [vmem:[#allocation2 + $0x108] sm:$0xff] %vm830, %v1318
      %1351 = vst.msk [vmem:[#allocation2 + $0x110] sm:$0xff] %vm830, %v1319
      %v1352 = vld [vmem:[%s9] sm:$0x1]
      %v1354 = vlaneseq
      %v1355 = vshrl.u32 %v1354, 7
      %v1356 = vsub.s32 0, %v1355
      %v1357 = vrot.slane %v1352, %v1356
      %v1359 = vld [vmem:[#allocation2 + $0x7] sm:$0xff]
      %v1360 = vld [vmem:[#allocation2 + $0xf] sm:$0xff]
      %v1361 = vld [vmem:[#allocation2 + $0x17] sm:$0xff]
      %v1362 = vld [vmem:[#allocation2 + $0x1f] sm:$0xff]
      %v1363 = vld [vmem:[#allocation2 + $0x27] sm:$0xff]
      %v1364 = vld [vmem:[#allocation2 + $0x2f] sm:$0xff]
      %v1365 = vld [vmem:[#allocation2 + $0x37] sm:$0xff]
      %v1366 = vld [vmem:[#allocation2 + $0x3f] sm:$0xff]
      %v1367 = vld [vmem:[#allocation2 + $0x47] sm:$0xff]
      %v1368 = vld [vmem:[#allocation2 + $0x4f] sm:$0xff]
      %v1369 = vld [vmem:[#allocation2 + $0x57] sm:$0xff]
      %v1370 = vld [vmem:[#allocation2 + $0x5f] sm:$0xff]
      %v1371 = vld [vmem:[#allocation2 + $0x67] sm:$0xff]
      %v1372 = vld [vmem:[#allocation2 + $0x6f] sm:$0xff]
      %v1373 = vld [vmem:[#allocation2 + $0x77] sm:$0xff]
      %v1374 = vld [vmem:[#allocation2 + $0x7f] sm:$0xff]
      %v1375 = vld [vmem:[#allocation2 + $0x87] sm:$0xff]
      %v1376 = vld [vmem:[#allocation2 + $0x8f] sm:$0xff]
      %v1377 = vld [vmem:[#allocation2 + $0x97] sm:$0xff]
      %v1378 = vld [vmem:[#allocation2 + $0x9f] sm:$0xff]
      %v1379 = vld [vmem:[#allocation2 + $0xa7] sm:$0xff]
      %v1380 = vld [vmem:[#allocation2 + $0xaf] sm:$0xff]
      %v1381 = vld [vmem:[#allocation2 + $0xb7] sm:$0xff]
      %v1382 = vld [vmem:[#allocation2 + $0xbf] sm:$0xff]
      %v1383 = vld [vmem:[#allocation2 + $0xc7] sm:$0xff]
      %v1384 = vld [vmem:[#allocation2 + $0xcf] sm:$0xff]
      %v1385 = vld [vmem:[#allocation2 + $0xd7] sm:$0xff]
      %v1386 = vld [vmem:[#allocation2 + $0xdf] sm:$0xff]
      %v1387 = vld [vmem:[#allocation2 + $0xe7] sm:$0xff]
      %v1388 = vld [vmem:[#allocation2 + $0xef] sm:$0xff]
      %v1389 = vld [vmem:[#allocation2 + $0xf7] sm:$0xff]
      %v1390 = vld [vmem:[#allocation2 + $0xff] sm:$0xff]
      %v1391 = vpack.c.bf16 %v1360, %v1359
      %v1392 = vpack.c.bf16 %v1362, %v1361
      %v1393 = vpack.c.bf16 %v1364, %v1363
      %v1394 = vpack.c.bf16 %v1366, %v1365
      %v1395 = vpack.c.bf16 %v1368, %v1367
      %v1396 = vpack.c.bf16 %v1370, %v1369
      %v1397 = vpack.c.bf16 %v1372, %v1371
      %v1398 = vpack.c.bf16 %v1374, %v1373
      %v1399 = vpack.c.bf16 %v1376, %v1375
      %v1400 = vpack.c.bf16 %v1378, %v1377
      %v1401 = vpack.c.bf16 %v1380, %v1379
      %v1402 = vpack.c.bf16 %v1382, %v1381
      %v1403 = vpack.c.bf16 %v1384, %v1383
      %v1404 = vpack.c.bf16 %v1386, %v1385
      %v1405 = vpack.c.bf16 %v1388, %v1387
      %v1406 = vpack.c.bf16 %v1390, %v1389
      %v1407 = vld [vmem:[%s8] sm:$0xf]
      %v1408 = vld [vmem:[%s8 + $0x4] sm:$0xf]
      %v1409 = vld [vmem:[#allocation2 + $0x107] sm:$0xff]
      %v1410 = vld [vmem:[#allocation2 + $0x10f] sm:$0xff]
      %v1411 = vpack.c.bf16 %v1410, %v1409
      %v1412 = vld [vmem:[%s8 + $0x18] sm:$0xf]
      %v1413 = vld [vmem:[%s8 + $0x1c] sm:$0xf]
      %v1416 = vunpack.c.l.b16 %v1412
      %v1417 = vunpack.c.l.b16 %v1413
      %v1418 = vpack.c.b16 %v1417, %v1416
      %v1421 = vsel %vm830, %v1392, 0
      %v1424 = vsel %vm830, %v1393, 0
      %v1427 = vsel %vm830, %v1394, 0
      %v1430 = vsel %vm830, %v1395, 0
      %v1433 = vsel %vm830, %v1396, 0
      %v1436 = vsel %vm830, %v1397, 0
      %v1439 = vsel %vm830, %v1398, 0
      %v1442 = vsel %vm830, %v1399, 0
      %v1445 = vsel %vm830, %v1400, 0
      %v1448 = vsel %vm830, %v1401, 0
      %v1451 = vsel %vm830, %v1402, 0
      %v1454 = vsel %vm830, %v1403, 0
      %v1457 = vsel %vm830, %v1404, 0
      %v1460 = vsel %vm830, %v1405, 0
      %v1463 = vsel %vm830, %v1406, 0
      %v1466 = vsel %vm830, %v1411, 0
      %1468 = vmatprep.subr.bf16.mxu0 0
      %1469 = vmatpush1.bf16.msra.mxu0 0
      %1470 = vmatprep.subr.bf16.mxu0 0
      %1471 = vmatpush1.bf16.msra.mxu0 0
      %1472 = vmatprep.subr.bf16.mxu0 0
      %1473 = vmatpush1.bf16.msra.mxu0 0
      %1474 = vmatprep.subr.bf16.mxu0 0
      %1475 = vmatpush1.bf16.msra.mxu0 0
      %1476 = vmatprep.subr.bf16.mxu0 0
      %1477 = vmatpush1.bf16.msra.mxu0 0
      %1478 = vmatprep.subr.bf16.mxu0 0
      %1479 = vmatpush1.bf16.msra.mxu0 0
      %1480 = vmatprep.subr.bf16.mxu0 0
      %1481 = vmatpush1.bf16.msra.mxu0 0
      %1482 = vmatprep.subr.bf16.mxu0 0
      %1483 = vmatpush1.bf16.msra.mxu0 %v1418
      %1484 = vmatprep.subr.bf16.mxu0 0
      %1485 = vmatpush2.bf16.msra.mxu0 0
      %1486 = vmatprep.subr.bf16.mxu0 0
      %1487 = vmatpush2.bf16.msra.mxu0 0
      %1488 = vmatprep.subr.bf16.mxu0 0
      %1489 = vmatpush2.bf16.msra.mxu0 0
      %1490 = vmatprep.subr.bf16.mxu0 0
      %1491 = vmatpush2.bf16.msra.mxu0 0
      %1492 = vmatprep.subr.bf16.mxu0 0
      %1493 = vmatpush2.bf16.msra.mxu0 0
      %1494 = vmatprep.subr.bf16.mxu0 0
      %1495 = vmatpush2.bf16.msra.mxu0 0
      %1496 = vmatprep.subr.bf16.mxu0 0
      %1497 = vmatpush2.bf16.msra.mxu0 0
      %1498 = vmatprep.subr.bf16.mxu0 0
      %1499 = vmatpush2.bf16.msra.mxu0 0
      %1500 = vmatprep.mubr.bf16.mxu0 0
      %1501 = vmatmul.mubr.bf16.gmra.mxu0 %v1421
      %v1502 = vpop.f32.mrf.mxu0
      %v1503 = vadd.f32 0.0, %v1502
      %v1504 = vpop.f32.mrf.mxu0
      %v1505 = vpop.f32.mrf.mxu0
      %v1506 = vadd.f32 0.0, %v1505
      %v1507 = vpop.f32.mrf.mxu0
      %1508 = vmatprep.mubr.bf16.mxu0 0
      %1509 = vmatmul.mubr.bf16.gmra.mxu0 %v1424
      %v1510 = vpop.f32.mrf.mxu0
      %v1511 = vadd.f32 0.0, %v1510
      %v1512 = vpop.f32.mrf.mxu0
      %v1513 = vpop.f32.mrf.mxu0
      %v1514 = vadd.f32 0.0, %v1513
      %v1515 = vpop.f32.mrf.mxu0
      %1516 = vmatprep.mubr.bf16.mxu0 0
      %1517 = vmatmul.mubr.bf16.gmra.mxu0 %v1427
      %v1518 = vpop.f32.mrf.mxu0
      %v1519 = vadd.f32 0.0, %v1518
      %v1520 = vpop.f32.mrf.mxu0
      %v1521 = vpop.f32.mrf.mxu0
      %v1522 = vadd.f32 0.0, %v1521
      %v1523 = vpop.f32.mrf.mxu0
      %1524 = vmatprep.mubr.bf16.mxu0 0
      %1525 = vmatmul.mubr.bf16.gmra.mxu0 %v1430
      %v1526 = vpop.f32.mrf.mxu0
      %v1527 = vadd.f32 0.0, %v1526
      %v1528 = vpop.f32.mrf.mxu0
      %v1529 = vpop.f32.mrf.mxu0
      %v1530 = vadd.f32 0.0, %v1529
      %v1531 = vpop.f32.mrf.mxu0
      %1532 = vmatprep.mubr.bf16.mxu0 0
      %1533 = vmatmul.mubr.bf16.gmra.mxu0 %v1433
      %v1534 = vpop.f32.mrf.mxu0
      %v1535 = vadd.f32 0.0, %v1534
      %v1536 = vpop.f32.mrf.mxu0
      %v1537 = vpop.f32.mrf.mxu0
      %v1538 = vadd.f32 0.0, %v1537
      %v1539 = vpop.f32.mrf.mxu0
      %1540 = vmatprep.mubr.bf16.mxu0 0
      %1541 = vmatmul.mubr.bf16.gmra.mxu0 %v1436
      %v1542 = vpop.f32.mrf.mxu0
      %v1543 = vadd.f32 0.0, %v1542
      %v1544 = vpop.f32.mrf.mxu0
      %v1545 = vpop.f32.mrf.mxu0
      %v1546 = vadd.f32 0.0, %v1545
      %v1547 = vpop.f32.mrf.mxu0
      %1548 = vmatprep.mubr.bf16.mxu0 0
      %1549 = vmatmul.mubr.bf16.gmra.mxu0 %v1439
      %v1550 = vpop.f32.mrf.mxu0
      %v1551 = vadd.f32 0.0, %v1550
      %v1552 = vpop.f32.mrf.mxu0
      %v1553 = vpop.f32.mrf.mxu0
      %v1554 = vadd.f32 0.0, %v1553
      %v1555 = vpop.f32.mrf.mxu0
      %1556 = vmatprep.mubr.bf16.mxu0 0
      %1557 = vmatmul.mubr.bf16.gmra.mxu0 %v1442
      %v1558 = vpop.f32.mrf.mxu0
      %v1559 = vadd.f32 0.0, %v1558
      %v1560 = vpop.f32.mrf.mxu0
      %v1561 = vpop.f32.mrf.mxu0
      %v1562 = vadd.f32 0.0, %v1561
      %v1563 = vpop.f32.mrf.mxu0
      %1564 = vmatprep.mubr.bf16.mxu0 0
      %1565 = vmatmul.mubr.bf16.gmra.mxu0 %v1445
      %v1566 = vpop.f32.mrf.mxu0
      %v1567 = vadd.f32 0.0, %v1566
      %v1568 = vpop.f32.mrf.mxu0
      %v1569 = vpop.f32.mrf.mxu0
      %v1570 = vadd.f32 0.0, %v1569
      %v1571 = vpop.f32.mrf.mxu0
      %1572 = vmatprep.mubr.bf16.mxu0 0
      %1573 = vmatmul.mubr.bf16.gmra.mxu0 %v1448
      %v1574 = vpop.f32.mrf.mxu0
      %v1575 = vadd.f32 0.0, %v1574
      %v1576 = vpop.f32.mrf.mxu0
      %v1577 = vpop.f32.mrf.mxu0
      %v1578 = vadd.f32 0.0, %v1577
      %v1579 = vpop.f32.mrf.mxu0
      %1580 = vmatprep.mubr.bf16.mxu0 0
      %1581 = vmatmul.mubr.bf16.gmra.mxu0 %v1451
      %v1582 = vpop.f32.mrf.mxu0
      %v1583 = vadd.f32 0.0, %v1582
      %v1584 = vpop.f32.mrf.mxu0
      %v1585 = vpop.f32.mrf.mxu0
      %v1586 = vadd.f32 0.0, %v1585
      %v1587 = vpop.f32.mrf.mxu0
      %1588 = vmatprep.mubr.bf16.mxu0 0
      %1589 = vmatmul.mubr.bf16.gmra.mxu0 %v1454
      %v1590 = vpop.f32.mrf.mxu0
      %v1591 = vadd.f32 0.0, %v1590
      %v1592 = vpop.f32.mrf.mxu0
      %v1593 = vpop.f32.mrf.mxu0
      %v1594 = vadd.f32 0.0, %v1593
      %v1595 = vpop.f32.mrf.mxu0
      %1596 = vmatprep.mubr.bf16.mxu0 0
      %1597 = vmatmul.mubr.bf16.gmra.mxu0 %v1457
      %v1598 = vpop.f32.mrf.mxu0
      %v1599 = vadd.f32 0.0, %v1598
      %v1600 = vpop.f32.mrf.mxu0
      %v1601 = vpop.f32.mrf.mxu0
      %v1602 = vadd.f32 0.0, %v1601
      %v1603 = vpop.f32.mrf.mxu0
      %1604 = vmatprep.mubr.bf16.mxu0 0
      %1605 = vmatmul.mubr.bf16.gmra.mxu0 %v1460
      %v1606 = vpop.f32.mrf.mxu0
      %v1607 = vadd.f32 0.0, %v1606
      %v1608 = vpop.f32.mrf.mxu0
      %v1609 = vpop.f32.mrf.mxu0
      %v1610 = vadd.f32 0.0, %v1609
      %v1611 = vpop.f32.mrf.mxu0
      %1612 = vmatprep.mubr.bf16.mxu0 0
      %1613 = vmatmul.mubr.bf16.gmra.mxu0 %v1463
      %v1614 = vpop.f32.mrf.mxu0
      %v1615 = vadd.f32 0.0, %v1614
      %v1616 = vpop.f32.mrf.mxu0
      %v1617 = vpop.f32.mrf.mxu0
      %v1618 = vadd.f32 0.0, %v1617
      %v1619 = vpop.f32.mrf.mxu0
      %1620 = vmatprep.mubr.bf16.mxu0 0
      %1621 = vmatmul.mubr.bf16.gmra.mxu0 %v1466
      %v1622 = vpop.f32.mrf.mxu0
      %v1623 = vadd.f32 0.0, %v1622
      %v1624 = vpop.f32.mrf.mxu0
      %v1625 = vpop.f32.mrf.mxu0
      %v1626 = vadd.f32 0.0, %v1625
      %v1627 = vpop.f32.mrf.mxu0
      %1628 = vdwg.mxu0
      %v1631 = vunpack.c.l.b16 %v1407
      %v1632 = vunpack.c.l.b16 %v1408
      %v1633 = vpack.c.b16 %v1632, %v1631
      %v1636 = vsel %vm830, %v1391, 0
      %1638 = vmatprep.subr.bf16.mxu0 0
      %1639 = vmatpush1.bf16.msra.mxu0 0
      %1640 = vmatprep.subr.bf16.mxu0 0
      %1641 = vmatpush1.bf16.msra.mxu0 0
      %1642 = vmatprep.subr.bf16.mxu0 0
      %1643 = vmatpush1.bf16.msra.mxu0 0
      %1644 = vmatprep.subr.bf16.mxu0 0
      %1645 = vmatpush1.bf16.msra.mxu0 0
      %1646 = vmatprep.subr.bf16.mxu0 0
      %1647 = vmatpush1.bf16.msra.mxu0 0
      %1648 = vmatprep.subr.bf16.mxu0 0
      %1649 = vmatpush1.bf16.msra.mxu0 0
      %1650 = vmatprep.subr.bf16.mxu0 0
      %1651 = vmatpush1.bf16.msra.mxu0 0
      %1652 = vmatprep.subr.bf16.mxu0 0
      %1653 = vmatpush1.bf16.msra.mxu0 %v1633
      %1654 = vmatprep.subr.bf16.mxu0 0
      %1655 = vmatpush2.bf16.msra.mxu0 0
      %1656 = vmatprep.subr.bf16.mxu0 0
      %1657 = vmatpush2.bf16.msra.mxu0 0
      %1658 = vmatprep.subr.bf16.mxu0 0
      %1659 = vmatpush2.bf16.msra.mxu0 0
      %1660 = vmatprep.subr.bf16.mxu0 0
      %1661 = vmatpush2.bf16.msra.mxu0 0
      %1662 = vmatprep.subr.bf16.mxu0 0
      %1663 = vmatpush2.bf16.msra.mxu0 0
      %1664 = vmatprep.subr.bf16.mxu0 0
      %1665 = vmatpush2.bf16.msra.mxu0 0
      %1666 = vmatprep.subr.bf16.mxu0 0
      %1667 = vmatpush2.bf16.msra.mxu0 0
      %1668 = vmatprep.subr.bf16.mxu0 0
      %1669 = vmatpush2.bf16.msra.mxu0 0
      %1670 = vmatprep.mubr.bf16.mxu0 0
      %1671 = vmatmul.mubr.bf16.gmra.mxu0 %v1636
      %v1672 = vpop.f32.mrf.mxu0
      %v1673 = vadd.f32 %v1503, %v1672
      %v1674 = vpop.f32.mrf.mxu0
      %v1675 = vpop.f32.mrf.mxu0
      %v1676 = vadd.f32 %v1506, %v1675
      %v1677 = vpop.f32.mrf.mxu0
      %1678 = vmatprep.mubr.bf16.mxu0 0
      %1679 = vmatmul.mubr.bf16.gmra.mxu0 %v1421
      %v1680 = vpop.f32.mrf.mxu0
      %v1681 = vadd.f32 %v1511, %v1680
      %v1682 = vpop.f32.mrf.mxu0
      %v1683 = vpop.f32.mrf.mxu0
      %v1684 = vadd.f32 %v1514, %v1683
      %v1685 = vpop.f32.mrf.mxu0
      %1686 = vmatprep.mubr.bf16.mxu0 0
      %1687 = vmatmul.mubr.bf16.gmra.mxu0 %v1424
      %v1688 = vpop.f32.mrf.mxu0
      %v1689 = vadd.f32 %v1519, %v1688
      %v1690 = vpop.f32.mrf.mxu0
      %v1691 = vpop.f32.mrf.mxu0
      %v1692 = vadd.f32 %v1522, %v1691
      %v1693 = vpop.f32.mrf.mxu0
      %1694 = vmatprep.mubr.bf16.mxu0 0
      %1695 = vmatmul.mubr.bf16.gmra.mxu0 %v1427
      %v1696 = vpop.f32.mrf.mxu0
      %v1697 = vadd.f32 %v1527, %v1696
      %v1698 = vpop.f32.mrf.mxu0
      %v1699 = vpop.f32.mrf.mxu0
      %v1700 = vadd.f32 %v1530, %v1699
      %v1701 = vpop.f32.mrf.mxu0
      %1702 = vmatprep.mubr.bf16.mxu0 0
      %1703 = vmatmul.mubr.bf16.gmra.mxu0 %v1430
      %v1704 = vpop.f32.mrf.mxu0
      %v1705 = vadd.f32 %v1535, %v1704
      %v1706 = vpop.f32.mrf.mxu0
      %v1707 = vpop.f32.mrf.mxu0
      %v1708 = vadd.f32 %v1538, %v1707
      %v1709 = vpop.f32.mrf.mxu0
      %1710 = vmatprep.mubr.bf16.mxu0 0
      %1711 = vmatmul.mubr.bf16.gmra.mxu0 %v1433
      %v1712 = vpop.f32.mrf.mxu0
      %v1713 = vadd.f32 %v1543, %v1712
      %v1714 = vpop.f32.mrf.mxu0
      %v1715 = vpop.f32.mrf.mxu0
      %v1716 = vadd.f32 %v1546, %v1715
      %v1717 = vpop.f32.mrf.mxu0
      %1718 = vmatprep.mubr.bf16.mxu0 0
      %1719 = vmatmul.mubr.bf16.gmra.mxu0 %v1436
      %v1720 = vpop.f32.mrf.mxu0
      %v1721 = vadd.f32 %v1551, %v1720
      %v1722 = vpop.f32.mrf.mxu0
      %v1723 = vpop.f32.mrf.mxu0
      %v1724 = vadd.f32 %v1554, %v1723
      %v1725 = vpop.f32.mrf.mxu0
      %1726 = vmatprep.mubr.bf16.mxu0 0
      %1727 = vmatmul.mubr.bf16.gmra.mxu0 %v1439
      %v1728 = vpop.f32.mrf.mxu0
      %v1729 = vadd.f32 %v1559, %v1728
      %v1730 = vpop.f32.mrf.mxu0
      %v1731 = vpop.f32.mrf.mxu0
      %v1732 = vadd.f32 %v1562, %v1731
      %v1733 = vpop.f32.mrf.mxu0
      %1734 = vmatprep.mubr.bf16.mxu0 0
      %1735 = vmatmul.mubr.bf16.gmra.mxu0 %v1442
      %v1736 = vpop.f32.mrf.mxu0
      %v1737 = vadd.f32 %v1567, %v1736
      %v1738 = vpop.f32.mrf.mxu0
      %v1739 = vpop.f32.mrf.mxu0
      %v1740 = vadd.f32 %v1570, %v1739
      %v1741 = vpop.f32.mrf.mxu0
      %1742 = vmatprep.mubr.bf16.mxu0 0
      %1743 = vmatmul.mubr.bf16.gmra.mxu0 %v1445
      %v1744 = vpop.f32.mrf.mxu0
      %v1745 = vadd.f32 %v1575, %v1744
      %v1746 = vpop.f32.mrf.mxu0
      %v1747 = vpop.f32.mrf.mxu0
      %v1748 = vadd.f32 %v1578, %v1747
      %v1749 = vpop.f32.mrf.mxu0
      %1750 = vmatprep.mubr.bf16.mxu0 0
      %1751 = vmatmul.mubr.bf16.gmra.mxu0 %v1448
      %v1752 = vpop.f32.mrf.mxu0
      %v1753 = vadd.f32 %v1583, %v1752
      %v1754 = vpop.f32.mrf.mxu0
      %v1755 = vpop.f32.mrf.mxu0
      %v1756 = vadd.f32 %v1586, %v1755
      %v1757 = vpop.f32.mrf.mxu0
      %1758 = vmatprep.mubr.bf16.mxu0 0
      %1759 = vmatmul.mubr.bf16.gmra.mxu0 %v1451
      %v1760 = vpop.f32.mrf.mxu0
      %v1761 = vadd.f32 %v1591, %v1760
      %v1762 = vpop.f32.mrf.mxu0
      %v1763 = vpop.f32.mrf.mxu0
      %v1764 = vadd.f32 %v1594, %v1763
      %v1765 = vpop.f32.mrf.mxu0
      %1766 = vmatprep.mubr.bf16.mxu0 0
      %1767 = vmatmul.mubr.bf16.gmra.mxu0 %v1454
      %v1768 = vpop.f32.mrf.mxu0
      %v1769 = vadd.f32 %v1599, %v1768
      %v1770 = vpop.f32.mrf.mxu0
      %v1771 = vpop.f32.mrf.mxu0
      %v1772 = vadd.f32 %v1602, %v1771
      %v1773 = vpop.f32.mrf.mxu0
      %1774 = vmatprep.mubr.bf16.mxu0 0
      %1775 = vmatmul.mubr.bf16.gmra.mxu0 %v1457
      %v1776 = vpop.f32.mrf.mxu0
      %v1777 = vadd.f32 %v1607, %v1776
      %v1778 = vpop.f32.mrf.mxu0
      %v1779 = vpop.f32.mrf.mxu0
      %v1780 = vadd.f32 %v1610, %v1779
      %v1781 = vpop.f32.mrf.mxu0
      %1782 = vmatprep.mubr.bf16.mxu0 0
      %1783 = vmatmul.mubr.bf16.gmra.mxu0 %v1460
      %v1784 = vpop.f32.mrf.mxu0
      %v1785 = vadd.f32 %v1615, %v1784
      %v1786 = vpop.f32.mrf.mxu0
      %v1787 = vpop.f32.mrf.mxu0
      %v1788 = vadd.f32 %v1618, %v1787
      %v1789 = vpop.f32.mrf.mxu0
      %1790 = vmatprep.mubr.bf16.mxu0 0
      %1791 = vmatmul.mubr.bf16.gmra.mxu0 %v1463
      %v1792 = vpop.f32.mrf.mxu0
      %v1793 = vadd.f32 %v1623, %v1792
      %v1794 = vpop.f32.mrf.mxu0
      %v1795 = vpop.f32.mrf.mxu0
      %v1796 = vadd.f32 %v1626, %v1795
      %v1797 = vpop.f32.mrf.mxu0
      %1798 = vdwg.mxu0
      %v1799 = vld [vmem:[#allocation2 + $0x27] sm:$0xff]
      %v1800 = vld [vmem:[#allocation2 + $0x2f] sm:$0xff]
      %v1801 = vld [vmem:[#allocation2 + $0x37] sm:$0xff]
      %v1802 = vld [vmem:[#allocation2 + $0x3f] sm:$0xff]
      %v1803 = vld [vmem:[#allocation2 + $0x47] sm:$0xff]
      %v1804 = vld [vmem:[#allocation2 + $0x4f] sm:$0xff]
      %v1805 = vld [vmem:[#allocation2 + $0x57] sm:$0xff]
      %v1806 = vld [vmem:[#allocation2 + $0x5f] sm:$0xff]
      %v1807 = vld [vmem:[#allocation2 + $0x67] sm:$0xff]
      %v1808 = vld [vmem:[#allocation2 + $0x6f] sm:$0xff]
      %v1809 = vld [vmem:[#allocation2 + $0x77] sm:$0xff]
      %v1810 = vld [vmem:[#allocation2 + $0x7f] sm:$0xff]
      %v1811 = vld [vmem:[#allocation2 + $0x87] sm:$0xff]
      %v1812 = vld [vmem:[#allocation2 + $0x8f] sm:$0xff]
      %v1813 = vld [vmem:[#allocation2 + $0x97] sm:$0xff]
      %v1814 = vld [vmem:[#allocation2 + $0x9f] sm:$0xff]
      %v1815 = vld [vmem:[#allocation2 + $0xa7] sm:$0xff]
      %v1816 = vld [vmem:[#allocation2 + $0xaf] sm:$0xff]
      %v1817 = vld [vmem:[#allocation2 + $0xb7] sm:$0xff]
      %v1818 = vld [vmem:[#allocation2 + $0xbf] sm:$0xff]
      %v1819 = vld [vmem:[#allocation2 + $0xc7] sm:$0xff]
      %v1820 = vld [vmem:[#allocation2 + $0xcf] sm:$0xff]
      %v1821 = vld [vmem:[#allocation2 + $0xd7] sm:$0xff]
      %v1822 = vld [vmem:[#allocation2 + $0xdf] sm:$0xff]
      %v1823 = vld [vmem:[#allocation2 + $0xe7] sm:$0xff]
      %v1824 = vld [vmem:[#allocation2 + $0xef] sm:$0xff]
      %v1825 = vld [vmem:[#allocation2 + $0xf7] sm:$0xff]
      %v1826 = vld [vmem:[#allocation2 + $0xff] sm:$0xff]
      %v1827 = vld [vmem:[#allocation2 + $0x107] sm:$0xff]
      %v1828 = vld [vmem:[#allocation2 + $0x10f] sm:$0xff]
      %v1829 = vld [vmem:[#allocation2 + $0x117] sm:$0xff]
      %v1830 = vld [vmem:[#allocation2 + $0x11f] sm:$0xff]
      %v1831 = vpack.c.bf16 %v1800, %v1799
      %v1832 = vpack.c.bf16 %v1802, %v1801
      %v1833 = vpack.c.bf16 %v1804, %v1803
      %v1834 = vpack.c.bf16 %v1806, %v1805
      %v1835 = vpack.c.bf16 %v1808, %v1807
      %v1836 = vpack.c.bf16 %v1810, %v1809
      %v1837 = vpack.c.bf16 %v1812, %v1811
      %v1838 = vpack.c.bf16 %v1814, %v1813
      %v1839 = vpack.c.bf16 %v1816, %v1815
      %v1840 = vpack.c.bf16 %v1818, %v1817
      %v1841 = vpack.c.bf16 %v1820, %v1819
      %v1842 = vpack.c.bf16 %v1822, %v1821
      %v1843 = vpack.c.bf16 %v1824, %v1823
      %v1844 = vpack.c.bf16 %v1826, %v1825
      %v1845 = vpack.c.bf16 %v1828, %v1827
      %v1846 = vpack.c.bf16 %v1830, %v1829
      %v1847 = vld [vmem:[%s8 + $0x30] sm:$0xf]
      %v1848 = vld [vmem:[%s8 + $0x34] sm:$0xf]
      %v1851 = vunpack.c.l.b16 %v1847
      %v1852 = vunpack.c.l.b16 %v1848
      %v1853 = vpack.c.b16 %v1852, %v1851
      %v1856 = vsel %vm830, %v1831, 0
      %v1859 = vsel %vm830, %v1832, 0
      %v1862 = vsel %vm830, %v1833, 0
      %v1865 = vsel %vm830, %v1834, 0
      %v1868 = vsel %vm830, %v1835, 0
      %v1871 = vsel %vm830, %v1836, 0
      %v1874 = vsel %vm830, %v1837, 0
      %v1877 = vsel %vm830, %v1838, 0
      %v1880 = vsel %vm830, %v1839, 0
      %v1883 = vsel %vm830, %v1840, 0
      %v1886 = vsel %vm830, %v1841, 0
      %v1889 = vsel %vm830, %v1842, 0
      %v1892 = vsel %vm830, %v1843, 0
      %v1895 = vsel %vm830, %v1844, 0
      %v1898 = vsel %vm830, %v1845, 0
      %v1901 = vsel %vm830, %v1846, 0
      %1903 = vmatprep.subr.bf16.mxu0 0
      %1904 = vmatpush1.bf16.msra.mxu0 0
      %1905 = vmatprep.subr.bf16.mxu0 0
      %1906 = vmatpush1.bf16.msra.mxu0 0
      %1907 = vmatprep.subr.bf16.mxu0 0
      %1908 = vmatpush1.bf16.msra.mxu0 0
      %1909 = vmatprep.subr.bf16.mxu0 0
      %1910 = vmatpush1.bf16.msra.mxu0 0
      %1911 = vmatprep.subr.bf16.mxu0 0
      %1912 = vmatpush1.bf16.msra.mxu0 0
      %1913 = vmatprep.subr.bf16.mxu0 0
      %1914 = vmatpush1.bf16.msra.mxu0 0
      %1915 = vmatprep.subr.bf16.mxu0 0
      %1916 = vmatpush1.bf16.msra.mxu0 0
      %1917 = vmatprep.subr.bf16.mxu0 0
      %1918 = vmatpush1.bf16.msra.mxu0 %v1853
      %1919 = vmatprep.subr.bf16.mxu0 0
      %1920 = vmatpush2.bf16.msra.mxu0 0
      %1921 = vmatprep.subr.bf16.mxu0 0
      %1922 = vmatpush2.bf16.msra.mxu0 0
      %1923 = vmatprep.subr.bf16.mxu0 0
      %1924 = vmatpush2.bf16.msra.mxu0 0
      %1925 = vmatprep.subr.bf16.mxu0 0
      %1926 = vmatpush2.bf16.msra.mxu0 0
      %1927 = vmatprep.subr.bf16.mxu0 0
      %1928 = vmatpush2.bf16.msra.mxu0 0
      %1929 = vmatprep.subr.bf16.mxu0 0
      %1930 = vmatpush2.bf16.msra.mxu0 0
      %1931 = vmatprep.subr.bf16.mxu0 0
      %1932 = vmatpush2.bf16.msra.mxu0 0
      %1933 = vmatprep.subr.bf16.mxu0 0
      %1934 = vmatpush2.bf16.msra.mxu0 0
      %1935 = vmatprep.mubr.bf16.mxu0 0
      %1936 = vmatmul.mubr.bf16.gmra.mxu0 %v1856
      %v1937 = vpop.f32.mrf.mxu0
      %v1938 = vadd.f32 0.0, %v1937
      %v1939 = vpop.f32.mrf.mxu0
      %v1940 = vpop.f32.mrf.mxu0
      %v1941 = vadd.f32 0.0, %v1940
      %v1942 = vpop.f32.mrf.mxu0
      %1943 = vmatprep.mubr.bf16.mxu0 0
      %1944 = vmatmul.mubr.bf16.gmra.mxu0 %v1859
      %v1945 = vpop.f32.mrf.mxu0
      %v1946 = vadd.f32 0.0, %v1945
      %v1947 = vpop.f32.mrf.mxu0
      %v1948 = vpop.f32.mrf.mxu0
      %v1949 = vadd.f32 0.0, %v1948
      %v1950 = vpop.f32.mrf.mxu0
      %1951 = vmatprep.mubr.bf16.mxu0 0
      %1952 = vmatmul.mubr.bf16.gmra.mxu0 %v1862
      %v1953 = vpop.f32.mrf.mxu0
      %v1954 = vadd.f32 0.0, %v1953
      %v1955 = vpop.f32.mrf.mxu0
      %v1956 = vpop.f32.mrf.mxu0
      %v1957 = vadd.f32 0.0, %v1956
      %v1958 = vpop.f32.mrf.mxu0
      %1959 = vmatprep.mubr.bf16.mxu0 0
      %1960 = vmatmul.mubr.bf16.gmra.mxu0 %v1865
      %v1961 = vpop.f32.mrf.mxu0
      %v1962 = vadd.f32 0.0, %v1961
      %v1963 = vpop.f32.mrf.mxu0
      %v1964 = vpop.f32.mrf.mxu0
      %v1965 = vadd.f32 0.0, %v1964
      %v1966 = vpop.f32.mrf.mxu0
      %1967 = vmatprep.mubr.bf16.mxu0 0
      %1968 = vmatmul.mubr.bf16.gmra.mxu0 %v1868
      %v1969 = vpop.f32.mrf.mxu0
      %v1970 = vadd.f32 0.0, %v1969
      %v1971 = vpop.f32.mrf.mxu0
      %v1972 = vpop.f32.mrf.mxu0
      %v1973 = vadd.f32 0.0, %v1972
      %v1974 = vpop.f32.mrf.mxu0
      %1975 = vmatprep.mubr.bf16.mxu0 0
      %1976 = vmatmul.mubr.bf16.gmra.mxu0 %v1871
      %v1977 = vpop.f32.mrf.mxu0
      %v1978 = vadd.f32 0.0, %v1977
      %v1979 = vpop.f32.mrf.mxu0
      %v1980 = vpop.f32.mrf.mxu0
      %v1981 = vadd.f32 0.0, %v1980
      %v1982 = vpop.f32.mrf.mxu0
      %1983 = vmatprep.mubr.bf16.mxu0 0
      %1984 = vmatmul.mubr.bf16.gmra.mxu0 %v1874
      %v1985 = vpop.f32.mrf.mxu0
      %v1986 = vadd.f32 0.0, %v1985
      %v1987 = vpop.f32.mrf.mxu0
      %v1988 = vpop.f32.mrf.mxu0
      %v1989 = vadd.f32 0.0, %v1988
      %v1990 = vpop.f32.mrf.mxu0
      %1991 = vmatprep.mubr.bf16.mxu0 0
      %1992 = vmatmul.mubr.bf16.gmra.mxu0 %v1877
      %v1993 = vpop.f32.mrf.mxu0
      %v1994 = vadd.f32 0.0, %v1993
      %v1995 = vpop.f32.mrf.mxu0
      %v1996 = vpop.f32.mrf.mxu0
      %v1997 = vadd.f32 0.0, %v1996
      %v1998 = vpop.f32.mrf.mxu0
      %1999 = vmatprep.mubr.bf16.mxu0 0
      %2000 = vmatmul.mubr.bf16.gmra.mxu0 %v1880
      %v2001 = vpop.f32.mrf.mxu0
      %v2002 = vadd.f32 0.0, %v2001
      %v2003 = vpop.f32.mrf.mxu0
      %v2004 = vpop.f32.mrf.mxu0
      %v2005 = vadd.f32 0.0, %v2004
      %v2006 = vpop.f32.mrf.mxu0
      %2007 = vmatprep.mubr.bf16.mxu0 0
      %2008 = vmatmul.mubr.bf16.gmra.mxu0 %v1883
      %v2009 = vpop.f32.mrf.mxu0
      %v2010 = vadd.f32 0.0, %v2009
      %v2011 = vpop.f32.mrf.mxu0
      %v2012 = vpop.f32.mrf.mxu0
      %v2013 = vadd.f32 0.0, %v2012
      %v2014 = vpop.f32.mrf.mxu0
      %2015 = vmatprep.mubr.bf16.mxu0 0
      %2016 = vmatmul.mubr.bf16.gmra.mxu0 %v1886
      %v2017 = vpop.f32.mrf.mxu0
      %v2018 = vadd.f32 0.0, %v2017
      %v2019 = vpop.f32.mrf.mxu0
      %v2020 = vpop.f32.mrf.mxu0
      %v2021 = vadd.f32 0.0, %v2020
      %v2022 = vpop.f32.mrf.mxu0
      %2023 = vmatprep.mubr.bf16.mxu0 0
      %2024 = vmatmul.mubr.bf16.gmra.mxu0 %v1889
      %v2025 = vpop.f32.mrf.mxu0
      %v2026 = vadd.f32 0.0, %v2025
      %v2027 = vpop.f32.mrf.mxu0
      %v2028 = vpop.f32.mrf.mxu0
      %v2029 = vadd.f32 0.0, %v2028
      %v2030 = vpop.f32.mrf.mxu0
      %2031 = vmatprep.mubr.bf16.mxu0 0
      %2032 = vmatmul.mubr.bf16.gmra.mxu0 %v1892
      %v2033 = vpop.f32.mrf.mxu0
      %v2034 = vadd.f32 0.0, %v2033
      %v2035 = vpop.f32.mrf.mxu0
      %v2036 = vpop.f32.mrf.mxu0
      %v2037 = vadd.f32 0.0, %v2036
      %v2038 = vpop.f32.mrf.mxu0
      %2039 = vmatprep.mubr.bf16.mxu0 0
      %2040 = vmatmul.mubr.bf16.gmra.mxu0 %v1895
      %v2041 = vpop.f32.mrf.mxu0
      %v2042 = vadd.f32 0.0, %v2041
      %v2043 = vpop.f32.mrf.mxu0
      %v2044 = vpop.f32.mrf.mxu0
      %v2045 = vadd.f32 0.0, %v2044
      %v2046 = vpop.f32.mrf.mxu0
      %2047 = vmatprep.mubr.bf16.mxu0 0
      %2048 = vmatmul.mubr.bf16.gmra.mxu0 %v1898
      %v2049 = vpop.f32.mrf.mxu0
      %v2050 = vadd.f32 0.0, %v2049
      %v2051 = vpop.f32.mrf.mxu0
      %v2052 = vpop.f32.mrf.mxu0
      %v2053 = vadd.f32 0.0, %v2052
      %v2054 = vpop.f32.mrf.mxu0
      %2055 = vmatprep.mubr.bf16.mxu0 0
      %2056 = vmatmul.mubr.bf16.gmra.mxu0 %v1901
      %v2057 = vpop.f32.mrf.mxu0
      %v2058 = vadd.f32 0.0, %v2057
      %v2059 = vpop.f32.mrf.mxu0
      %v2060 = vpop.f32.mrf.mxu0
      %v2061 = vadd.f32 0.0, %v2060
      %v2062 = vpop.f32.mrf.mxu0
      %2063 = vdwg.mxu0
      %v2064 = vadd.f32 %v1673, %v1938
      %v2065 = vadd.f32 %v1676, %v1941
      %v2066 = vadd.f32 %v1681, %v1946
      %v2067 = vadd.f32 %v1684, %v1949
      %v2068 = vadd.f32 %v1689, %v1954
      %v2069 = vadd.f32 %v1692, %v1957
      %v2070 = vadd.f32 %v1697, %v1962
      %v2071 = vadd.f32 %v1700, %v1965
      %v2072 = vadd.f32 %v1705, %v1970
      %v2073 = vadd.f32 %v1708, %v1973
      %v2074 = vadd.f32 %v1713, %v1978
      %v2075 = vadd.f32 %v1716, %v1981
      %v2076 = vadd.f32 %v1721, %v1986
      %v2077 = vadd.f32 %v1724, %v1989
      %v2078 = vadd.f32 %v1729, %v1994
      %v2079 = vadd.f32 %v1732, %v1997
      %v2080 = vadd.f32 %v1737, %v2002
      %v2081 = vadd.f32 %v1740, %v2005
      %v2082 = vadd.f32 %v1745, %v2010
      %v2083 = vadd.f32 %v1748, %v2013
      %v2084 = vadd.f32 %v1753, %v2018
      %v2085 = vadd.f32 %v1756, %v2021
      %v2086 = vadd.f32 %v1761, %v2026
      %v2087 = vadd.f32 %v1764, %v2029
      %v2088 = vadd.f32 %v1769, %v2034
      %v2089 = vadd.f32 %v1772, %v2037
      %v2090 = vadd.f32 %v1777, %v2042
      %v2091 = vadd.f32 %v1780, %v2045
      %v2092 = vadd.f32 %v1785, %v2050
      %v2093 = vadd.f32 %v1788, %v2053
      %v2094 = vadd.f32 %v1793, %v2058
      %v2095 = vadd.f32 %v1796, %v2061
      %2097 = vset.pattern.permute.xlu0 0
      %2098 = vperm.xlu0 %2097, %v766
      %v2099 = vpop.permute.xlu0 %2098
      %2102 = vset.pattern.permute.xlu0 0
      %2103 = vperm.xlu0 %2102, %v767
      %v2104 = vpop.permute.xlu0 %2103
      %2107 = vset.pattern.permute.xlu0 0
      %2108 = vperm.xlu0 %2107, %v768
      %v2109 = vpop.permute.xlu0 %2108
      %2112 = vset.pattern.permute.xlu0 0
      %2113 = vperm.xlu0 %2112, %v769
      %v2114 = vpop.permute.xlu0 %2113
      %2117 = vset.pattern.permute.xlu0 0
      %2118 = vperm.xlu0 %2117, %v770
      %v2119 = vpop.permute.xlu0 %2118
      %2122 = vset.pattern.permute.xlu0 0
      %2123 = vperm.xlu0 %2122, %v771
      %v2124 = vpop.permute.xlu0 %2123
      %2127 = vset.pattern.permute.xlu0 0
      %2128 = vperm.xlu0 %2127, %v772
      %v2129 = vpop.permute.xlu0 %2128
      %2132 = vset.pattern.permute.xlu0 0
      %2133 = vperm.xlu0 %2132, %v773
      %v2134 = vpop.permute.xlu0 %2133
      %2137 = vset.pattern.permute.xlu0 0
      %2138 = vperm.xlu0 %2137, %v774
      %v2139 = vpop.permute.xlu0 %2138
      %2142 = vset.pattern.permute.xlu0 0
      %2143 = vperm.xlu0 %2142, %v775
      %v2144 = vpop.permute.xlu0 %2143
      %2147 = vset.pattern.permute.xlu0 0
      %2148 = vperm.xlu0 %2147, %v776
      %v2149 = vpop.permute.xlu0 %2148
      %2152 = vset.pattern.permute.xlu0 0
      %2153 = vperm.xlu0 %2152, %v777
      %v2154 = vpop.permute.xlu0 %2153
      %2157 = vset.pattern.permute.xlu0 0
      %2158 = vperm.xlu0 %2157, %v778
      %v2159 = vpop.permute.xlu0 %2158
      %2162 = vset.pattern.permute.xlu0 0
      %2163 = vperm.xlu0 %2162, %v779
      %v2164 = vpop.permute.xlu0 %2163
      %2167 = vset.pattern.permute.xlu0 0
      %2168 = vperm.xlu0 %2167, %v780
      %v2169 = vpop.permute.xlu0 %2168
      %2172 = vset.pattern.permute.xlu0 0
      %2173 = vperm.xlu0 %2172, %v781
      %v2174 = vpop.permute.xlu0 %2173
      %2177 = vset.pattern.permute.xlu0 0
      %2178 = vperm.xlu0 %2177, %v782
      %v2179 = vpop.permute.xlu0 %2178
      %2182 = vset.pattern.permute.xlu0 0
      %2183 = vperm.xlu0 %2182, %v783
      %v2184 = vpop.permute.xlu0 %2183
      %2187 = vset.pattern.permute.xlu0 0
      %2188 = vperm.xlu0 %2187, %v784
      %v2189 = vpop.permute.xlu0 %2188
      %2192 = vset.pattern.permute.xlu0 0
      %2193 = vperm.xlu0 %2192, %v785
      %v2194 = vpop.permute.xlu0 %2193
      %2197 = vset.pattern.permute.xlu0 0
      %2198 = vperm.xlu0 %2197, %v786
      %v2199 = vpop.permute.xlu0 %2198
      %2202 = vset.pattern.permute.xlu0 0
      %2203 = vperm.xlu0 %2202, %v787
      %v2204 = vpop.permute.xlu0 %2203
      %2207 = vset.pattern.permute.xlu0 0
      %2208 = vperm.xlu0 %2207, %v788
      %v2209 = vpop.permute.xlu0 %2208
      %2212 = vset.pattern.permute.xlu0 0
      %2213 = vperm.xlu0 %2212, %v789
      %v2214 = vpop.permute.xlu0 %2213
      %2217 = vset.pattern.permute.xlu0 0
      %2218 = vperm.xlu0 %2217, %v790
      %v2219 = vpop.permute.xlu0 %2218
      %2222 = vset.pattern.permute.xlu0 0
      %2223 = vperm.xlu0 %2222, %v791
      %v2224 = vpop.permute.xlu0 %2223
      %2227 = vset.pattern.permute.xlu0 0
      %2228 = vperm.xlu0 %2227, %v792
      %v2229 = vpop.permute.xlu0 %2228
      %2232 = vset.pattern.permute.xlu0 0
      %2233 = vperm.xlu0 %2232, %v793
      %v2234 = vpop.permute.xlu0 %2233
      %2237 = vset.pattern.permute.xlu0 0
      %2238 = vperm.xlu0 %2237, %v794
      %v2239 = vpop.permute.xlu0 %2238
      %2242 = vset.pattern.permute.xlu0 0
      %2243 = vperm.xlu0 %2242, %v795
      %v2244 = vpop.permute.xlu0 %2243
      %2247 = vset.pattern.permute.xlu0 0
      %2248 = vperm.xlu0 %2247, %v796
      %v2249 = vpop.permute.xlu0 %2248
      %2252 = vset.pattern.permute.xlu0 0
      %2253 = vperm.xlu0 %2252, %v797
      %v2254 = vpop.permute.xlu0 %2253
      %v2256 = vmul.f32 %v2064, %v2099
      %v2257 = vmul.f32 %v2065, %v2104
      %v2258 = vmul.f32 %v2066, %v2109
      %v2259 = vmul.f32 %v2067, %v2114
      %v2260 = vmul.f32 %v2068, %v2119
      %v2261 = vmul.f32 %v2069, %v2124
      %v2262 = vmul.f32 %v2070, %v2129
      %v2263 = vmul.f32 %v2071, %v2134
      %v2264 = vmul.f32 %v2072, %v2139
      %v2265 = vmul.f32 %v2073, %v2144
      %v2266 = vmul.f32 %v2074, %v2149
      %v2267 = vmul.f32 %v2075, %v2154
      %v2268 = vmul.f32 %v2076, %v2159
      %v2269 = vmul.f32 %v2077, %v2164
      %v2270 = vmul.f32 %v2078, %v2169
      %v2271 = vmul.f32 %v2079, %v2174
      %v2272 = vmul.f32 %v2080, %v2179
      %v2273 = vmul.f32 %v2081, %v2184
      %v2274 = vmul.f32 %v2082, %v2189
      %v2275 = vmul.f32 %v2083, %v2194
      %v2276 = vmul.f32 %v2084, %v2199
      %v2277 = vmul.f32 %v2085, %v2204
      %v2278 = vmul.f32 %v2086, %v2209
      %v2279 = vmul.f32 %v2087, %v2214
      %v2280 = vmul.f32 %v2088, %v2219
      %v2281 = vmul.f32 %v2089, %v2224
      %v2282 = vmul.f32 %v2090, %v2229
      %v2283 = vmul.f32 %v2091, %v2234
      %v2284 = vmul.f32 %v2092, %v2239
      %v2285 = vmul.f32 %v2093, %v2244
      %v2286 = vmul.f32 %v2094, %v2249
      %v2287 = vmul.f32 %v2095, %v2254
      %v2288 = vadd.f32 %v1357, %v2256
      %v2289 = vadd.f32 %v1357, %v2257
      %v2290 = vadd.f32 %v1357, %v2258
      %v2291 = vadd.f32 %v1357, %v2259
      %v2292 = vadd.f32 %v1357, %v2260
      %v2293 = vadd.f32 %v1357, %v2261
      %v2294 = vadd.f32 %v1357, %v2262
      %v2295 = vadd.f32 %v1357, %v2263
      %v2296 = vadd.f32 %v1357, %v2264
      %v2297 = vadd.f32 %v1357, %v2265
      %v2298 = vadd.f32 %v1357, %v2266
      %v2299 = vadd.f32 %v1357, %v2267
      %v2300 = vadd.f32 %v1357, %v2268
      %v2301 = vadd.f32 %v1357, %v2269
      %v2302 = vadd.f32 %v1357, %v2270
      %v2303 = vadd.f32 %v1357, %v2271
      %v2304 = vadd.f32 %v1357, %v2272
      %v2305 = vadd.f32 %v1357, %v2273
      %v2306 = vadd.f32 %v1357, %v2274
      %v2307 = vadd.f32 %v1357, %v2275
      %v2308 = vadd.f32 %v1357, %v2276
      %v2309 = vadd.f32 %v1357, %v2277
      %v2310 = vadd.f32 %v1357, %v2278
      %v2311 = vadd.f32 %v1357, %v2279
      %v2312 = vadd.f32 %v1357, %v2280
      %v2313 = vadd.f32 %v1357, %v2281
      %v2314 = vadd.f32 %v1357, %v2282
      %v2315 = vadd.f32 %v1357, %v2283
      %v2316 = vadd.f32 %v1357, %v2284
      %v2317 = vadd.f32 %v1357, %v2285
      %v2318 = vadd.f32 %v1357, %v2286
      %v2319 = vadd.f32 %v1357, %v2287
      %v2320 = vld [vmem:[#allocation2 + $0x8] sm:$0xff]
      %v2321 = vld [vmem:[#allocation2 + $0x10] sm:$0xff]
      %v2322 = vld [vmem:[#allocation2 + $0x18] sm:$0xff]
      %v2323 = vld [vmem:[#allocation2 + $0x20] sm:$0xff]
      %v2324 = vld [vmem:[#allocation2 + $0x28] sm:$0xff]
      %v2325 = vld [vmem:[#allocation2 + $0x30] sm:$0xff]
      %v2326 = vld [vmem:[#allocation2 + $0x38] sm:$0xff]
      %v2327 = vld [vmem:[#allocation2 + $0x40] sm:$0xff]
      %v2328 = vld [vmem:[#allocation2 + $0x48] sm:$0xff]
      %v2329 = vld [vmem:[#allocation2 + $0x50] sm:$0xff]
      %v2330 = vld [vmem:[#allocation2 + $0x58] sm:$0xff]
      %v2331 = vld [vmem:[#allocation2 + $0x60] sm:$0xff]
      %v2332 = vld [vmem:[#allocation2 + $0x68] sm:$0xff]
      %v2333 = vld [vmem:[#allocation2 + $0x70] sm:$0xff]
      %v2334 = vld [vmem:[#allocation2 + $0x78] sm:$0xff]
      %v2335 = vld [vmem:[#allocation2 + $0x80] sm:$0xff]
      %v2336 = vld [vmem:[#allocation2 + $0x88] sm:$0xff]
      %v2337 = vld [vmem:[#allocation2 + $0x90] sm:$0xff]
      %v2338 = vld [vmem:[#allocation2 + $0x98] sm:$0xff]
      %v2339 = vld [vmem:[#allocation2 + $0xa0] sm:$0xff]
      %v2340 = vld [vmem:[#allocation2 + $0xa8] sm:$0xff]
      %v2341 = vld [vmem:[#allocation2 + $0xb0] sm:$0xff]
      %v2342 = vld [vmem:[#allocation2 + $0xb8] sm:$0xff]
      %v2343 = vld [vmem:[#allocation2 + $0xc0] sm:$0xff]
      %v2344 = vld [vmem:[#allocation2 + $0xc8] sm:$0xff]
      %v2345 = vld [vmem:[#allocation2 + $0xd0] sm:$0xff]
      %v2346 = vld [vmem:[#allocation2 + $0xd8] sm:$0xff]
      %v2347 = vld [vmem:[#allocation2 + $0xe0] sm:$0xff]
      %v2348 = vld [vmem:[#allocation2 + $0xe8] sm:$0xff]
      %v2349 = vld [vmem:[#allocation2 + $0xf0] sm:$0xff]
      %v2350 = vld [vmem:[#allocation2 + $0xf8] sm:$0xff]
      %v2351 = vld [vmem:[#allocation2 + $0x100] sm:$0xff]
      %v2352 = vpack.c.bf16 %v2321, %v2320
      %v2353 = vpack.c.bf16 %v2323, %v2322
      %v2354 = vpack.c.bf16 %v2325, %v2324
      %v2355 = vpack.c.bf16 %v2327, %v2326
      %v2356 = vpack.c.bf16 %v2329, %v2328
      %v2357 = vpack.c.bf16 %v2331, %v2330
      %v2358 = vpack.c.bf16 %v2333, %v2332
      %v2359 = vpack.c.bf16 %v2335, %v2334
      %v2360 = vpack.c.bf16 %v2337, %v2336
      %v2361 = vpack.c.bf16 %v2339, %v2338
      %v2362 = vpack.c.bf16 %v2341, %v2340
      %v2363 = vpack.c.bf16 %v2343, %v2342
      %v2364 = vpack.c.bf16 %v2345, %v2344
      %v2365 = vpack.c.bf16 %v2347, %v2346
      %v2366 = vpack.c.bf16 %v2349, %v2348
      %v2367 = vpack.c.bf16 %v2351, %v2350
      %v2368 = vld [vmem:[%s8 + $0x8] sm:$0xf]
      %v2369 = vld [vmem:[%s8 + $0xc] sm:$0xf]
      %v2370 = vld [vmem:[#allocation2 + $0x108] sm:$0xff]
      %v2371 = vld [vmem:[#allocation2 + $0x110] sm:$0xff]
      %v2372 = vpack.c.bf16 %v2371, %v2370
      %v2373 = vld [vmem:[%s8 + $0x20] sm:$0xf]
      %v2374 = vld [vmem:[%s8 + $0x24] sm:$0xf]
      %v2377 = vunpack.c.l.b16 %v2373
      %v2378 = vunpack.c.l.b16 %v2374
      %v2379 = vpack.c.b16 %v2378, %v2377
      %v2382 = vsel %vm830, %v2353, 0
      %v2385 = vsel %vm830, %v2354, 0
      %v2388 = vsel %vm830, %v2355, 0
      %v2391 = vsel %vm830, %v2356, 0
      %v2394 = vsel %vm830, %v2357, 0
      %v2397 = vsel %vm830, %v2358, 0
      %v2400 = vsel %vm830, %v2359, 0
      %v2403 = vsel %vm830, %v2360, 0
      %v2406 = vsel %vm830, %v2361, 0
      %v2409 = vsel %vm830, %v2362, 0
      %v2412 = vsel %vm830, %v2363, 0
      %v2415 = vsel %vm830, %v2364, 0
      %v2418 = vsel %vm830, %v2365, 0
      %v2421 = vsel %vm830, %v2366, 0
      %v2424 = vsel %vm830, %v2367, 0
      %v2427 = vsel %vm830, %v2372, 0
      %2429 = vmatprep.subr.bf16.mxu0 0
      %2430 = vmatpush1.bf16.msra.mxu0 0
      %2431 = vmatprep.subr.bf16.mxu0 0
      %2432 = vmatpush1.bf16.msra.mxu0 0
      %2433 = vmatprep.subr.bf16.mxu0 0
      %2434 = vmatpush1.bf16.msra.mxu0 0
      %2435 = vmatprep.subr.bf16.mxu0 0
      %2436 = vmatpush1.bf16.msra.mxu0 0
      %2437 = vmatprep.subr.bf16.mxu0 0
      %2438 = vmatpush1.bf16.msra.mxu0 0
      %2439 = vmatprep.subr.bf16.mxu0 0
      %2440 = vmatpush1.bf16.msra.mxu0 0
      %2441 = vmatprep.subr.bf16.mxu0 0
      %2442 = vmatpush1.bf16.msra.mxu0 0
      %2443 = vmatprep.subr.bf16.mxu0 0
      %2444 = vmatpush1.bf16.msra.mxu0 %v2379
      %2445 = vmatprep.subr.bf16.mxu0 0
      %2446 = vmatpush2.bf16.msra.mxu0 0
      %2447 = vmatprep.subr.bf16.mxu0 0
      %2448 = vmatpush2.bf16.msra.mxu0 0
      %2449 = vmatprep.subr.bf16.mxu0 0
      %2450 = vmatpush2.bf16.msra.mxu0 0
      %2451 = vmatprep.subr.bf16.mxu0 0
      %2452 = vmatpush2.bf16.msra.mxu0 0
      %2453 = vmatprep.subr.bf16.mxu0 0
      %2454 = vmatpush2.bf16.msra.mxu0 0
      %2455 = vmatprep.subr.bf16.mxu0 0
      %2456 = vmatpush2.bf16.msra.mxu0 0
      %2457 = vmatprep.subr.bf16.mxu0 0
      %2458 = vmatpush2.bf16.msra.mxu0 0
      %2459 = vmatprep.subr.bf16.mxu0 0
      %2460 = vmatpush2.bf16.msra.mxu0 0
      %2461 = vmatprep.mubr.bf16.mxu0 0
      %2462 = vmatmul.mubr.bf16.gmra.mxu0 %v2382
      %v2463 = vpop.f32.mrf.mxu0
      %v2464 = vadd.f32 0.0, %v2463
      %v2465 = vpop.f32.mrf.mxu0
      %v2466 = vpop.f32.mrf.mxu0
      %v2467 = vadd.f32 0.0, %v2466
      %v2468 = vpop.f32.mrf.mxu0
      %2469 = vmatprep.mubr.bf16.mxu0 0
      %2470 = vmatmul.mubr.bf16.gmra.mxu0 %v2385
      %v2471 = vpop.f32.mrf.mxu0
      %v2472 = vadd.f32 0.0, %v2471
      %v2473 = vpop.f32.mrf.mxu0
      %v2474 = vpop.f32.mrf.mxu0
      %v2475 = vadd.f32 0.0, %v2474
      %v2476 = vpop.f32.mrf.mxu0
      %2477 = vmatprep.mubr.bf16.mxu0 0
      %2478 = vmatmul.mubr.bf16.gmra.mxu0 %v2388
      %v2479 = vpop.f32.mrf.mxu0
      %v2480 = vadd.f32 0.0, %v2479
      %v2481 = vpop.f32.mrf.mxu0
      %v2482 = vpop.f32.mrf.mxu0
      %v2483 = vadd.f32 0.0, %v2482
      %v2484 = vpop.f32.mrf.mxu0
      %2485 = vmatprep.mubr.bf16.mxu0 0
      %2486 = vmatmul.mubr.bf16.gmra.mxu0 %v2391
      %v2487 = vpop.f32.mrf.mxu0
      %v2488 = vadd.f32 0.0, %v2487
      %v2489 = vpop.f32.mrf.mxu0
      %v2490 = vpop.f32.mrf.mxu0
      %v2491 = vadd.f32 0.0, %v2490
      %v2492 = vpop.f32.mrf.mxu0
      %2493 = vmatprep.mubr.bf16.mxu0 0
      %2494 = vmatmul.mubr.bf16.gmra.mxu0 %v2394
      %v2495 = vpop.f32.mrf.mxu0
      %v2496 = vadd.f32 0.0, %v2495
      %v2497 = vpop.f32.mrf.mxu0
      %v2498 = vpop.f32.mrf.mxu0
      %v2499 = vadd.f32 0.0, %v2498
      %v2500 = vpop.f32.mrf.mxu0
      %2501 = vmatprep.mubr.bf16.mxu0 0
      %2502 = vmatmul.mubr.bf16.gmra.mxu0 %v2397
      %v2503 = vpop.f32.mrf.mxu0
      %v2504 = vadd.f32 0.0, %v2503
      %v2505 = vpop.f32.mrf.mxu0
      %v2506 = vpop.f32.mrf.mxu0
      %v2507 = vadd.f32 0.0, %v2506
      %v2508 = vpop.f32.mrf.mxu0
      %2509 = vmatprep.mubr.bf16.mxu0 0
      %2510 = vmatmul.mubr.bf16.gmra.mxu0 %v2400
      %v2511 = vpop.f32.mrf.mxu0
      %v2512 = vadd.f32 0.0, %v2511
      %v2513 = vpop.f32.mrf.mxu0
      %v2514 = vpop.f32.mrf.mxu0
      %v2515 = vadd.f32 0.0, %v2514
      %v2516 = vpop.f32.mrf.mxu0
      %2517 = vmatprep.mubr.bf16.mxu0 0
      %2518 = vmatmul.mubr.bf16.gmra.mxu0 %v2403
      %v2519 = vpop.f32.mrf.mxu0
      %v2520 = vadd.f32 0.0, %v2519
      %v2521 = vpop.f32.mrf.mxu0
      %v2522 = vpop.f32.mrf.mxu0
      %v2523 = vadd.f32 0.0, %v2522
      %v2524 = vpop.f32.mrf.mxu0
      %2525 = vmatprep.mubr.bf16.mxu0 0
      %2526 = vmatmul.mubr.bf16.gmra.mxu0 %v2406
      %v2527 = vpop.f32.mrf.mxu0
      %v2528 = vadd.f32 0.0, %v2527
      %v2529 = vpop.f32.mrf.mxu0
      %v2530 = vpop.f32.mrf.mxu0
      %v2531 = vadd.f32 0.0, %v2530
      %v2532 = vpop.f32.mrf.mxu0
      %2533 = vmatprep.mubr.bf16.mxu0 0
      %2534 = vmatmul.mubr.bf16.gmra.mxu0 %v2409
      %v2535 = vpop.f32.mrf.mxu0
      %v2536 = vadd.f32 0.0, %v2535
      %v2537 = vpop.f32.mrf.mxu0
      %v2538 = vpop.f32.mrf.mxu0
      %v2539 = vadd.f32 0.0, %v2538
      %v2540 = vpop.f32.mrf.mxu0
      %2541 = vmatprep.mubr.bf16.mxu0 0
      %2542 = vmatmul.mubr.bf16.gmra.mxu0 %v2412
      %v2543 = vpop.f32.mrf.mxu0
      %v2544 = vadd.f32 0.0, %v2543
      %v2545 = vpop.f32.mrf.mxu0
      %v2546 = vpop.f32.mrf.mxu0
      %v2547 = vadd.f32 0.0, %v2546
      %v2548 = vpop.f32.mrf.mxu0
      %2549 = vmatprep.mubr.bf16.mxu0 0
      %2550 = vmatmul.mubr.bf16.gmra.mxu0 %v2415
      %v2551 = vpop.f32.mrf.mxu0
      %v2552 = vadd.f32 0.0, %v2551
      %v2553 = vpop.f32.mrf.mxu0
      %v2554 = vpop.f32.mrf.mxu0
      %v2555 = vadd.f32 0.0, %v2554
      %v2556 = vpop.f32.mrf.mxu0
      %2557 = vmatprep.mubr.bf16.mxu0 0
      %2558 = vmatmul.mubr.bf16.gmra.mxu0 %v2418
      %v2559 = vpop.f32.mrf.mxu0
      %v2560 = vadd.f32 0.0, %v2559
      %v2561 = vpop.f32.mrf.mxu0
      %v2562 = vpop.f32.mrf.mxu0
      %v2563 = vadd.f32 0.0, %v2562
      %v2564 = vpop.f32.mrf.mxu0
      %2565 = vmatprep.mubr.bf16.mxu0 0
      %2566 = vmatmul.mubr.bf16.gmra.mxu0 %v2421
      %v2567 = vpop.f32.mrf.mxu0
      %v2568 = vadd.f32 0.0, %v2567
      %v2569 = vpop.f32.mrf.mxu0
      %v2570 = vpop.f32.mrf.mxu0
      %v2571 = vadd.f32 0.0, %v2570
      %v2572 = vpop.f32.mrf.mxu0
      %2573 = vmatprep.mubr.bf16.mxu0 0
      %2574 = vmatmul.mubr.bf16.gmra.mxu0 %v2424
      %v2575 = vpop.f32.mrf.mxu0
      %v2576 = vadd.f32 0.0, %v2575
      %v2577 = vpop.f32.mrf.mxu0
      %v2578 = vpop.f32.mrf.mxu0
      %v2579 = vadd.f32 0.0, %v2578
      %v2580 = vpop.f32.mrf.mxu0
      %2581 = vmatprep.mubr.bf16.mxu0 0
      %2582 = vmatmul.mubr.bf16.gmra.mxu0 %v2427
      %v2583 = vpop.f32.mrf.mxu0
      %v2584 = vadd.f32 0.0, %v2583
      %v2585 = vpop.f32.mrf.mxu0
      %v2586 = vpop.f32.mrf.mxu0
      %v2587 = vadd.f32 0.0, %v2586
      %v2588 = vpop.f32.mrf.mxu0
      %2589 = vdwg.mxu0
      %v2592 = vunpack.c.l.b16 %v2368
      %v2593 = vunpack.c.l.b16 %v2369
      %v2594 = vpack.c.b16 %v2593, %v2592
      %v2597 = vsel %vm830, %v2352, 0
      %2599 = vmatprep.subr.bf16.mxu0 0
      %2600 = vmatpush1.bf16.msra.mxu0 0
      %2601 = vmatprep.subr.bf16.mxu0 0
      %2602 = vmatpush1.bf16.msra.mxu0 0
      %2603 = vmatprep.subr.bf16.mxu0 0
      %2604 = vmatpush1.bf16.msra.mxu0 0
      %2605 = vmatprep.subr.bf16.mxu0 0
      %2606 = vmatpush1.bf16.msra.mxu0 0
      %2607 = vmatprep.subr.bf16.mxu0 0
      %2608 = vmatpush1.bf16.msra.mxu0 0
      %2609 = vmatprep.subr.bf16.mxu0 0
      %2610 = vmatpush1.bf16.msra.mxu0 0
      %2611 = vmatprep.subr.bf16.mxu0 0
      %2612 = vmatpush1.bf16.msra.mxu0 0
      %2613 = vmatprep.subr.bf16.mxu0 0
      %2614 = vmatpush1.bf16.msra.mxu0 %v2594
      %2615 = vmatprep.subr.bf16.mxu0 0
      %2616 = vmatpush2.bf16.msra.mxu0 0
      %2617 = vmatprep.subr.bf16.mxu0 0
      %2618 = vmatpush2.bf16.msra.mxu0 0
      %2619 = vmatprep.subr.bf16.mxu0 0
      %2620 = vmatpush2.bf16.msra.mxu0 0
      %2621 = vmatprep.subr.bf16.mxu0 0
      %2622 = vmatpush2.bf16.msra.mxu0 0
      %2623 = vmatprep.subr.bf16.mxu0 0
      %2624 = vmatpush2.bf16.msra.mxu0 0
      %2625 = vmatprep.subr.bf16.mxu0 0
      %2626 = vmatpush2.bf16.msra.mxu0 0
      %2627 = vmatprep.subr.bf16.mxu0 0
      %2628 = vmatpush2.bf16.msra.mxu0 0
      %2629 = vmatprep.subr.bf16.mxu0 0
      %2630 = vmatpush2.bf16.msra.mxu0 0
      %2631 = vmatprep.mubr.bf16.mxu0 0
      %2632 = vmatmul.mubr.bf16.gmra.mxu0 %v2597
      %v2633 = vpop.f32.mrf.mxu0
      %v2634 = vadd.f32 %v2464, %v2633
      %v2635 = vpop.f32.mrf.mxu0
      %v2636 = vpop.f32.mrf.mxu0
      %v2637 = vadd.f32 %v2467, %v2636
      %v2638 = vpop.f32.mrf.mxu0
      %2639 = vmatprep.mubr.bf16.mxu0 0
      %2640 = vmatmul.mubr.bf16.gmra.mxu0 %v2382
      %v2641 = vpop.f32.mrf.mxu0
      %v2642 = vadd.f32 %v2472, %v2641
      %v2643 = vpop.f32.mrf.mxu0
      %v2644 = vpop.f32.mrf.mxu0
      %v2645 = vadd.f32 %v2475, %v2644
      %v2646 = vpop.f32.mrf.mxu0
      %2647 = vmatprep.mubr.bf16.mxu0 0
      %2648 = vmatmul.mubr.bf16.gmra.mxu0 %v2385
      %v2649 = vpop.f32.mrf.mxu0
      %v2650 = vadd.f32 %v2480, %v2649
      %v2651 = vpop.f32.mrf.mxu0
      %v2652 = vpop.f32.mrf.mxu0
      %v2653 = vadd.f32 %v2483, %v2652
      %v2654 = vpop.f32.mrf.mxu0
      %2655 = vmatprep.mubr.bf16.mxu0 0
      %2656 = vmatmul.mubr.bf16.gmra.mxu0 %v2388
      %v2657 = vpop.f32.mrf.mxu0
      %v2658 = vadd.f32 %v2488, %v2657
      %v2659 = vpop.f32.mrf.mxu0
      %v2660 = vpop.f32.mrf.mxu0
      %v2661 = vadd.f32 %v2491, %v2660
      %v2662 = vpop.f32.mrf.mxu0
      %2663 = vmatprep.mubr.bf16.mxu0 0
      %2664 = vmatmul.mubr.bf16.gmra.mxu0 %v2391
      %v2665 = vpop.f32.mrf.mxu0
      %v2666 = vadd.f32 %v2496, %v2665
      %v2667 = vpop.f32.mrf.mxu0
      %v2668 = vpop.f32.mrf.mxu0
      %v2669 = vadd.f32 %v2499, %v2668
      %v2670 = vpop.f32.mrf.mxu0
      %2671 = vmatprep.mubr.bf16.mxu0 0
      %2672 = vmatmul.mubr.bf16.gmra.mxu0 %v2394
      %v2673 = vpop.f32.mrf.mxu0
      %v2674 = vadd.f32 %v2504, %v2673
      %v2675 = vpop.f32.mrf.mxu0
      %v2676 = vpop.f32.mrf.mxu0
      %v2677 = vadd.f32 %v2507, %v2676
      %v2678 = vpop.f32.mrf.mxu0
      %2679 = vmatprep.mubr.bf16.mxu0 0
      %2680 = vmatmul.mubr.bf16.gmra.mxu0 %v2397
      %v2681 = vpop.f32.mrf.mxu0
      %v2682 = vadd.f32 %v2512, %v2681
      %v2683 = vpop.f32.mrf.mxu0
      %v2684 = vpop.f32.mrf.mxu0
      %v2685 = vadd.f32 %v2515, %v2684
      %v2686 = vpop.f32.mrf.mxu0
      %2687 = vmatprep.mubr.bf16.mxu0 0
      %2688 = vmatmul.mubr.bf16.gmra.mxu0 %v2400
      %v2689 = vpop.f32.mrf.mxu0
      %v2690 = vadd.f32 %v2520, %v2689
      %v2691 = vpop.f32.mrf.mxu0
      %v2692 = vpop.f32.mrf.mxu0
      %v2693 = vadd.f32 %v2523, %v2692
      %v2694 = vpop.f32.mrf.mxu0
      %2695 = vmatprep.mubr.bf16.mxu0 0
      %2696 = vmatmul.mubr.bf16.gmra.mxu0 %v2403
      %v2697 = vpop.f32.mrf.mxu0
      %v2698 = vadd.f32 %v2528, %v2697
      %v2699 = vpop.f32.mrf.mxu0
      %v2700 = vpop.f32.mrf.mxu0
      %v2701 = vadd.f32 %v2531, %v2700
      %v2702 = vpop.f32.mrf.mxu0
      %2703 = vmatprep.mubr.bf16.mxu0 0
      %2704 = vmatmul.mubr.bf16.gmra.mxu0 %v2406
      %v2705 = vpop.f32.mrf.mxu0
      %v2706 = vadd.f32 %v2536, %v2705
      %v2707 = vpop.f32.mrf.mxu0
      %v2708 = vpop.f32.mrf.mxu0
      %v2709 = vadd.f32 %v2539, %v2708
      %v2710 = vpop.f32.mrf.mxu0
      %2711 = vmatprep.mubr.bf16.mxu0 0
      %2712 = vmatmul.mubr.bf16.gmra.mxu0 %v2409
      %v2713 = vpop.f32.mrf.mxu0
      %v2714 = vadd.f32 %v2544, %v2713
      %v2715 = vpop.f32.mrf.mxu0
      %v2716 = vpop.f32.mrf.mxu0
      %v2717 = vadd.f32 %v2547, %v2716
      %v2718 = vpop.f32.mrf.mxu0
      %2719 = vmatprep.mubr.bf16.mxu0 0
      %2720 = vmatmul.mubr.bf16.gmra.mxu0 %v2412
      %v2721 = vpop.f32.mrf.mxu0
      %v2722 = vadd.f32 %v2552, %v2721
      %v2723 = vpop.f32.mrf.mxu0
      %v2724 = vpop.f32.mrf.mxu0
      %v2725 = vadd.f32 %v2555, %v2724
      %v2726 = vpop.f32.mrf.mxu0
      %2727 = vmatprep.mubr.bf16.mxu0 0
      %2728 = vmatmul.mubr.bf16.gmra.mxu0 %v2415
      %v2729 = vpop.f32.mrf.mxu0
      %v2730 = vadd.f32 %v2560, %v2729
      %v2731 = vpop.f32.mrf.mxu0
      %v2732 = vpop.f32.mrf.mxu0
      %v2733 = vadd.f32 %v2563, %v2732
      %v2734 = vpop.f32.mrf.mxu0
      %2735 = vmatprep.mubr.bf16.mxu0 0
      %2736 = vmatmul.mubr.bf16.gmra.mxu0 %v2418
      %v2737 = vpop.f32.mrf.mxu0
      %v2738 = vadd.f32 %v2568, %v2737
      %v2739 = vpop.f32.mrf.mxu0
      %v2740 = vpop.f32.mrf.mxu0
      %v2741 = vadd.f32 %v2571, %v2740
      %v2742 = vpop.f32.mrf.mxu0
      %2743 = vmatprep.mubr.bf16.mxu0 0
      %2744 = vmatmul.mubr.bf16.gmra.mxu0 %v2421
      %v2745 = vpop.f32.mrf.mxu0
      %v2746 = vadd.f32 %v2576, %v2745
      %v2747 = vpop.f32.mrf.mxu0
      %v2748 = vpop.f32.mrf.mxu0
      %v2749 = vadd.f32 %v2579, %v2748
      %v2750 = vpop.f32.mrf.mxu0
      %2751 = vmatprep.mubr.bf16.mxu0 0
      %2752 = vmatmul.mubr.bf16.gmra.mxu0 %v2424
      %v2753 = vpop.f32.mrf.mxu0
      %v2754 = vadd.f32 %v2584, %v2753
      %v2755 = vpop.f32.mrf.mxu0
      %v2756 = vpop.f32.mrf.mxu0
      %v2757 = vadd.f32 %v2587, %v2756
      %v2758 = vpop.f32.mrf.mxu0
      %2759 = vdwg.mxu0
      %v2760 = vld [vmem:[#allocation2 + $0x28] sm:$0xff]
      %v2761 = vld [vmem:[#allocation2 + $0x30] sm:$0xff]
      %v2762 = vld [vmem:[#allocation2 + $0x38] sm:$0xff]
      %v2763 = vld [vmem:[#allocation2 + $0x40] sm:$0xff]
      %v2764 = vld [vmem:[#allocation2 + $0x48] sm:$0xff]
      %v2765 = vld [vmem:[#allocation2 + $0x50] sm:$0xff]
      %v2766 = vld [vmem:[#allocation2 + $0x58] sm:$0xff]
      %v2767 = vld [vmem:[#allocation2 + $0x60] sm:$0xff]
      %v2768 = vld [vmem:[#allocation2 + $0x68] sm:$0xff]
      %v2769 = vld [vmem:[#allocation2 + $0x70] sm:$0xff]
      %v2770 = vld [vmem:[#allocation2 + $0x78] sm:$0xff]
      %v2771 = vld [vmem:[#allocation2 + $0x80] sm:$0xff]
      %v2772 = vld [vmem:[#allocation2 + $0x88] sm:$0xff]
      %v2773 = vld [vmem:[#allocation2 + $0x90] sm:$0xff]
      %v2774 = vld [vmem:[#allocation2 + $0x98] sm:$0xff]
      %v2775 = vld [vmem:[#allocation2 + $0xa0] sm:$0xff]
      %v2776 = vld [vmem:[#allocation2 + $0xa8] sm:$0xff]
      %v2777 = vld [vmem:[#allocation2 + $0xb0] sm:$0xff]
      %v2778 = vld [vmem:[#allocation2 + $0xb8] sm:$0xff]
      %v2779 = vld [vmem:[#allocation2 + $0xc0] sm:$0xff]
      %v2780 = vld [vmem:[#allocation2 + $0xc8] sm:$0xff]
      %v2781 = vld [vmem:[#allocation2 + $0xd0] sm:$0xff]
      %v2782 = vld [vmem:[#allocation2 + $0xd8] sm:$0xff]
      %v2783 = vld [vmem:[#allocation2 + $0xe0] sm:$0xff]
      %v2784 = vld [vmem:[#allocation2 + $0xe8] sm:$0xff]
      %v2785 = vld [vmem:[#allocation2 + $0xf0] sm:$0xff]
      %v2786 = vld [vmem:[#allocation2 + $0xf8] sm:$0xff]
      %v2787 = vld [vmem:[#allocation2 + $0x100] sm:$0xff]
      %v2788 = vld [vmem:[#allocation2 + $0x108] sm:$0xff]
      %v2789 = vld [vmem:[#allocation2 + $0x110] sm:$0xff]
      %v2790 = vld [vmem:[#allocation2 + $0x118] sm:$0xff]
      %v2791 = vld [vmem:[#allocation2 + $0x120] sm:$0xff]
      %v2792 = vpack.c.bf16 %v2761, %v2760
      %v2793 = vpack.c.bf16 %v2763, %v2762
      %v2794 = vpack.c.bf16 %v2765, %v2764
      %v2795 = vpack.c.bf16 %v2767, %v2766
      %v2796 = vpack.c.bf16 %v2769, %v2768
      %v2797 = vpack.c.bf16 %v2771, %v2770
      %v2798 = vpack.c.bf16 %v2773, %v2772
      %v2799 = vpack.c.bf16 %v2775, %v2774
      %v2800 = vpack.c.bf16 %v2777, %v2776
      %v2801 = vpack.c.bf16 %v2779, %v2778
      %v2802 = vpack.c.bf16 %v2781, %v2780
      %v2803 = vpack.c.bf16 %v2783, %v2782
      %v2804 = vpack.c.bf16 %v2785, %v2784
      %v2805 = vpack.c.bf16 %v2787, %v2786
      %v2806 = vpack.c.bf16 %v2789, %v2788
      %v2807 = vpack.c.bf16 %v2791, %v2790
      %v2808 = vld [vmem:[%s8 + $0x38] sm:$0xf]
      %v2809 = vld [vmem:[%s8 + $0x3c] sm:$0xf]
      %v2812 = vunpack.c.l.b16 %v2808
      %v2813 = vunpack.c.l.b16 %v2809
      %v2814 = vpack.c.b16 %v2813, %v2812
      %v2817 = vsel %vm830, %v2792, 0
      %v2820 = vsel %vm830, %v2793, 0
      %v2823 = vsel %vm830, %v2794, 0
      %v2826 = vsel %vm830, %v2795, 0
      %v2829 = vsel %vm830, %v2796, 0
      %v2832 = vsel %vm830, %v2797, 0
      %v2835 = vsel %vm830, %v2798, 0
      %v2838 = vsel %vm830, %v2799, 0
      %v2841 = vsel %vm830, %v2800, 0
      %v2844 = vsel %vm830, %v2801, 0
      %v2847 = vsel %vm830, %v2802, 0
      %v2850 = vsel %vm830, %v2803, 0
      %v2853 = vsel %vm830, %v2804, 0
      %v2856 = vsel %vm830, %v2805, 0
      %v2859 = vsel %vm830, %v2806, 0
      %v2862 = vsel %vm830, %v2807, 0
      %2864 = vmatprep.subr.bf16.mxu0 0
      %2865 = vmatpush1.bf16.msra.mxu0 0
      %2866 = vmatprep.subr.bf16.mxu0 0
      %2867 = vmatpush1.bf16.msra.mxu0 0
      %2868 = vmatprep.subr.bf16.mxu0 0
      %2869 = vmatpush1.bf16.msra.mxu0 0
      %2870 = vmatprep.subr.bf16.mxu0 0
      %2871 = vmatpush1.bf16.msra.mxu0 0
      %2872 = vmatprep.subr.bf16.mxu0 0
      %2873 = vmatpush1.bf16.msra.mxu0 0
      %2874 = vmatprep.subr.bf16.mxu0 0
      %2875 = vmatpush1.bf16.msra.mxu0 0
      %2876 = vmatprep.subr.bf16.mxu0 0
      %2877 = vmatpush1.bf16.msra.mxu0 0
      %2878 = vmatprep.subr.bf16.mxu0 0
      %2879 = vmatpush1.bf16.msra.mxu0 %v2814
      %2880 = vmatprep.subr.bf16.mxu0 0
      %2881 = vmatpush2.bf16.msra.mxu0 0
      %2882 = vmatprep.subr.bf16.mxu0 0
      %2883 = vmatpush2.bf16.msra.mxu0 0
      %2884 = vmatprep.subr.bf16.mxu0 0
      %2885 = vmatpush2.bf16.msra.mxu0 0
      %2886 = vmatprep.subr.bf16.mxu0 0
      %2887 = vmatpush2.bf16.msra.mxu0 0
      %2888 = vmatprep.subr.bf16.mxu0 0
      %2889 = vmatpush2.bf16.msra.mxu0 0
      %2890 = vmatprep.subr.bf16.mxu0 0
      %2891 = vmatpush2.bf16.msra.mxu0 0
      %2892 = vmatprep.subr.bf16.mxu0 0
      %2893 = vmatpush2.bf16.msra.mxu0 0
      %2894 = vmatprep.subr.bf16.mxu0 0
      %2895 = vmatpush2.bf16.msra.mxu0 0
      %2896 = vmatprep.mubr.bf16.mxu0 0
      %2897 = vmatmul.mubr.bf16.gmra.mxu0 %v2817
      %v2898 = vpop.f32.mrf.mxu0
      %v2899 = vadd.f32 0.0, %v2898
      %v2900 = vpop.f32.mrf.mxu0
      %v2901 = vpop.f32.mrf.mxu0
      %v2902 = vadd.f32 0.0, %v2901
      %v2903 = vpop.f32.mrf.mxu0
      %2904 = vmatprep.mubr.bf16.mxu0 0
      %2905 = vmatmul.mubr.bf16.gmra.mxu0 %v2820
      %v2906 = vpop.f32.mrf.mxu0
      %v2907 = vadd.f32 0.0, %v2906
      %v2908 = vpop.f32.mrf.mxu0
      %v2909 = vpop.f32.mrf.mxu0
      %v2910 = vadd.f32 0.0, %v2909
      %v2911 = vpop.f32.mrf.mxu0
      %2912 = vmatprep.mubr.bf16.mxu0 0
      %2913 = vmatmul.mubr.bf16.gmra.mxu0 %v2823
      %v2914 = vpop.f32.mrf.mxu0
      %v2915 = vadd.f32 0.0, %v2914
      %v2916 = vpop.f32.mrf.mxu0
      %v2917 = vpop.f32.mrf.mxu0
      %v2918 = vadd.f32 0.0, %v2917
      %v2919 = vpop.f32.mrf.mxu0
      %2920 = vmatprep.mubr.bf16.mxu0 0
      %2921 = vmatmul.mubr.bf16.gmra.mxu0 %v2826
      %v2922 = vpop.f32.mrf.mxu0
      %v2923 = vadd.f32 0.0, %v2922
      %v2924 = vpop.f32.mrf.mxu0
      %v2925 = vpop.f32.mrf.mxu0
      %v2926 = vadd.f32 0.0, %v2925
      %v2927 = vpop.f32.mrf.mxu0
      %2928 = vmatprep.mubr.bf16.mxu0 0
      %2929 = vmatmul.mubr.bf16.gmra.mxu0 %v2829
      %v2930 = vpop.f32.mrf.mxu0
      %v2931 = vadd.f32 0.0, %v2930
      %v2932 = vpop.f32.mrf.mxu0
      %v2933 = vpop.f32.mrf.mxu0
      %v2934 = vadd.f32 0.0, %v2933
      %v2935 = vpop.f32.mrf.mxu0
      %2936 = vmatprep.mubr.bf16.mxu0 0
      %2937 = vmatmul.mubr.bf16.gmra.mxu0 %v2832
      %v2938 = vpop.f32.mrf.mxu0
      %v2939 = vadd.f32 0.0, %v2938
      %v2940 = vpop.f32.mrf.mxu0
      %v2941 = vpop.f32.mrf.mxu0
      %v2942 = vadd.f32 0.0, %v2941
      %v2943 = vpop.f32.mrf.mxu0
      %2944 = vmatprep.mubr.bf16.mxu0 0
      %2945 = vmatmul.mubr.bf16.gmra.mxu0 %v2835
      %v2946 = vpop.f32.mrf.mxu0
      %v2947 = vadd.f32 0.0, %v2946
      %v2948 = vpop.f32.mrf.mxu0
      %v2949 = vpop.f32.mrf.mxu0
      %v2950 = vadd.f32 0.0, %v2949
      %v2951 = vpop.f32.mrf.mxu0
      %2952 = vmatprep.mubr.bf16.mxu0 0
      %2953 = vmatmul.mubr.bf16.gmra.mxu0 %v2838
      %v2954 = vpop.f32.mrf.mxu0
      %v2955 = vadd.f32 0.0, %v2954
      %v2956 = vpop.f32.mrf.mxu0
      %v2957 = vpop.f32.mrf.mxu0
      %v2958 = vadd.f32 0.0, %v2957
      %v2959 = vpop.f32.mrf.mxu0
      %2960 = vmatprep.mubr.bf16.mxu0 0
      %2961 = vmatmul.mubr.bf16.gmra.mxu0 %v2841
      %v2962 = vpop.f32.mrf.mxu0
      %v2963 = vadd.f32 0.0, %v2962
      %v2964 = vpop.f32.mrf.mxu0
      %v2965 = vpop.f32.mrf.mxu0
      %v2966 = vadd.f32 0.0, %v2965
      %v2967 = vpop.f32.mrf.mxu0
      %2968 = vmatprep.mubr.bf16.mxu0 0
      %2969 = vmatmul.mubr.bf16.gmra.mxu0 %v2844
      %v2970 = vpop.f32.mrf.mxu0
      %v2971 = vadd.f32 0.0, %v2970
      %v2972 = vpop.f32.mrf.mxu0
      %v2973 = vpop.f32.mrf.mxu0
      %v2974 = vadd.f32 0.0, %v2973
      %v2975 = vpop.f32.mrf.mxu0
      %2976 = vmatprep.mubr.bf16.mxu0 0
      %2977 = vmatmul.mubr.bf16.gmra.mxu0 %v2847
      %v2978 = vpop.f32.mrf.mxu0
      %v2979 = vadd.f32 0.0, %v2978
      %v2980 = vpop.f32.mrf.mxu0
      %v2981 = vpop.f32.mrf.mxu0
      %v2982 = vadd.f32 0.0, %v2981
      %v2983 = vpop.f32.mrf.mxu0
      %2984 = vmatprep.mubr.bf16.mxu0 0
      %2985 = vmatmul.mubr.bf16.gmra.mxu0 %v2850
      %v2986 = vpop.f32.mrf.mxu0
      %v2987 = vadd.f32 0.0, %v2986
      %v2988 = vpop.f32.mrf.mxu0
      %v2989 = vpop.f32.mrf.mxu0
      %v2990 = vadd.f32 0.0, %v2989
      %v2991 = vpop.f32.mrf.mxu0
      %2992 = vmatprep.mubr.bf16.mxu0 0
      %2993 = vmatmul.mubr.bf16.gmra.mxu0 %v2853
      %v2994 = vpop.f32.mrf.mxu0
      %v2995 = vadd.f32 0.0, %v2994
      %v2996 = vpop.f32.mrf.mxu0
      %v2997 = vpop.f32.mrf.mxu0
      %v2998 = vadd.f32 0.0, %v2997
      %v2999 = vpop.f32.mrf.mxu0
      %3000 = vmatprep.mubr.bf16.mxu0 0
      %3001 = vmatmul.mubr.bf16.gmra.mxu0 %v2856
      %v3002 = vpop.f32.mrf.mxu0
      %v3003 = vadd.f32 0.0, %v3002
      %v3004 = vpop.f32.mrf.mxu0
      %v3005 = vpop.f32.mrf.mxu0
      %v3006 = vadd.f32 0.0, %v3005
      %v3007 = vpop.f32.mrf.mxu0
      %3008 = vmatprep.mubr.bf16.mxu0 0
      %3009 = vmatmul.mubr.bf16.gmra.mxu0 %v2859
      %v3010 = vpop.f32.mrf.mxu0
      %v3011 = vadd.f32 0.0, %v3010
      %v3012 = vpop.f32.mrf.mxu0
      %v3013 = vpop.f32.mrf.mxu0
      %v3014 = vadd.f32 0.0, %v3013
      %v3015 = vpop.f32.mrf.mxu0
      %3016 = vmatprep.mubr.bf16.mxu0 0
      %3017 = vmatmul.mubr.bf16.gmra.mxu0 %v2862
      %v3018 = vpop.f32.mrf.mxu0
      %v3019 = vadd.f32 0.0, %v3018
      %v3020 = vpop.f32.mrf.mxu0
      %v3021 = vpop.f32.mrf.mxu0
      %v3022 = vadd.f32 0.0, %v3021
      %v3023 = vpop.f32.mrf.mxu0
      %3024 = vdwg.mxu0
      %v3025 = vadd.f32 %v2634, %v2899
      %v3026 = vadd.f32 %v2637, %v2902
      %v3027 = vadd.f32 %v2642, %v2907
      %v3028 = vadd.f32 %v2645, %v2910
      %v3029 = vadd.f32 %v2650, %v2915
      %v3030 = vadd.f32 %v2653, %v2918
      %v3031 = vadd.f32 %v2658, %v2923
      %v3032 = vadd.f32 %v2661, %v2926
      %v3033 = vadd.f32 %v2666, %v2931
      %v3034 = vadd.f32 %v2669, %v2934
      %v3035 = vadd.f32 %v2674, %v2939
      %v3036 = vadd.f32 %v2677, %v2942
      %v3037 = vadd.f32 %v2682, %v2947
      %v3038 = vadd.f32 %v2685, %v2950
      %v3039 = vadd.f32 %v2690, %v2955
      %v3040 = vadd.f32 %v2693, %v2958
      %v3041 = vadd.f32 %v2698, %v2963
      %v3042 = vadd.f32 %v2701, %v2966
      %v3043 = vadd.f32 %v2706, %v2971
      %v3044 = vadd.f32 %v2709, %v2974
      %v3045 = vadd.f32 %v2714, %v2979
      %v3046 = vadd.f32 %v2717, %v2982
      %v3047 = vadd.f32 %v2722, %v2987
      %v3048 = vadd.f32 %v2725, %v2990
      %v3049 = vadd.f32 %v2730, %v2995
      %v3050 = vadd.f32 %v2733, %v2998
      %v3051 = vadd.f32 %v2738, %v3003
      %v3052 = vadd.f32 %v2741, %v3006
      %v3053 = vadd.f32 %v2746, %v3011
      %v3054 = vadd.f32 %v2749, %v3014
      %v3055 = vadd.f32 %v2754, %v3019
      %v3056 = vadd.f32 %v2757, %v3022
      %v3057 = vadd.f32 %v2288, %v3025
      %v3058 = vadd.f32 %v2289, %v3026
      %v3059 = vadd.f32 %v2290, %v3027
      %v3060 = vadd.f32 %v2291, %v3028
      %v3061 = vadd.f32 %v2292, %v3029
      %v3062 = vadd.f32 %v2293, %v3030
      %v3063 = vadd.f32 %v2294, %v3031
      %v3064 = vadd.f32 %v2295, %v3032
      %v3065 = vadd.f32 %v2296, %v3033
      %v3066 = vadd.f32 %v2297, %v3034
      %v3067 = vadd.f32 %v2298, %v3035
      %v3068 = vadd.f32 %v2299, %v3036
      %v3069 = vadd.f32 %v2300, %v3037
      %v3070 = vadd.f32 %v2301, %v3038
      %v3071 = vadd.f32 %v2302, %v3039
      %v3072 = vadd.f32 %v2303, %v3040
      %v3073 = vadd.f32 %v2304, %v3041
      %v3074 = vadd.f32 %v2305, %v3042
      %v3075 = vadd.f32 %v2306, %v3043
      %v3076 = vadd.f32 %v2307, %v3044
      %v3077 = vadd.f32 %v2308, %v3045
      %v3078 = vadd.f32 %v2309, %v3046
      %v3079 = vadd.f32 %v2310, %v3047
      %v3080 = vadd.f32 %v2311, %v3048
      %v3081 = vadd.f32 %v2312, %v3049
      %v3082 = vadd.f32 %v2313, %v3050
      %v3083 = vadd.f32 %v2314, %v3051
      %v3084 = vadd.f32 %v2315, %v3052
      %v3085 = vadd.f32 %v2316, %v3053
      %v3086 = vadd.f32 %v2317, %v3054
      %v3087 = vadd.f32 %v2318, %v3055
      %v3088 = vadd.f32 %v2319, %v3056
      %v3089 = vld [vmem:[#allocation2 + $0x9] sm:$0xff]
      %v3090 = vld [vmem:[#allocation2 + $0x11] sm:$0xff]
      %v3091 = vld [vmem:[#allocation2 + $0x19] sm:$0xff]
      %v3092 = vld [vmem:[#allocation2 + $0x21] sm:$0xff]
      %v3093 = vld [vmem:[#allocation2 + $0x29] sm:$0xff]
      %v3094 = vld [vmem:[#allocation2 + $0x31] sm:$0xff]
      %v3095 = vld [vmem:[#allocation2 + $0x39] sm:$0xff]
      %v3096 = vld [vmem:[#allocation2 + $0x41] sm:$0xff]
      %v3097 = vld [vmem:[#allocation2 + $0x49] sm:$0xff]
      %v3098 = vld [vmem:[#allocation2 + $0x51] sm:$0xff]
      %v3099 = vld [vmem:[#allocation2 + $0x59] sm:$0xff]
      %v3100 = vld [vmem:[#allocation2 + $0x61] sm:$0xff]
      %v3101 = vld [vmem:[#allocation2 + $0x69] sm:$0xff]
      %v3102 = vld [vmem:[#allocation2 + $0x71] sm:$0xff]
      %v3103 = vld [vmem:[#allocation2 + $0x79] sm:$0xff]
      %v3104 = vld [vmem:[#allocation2 + $0x81] sm:$0xff]
      %v3105 = vld [vmem:[#allocation2 + $0x89] sm:$0xff]
      %v3106 = vld [vmem:[#allocation2 + $0x91] sm:$0xff]
      %v3107 = vld [vmem:[#allocation2 + $0x99] sm:$0xff]
      %v3108 = vld [vmem:[#allocation2 + $0xa1] sm:$0xff]
      %v3109 = vld [vmem:[#allocation2 + $0xa9] sm:$0xff]
      %v3110 = vld [vmem:[#allocation2 + $0xb1] sm:$0xff]
      %v3111 = vld [vmem:[#allocation2 + $0xb9] sm:$0xff]
      %v3112 = vld [vmem:[#allocation2 + $0xc1] sm:$0xff]
      %v3113 = vld [vmem:[#allocation2 + $0xc9] sm:$0xff]
      %v3114 = vld [vmem:[#allocation2 + $0xd1] sm:$0xff]
      %v3115 = vld [vmem:[#allocation2 + $0xd9] sm:$0xff]
      %v3116 = vld [vmem:[#allocation2 + $0xe1] sm:$0xff]
      %v3117 = vld [vmem:[#allocation2 + $0xe9] sm:$0xff]
      %v3118 = vld [vmem:[#allocation2 + $0xf1] sm:$0xff]
      %v3119 = vld [vmem:[#allocation2 + $0xf9] sm:$0xff]
      %v3120 = vld [vmem:[#allocation2 + $0x101] sm:$0xff]
      %v3121 = vpack.c.bf16 %v3090, %v3089
      %v3122 = vpack.c.bf16 %v3092, %v3091
      %v3123 = vpack.c.bf16 %v3094, %v3093
      %v3124 = vpack.c.bf16 %v3096, %v3095
      %v3125 = vpack.c.bf16 %v3098, %v3097
      %v3126 = vpack.c.bf16 %v3100, %v3099
      %v3127 = vpack.c.bf16 %v3102, %v3101
      %v3128 = vpack.c.bf16 %v3104, %v3103
      %v3129 = vpack.c.bf16 %v3106, %v3105
      %v3130 = vpack.c.bf16 %v3108, %v3107
      %v3131 = vpack.c.bf16 %v3110, %v3109
      %v3132 = vpack.c.bf16 %v3112, %v3111
      %v3133 = vpack.c.bf16 %v3114, %v3113
      %v3134 = vpack.c.bf16 %v3116, %v3115
      %v3135 = vpack.c.bf16 %v3118, %v3117
      %v3136 = vpack.c.bf16 %v3120, %v3119
      %v3137 = vld [vmem:[%s8 + $0x10] sm:$0xf]
      %v3138 = vld [vmem:[%s8 + $0x14] sm:$0xf]
      %v3139 = vld [vmem:[#allocation2 + $0x109] sm:$0xff]
      %v3140 = vld [vmem:[#allocation2 + $0x111] sm:$0xff]
      %v3141 = vpack.c.bf16 %v3140, %v3139
      %v3142 = vld [vmem:[%s8 + $0x28] sm:$0xf]
      %v3143 = vld [vmem:[%s8 + $0x2c] sm:$0xf]
      %v3146 = vunpack.c.l.b16 %v3142
      %v3147 = vunpack.c.l.b16 %v3143
      %v3148 = vpack.c.b16 %v3147, %v3146
      %v3151 = vsel %vm830, %v3122, 0
      %v3154 = vsel %vm830, %v3123, 0
      %v3157 = vsel %vm830, %v3124, 0
      %v3160 = vsel %vm830, %v3125, 0
      %v3163 = vsel %vm830, %v3126, 0
      %v3166 = vsel %vm830, %v3127, 0
      %v3169 = vsel %vm830, %v3128, 0
      %v3172 = vsel %vm830, %v3129, 0
      %v3175 = vsel %vm830, %v3130, 0
      %v3178 = vsel %vm830, %v3131, 0
      %v3181 = vsel %vm830, %v3132, 0
      %v3184 = vsel %vm830, %v3133, 0
      %v3187 = vsel %vm830, %v3134, 0
      %v3190 = vsel %vm830, %v3135, 0
      %v3193 = vsel %vm830, %v3136, 0
      %v3196 = vsel %vm830, %v3141, 0
      %3198 = vmatprep.subr.bf16.mxu0 0
      %3199 = vmatpush1.bf16.msra.mxu0 0
      %3200 = vmatprep.subr.bf16.mxu0 0
      %3201 = vmatpush1.bf16.msra.mxu0 0
      %3202 = vmatprep.subr.bf16.mxu0 0
      %3203 = vmatpush1.bf16.msra.mxu0 0
      %3204 = vmatprep.subr.bf16.mxu0 0
      %3205 = vmatpush1.bf16.msra.mxu0 0
      %3206 = vmatprep.subr.bf16.mxu0 0
      %3207 = vmatpush1.bf16.msra.mxu0 0
      %3208 = vmatprep.subr.bf16.mxu0 0
      %3209 = vmatpush1.bf16.msra.mxu0 0
      %3210 = vmatprep.subr.bf16.mxu0 0
      %3211 = vmatpush1.bf16.msra.mxu0 0
      %3212 = vmatprep.subr.bf16.mxu0 0
      %3213 = vmatpush1.bf16.msra.mxu0 %v3148
      %3214 = vmatprep.subr.bf16.mxu0 0
      %3215 = vmatpush2.bf16.msra.mxu0 0
      %3216 = vmatprep.subr.bf16.mxu0 0
      %3217 = vmatpush2.bf16.msra.mxu0 0
      %3218 = vmatprep.subr.bf16.mxu0 0
      %3219 = vmatpush2.bf16.msra.mxu0 0
      %3220 = vmatprep.subr.bf16.mxu0 0
      %3221 = vmatpush2.bf16.msra.mxu0 0
      %3222 = vmatprep.subr.bf16.mxu0 0
      %3223 = vmatpush2.bf16.msra.mxu0 0
      %3224 = vmatprep.subr.bf16.mxu0 0
      %3225 = vmatpush2.bf16.msra.mxu0 0
      %3226 = vmatprep.subr.bf16.mxu0 0
      %3227 = vmatpush2.bf16.msra.mxu0 0
      %3228 = vmatprep.subr.bf16.mxu0 0
      %3229 = vmatpush2.bf16.msra.mxu0 0
      %3230 = vmatprep.mubr.bf16.mxu0 0
      %3231 = vmatmul.mubr.bf16.gmra.mxu0 %v3151
      %v3232 = vpop.f32.mrf.mxu0
      %v3233 = vadd.f32 0.0, %v3232
      %v3234 = vpop.f32.mrf.mxu0
      %v3235 = vpop.f32.mrf.mxu0
      %v3236 = vadd.f32 0.0, %v3235
      %v3237 = vpop.f32.mrf.mxu0
      %3238 = vmatprep.mubr.bf16.mxu0 0
      %3239 = vmatmul.mubr.bf16.gmra.mxu0 %v3154
      %v3240 = vpop.f32.mrf.mxu0
      %v3241 = vadd.f32 0.0, %v3240
      %v3242 = vpop.f32.mrf.mxu0
      %v3243 = vpop.f32.mrf.mxu0
      %v3244 = vadd.f32 0.0, %v3243
      %v3245 = vpop.f32.mrf.mxu0
      %3246 = vmatprep.mubr.bf16.mxu0 0
      %3247 = vmatmul.mubr.bf16.gmra.mxu0 %v3157
      %v3248 = vpop.f32.mrf.mxu0
      %v3249 = vadd.f32 0.0, %v3248
      %v3250 = vpop.f32.mrf.mxu0
      %v3251 = vpop.f32.mrf.mxu0
      %v3252 = vadd.f32 0.0, %v3251
      %v3253 = vpop.f32.mrf.mxu0
      %3254 = vmatprep.mubr.bf16.mxu0 0
      %3255 = vmatmul.mubr.bf16.gmra.mxu0 %v3160
      %v3256 = vpop.f32.mrf.mxu0
      %v3257 = vadd.f32 0.0, %v3256
      %v3258 = vpop.f32.mrf.mxu0
      %v3259 = vpop.f32.mrf.mxu0
      %v3260 = vadd.f32 0.0, %v3259
      %v3261 = vpop.f32.mrf.mxu0
      %3262 = vmatprep.mubr.bf16.mxu0 0
      %3263 = vmatmul.mubr.bf16.gmra.mxu0 %v3163
      %v3264 = vpop.f32.mrf.mxu0
      %v3265 = vadd.f32 0.0, %v3264
      %v3266 = vpop.f32.mrf.mxu0
      %v3267 = vpop.f32.mrf.mxu0
      %v3268 = vadd.f32 0.0, %v3267
      %v3269 = vpop.f32.mrf.mxu0
      %3270 = vmatprep.mubr.bf16.mxu0 0
      %3271 = vmatmul.mubr.bf16.gmra.mxu0 %v3166
      %v3272 = vpop.f32.mrf.mxu0
      %v3273 = vadd.f32 0.0, %v3272
      %v3274 = vpop.f32.mrf.mxu0
      %v3275 = vpop.f32.mrf.mxu0
      %v3276 = vadd.f32 0.0, %v3275
      %v3277 = vpop.f32.mrf.mxu0
      %3278 = vmatprep.mubr.bf16.mxu0 0
      %3279 = vmatmul.mubr.bf16.gmra.mxu0 %v3169
      %v3280 = vpop.f32.mrf.mxu0
      %v3281 = vadd.f32 0.0, %v3280
      %v3282 = vpop.f32.mrf.mxu0
      %v3283 = vpop.f32.mrf.mxu0
      %v3284 = vadd.f32 0.0, %v3283
      %v3285 = vpop.f32.mrf.mxu0
      %3286 = vmatprep.mubr.bf16.mxu0 0
      %3287 = vmatmul.mubr.bf16.gmra.mxu0 %v3172
      %v3288 = vpop.f32.mrf.mxu0
      %v3289 = vadd.f32 0.0, %v3288
      %v3290 = vpop.f32.mrf.mxu0
      %v3291 = vpop.f32.mrf.mxu0
      %v3292 = vadd.f32 0.0, %v3291
      %v3293 = vpop.f32.mrf.mxu0
      %3294 = vmatprep.mubr.bf16.mxu0 0
      %3295 = vmatmul.mubr.bf16.gmra.mxu0 %v3175
      %v3296 = vpop.f32.mrf.mxu0
      %v3297 = vadd.f32 0.0, %v3296
      %v3298 = vpop.f32.mrf.mxu0
      %v3299 = vpop.f32.mrf.mxu0
      %v3300 = vadd.f32 0.0, %v3299
      %v3301 = vpop.f32.mrf.mxu0
      %3302 = vmatprep.mubr.bf16.mxu0 0
      %3303 = vmatmul.mubr.bf16.gmra.mxu0 %v3178
      %v3304 = vpop.f32.mrf.mxu0
      %v3305 = vadd.f32 0.0, %v3304
      %v3306 = vpop.f32.mrf.mxu0
      %v3307 = vpop.f32.mrf.mxu0
      %v3308 = vadd.f32 0.0, %v3307
      %v3309 = vpop.f32.mrf.mxu0
      %3310 = vmatprep.mubr.bf16.mxu0 0
      %3311 = vmatmul.mubr.bf16.gmra.mxu0 %v3181
      %v3312 = vpop.f32.mrf.mxu0
      %v3313 = vadd.f32 0.0, %v3312
      %v3314 = vpop.f32.mrf.mxu0
      %v3315 = vpop.f32.mrf.mxu0
      %v3316 = vadd.f32 0.0, %v3315
      %v3317 = vpop.f32.mrf.mxu0
      %3318 = vmatprep.mubr.bf16.mxu0 0
      %3319 = vmatmul.mubr.bf16.gmra.mxu0 %v3184
      %v3320 = vpop.f32.mrf.mxu0
      %v3321 = vadd.f32 0.0, %v3320
      %v3322 = vpop.f32.mrf.mxu0
      %v3323 = vpop.f32.mrf.mxu0
      %v3324 = vadd.f32 0.0, %v3323
      %v3325 = vpop.f32.mrf.mxu0
      %3326 = vmatprep.mubr.bf16.mxu0 0
      %3327 = vmatmul.mubr.bf16.gmra.mxu0 %v3187
      %v3328 = vpop.f32.mrf.mxu0
      %v3329 = vadd.f32 0.0, %v3328
      %v3330 = vpop.f32.mrf.mxu0
      %v3331 = vpop.f32.mrf.mxu0
      %v3332 = vadd.f32 0.0, %v3331
      %v3333 = vpop.f32.mrf.mxu0
      %3334 = vmatprep.mubr.bf16.mxu0 0
      %3335 = vmatmul.mubr.bf16.gmra.mxu0 %v3190
      %v3336 = vpop.f32.mrf.mxu0
      %v3337 = vadd.f32 0.0, %v3336
      %v3338 = vpop.f32.mrf.mxu0
      %v3339 = vpop.f32.mrf.mxu0
      %v3340 = vadd.f32 0.0, %v3339
      %v3341 = vpop.f32.mrf.mxu0
      %3342 = vmatprep.mubr.bf16.mxu0 0
      %3343 = vmatmul.mubr.bf16.gmra.mxu0 %v3193
      %v3344 = vpop.f32.mrf.mxu0
      %v3345 = vadd.f32 0.0, %v3344
      %v3346 = vpop.f32.mrf.mxu0
      %v3347 = vpop.f32.mrf.mxu0
      %v3348 = vadd.f32 0.0, %v3347
      %v3349 = vpop.f32.mrf.mxu0
      %3350 = vmatprep.mubr.bf16.mxu0 0
      %3351 = vmatmul.mubr.bf16.gmra.mxu0 %v3196
      %v3352 = vpop.f32.mrf.mxu0
      %v3353 = vadd.f32 0.0, %v3352
      %v3354 = vpop.f32.mrf.mxu0
      %v3355 = vpop.f32.mrf.mxu0
      %v3356 = vadd.f32 0.0, %v3355
      %v3357 = vpop.f32.mrf.mxu0
      %3358 = vdwg.mxu0
      %v3361 = vunpack.c.l.b16 %v3137
      %v3362 = vunpack.c.l.b16 %v3138
      %v3363 = vpack.c.b16 %v3362, %v3361
      %v3366 = vsel %vm830, %v3121, 0
      %3368 = vmatprep.subr.bf16.mxu0 0
      %3369 = vmatpush1.bf16.msra.mxu0 0
      %3370 = vmatprep.subr.bf16.mxu0 0
      %3371 = vmatpush1.bf16.msra.mxu0 0
      %3372 = vmatprep.subr.bf16.mxu0 0
      %3373 = vmatpush1.bf16.msra.mxu0 0
      %3374 = vmatprep.subr.bf16.mxu0 0
      %3375 = vmatpush1.bf16.msra.mxu0 0
      %3376 = vmatprep.subr.bf16.mxu0 0
      %3377 = vmatpush1.bf16.msra.mxu0 0
      %3378 = vmatprep.subr.bf16.mxu0 0
      %3379 = vmatpush1.bf16.msra.mxu0 0
      %3380 = vmatprep.subr.bf16.mxu0 0
      %3381 = vmatpush1.bf16.msra.mxu0 0
      %3382 = vmatprep.subr.bf16.mxu0 0
      %3383 = vmatpush1.bf16.msra.mxu0 %v3363
      %3384 = vmatprep.subr.bf16.mxu0 0
      %3385 = vmatpush2.bf16.msra.mxu0 0
      %3386 = vmatprep.subr.bf16.mxu0 0
      %3387 = vmatpush2.bf16.msra.mxu0 0
      %3388 = vmatprep.subr.bf16.mxu0 0
      %3389 = vmatpush2.bf16.msra.mxu0 0
      %3390 = vmatprep.subr.bf16.mxu0 0
      %3391 = vmatpush2.bf16.msra.mxu0 0
      %3392 = vmatprep.subr.bf16.mxu0 0
      %3393 = vmatpush2.bf16.msra.mxu0 0
      %3394 = vmatprep.subr.bf16.mxu0 0
      %3395 = vmatpush2.bf16.msra.mxu0 0
      %3396 = vmatprep.subr.bf16.mxu0 0
      %3397 = vmatpush2.bf16.msra.mxu0 0
      %3398 = vmatprep.subr.bf16.mxu0 0
      %3399 = vmatpush2.bf16.msra.mxu0 0
      %3400 = vmatprep.mubr.bf16.mxu0 0
      %3401 = vmatmul.mubr.bf16.gmra.mxu0 %v3366
      %v3402 = vpop.f32.mrf.mxu0
      %v3403 = vadd.f32 %v3233, %v3402
      %v3404 = vpop.f32.mrf.mxu0
      %v3405 = vpop.f32.mrf.mxu0
      %v3406 = vadd.f32 %v3236, %v3405
      %v3407 = vpop.f32.mrf.mxu0
      %3408 = vmatprep.mubr.bf16.mxu0 0
      %3409 = vmatmul.mubr.bf16.gmra.mxu0 %v3151
      %v3410 = vpop.f32.mrf.mxu0
      %v3411 = vadd.f32 %v3241, %v3410
      %v3412 = vpop.f32.mrf.mxu0
      %v3413 = vpop.f32.mrf.mxu0
      %v3414 = vadd.f32 %v3244, %v3413
      %v3415 = vpop.f32.mrf.mxu0
      %3416 = vmatprep.mubr.bf16.mxu0 0
      %3417 = vmatmul.mubr.bf16.gmra.mxu0 %v3154
      %v3418 = vpop.f32.mrf.mxu0
      %v3419 = vadd.f32 %v3249, %v3418
      %v3420 = vpop.f32.mrf.mxu0
      %v3421 = vpop.f32.mrf.mxu0
      %v3422 = vadd.f32 %v3252, %v3421
      %v3423 = vpop.f32.mrf.mxu0
      %3424 = vmatprep.mubr.bf16.mxu0 0
      %3425 = vmatmul.mubr.bf16.gmra.mxu0 %v3157
      %v3426 = vpop.f32.mrf.mxu0
      %v3427 = vadd.f32 %v3257, %v3426
      %v3428 = vpop.f32.mrf.mxu0
      %v3429 = vpop.f32.mrf.mxu0
      %v3430 = vadd.f32 %v3260, %v3429
      %v3431 = vpop.f32.mrf.mxu0
      %3432 = vmatprep.mubr.bf16.mxu0 0
      %3433 = vmatmul.mubr.bf16.gmra.mxu0 %v3160
      %v3434 = vpop.f32.mrf.mxu0
      %v3435 = vadd.f32 %v3265, %v3434
      %v3436 = vpop.f32.mrf.mxu0
      %v3437 = vpop.f32.mrf.mxu0
      %v3438 = vadd.f32 %v3268, %v3437
      %v3439 = vpop.f32.mrf.mxu0
      %3440 = vmatprep.mubr.bf16.mxu0 0
      %3441 = vmatmul.mubr.bf16.gmra.mxu0 %v3163
      %v3442 = vpop.f32.mrf.mxu0
      %v3443 = vadd.f32 %v3273, %v3442
      %v3444 = vpop.f32.mrf.mxu0
      %v3445 = vpop.f32.mrf.mxu0
      %v3446 = vadd.f32 %v3276, %v3445
      %v3447 = vpop.f32.mrf.mxu0
      %3448 = vmatprep.mubr.bf16.mxu0 0
      %3449 = vmatmul.mubr.bf16.gmra.mxu0 %v3166
      %v3450 = vpop.f32.mrf.mxu0
      %v3451 = vadd.f32 %v3281, %v3450
      %v3452 = vpop.f32.mrf.mxu0
      %v3453 = vpop.f32.mrf.mxu0
      %v3454 = vadd.f32 %v3284, %v3453
      %v3455 = vpop.f32.mrf.mxu0
      %3456 = vmatprep.mubr.bf16.mxu0 0
      %3457 = vmatmul.mubr.bf16.gmra.mxu0 %v3169
      %v3458 = vpop.f32.mrf.mxu0
      %v3459 = vadd.f32 %v3289, %v3458
      %v3460 = vpop.f32.mrf.mxu0
      %v3461 = vpop.f32.mrf.mxu0
      %v3462 = vadd.f32 %v3292, %v3461
      %v3463 = vpop.f32.mrf.mxu0
      %3464 = vmatprep.mubr.bf16.mxu0 0
      %3465 = vmatmul.mubr.bf16.gmra.mxu0 %v3172
      %v3466 = vpop.f32.mrf.mxu0
      %v3467 = vadd.f32 %v3297, %v3466
      %v3468 = vpop.f32.mrf.mxu0
      %v3469 = vpop.f32.mrf.mxu0
      %v3470 = vadd.f32 %v3300, %v3469
      %v3471 = vpop.f32.mrf.mxu0
      %3472 = vmatprep.mubr.bf16.mxu0 0
      %3473 = vmatmul.mubr.bf16.gmra.mxu0 %v3175
      %v3474 = vpop.f32.mrf.mxu0
      %v3475 = vadd.f32 %v3305, %v3474
      %v3476 = vpop.f32.mrf.mxu0
      %v3477 = vpop.f32.mrf.mxu0
      %v3478 = vadd.f32 %v3308, %v3477
      %v3479 = vpop.f32.mrf.mxu0
      %3480 = vmatprep.mubr.bf16.mxu0 0
      %3481 = vmatmul.mubr.bf16.gmra.mxu0 %v3178
      %v3482 = vpop.f32.mrf.mxu0
      %v3483 = vadd.f32 %v3313, %v3482
      %v3484 = vpop.f32.mrf.mxu0
      %v3485 = vpop.f32.mrf.mxu0
      %v3486 = vadd.f32 %v3316, %v3485
      %v3487 = vpop.f32.mrf.mxu0
      %3488 = vmatprep.mubr.bf16.mxu0 0
      %3489 = vmatmul.mubr.bf16.gmra.mxu0 %v3181
      %v3490 = vpop.f32.mrf.mxu0
      %v3491 = vadd.f32 %v3321, %v3490
      %v3492 = vpop.f32.mrf.mxu0
      %v3493 = vpop.f32.mrf.mxu0
      %v3494 = vadd.f32 %v3324, %v3493
      %v3495 = vpop.f32.mrf.mxu0
      %3496 = vmatprep.mubr.bf16.mxu0 0
      %3497 = vmatmul.mubr.bf16.gmra.mxu0 %v3184
      %v3498 = vpop.f32.mrf.mxu0
      %v3499 = vadd.f32 %v3329, %v3498
      %v3500 = vpop.f32.mrf.mxu0
      %v3501 = vpop.f32.mrf.mxu0
      %v3502 = vadd.f32 %v3332, %v3501
      %v3503 = vpop.f32.mrf.mxu0
      %3504 = vmatprep.mubr.bf16.mxu0 0
      %3505 = vmatmul.mubr.bf16.gmra.mxu0 %v3187
      %v3506 = vpop.f32.mrf.mxu0
      %v3507 = vadd.f32 %v3337, %v3506
      %v3508 = vpop.f32.mrf.mxu0
      %v3509 = vpop.f32.mrf.mxu0
      %v3510 = vadd.f32 %v3340, %v3509
      %v3511 = vpop.f32.mrf.mxu0
      %3512 = vmatprep.mubr.bf16.mxu0 0
      %3513 = vmatmul.mubr.bf16.gmra.mxu0 %v3190
      %v3514 = vpop.f32.mrf.mxu0
      %v3515 = vadd.f32 %v3345, %v3514
      %v3516 = vpop.f32.mrf.mxu0
      %v3517 = vpop.f32.mrf.mxu0
      %v3518 = vadd.f32 %v3348, %v3517
      %v3519 = vpop.f32.mrf.mxu0
      %3520 = vmatprep.mubr.bf16.mxu0 0
      %3521 = vmatmul.mubr.bf16.gmra.mxu0 %v3193
      %v3522 = vpop.f32.mrf.mxu0
      %v3523 = vadd.f32 %v3353, %v3522
      %v3524 = vpop.f32.mrf.mxu0
      %v3525 = vpop.f32.mrf.mxu0
      %v3526 = vadd.f32 %v3356, %v3525
      %v3527 = vpop.f32.mrf.mxu0
      %3528 = vdwg.mxu0
      %v3529 = vld [vmem:[#allocation2 + $0x29] sm:$0xff]
      %v3530 = vld [vmem:[#allocation2 + $0x31] sm:$0xff]
      %v3531 = vld [vmem:[#allocation2 + $0x39] sm:$0xff]
      %v3532 = vld [vmem:[#allocation2 + $0x41] sm:$0xff]
      %v3533 = vld [vmem:[#allocation2 + $0x49] sm:$0xff]
      %v3534 = vld [vmem:[#allocation2 + $0x51] sm:$0xff]
      %v3535 = vld [vmem:[#allocation2 + $0x59] sm:$0xff]
      %v3536 = vld [vmem:[#allocation2 + $0x61] sm:$0xff]
      %v3537 = vld [vmem:[#allocation2 + $0x69] sm:$0xff]
      %v3538 = vld [vmem:[#allocation2 + $0x71] sm:$0xff]
      %v3539 = vld [vmem:[#allocation2 + $0x79] sm:$0xff]
      %v3540 = vld [vmem:[#allocation2 + $0x81] sm:$0xff]
      %v3541 = vld [vmem:[#allocation2 + $0x89] sm:$0xff]
      %v3542 = vld [vmem:[#allocation2 + $0x91] sm:$0xff]
      %v3543 = vld [vmem:[#allocation2 + $0x99] sm:$0xff]
      %v3544 = vld [vmem:[#allocation2 + $0xa1] sm:$0xff]
      %v3545 = vld [vmem:[#allocation2 + $0xa9] sm:$0xff]
      %v3546 = vld [vmem:[#allocation2 + $0xb1] sm:$0xff]
      %v3547 = vld [vmem:[#allocation2 + $0xb9] sm:$0xff]
      %v3548 = vld [vmem:[#allocation2 + $0xc1] sm:$0xff]
      %v3549 = vld [vmem:[#allocation2 + $0xc9] sm:$0xff]
      %v3550 = vld [vmem:[#allocation2 + $0xd1] sm:$0xff]
      %v3551 = vld [vmem:[#allocation2 + $0xd9] sm:$0xff]
      %v3552 = vld [vmem:[#allocation2 + $0xe1] sm:$0xff]
      %v3553 = vld [vmem:[#allocation2 + $0xe9] sm:$0xff]
      %v3554 = vld [vmem:[#allocation2 + $0xf1] sm:$0xff]
      %v3555 = vld [vmem:[#allocation2 + $0xf9] sm:$0xff]
      %v3556 = vld [vmem:[#allocation2 + $0x101] sm:$0xff]
      %v3557 = vld [vmem:[#allocation2 + $0x109] sm:$0xff]
      %v3558 = vld [vmem:[#allocation2 + $0x111] sm:$0xff]
      %v3559 = vld [vmem:[#allocation2 + $0x119] sm:$0xff]
      %v3560 = vld [vmem:[#allocation2 + $0x121] sm:$0xff]
      %v3561 = vpack.c.bf16 %v3530, %v3529
      %v3562 = vpack.c.bf16 %v3532, %v3531
      %v3563 = vpack.c.bf16 %v3534, %v3533
      %v3564 = vpack.c.bf16 %v3536, %v3535
      %v3565 = vpack.c.bf16 %v3538, %v3537
      %v3566 = vpack.c.bf16 %v3540, %v3539
      %v3567 = vpack.c.bf16 %v3542, %v3541
      %v3568 = vpack.c.bf16 %v3544, %v3543
      %v3569 = vpack.c.bf16 %v3546, %v3545
      %v3570 = vpack.c.bf16 %v3548, %v3547
      %v3571 = vpack.c.bf16 %v3550, %v3549
      %v3572 = vpack.c.bf16 %v3552, %v3551
      %v3573 = vpack.c.bf16 %v3554, %v3553
      %v3574 = vpack.c.bf16 %v3556, %v3555
      %v3575 = vpack.c.bf16 %v3558, %v3557
      %v3576 = vpack.c.bf16 %v3560, %v3559
      %v3577 = vld [vmem:[%s8 + $0x40] sm:$0xf]
      %v3578 = vld [vmem:[%s8 + $0x44] sm:$0xf]
      %v3581 = vunpack.c.l.b16 %v3577
      %v3582 = vunpack.c.l.b16 %v3578
      %v3583 = vpack.c.b16 %v3582, %v3581
      %v3586 = vsel %vm830, %v3561, 0
      %v3589 = vsel %vm830, %v3562, 0
      %v3592 = vsel %vm830, %v3563, 0
      %v3595 = vsel %vm830, %v3564, 0
      %v3598 = vsel %vm830, %v3565, 0
      %v3601 = vsel %vm830, %v3566, 0
      %v3604 = vsel %vm830, %v3567, 0
      %v3607 = vsel %vm830, %v3568, 0
      %v3610 = vsel %vm830, %v3569, 0
      %v3613 = vsel %vm830, %v3570, 0
      %v3616 = vsel %vm830, %v3571, 0
      %v3619 = vsel %vm830, %v3572, 0
      %v3622 = vsel %vm830, %v3573, 0
      %v3625 = vsel %vm830, %v3574, 0
      %v3628 = vsel %vm830, %v3575, 0
      %v3631 = vsel %vm830, %v3576, 0
      %3633 = vmatprep.subr.bf16.mxu0 0
      %3634 = vmatpush1.bf16.msra.mxu0 0
      %3635 = vmatprep.subr.bf16.mxu0 0
      %3636 = vmatpush1.bf16.msra.mxu0 0
      %3637 = vmatprep.subr.bf16.mxu0 0
      %3638 = vmatpush1.bf16.msra.mxu0 0
      %3639 = vmatprep.subr.bf16.mxu0 0
      %3640 = vmatpush1.bf16.msra.mxu0 0
      %3641 = vmatprep.subr.bf16.mxu0 0
      %3642 = vmatpush1.bf16.msra.mxu0 0
      %3643 = vmatprep.subr.bf16.mxu0 0
      %3644 = vmatpush1.bf16.msra.mxu0 0
      %3645 = vmatprep.subr.bf16.mxu0 0
      %3646 = vmatpush1.bf16.msra.mxu0 0
      %3647 = vmatprep.subr.bf16.mxu0 0
      %3648 = vmatpush1.bf16.msra.mxu0 %v3583
      %3649 = vmatprep.subr.bf16.mxu0 0
      %3650 = vmatpush2.bf16.msra.mxu0 0
      %3651 = vmatprep.subr.bf16.mxu0 0
      %3652 = vmatpush2.bf16.msra.mxu0 0
      %3653 = vmatprep.subr.bf16.mxu0 0
      %3654 = vmatpush2.bf16.msra.mxu0 0
      %3655 = vmatprep.subr.bf16.mxu0 0
      %3656 = vmatpush2.bf16.msra.mxu0 0
      %3657 = vmatprep.subr.bf16.mxu0 0
      %3658 = vmatpush2.bf16.msra.mxu0 0
      %3659 = vmatprep.subr.bf16.mxu0 0
      %3660 = vmatpush2.bf16.msra.mxu0 0
      %3661 = vmatprep.subr.bf16.mxu0 0
      %3662 = vmatpush2.bf16.msra.mxu0 0
      %3663 = vmatprep.subr.bf16.mxu0 0
      %3664 = vmatpush2.bf16.msra.mxu0 0
      %3665 = vmatprep.mubr.bf16.mxu0 0
      %3666 = vmatmul.mubr.bf16.gmra.mxu0 %v3586
      %v3667 = vpop.f32.mrf.mxu0
      %v3668 = vadd.f32 0.0, %v3667
      %v3669 = vpop.f32.mrf.mxu0
      %v3670 = vpop.f32.mrf.mxu0
      %v3671 = vadd.f32 0.0, %v3670
      %v3672 = vpop.f32.mrf.mxu0
      %3673 = vmatprep.mubr.bf16.mxu0 0
      %3674 = vmatmul.mubr.bf16.gmra.mxu0 %v3589
      %v3675 = vpop.f32.mrf.mxu0
      %v3676 = vadd.f32 0.0, %v3675
      %v3677 = vpop.f32.mrf.mxu0
      %v3678 = vpop.f32.mrf.mxu0
      %v3679 = vadd.f32 0.0, %v3678
      %v3680 = vpop.f32.mrf.mxu0
      %3681 = vmatprep.mubr.bf16.mxu0 0
      %3682 = vmatmul.mubr.bf16.gmra.mxu0 %v3592
      %v3683 = vpop.f32.mrf.mxu0
      %v3684 = vadd.f32 0.0, %v3683
      %v3685 = vpop.f32.mrf.mxu0
      %v3686 = vpop.f32.mrf.mxu0
      %v3687 = vadd.f32 0.0, %v3686
      %v3688 = vpop.f32.mrf.mxu0
      %3689 = vmatprep.mubr.bf16.mxu0 0
      %3690 = vmatmul.mubr.bf16.gmra.mxu0 %v3595
      %v3691 = vpop.f32.mrf.mxu0
      %v3692 = vadd.f32 0.0, %v3691
      %v3693 = vpop.f32.mrf.mxu0
      %v3694 = vpop.f32.mrf.mxu0
      %v3695 = vadd.f32 0.0, %v3694
      %v3696 = vpop.f32.mrf.mxu0
      %3697 = vmatprep.mubr.bf16.mxu0 0
      %3698 = vmatmul.mubr.bf16.gmra.mxu0 %v3598
      %v3699 = vpop.f32.mrf.mxu0
      %v3700 = vadd.f32 0.0, %v3699
      %v3701 = vpop.f32.mrf.mxu0
      %v3702 = vpop.f32.mrf.mxu0
      %v3703 = vadd.f32 0.0, %v3702
      %v3704 = vpop.f32.mrf.mxu0
      %3705 = vmatprep.mubr.bf16.mxu0 0
      %3706 = vmatmul.mubr.bf16.gmra.mxu0 %v3601
      %v3707 = vpop.f32.mrf.mxu0
      %v3708 = vadd.f32 0.0, %v3707
      %v3709 = vpop.f32.mrf.mxu0
      %v3710 = vpop.f32.mrf.mxu0
      %v3711 = vadd.f32 0.0, %v3710
      %v3712 = vpop.f32.mrf.mxu0
      %3713 = vmatprep.mubr.bf16.mxu0 0
      %3714 = vmatmul.mubr.bf16.gmra.mxu0 %v3604
      %v3715 = vpop.f32.mrf.mxu0
      %v3716 = vadd.f32 0.0, %v3715
      %v3717 = vpop.f32.mrf.mxu0
      %v3718 = vpop.f32.mrf.mxu0
      %v3719 = vadd.f32 0.0, %v3718
      %v3720 = vpop.f32.mrf.mxu0
      %3721 = vmatprep.mubr.bf16.mxu0 0
      %3722 = vmatmul.mubr.bf16.gmra.mxu0 %v3607
      %v3723 = vpop.f32.mrf.mxu0
      %v3724 = vadd.f32 0.0, %v3723
      %v3725 = vpop.f32.mrf.mxu0
      %v3726 = vpop.f32.mrf.mxu0
      %v3727 = vadd.f32 0.0, %v3726
      %v3728 = vpop.f32.mrf.mxu0
      %3729 = vmatprep.mubr.bf16.mxu0 0
      %3730 = vmatmul.mubr.bf16.gmra.mxu0 %v3610
      %v3731 = vpop.f32.mrf.mxu0
      %v3732 = vadd.f32 0.0, %v3731
      %v3733 = vpop.f32.mrf.mxu0
      %v3734 = vpop.f32.mrf.mxu0
      %v3735 = vadd.f32 0.0, %v3734
      %v3736 = vpop.f32.mrf.mxu0
      %3737 = vmatprep.mubr.bf16.mxu0 0
      %3738 = vmatmul.mubr.bf16.gmra.mxu0 %v3613
      %v3739 = vpop.f32.mrf.mxu0
      %v3740 = vadd.f32 0.0, %v3739
      %v3741 = vpop.f32.mrf.mxu0
      %v3742 = vpop.f32.mrf.mxu0
      %v3743 = vadd.f32 0.0, %v3742
      %v3744 = vpop.f32.mrf.mxu0
      %3745 = vmatprep.mubr.bf16.mxu0 0
      %3746 = vmatmul.mubr.bf16.gmra.mxu0 %v3616
      %v3747 = vpop.f32.mrf.mxu0
      %v3748 = vadd.f32 0.0, %v3747
      %v3749 = vpop.f32.mrf.mxu0
      %v3750 = vpop.f32.mrf.mxu0
      %v3751 = vadd.f32 0.0, %v3750
      %v3752 = vpop.f32.mrf.mxu0
      %3753 = vmatprep.mubr.bf16.mxu0 0
      %3754 = vmatmul.mubr.bf16.gmra.mxu0 %v3619
      %v3755 = vpop.f32.mrf.mxu0
      %v3756 = vadd.f32 0.0, %v3755
      %v3757 = vpop.f32.mrf.mxu0
      %v3758 = vpop.f32.mrf.mxu0
      %v3759 = vadd.f32 0.0, %v3758
      %v3760 = vpop.f32.mrf.mxu0
      %3761 = vmatprep.mubr.bf16.mxu0 0
      %3762 = vmatmul.mubr.bf16.gmra.mxu0 %v3622
      %v3763 = vpop.f32.mrf.mxu0
      %v3764 = vadd.f32 0.0, %v3763
      %v3765 = vpop.f32.mrf.mxu0
      %v3766 = vpop.f32.mrf.mxu0
      %v3767 = vadd.f32 0.0, %v3766
      %v3768 = vpop.f32.mrf.mxu0
      %3769 = vmatprep.mubr.bf16.mxu0 0
      %3770 = vmatmul.mubr.bf16.gmra.mxu0 %v3625
      %v3771 = vpop.f32.mrf.mxu0
      %v3772 = vadd.f32 0.0, %v3771
      %v3773 = vpop.f32.mrf.mxu0
      %v3774 = vpop.f32.mrf.mxu0
      %v3775 = vadd.f32 0.0, %v3774
      %v3776 = vpop.f32.mrf.mxu0
      %3777 = vmatprep.mubr.bf16.mxu0 0
      %3778 = vmatmul.mubr.bf16.gmra.mxu0 %v3628
      %v3779 = vpop.f32.mrf.mxu0
      %v3780 = vadd.f32 0.0, %v3779
      %v3781 = vpop.f32.mrf.mxu0
      %v3782 = vpop.f32.mrf.mxu0
      %v3783 = vadd.f32 0.0, %v3782
      %v3784 = vpop.f32.mrf.mxu0
      %3785 = vmatprep.mubr.bf16.mxu0 0
      %3786 = vmatmul.mubr.bf16.gmra.mxu0 %v3631
      %v3787 = vpop.f32.mrf.mxu0
      %v3788 = vadd.f32 0.0, %v3787
      %v3789 = vpop.f32.mrf.mxu0
      %v3790 = vpop.f32.mrf.mxu0
      %v3791 = vadd.f32 0.0, %v3790
      %v3792 = vpop.f32.mrf.mxu0
      %3793 = vdwg.mxu0
      %v3794 = vadd.f32 %v3403, %v3668
      %v3795 = vadd.f32 %v3406, %v3671
      %v3796 = vadd.f32 %v3411, %v3676
      %v3797 = vadd.f32 %v3414, %v3679
      %v3798 = vadd.f32 %v3419, %v3684
      %v3799 = vadd.f32 %v3422, %v3687
      %v3800 = vadd.f32 %v3427, %v3692
      %v3801 = vadd.f32 %v3430, %v3695
      %v3802 = vadd.f32 %v3435, %v3700
      %v3803 = vadd.f32 %v3438, %v3703
      %v3804 = vadd.f32 %v3443, %v3708
      %v3805 = vadd.f32 %v3446, %v3711
      %v3806 = vadd.f32 %v3451, %v3716
      %v3807 = vadd.f32 %v3454, %v3719
      %v3808 = vadd.f32 %v3459, %v3724
      %v3809 = vadd.f32 %v3462, %v3727
      %v3810 = vadd.f32 %v3467, %v3732
      %v3811 = vadd.f32 %v3470, %v3735
      %v3812 = vadd.f32 %v3475, %v3740
      %v3813 = vadd.f32 %v3478, %v3743
      %v3814 = vadd.f32 %v3483, %v3748
      %v3815 = vadd.f32 %v3486, %v3751
      %v3816 = vadd.f32 %v3491, %v3756
      %v3817 = vadd.f32 %v3494, %v3759
      %v3818 = vadd.f32 %v3499, %v3764
      %v3819 = vadd.f32 %v3502, %v3767
      %v3820 = vadd.f32 %v3507, %v3772
      %v3821 = vadd.f32 %v3510, %v3775
      %v3822 = vadd.f32 %v3515, %v3780
      %v3823 = vadd.f32 %v3518, %v3783
      %v3824 = vadd.f32 %v3523, %v3788
      %v3825 = vadd.f32 %v3526, %v3791
      %3827 = vset.pattern.permute.xlu0 0
      %3828 = vperm.xlu0 %3827, %v798
      %v3829 = vpop.permute.xlu0 %3828
      %3832 = vset.pattern.permute.xlu0 0
      %3833 = vperm.xlu0 %3832, %v799
      %v3834 = vpop.permute.xlu0 %3833
      %3837 = vset.pattern.permute.xlu0 0
      %3838 = vperm.xlu0 %3837, %v800
      %v3839 = vpop.permute.xlu0 %3838
      %3842 = vset.pattern.permute.xlu0 0
      %3843 = vperm.xlu0 %3842, %v801
      %v3844 = vpop.permute.xlu0 %3843
      %3847 = vset.pattern.permute.xlu0 0
      %3848 = vperm.xlu0 %3847, %v802
      %v3849 = vpop.permute.xlu0 %3848
      %3852 = vset.pattern.permute.xlu0 0
      %3853 = vperm.xlu0 %3852, %v803
      %v3854 = vpop.permute.xlu0 %3853
      %3857 = vset.pattern.permute.xlu0 0
      %3858 = vperm.xlu0 %3857, %v804
      %v3859 = vpop.permute.xlu0 %3858
      %3862 = vset.pattern.permute.xlu0 0
      %3863 = vperm.xlu0 %3862, %v805
      %v3864 = vpop.permute.xlu0 %3863
      %3867 = vset.pattern.permute.xlu0 0
      %3868 = vperm.xlu0 %3867, %v806
      %v3869 = vpop.permute.xlu0 %3868
      %3872 = vset.pattern.permute.xlu0 0
      %3873 = vperm.xlu0 %3872, %v807
      %v3874 = vpop.permute.xlu0 %3873
      %3877 = vset.pattern.permute.xlu0 0
      %3878 = vperm.xlu0 %3877, %v808
      %v3879 = vpop.permute.xlu0 %3878
      %3882 = vset.pattern.permute.xlu0 0
      %3883 = vperm.xlu0 %3882, %v809
      %v3884 = vpop.permute.xlu0 %3883
      %3887 = vset.pattern.permute.xlu0 0
      %3888 = vperm.xlu0 %3887, %v810
      %v3889 = vpop.permute.xlu0 %3888
      %3892 = vset.pattern.permute.xlu0 0
      %3893 = vperm.xlu0 %3892, %v811
      %v3894 = vpop.permute.xlu0 %3893
      %3897 = vset.pattern.permute.xlu0 0
      %3898 = vperm.xlu0 %3897, %v812
      %v3899 = vpop.permute.xlu0 %3898
      %3902 = vset.pattern.permute.xlu0 0
      %3903 = vperm.xlu0 %3902, %v813
      %v3904 = vpop.permute.xlu0 %3903
      %3907 = vset.pattern.permute.xlu0 0
      %3908 = vperm.xlu0 %3907, %v814
      %v3909 = vpop.permute.xlu0 %3908
      %3912 = vset.pattern.permute.xlu0 0
      %3913 = vperm.xlu0 %3912, %v815
      %v3914 = vpop.permute.xlu0 %3913
      %3917 = vset.pattern.permute.xlu0 0
      %3918 = vperm.xlu0 %3917, %v816
      %v3919 = vpop.permute.xlu0 %3918
      %3922 = vset.pattern.permute.xlu0 0
      %3923 = vperm.xlu0 %3922, %v817
      %v3924 = vpop.permute.xlu0 %3923
      %3927 = vset.pattern.permute.xlu0 0
      %3928 = vperm.xlu0 %3927, %v818
      %v3929 = vpop.permute.xlu0 %3928
      %3932 = vset.pattern.permute.xlu0 0
      %3933 = vperm.xlu0 %3932, %v819
      %v3934 = vpop.permute.xlu0 %3933
      %3937 = vset.pattern.permute.xlu0 0
      %3938 = vperm.xlu0 %3937, %v820
      %v3939 = vpop.permute.xlu0 %3938
      %3942 = vset.pattern.permute.xlu0 0
      %3943 = vperm.xlu0 %3942, %v821
      %v3944 = vpop.permute.xlu0 %3943
      %3947 = vset.pattern.permute.xlu0 0
      %3948 = vperm.xlu0 %3947, %v822
      %v3949 = vpop.permute.xlu0 %3948
      %3952 = vset.pattern.permute.xlu0 0
      %3953 = vperm.xlu0 %3952, %v823
      %v3954 = vpop.permute.xlu0 %3953
      %3957 = vset.pattern.permute.xlu0 0
      %3958 = vperm.xlu0 %3957, %v824
      %v3959 = vpop.permute.xlu0 %3958
      %3962 = vset.pattern.permute.xlu0 0
      %3963 = vperm.xlu0 %3962, %v825
      %v3964 = vpop.permute.xlu0 %3963
      %3967 = vset.pattern.permute.xlu0 0
      %3968 = vperm.xlu0 %3967, %v826
      %v3969 = vpop.permute.xlu0 %3968
      %3972 = vset.pattern.permute.xlu0 0
      %3973 = vperm.xlu0 %3972, %v827
      %v3974 = vpop.permute.xlu0 %3973
      %3977 = vset.pattern.permute.xlu0 0
      %3978 = vperm.xlu0 %3977, %v828
      %v3979 = vpop.permute.xlu0 %3978
      %3982 = vset.pattern.permute.xlu0 0
      %3983 = vperm.xlu0 %3982, %v829
      %v3984 = vpop.permute.xlu0 %3983
      %v3986 = vmul.f32 %v3794, %v3829
      %v3987 = vmul.f32 %v3795, %v3834
      %v3988 = vmul.f32 %v3796, %v3839
      %v3989 = vmul.f32 %v3797, %v3844
      %v3990 = vmul.f32 %v3798, %v3849
      %v3991 = vmul.f32 %v3799, %v3854
      %v3992 = vmul.f32 %v3800, %v3859
      %v3993 = vmul.f32 %v3801, %v3864
      %v3994 = vmul.f32 %v3802, %v3869
      %v3995 = vmul.f32 %v3803, %v3874
      %v3996 = vmul.f32 %v3804, %v3879
      %v3997 = vmul.f32 %v3805, %v3884
      %v3998 = vmul.f32 %v3806, %v3889
      %v3999 = vmul.f32 %v3807, %v3894
      %v4000 = vmul.f32 %v3808, %v3899
      %v4001 = vmul.f32 %v3809, %v3904
      %v4002 = vmul.f32 %v3810, %v3909
      %v4003 = vmul.f32 %v3811, %v3914
      %v4004 = vmul.f32 %v3812, %v3919
      %v4005 = vmul.f32 %v3813, %v3924
      %v4006 = vmul.f32 %v3814, %v3929
      %v4007 = vmul.f32 %v3815, %v3934
      %v4008 = vmul.f32 %v3816, %v3939
      %v4009 = vmul.f32 %v3817, %v3944
      %v4010 = vmul.f32 %v3818, %v3949
      %v4011 = vmul.f32 %v3819, %v3954
      %v4012 = vmul.f32 %v3820, %v3959
      %v4013 = vmul.f32 %v3821, %v3964
      %v4014 = vmul.f32 %v3822, %v3969
      %v4015 = vmul.f32 %v3823, %v3974
      %v4016 = vmul.f32 %v3824, %v3979
      %v4017 = vmul.f32 %v3825, %v3984
      %v4018 = vadd.f32 %v3057, %v3986
      %v4019 = vadd.f32 %v3058, %v3987
      %v4020 = vadd.f32 %v3059, %v3988
      %v4021 = vadd.f32 %v3060, %v3989
      %v4022 = vadd.f32 %v3061, %v3990
      %v4023 = vadd.f32 %v3062, %v3991
      %v4024 = vadd.f32 %v3063, %v3992
      %v4025 = vadd.f32 %v3064, %v3993
      %v4026 = vadd.f32 %v3065, %v3994
      %v4027 = vadd.f32 %v3066, %v3995
      %v4028 = vadd.f32 %v3067, %v3996
      %v4029 = vadd.f32 %v3068, %v3997
      %v4030 = vadd.f32 %v3069, %v3998
      %v4031 = vadd.f32 %v3070, %v3999
      %v4032 = vadd.f32 %v3071, %v4000
      %v4033 = vadd.f32 %v3072, %v4001
      %v4034 = vadd.f32 %v3073, %v4002
      %v4035 = vadd.f32 %v3074, %v4003
      %v4036 = vadd.f32 %v3075, %v4004
      %v4037 = vadd.f32 %v3076, %v4005
      %v4038 = vadd.f32 %v3077, %v4006
      %v4039 = vadd.f32 %v3078, %v4007
      %v4040 = vadd.f32 %v3079, %v4008
      %v4041 = vadd.f32 %v3080, %v4009
      %v4042 = vadd.f32 %v3081, %v4010
      %v4043 = vadd.f32 %v3082, %v4011
      %v4044 = vadd.f32 %v3083, %v4012
      %v4045 = vadd.f32 %v3084, %v4013
      %v4046 = vadd.f32 %v3085, %v4014
      %v4047 = vadd.f32 %v3086, %v4015
      %v4048 = vadd.f32 %v3087, %v4016
      %v4049 = vadd.f32 %v3088, %v4017
      %v4050 = vld [vmem:[%s10] sm:$0x1]
      %v4052 = vlaneseq
      %v4053 = vshrl.u32 %v4052, 7
      %v4054 = vsub.s32 0, %v4053
      %v4055 = vrot.slane %v4050, %v4054
      %v4057 = vmul.f32 %v837, %v4055
      %v4058 = vmul.f32 %v838, %v4055
      %v4059 = vmul.f32 %v839, %v4055
      %v4060 = vmul.f32 %v840, %v4055
      %v4061 = vmul.f32 %v841, %v4055
      %v4062 = vmul.f32 %v842, %v4055
      %v4063 = vmul.f32 %v843, %v4055
      %v4064 = vmul.f32 %v844, %v4055
      %v4065 = vmul.f32 %v845, %v4055
      %v4066 = vmul.f32 %v846, %v4055
      %v4067 = vmul.f32 %v847, %v4055
      %v4068 = vmul.f32 %v848, %v4055
      %v4069 = vmul.f32 %v849, %v4055
      %v4070 = vmul.f32 %v850, %v4055
      %v4071 = vmul.f32 %v851, %v4055
      %v4072 = vmul.f32 %v852, %v4055
      %v4073 = vmul.f32 %v853, %v4055
      %v4074 = vmul.f32 %v854, %v4055
      %v4075 = vmul.f32 %v855, %v4055
      %v4076 = vmul.f32 %v856, %v4055
      %v4077 = vmul.f32 %v857, %v4055
      %v4078 = vmul.f32 %v858, %v4055
      %v4079 = vmul.f32 %v859, %v4055
      %v4080 = vmul.f32 %v860, %v4055
      %v4081 = vmul.f32 %v861, %v4055
      %v4082 = vmul.f32 %v862, %v4055
      %v4083 = vmul.f32 %v863, %v4055
      %v4084 = vmul.f32 %v864, %v4055
      %v4085 = vmul.f32 %v865, %v4055
      %v4086 = vmul.f32 %v866, %v4055
      %v4087 = vmul.f32 %v867, %v4055
      %v4088 = vmul.f32 %v868, %v4055
      %v4089 = vld [vmem:[%s12] sm:$0x1]
      %v4091 = vlaneseq
      %v4092 = vshrl.u32 %v4091, 7
      %v4093 = vsub.s32 0, %v4092
      %v4094 = vrot.slane %v4089, %v4093
      %v4096 = vadd.f32 %v4057, %v4094
      %v4097 = vadd.f32 %v4058, %v4094
      %v4098 = vadd.f32 %v4059, %v4094
      %v4099 = vadd.f32 %v4060, %v4094
      %v4100 = vadd.f32 %v4061, %v4094
      %v4101 = vadd.f32 %v4062, %v4094
      %v4102 = vadd.f32 %v4063, %v4094
      %v4103 = vadd.f32 %v4064, %v4094
      %v4104 = vadd.f32 %v4065, %v4094
      %v4105 = vadd.f32 %v4066, %v4094
      %v4106 = vadd.f32 %v4067, %v4094
      %v4107 = vadd.f32 %v4068, %v4094
      %v4108 = vadd.f32 %v4069, %v4094
      %v4109 = vadd.f32 %v4070, %v4094
      %v4110 = vadd.f32 %v4071, %v4094
      %v4111 = vadd.f32 %v4072, %v4094
      %v4112 = vadd.f32 %v4073, %v4094
      %v4113 = vadd.f32 %v4074, %v4094
      %v4114 = vadd.f32 %v4075, %v4094
      %v4115 = vadd.f32 %v4076, %v4094
      %v4116 = vadd.f32 %v4077, %v4094
      %v4117 = vadd.f32 %v4078, %v4094
      %v4118 = vadd.f32 %v4079, %v4094
      %v4119 = vadd.f32 %v4080, %v4094
      %v4120 = vadd.f32 %v4081, %v4094
      %v4121 = vadd.f32 %v4082, %v4094
      %v4122 = vadd.f32 %v4083, %v4094
      %v4123 = vadd.f32 %v4084, %v4094
      %v4124 = vadd.f32 %v4085, %v4094
      %v4125 = vadd.f32 %v4086, %v4094
      %v4126 = vadd.f32 %v4087, %v4094
      %v4127 = vadd.f32 %v4088, %v4094
      %v4128 = vmax.f32 %v4096, 0.0
      %v4129 = vmax.f32 %v4097, 0.0
      %v4130 = vmax.f32 %v4098, 0.0
      %v4131 = vmax.f32 %v4099, 0.0
      %v4132 = vmax.f32 %v4100, 0.0
      %v4133 = vmax.f32 %v4101, 0.0
      %v4134 = vmax.f32 %v4102, 0.0
      %v4135 = vmax.f32 %v4103, 0.0
      %v4136 = vmax.f32 %v4104, 0.0
      %v4137 = vmax.f32 %v4105, 0.0
      %v4138 = vmax.f32 %v4106, 0.0
      %v4139 = vmax.f32 %v4107, 0.0
      %v4140 = vmax.f32 %v4108, 0.0
      %v4141 = vmax.f32 %v4109, 0.0
      %v4142 = vmax.f32 %v4110, 0.0
      %v4143 = vmax.f32 %v4111, 0.0
      %v4144 = vmax.f32 %v4112, 0.0
      %v4145 = vmax.f32 %v4113, 0.0
      %v4146 = vmax.f32 %v4114, 0.0
      %v4147 = vmax.f32 %v4115, 0.0
      %v4148 = vmax.f32 %v4116, 0.0
      %v4149 = vmax.f32 %v4117, 0.0
      %v4150 = vmax.f32 %v4118, 0.0
      %v4151 = vmax.f32 %v4119, 0.0
      %v4152 = vmax.f32 %v4120, 0.0
      %v4153 = vmax.f32 %v4121, 0.0
      %v4154 = vmax.f32 %v4122, 0.0
      %v4155 = vmax.f32 %v4123, 0.0
      %v4156 = vmax.f32 %v4124, 0.0
      %v4157 = vmax.f32 %v4125, 0.0
      %v4158 = vmax.f32 %v4126, 0.0
      %v4159 = vmax.f32 %v4127, 0.0
      %v4160 = vpack.c.bf16 %v4129, %v4128
      %v4161 = vpack.c.bf16 %v4131, %v4130
      %v4162 = vpack.c.bf16 %v4133, %v4132
      %v4163 = vpack.c.bf16 %v4135, %v4134
      %v4164 = vpack.c.bf16 %v4137, %v4136
      %v4165 = vpack.c.bf16 %v4139, %v4138
      %v4166 = vpack.c.bf16 %v4141, %v4140
      %v4167 = vpack.c.bf16 %v4143, %v4142
      %v4168 = vpack.c.bf16 %v4145, %v4144
      %v4169 = vpack.c.bf16 %v4147, %v4146
      %v4170 = vpack.c.bf16 %v4149, %v4148
      %v4171 = vpack.c.bf16 %v4151, %v4150
      %v4172 = vpack.c.bf16 %v4153, %v4152
      %v4173 = vpack.c.bf16 %v4155, %v4154
      %v4174 = vpack.c.bf16 %v4157, %v4156
      %v4175 = vpack.c.bf16 %v4159, %v4158
      %v4176 = vld [vmem:[%s14] sm:$0x3]
      %v4177 = vld [vmem:[%s11] sm:$0x1]
      %v4179 = vlaneseq
      %v4180 = vshrl.u32 %v4179, 7
      %v4181 = vsub.s32 0, %v4180
      %v4182 = vrot.slane %v4177, %v4181
      %v4184 = vmul.f32 %v4018, %v4182
      %v4185 = vmul.f32 %v4019, %v4182
      %v4186 = vmul.f32 %v4020, %v4182
      %v4187 = vmul.f32 %v4021, %v4182
      %v4188 = vmul.f32 %v4022, %v4182
      %v4189 = vmul.f32 %v4023, %v4182
      %v4190 = vmul.f32 %v4024, %v4182
      %v4191 = vmul.f32 %v4025, %v4182
      %v4192 = vmul.f32 %v4026, %v4182
      %v4193 = vmul.f32 %v4027, %v4182
      %v4194 = vmul.f32 %v4028, %v4182
      %v4195 = vmul.f32 %v4029, %v4182
      %v4196 = vmul.f32 %v4030, %v4182
      %v4197 = vmul.f32 %v4031, %v4182
      %v4198 = vmul.f32 %v4032, %v4182
      %v4199 = vmul.f32 %v4033, %v4182
      %v4200 = vmul.f32 %v4034, %v4182
      %v4201 = vmul.f32 %v4035, %v4182
      %v4202 = vmul.f32 %v4036, %v4182
      %v4203 = vmul.f32 %v4037, %v4182
      %v4204 = vmul.f32 %v4038, %v4182
      %v4205 = vmul.f32 %v4039, %v4182
      %v4206 = vmul.f32 %v4040, %v4182
      %v4207 = vmul.f32 %v4041, %v4182
      %v4208 = vmul.f32 %v4042, %v4182
      %v4209 = vmul.f32 %v4043, %v4182
      %v4210 = vmul.f32 %v4044, %v4182
      %v4211 = vmul.f32 %v4045, %v4182
      %v4212 = vmul.f32 %v4046, %v4182
      %v4213 = vmul.f32 %v4047, %v4182
      %v4214 = vmul.f32 %v4048, %v4182
      %v4215 = vmul.f32 %v4049, %v4182
      %v4216 = vld [vmem:[%s13] sm:$0x1]
      %v4218 = vlaneseq
      %v4219 = vshrl.u32 %v4218, 7
      %v4220 = vsub.s32 0, %v4219
      %v4221 = vrot.slane %v4216, %v4220
      %v4223 = vadd.f32 %v4184, %v4221
      %v4224 = vadd.f32 %v4185, %v4221
      %v4225 = vadd.f32 %v4186, %v4221
      %v4226 = vadd.f32 %v4187, %v4221
      %v4227 = vadd.f32 %v4188, %v4221
      %v4228 = vadd.f32 %v4189, %v4221
      %v4229 = vadd.f32 %v4190, %v4221
      %v4230 = vadd.f32 %v4191, %v4221
      %v4231 = vadd.f32 %v4192, %v4221
      %v4232 = vadd.f32 %v4193, %v4221
      %v4233 = vadd.f32 %v4194, %v4221
      %v4234 = vadd.f32 %v4195, %v4221
      %v4235 = vadd.f32 %v4196, %v4221
      %v4236 = vadd.f32 %v4197, %v4221
      %v4237 = vadd.f32 %v4198, %v4221
      %v4238 = vadd.f32 %v4199, %v4221
      %v4239 = vadd.f32 %v4200, %v4221
      %v4240 = vadd.f32 %v4201, %v4221
      %v4241 = vadd.f32 %v4202, %v4221
      %v4242 = vadd.f32 %v4203, %v4221
      %v4243 = vadd.f32 %v4204, %v4221
      %v4244 = vadd.f32 %v4205, %v4221
      %v4245 = vadd.f32 %v4206, %v4221
      %v4246 = vadd.f32 %v4207, %v4221
      %v4247 = vadd.f32 %v4208, %v4221
      %v4248 = vadd.f32 %v4209, %v4221
      %v4249 = vadd.f32 %v4210, %v4221
      %v4250 = vadd.f32 %v4211, %v4221
      %v4251 = vadd.f32 %v4212, %v4221
      %v4252 = vadd.f32 %v4213, %v4221
      %v4253 = vadd.f32 %v4214, %v4221
      %v4254 = vadd.f32 %v4215, %v4221
      %v4255 = vmax.f32 %v4223, 0.0
      %v4256 = vmax.f32 %v4224, 0.0
      %v4257 = vmax.f32 %v4225, 0.0
      %v4258 = vmax.f32 %v4226, 0.0
      %v4259 = vmax.f32 %v4227, 0.0
      %v4260 = vmax.f32 %v4228, 0.0
      %v4261 = vmax.f32 %v4229, 0.0
      %v4262 = vmax.f32 %v4230, 0.0
      %v4263 = vmax.f32 %v4231, 0.0
      %v4264 = vmax.f32 %v4232, 0.0
      %v4265 = vmax.f32 %v4233, 0.0
      %v4266 = vmax.f32 %v4234, 0.0
      %v4267 = vmax.f32 %v4235, 0.0
      %v4268 = vmax.f32 %v4236, 0.0
      %v4269 = vmax.f32 %v4237, 0.0
      %v4270 = vmax.f32 %v4238, 0.0
      %v4271 = vmax.f32 %v4239, 0.0
      %v4272 = vmax.f32 %v4240, 0.0
      %v4273 = vmax.f32 %v4241, 0.0
      %v4274 = vmax.f32 %v4242, 0.0
      %v4275 = vmax.f32 %v4243, 0.0
      %v4276 = vmax.f32 %v4244, 0.0
      %v4277 = vmax.f32 %v4245, 0.0
      %v4278 = vmax.f32 %v4246, 0.0
      %v4279 = vmax.f32 %v4247, 0.0
      %v4280 = vmax.f32 %v4248, 0.0
      %v4281 = vmax.f32 %v4249, 0.0
      %v4282 = vmax.f32 %v4250, 0.0
      %v4283 = vmax.f32 %v4251, 0.0
      %v4284 = vmax.f32 %v4252, 0.0
      %v4285 = vmax.f32 %v4253, 0.0
      %v4286 = vmax.f32 %v4254, 0.0
      %v4287 = vpack.c.bf16 %v4256, %v4255
      %v4288 = vpack.c.bf16 %v4258, %v4257
      %v4289 = vpack.c.bf16 %v4260, %v4259
      %v4290 = vpack.c.bf16 %v4262, %v4261
      %v4291 = vpack.c.bf16 %v4264, %v4263
      %v4292 = vpack.c.bf16 %v4266, %v4265
      %v4293 = vpack.c.bf16 %v4268, %v4267
      %v4294 = vpack.c.bf16 %v4270, %v4269
      %v4295 = vpack.c.bf16 %v4272, %v4271
      %v4296 = vpack.c.bf16 %v4274, %v4273
      %v4297 = vpack.c.bf16 %v4276, %v4275
      %v4298 = vpack.c.bf16 %v4278, %v4277
      %v4299 = vpack.c.bf16 %v4280, %v4279
      %v4300 = vpack.c.bf16 %v4282, %v4281
      %v4301 = vpack.c.bf16 %v4284, %v4283
      %v4302 = vpack.c.bf16 %v4286, %v4285
      %v4303 = vld [vmem:[%s15] sm:$0x3]
      %v4305 = vsel %vm996, %v4287, 0
      %v4308 = vsel %vm996, %v4288, 0
      %v4311 = vsel %vm996, %v4289, 0
      %v4314 = vsel %vm996, %v4290, 0
      %v4317 = vsel %vm996, %v4291, 0
      %v4320 = vsel %vm996, %v4292, 0
      %v4323 = vsel %vm996, %v4293, 0
      %v4326 = vsel %vm996, %v4294, 0
      %v4329 = vsel %vm996, %v4295, 0
      %v4332 = vsel %vm996, %v4296, 0
      %v4335 = vsel %vm996, %v4297, 0
      %v4338 = vsel %vm996, %v4298, 0
      %v4341 = vsel %vm996, %v4299, 0
      %v4344 = vsel %vm996, %v4300, 0
      %v4347 = vsel %vm996, %v4301, 0
      %v4350 = vsel %vm996, %v4302, 0
      %v4353 = vsel %vm1045, %v4303, 0
      %4355 = vmatprep.subr.bf16.mxu0 0
      %4356 = vmatpush1.bf16.msra.mxu0 0
      %4357 = vmatprep.subr.bf16.mxu0 0
      %4358 = vmatpush1.bf16.msra.mxu0 0
      %4359 = vmatprep.subr.bf16.mxu0 0
      %4360 = vmatpush1.bf16.msra.mxu0 0
      %4361 = vmatprep.subr.bf16.mxu0 0
      %4362 = vmatpush1.bf16.msra.mxu0 0
      %4363 = vmatprep.subr.bf16.mxu0 0
      %4364 = vmatpush1.bf16.msra.mxu0 0
      %4365 = vmatprep.subr.bf16.mxu0 0
      %4366 = vmatpush1.bf16.msra.mxu0 0
      %4367 = vmatprep.subr.bf16.mxu0 0
      %4368 = vmatpush1.bf16.msra.mxu0 0
      %4369 = vmatprep.subr.bf16.mxu0 0
      %4370 = vmatpush1.bf16.msra.mxu0 %v4353
      %4371 = vmatprep.subr.bf16.mxu0 0
      %4372 = vmatpush2.bf16.msra.mxu0 0
      %4373 = vmatprep.subr.bf16.mxu0 0
      %4374 = vmatpush2.bf16.msra.mxu0 0
      %4375 = vmatprep.subr.bf16.mxu0 0
      %4376 = vmatpush2.bf16.msra.mxu0 0
      %4377 = vmatprep.subr.bf16.mxu0 0
      %4378 = vmatpush2.bf16.msra.mxu0 0
      %4379 = vmatprep.subr.bf16.mxu0 0
      %4380 = vmatpush2.bf16.msra.mxu0 0
      %4381 = vmatprep.subr.bf16.mxu0 0
      %4382 = vmatpush2.bf16.msra.mxu0 0
      %4383 = vmatprep.subr.bf16.mxu0 0
      %4384 = vmatpush2.bf16.msra.mxu0 0
      %4385 = vmatprep.subr.bf16.mxu0 0
      %4386 = vmatpush2.bf16.msra.mxu0 0
      %4387 = vmatprep.mubr.bf16.mxu0 0
      %4388 = vmatmul.mubr.bf16.gmra.mxu0 %v4305
      %v4389 = vpop.f32.mrf.mxu0
      %v4390 = vadd.f32 0.0, %v4389
      %v4391 = vpop.f32.mrf.mxu0
      %v4392 = vpop.f32.mrf.mxu0
      %v4393 = vadd.f32 0.0, %v4392
      %v4394 = vpop.f32.mrf.mxu0
      %4395 = vmatprep.mubr.bf16.mxu0 0
      %4396 = vmatmul.mubr.bf16.gmra.mxu0 %v4308
      %v4397 = vpop.f32.mrf.mxu0
      %v4398 = vadd.f32 0.0, %v4397
      %v4399 = vpop.f32.mrf.mxu0
      %v4400 = vpop.f32.mrf.mxu0
      %v4401 = vadd.f32 0.0, %v4400
      %v4402 = vpop.f32.mrf.mxu0
      %4403 = vmatprep.mubr.bf16.mxu0 0
      %4404 = vmatmul.mubr.bf16.gmra.mxu0 %v4311
      %v4405 = vpop.f32.mrf.mxu0
      %v4406 = vadd.f32 0.0, %v4405
      %v4407 = vpop.f32.mrf.mxu0
      %v4408 = vpop.f32.mrf.mxu0
      %v4409 = vadd.f32 0.0, %v4408
      %v4410 = vpop.f32.mrf.mxu0
      %4411 = vmatprep.mubr.bf16.mxu0 0
      %4412 = vmatmul.mubr.bf16.gmra.mxu0 %v4314
      %v4413 = vpop.f32.mrf.mxu0
      %v4414 = vadd.f32 0.0, %v4413
      %v4415 = vpop.f32.mrf.mxu0
      %v4416 = vpop.f32.mrf.mxu0
      %v4417 = vadd.f32 0.0, %v4416
      %v4418 = vpop.f32.mrf.mxu0
      %4419 = vmatprep.mubr.bf16.mxu0 0
      %4420 = vmatmul.mubr.bf16.gmra.mxu0 %v4317
      %v4421 = vpop.f32.mrf.mxu0
      %v4422 = vadd.f32 0.0, %v4421
      %v4423 = vpop.f32.mrf.mxu0
      %v4424 = vpop.f32.mrf.mxu0
      %v4425 = vadd.f32 0.0, %v4424
      %v4426 = vpop.f32.mrf.mxu0
      %4427 = vmatprep.mubr.bf16.mxu0 0
      %4428 = vmatmul.mubr.bf16.gmra.mxu0 %v4320
      %v4429 = vpop.f32.mrf.mxu0
      %v4430 = vadd.f32 0.0, %v4429
      %v4431 = vpop.f32.mrf.mxu0
      %v4432 = vpop.f32.mrf.mxu0
      %v4433 = vadd.f32 0.0, %v4432
      %v4434 = vpop.f32.mrf.mxu0
      %4435 = vmatprep.mubr.bf16.mxu0 0
      %4436 = vmatmul.mubr.bf16.gmra.mxu0 %v4323
      %v4437 = vpop.f32.mrf.mxu0
      %v4438 = vadd.f32 0.0, %v4437
      %v4439 = vpop.f32.mrf.mxu0
      %v4440 = vpop.f32.mrf.mxu0
      %v4441 = vadd.f32 0.0, %v4440
      %v4442 = vpop.f32.mrf.mxu0
      %4443 = vmatprep.mubr.bf16.mxu0 0
      %4444 = vmatmul.mubr.bf16.gmra.mxu0 %v4326
      %v4445 = vpop.f32.mrf.mxu0
      %v4446 = vadd.f32 0.0, %v4445
      %v4447 = vpop.f32.mrf.mxu0
      %v4448 = vpop.f32.mrf.mxu0
      %v4449 = vadd.f32 0.0, %v4448
      %v4450 = vpop.f32.mrf.mxu0
      %4451 = vmatprep.mubr.bf16.mxu0 0
      %4452 = vmatmul.mubr.bf16.gmra.mxu0 %v4329
      %v4453 = vpop.f32.mrf.mxu0
      %v4454 = vadd.f32 0.0, %v4453
      %v4455 = vpop.f32.mrf.mxu0
      %v4456 = vpop.f32.mrf.mxu0
      %v4457 = vadd.f32 0.0, %v4456
      %v4458 = vpop.f32.mrf.mxu0
      %4459 = vmatprep.mubr.bf16.mxu0 0
      %4460 = vmatmul.mubr.bf16.gmra.mxu0 %v4332
      %v4461 = vpop.f32.mrf.mxu0
      %v4462 = vadd.f32 0.0, %v4461
      %v4463 = vpop.f32.mrf.mxu0
      %v4464 = vpop.f32.mrf.mxu0
      %v4465 = vadd.f32 0.0, %v4464
      %v4466 = vpop.f32.mrf.mxu0
      %4467 = vmatprep.mubr.bf16.mxu0 0
      %4468 = vmatmul.mubr.bf16.gmra.mxu0 %v4335
      %v4469 = vpop.f32.mrf.mxu0
      %v4470 = vadd.f32 0.0, %v4469
      %v4471 = vpop.f32.mrf.mxu0
      %v4472 = vpop.f32.mrf.mxu0
      %v4473 = vadd.f32 0.0, %v4472
      %v4474 = vpop.f32.mrf.mxu0
      %4475 = vmatprep.mubr.bf16.mxu0 0
      %4476 = vmatmul.mubr.bf16.gmra.mxu0 %v4338
      %v4477 = vpop.f32.mrf.mxu0
      %v4478 = vadd.f32 0.0, %v4477
      %v4479 = vpop.f32.mrf.mxu0
      %v4480 = vpop.f32.mrf.mxu0
      %v4481 = vadd.f32 0.0, %v4480
      %v4482 = vpop.f32.mrf.mxu0
      %4483 = vmatprep.mubr.bf16.mxu0 0
      %4484 = vmatmul.mubr.bf16.gmra.mxu0 %v4341
      %v4485 = vpop.f32.mrf.mxu0
      %v4486 = vadd.f32 0.0, %v4485
      %v4487 = vpop.f32.mrf.mxu0
      %v4488 = vpop.f32.mrf.mxu0
      %v4489 = vadd.f32 0.0, %v4488
      %v4490 = vpop.f32.mrf.mxu0
      %4491 = vmatprep.mubr.bf16.mxu0 0
      %4492 = vmatmul.mubr.bf16.gmra.mxu0 %v4344
      %v4493 = vpop.f32.mrf.mxu0
      %v4494 = vadd.f32 0.0, %v4493
      %v4495 = vpop.f32.mrf.mxu0
      %v4496 = vpop.f32.mrf.mxu0
      %v4497 = vadd.f32 0.0, %v4496
      %v4498 = vpop.f32.mrf.mxu0
      %4499 = vmatprep.mubr.bf16.mxu0 0
      %4500 = vmatmul.mubr.bf16.gmra.mxu0 %v4347
      %v4501 = vpop.f32.mrf.mxu0
      %v4502 = vadd.f32 0.0, %v4501
      %v4503 = vpop.f32.mrf.mxu0
      %v4504 = vpop.f32.mrf.mxu0
      %v4505 = vadd.f32 0.0, %v4504
      %v4506 = vpop.f32.mrf.mxu0
      %4507 = vmatprep.mubr.bf16.mxu0 0
      %4508 = vmatmul.mubr.bf16.gmra.mxu0 %v4350
      %v4509 = vpop.f32.mrf.mxu0
      %v4510 = vadd.f32 0.0, %v4509
      %v4511 = vpop.f32.mrf.mxu0
      %v4512 = vpop.f32.mrf.mxu0
      %v4513 = vadd.f32 0.0, %v4512
      %v4514 = vpop.f32.mrf.mxu0
      %4515 = vdwg.mxu0
      %v4517 = vsel %vm996, %v4160, 0
      %v4520 = vsel %vm996, %v4161, 0
      %v4523 = vsel %vm996, %v4162, 0
      %v4526 = vsel %vm996, %v4163, 0
      %v4529 = vsel %vm996, %v4164, 0
      %v4532 = vsel %vm996, %v4165, 0
      %v4535 = vsel %vm996, %v4166, 0
      %v4538 = vsel %vm996, %v4167, 0
      %v4541 = vsel %vm996, %v4168, 0
      %v4544 = vsel %vm996, %v4169, 0
      %v4547 = vsel %vm996, %v4170, 0
      %v4550 = vsel %vm996, %v4171, 0
      %v4553 = vsel %vm996, %v4172, 0
      %v4556 = vsel %vm996, %v4173, 0
      %v4559 = vsel %vm996, %v4174, 0
      %v4562 = vsel %vm996, %v4175, 0
      %v4565 = vsel %vm1045, %v4176, 0
      %4567 = vmatprep.subr.bf16.mxu0 0
      %4568 = vmatpush1.bf16.msra.mxu0 0
      %4569 = vmatprep.subr.bf16.mxu0 0
      %4570 = vmatpush1.bf16.msra.mxu0 0
      %4571 = vmatprep.subr.bf16.mxu0 0
      %4572 = vmatpush1.bf16.msra.mxu0 0
      %4573 = vmatprep.subr.bf16.mxu0 0
      %4574 = vmatpush1.bf16.msra.mxu0 0
      %4575 = vmatprep.subr.bf16.mxu0 0
      %4576 = vmatpush1.bf16.msra.mxu0 0
      %4577 = vmatprep.subr.bf16.mxu0 0
      %4578 = vmatpush1.bf16.msra.mxu0 0
      %4579 = vmatprep.subr.bf16.mxu0 0
      %4580 = vmatpush1.bf16.msra.mxu0 0
      %4581 = vmatprep.subr.bf16.mxu0 0
      %4582 = vmatpush1.bf16.msra.mxu0 %v4565
      %4583 = vmatprep.subr.bf16.mxu0 0
      %4584 = vmatpush2.bf16.msra.mxu0 0
      %4585 = vmatprep.subr.bf16.mxu0 0
      %4586 = vmatpush2.bf16.msra.mxu0 0
      %4587 = vmatprep.subr.bf16.mxu0 0
      %4588 = vmatpush2.bf16.msra.mxu0 0
      %4589 = vmatprep.subr.bf16.mxu0 0
      %4590 = vmatpush2.bf16.msra.mxu0 0
      %4591 = vmatprep.subr.bf16.mxu0 0
      %4592 = vmatpush2.bf16.msra.mxu0 0
      %4593 = vmatprep.subr.bf16.mxu0 0
      %4594 = vmatpush2.bf16.msra.mxu0 0
      %4595 = vmatprep.subr.bf16.mxu0 0
      %4596 = vmatpush2.bf16.msra.mxu0 0
      %4597 = vmatprep.subr.bf16.mxu0 0
      %4598 = vmatpush2.bf16.msra.mxu0 0
      %4599 = vmatprep.mubr.bf16.mxu0 0
      %4600 = vmatmul.mubr.bf16.gmra.mxu0 %v4517
      %v4601 = vpop.f32.mrf.mxu0
      %v4602 = vadd.f32 %v4390, %v4601
      %v4603 = vpop.f32.mrf.mxu0
      %v4604 = vpop.f32.mrf.mxu0
      %v4605 = vadd.f32 %v4393, %v4604
      %v4606 = vpop.f32.mrf.mxu0
      %4607 = vmatprep.mubr.bf16.mxu0 0
      %4608 = vmatmul.mubr.bf16.gmra.mxu0 %v4520
      %v4609 = vpop.f32.mrf.mxu0
      %v4610 = vadd.f32 %v4398, %v4609
      %v4611 = vpop.f32.mrf.mxu0
      %v4612 = vpop.f32.mrf.mxu0
      %v4613 = vadd.f32 %v4401, %v4612
      %v4614 = vpop.f32.mrf.mxu0
      %4615 = vmatprep.mubr.bf16.mxu0 0
      %4616 = vmatmul.mubr.bf16.gmra.mxu0 %v4523
      %v4617 = vpop.f32.mrf.mxu0
      %v4618 = vadd.f32 %v4406, %v4617
      %v4619 = vpop.f32.mrf.mxu0
      %v4620 = vpop.f32.mrf.mxu0
      %v4621 = vadd.f32 %v4409, %v4620
      %v4622 = vpop.f32.mrf.mxu0
      %4623 = vmatprep.mubr.bf16.mxu0 0
      %4624 = vmatmul.mubr.bf16.gmra.mxu0 %v4526
      %v4625 = vpop.f32.mrf.mxu0
      %v4626 = vadd.f32 %v4414, %v4625
      %v4627 = vpop.f32.mrf.mxu0
      %v4628 = vpop.f32.mrf.mxu0
      %v4629 = vadd.f32 %v4417, %v4628
      %v4630 = vpop.f32.mrf.mxu0
      %4631 = vmatprep.mubr.bf16.mxu0 0
      %4632 = vmatmul.mubr.bf16.gmra.mxu0 %v4529
      %v4633 = vpop.f32.mrf.mxu0
      %v4634 = vadd.f32 %v4422, %v4633
      %v4635 = vpop.f32.mrf.mxu0
      %v4636 = vpop.f32.mrf.mxu0
      %v4637 = vadd.f32 %v4425, %v4636
      %v4638 = vpop.f32.mrf.mxu0
      %4639 = vmatprep.mubr.bf16.mxu0 0
      %4640 = vmatmul.mubr.bf16.gmra.mxu0 %v4532
      %v4641 = vpop.f32.mrf.mxu0
      %v4642 = vadd.f32 %v4430, %v4641
      %v4643 = vpop.f32.mrf.mxu0
      %v4644 = vpop.f32.mrf.mxu0
      %v4645 = vadd.f32 %v4433, %v4644
      %v4646 = vpop.f32.mrf.mxu0
      %4647 = vmatprep.mubr.bf16.mxu0 0
      %4648 = vmatmul.mubr.bf16.gmra.mxu0 %v4535
      %v4649 = vpop.f32.mrf.mxu0
      %v4650 = vadd.f32 %v4438, %v4649
      %v4651 = vpop.f32.mrf.mxu0
      %v4652 = vpop.f32.mrf.mxu0
      %v4653 = vadd.f32 %v4441, %v4652
      %v4654 = vpop.f32.mrf.mxu0
      %4655 = vmatprep.mubr.bf16.mxu0 0
      %4656 = vmatmul.mubr.bf16.gmra.mxu0 %v4538
      %v4657 = vpop.f32.mrf.mxu0
      %v4658 = vadd.f32 %v4446, %v4657
      %v4659 = vpop.f32.mrf.mxu0
      %v4660 = vpop.f32.mrf.mxu0
      %v4661 = vadd.f32 %v4449, %v4660
      %v4662 = vpop.f32.mrf.mxu0
      %4663 = vmatprep.mubr.bf16.mxu0 0
      %4664 = vmatmul.mubr.bf16.gmra.mxu0 %v4541
      %v4665 = vpop.f32.mrf.mxu0
      %v4666 = vadd.f32 %v4454, %v4665
      %v4667 = vpop.f32.mrf.mxu0
      %v4668 = vpop.f32.mrf.mxu0
      %v4669 = vadd.f32 %v4457, %v4668
      %v4670 = vpop.f32.mrf.mxu0
      %4671 = vmatprep.mubr.bf16.mxu0 0
      %4672 = vmatmul.mubr.bf16.gmra.mxu0 %v4544
      %v4673 = vpop.f32.mrf.mxu0
      %v4674 = vadd.f32 %v4462, %v4673
      %v4675 = vpop.f32.mrf.mxu0
      %v4676 = vpop.f32.mrf.mxu0
      %v4677 = vadd.f32 %v4465, %v4676
      %v4678 = vpop.f32.mrf.mxu0
      %4679 = vmatprep.mubr.bf16.mxu0 0
      %4680 = vmatmul.mubr.bf16.gmra.mxu0 %v4547
      %v4681 = vpop.f32.mrf.mxu0
      %v4682 = vadd.f32 %v4470, %v4681
      %v4683 = vpop.f32.mrf.mxu0
      %v4684 = vpop.f32.mrf.mxu0
      %v4685 = vadd.f32 %v4473, %v4684
      %v4686 = vpop.f32.mrf.mxu0
      %4687 = vmatprep.mubr.bf16.mxu0 0
      %4688 = vmatmul.mubr.bf16.gmra.mxu0 %v4550
      %v4689 = vpop.f32.mrf.mxu0
      %v4690 = vadd.f32 %v4478, %v4689
      %v4691 = vpop.f32.mrf.mxu0
      %v4692 = vpop.f32.mrf.mxu0
      %v4693 = vadd.f32 %v4481, %v4692
      %v4694 = vpop.f32.mrf.mxu0
      %4695 = vmatprep.mubr.bf16.mxu0 0
      %4696 = vmatmul.mubr.bf16.gmra.mxu0 %v4553
      %v4697 = vpop.f32.mrf.mxu0
      %v4698 = vadd.f32 %v4486, %v4697
      %v4699 = vpop.f32.mrf.mxu0
      %v4700 = vpop.f32.mrf.mxu0
      %v4701 = vadd.f32 %v4489, %v4700
      %v4702 = vpop.f32.mrf.mxu0
      %4703 = vmatprep.mubr.bf16.mxu0 0
      %4704 = vmatmul.mubr.bf16.gmra.mxu0 %v4556
      %v4705 = vpop.f32.mrf.mxu0
      %v4706 = vadd.f32 %v4494, %v4705
      %v4707 = vpop.f32.mrf.mxu0
      %v4708 = vpop.f32.mrf.mxu0
      %v4709 = vadd.f32 %v4497, %v4708
      %v4710 = vpop.f32.mrf.mxu0
      %4711 = vmatprep.mubr.bf16.mxu0 0
      %4712 = vmatmul.mubr.bf16.gmra.mxu0 %v4559
      %v4713 = vpop.f32.mrf.mxu0
      %v4714 = vadd.f32 %v4502, %v4713
      %v4715 = vpop.f32.mrf.mxu0
      %v4716 = vpop.f32.mrf.mxu0
      %v4717 = vadd.f32 %v4505, %v4716
      %v4718 = vpop.f32.mrf.mxu0
      %4719 = vmatprep.mubr.bf16.mxu0 0
      %4720 = vmatmul.mubr.bf16.gmra.mxu0 %v4562
      %v4721 = vpop.f32.mrf.mxu0
      %v4722 = vadd.f32 %v4510, %v4721
      %v4723 = vpop.f32.mrf.mxu0
      %v4724 = vpop.f32.mrf.mxu0
      %v4725 = vadd.f32 %v4513, %v4724
      %v4726 = vpop.f32.mrf.mxu0
      %4727 = vdwg.mxu0
      %v4728 = vld [vmem:[%s16] sm:$0x1]
      %v4730 = vlaneseq
      %v4731 = vshrl.u32 %v4730, 7
      %v4732 = vsub.s32 0, %v4731
      %v4733 = vrot.slane %v4728, %v4732
      %v4735 = vmul.f32 %v4602, %v4733
      %v4736 = vmul.f32 %v4605, %v4733
      %v4737 = vmul.f32 %v4610, %v4733
      %v4738 = vmul.f32 %v4613, %v4733
      %v4739 = vmul.f32 %v4618, %v4733
      %v4740 = vmul.f32 %v4621, %v4733
      %v4741 = vmul.f32 %v4626, %v4733
      %v4742 = vmul.f32 %v4629, %v4733
      %v4743 = vmul.f32 %v4634, %v4733
      %v4744 = vmul.f32 %v4637, %v4733
      %v4745 = vmul.f32 %v4642, %v4733
      %v4746 = vmul.f32 %v4645, %v4733
      %v4747 = vmul.f32 %v4650, %v4733
      %v4748 = vmul.f32 %v4653, %v4733
      %v4749 = vmul.f32 %v4658, %v4733
      %v4750 = vmul.f32 %v4661, %v4733
      %v4751 = vmul.f32 %v4666, %v4733
      %v4752 = vmul.f32 %v4669, %v4733
      %v4753 = vmul.f32 %v4674, %v4733
      %v4754 = vmul.f32 %v4677, %v4733
      %v4755 = vmul.f32 %v4682, %v4733
      %v4756 = vmul.f32 %v4685, %v4733
      %v4757 = vmul.f32 %v4690, %v4733
      %v4758 = vmul.f32 %v4693, %v4733
      %v4759 = vmul.f32 %v4698, %v4733
      %v4760 = vmul.f32 %v4701, %v4733
      %v4761 = vmul.f32 %v4706, %v4733
      %v4762 = vmul.f32 %v4709, %v4733
      %v4763 = vmul.f32 %v4714, %v4733
      %v4764 = vmul.f32 %v4717, %v4733
      %v4765 = vmul.f32 %v4722, %v4733
      %v4766 = vmul.f32 %v4725, %v4733
      %v4767 = vld [vmem:[%s17] sm:$0x1]
      %v4769 = vlaneseq
      %v4770 = vshrl.u32 %v4769, 7
      %v4771 = vsub.s32 0, %v4770
      %v4772 = vrot.slane %v4767, %v4771
      %v4774 = vadd.f32 %v4735, %v4772
      %v4775 = vadd.f32 %v4736, %v4772
      %v4776 = vadd.f32 %v4737, %v4772
      %v4777 = vadd.f32 %v4738, %v4772
      %v4778 = vadd.f32 %v4739, %v4772
      %v4779 = vadd.f32 %v4740, %v4772
      %v4780 = vadd.f32 %v4741, %v4772
      %v4781 = vadd.f32 %v4742, %v4772
      %v4782 = vadd.f32 %v4743, %v4772
      %v4783 = vadd.f32 %v4744, %v4772
      %v4784 = vadd.f32 %v4745, %v4772
      %v4785 = vadd.f32 %v4746, %v4772
      %v4786 = vadd.f32 %v4747, %v4772
      %v4787 = vadd.f32 %v4748, %v4772
      %v4788 = vadd.f32 %v4749, %v4772
      %v4789 = vadd.f32 %v4750, %v4772
      %v4790 = vadd.f32 %v4751, %v4772
      %v4791 = vadd.f32 %v4752, %v4772
      %v4792 = vadd.f32 %v4753, %v4772
      %v4793 = vadd.f32 %v4754, %v4772
      %v4794 = vadd.f32 %v4755, %v4772
      %v4795 = vadd.f32 %v4756, %v4772
      %v4796 = vadd.f32 %v4757, %v4772
      %v4797 = vadd.f32 %v4758, %v4772
      %v4798 = vadd.f32 %v4759, %v4772
      %v4799 = vadd.f32 %v4760, %v4772
      %v4800 = vadd.f32 %v4761, %v4772
      %v4801 = vadd.f32 %v4762, %v4772
      %v4802 = vadd.f32 %v4763, %v4772
      %v4803 = vadd.f32 %v4764, %v4772
      %v4804 = vadd.f32 %v4765, %v4772
      %v4805 = vadd.f32 %v4766, %v4772
      %v4806 = vmax.f32 %v4774, 0.0
      %v4807 = vmax.f32 %v4775, 0.0
      %v4808 = vmax.f32 %v4776, 0.0
      %v4809 = vmax.f32 %v4777, 0.0
      %v4810 = vmax.f32 %v4778, 0.0
      %v4811 = vmax.f32 %v4779, 0.0
      %v4812 = vmax.f32 %v4780, 0.0
      %v4813 = vmax.f32 %v4781, 0.0
      %v4814 = vmax.f32 %v4782, 0.0
      %v4815 = vmax.f32 %v4783, 0.0
      %v4816 = vmax.f32 %v4784, 0.0
      %v4817 = vmax.f32 %v4785, 0.0
      %v4818 = vmax.f32 %v4786, 0.0
      %v4819 = vmax.f32 %v4787, 0.0
      %v4820 = vmax.f32 %v4788, 0.0
      %v4821 = vmax.f32 %v4789, 0.0
      %v4822 = vmax.f32 %v4790, 0.0
      %v4823 = vmax.f32 %v4791, 0.0
      %v4824 = vmax.f32 %v4792, 0.0
      %v4825 = vmax.f32 %v4793, 0.0
      %v4826 = vmax.f32 %v4794, 0.0
      %v4827 = vmax.f32 %v4795, 0.0
      %v4828 = vmax.f32 %v4796, 0.0
      %v4829 = vmax.f32 %v4797, 0.0
      %v4830 = vmax.f32 %v4798, 0.0
      %v4831 = vmax.f32 %v4799, 0.0
      %v4832 = vmax.f32 %v4800, 0.0
      %v4833 = vmax.f32 %v4801, 0.0
      %v4834 = vmax.f32 %v4802, 0.0
      %v4835 = vmax.f32 %v4803, 0.0
      %v4836 = vmax.f32 %v4804, 0.0
      %v4837 = vmax.f32 %v4805, 0.0
      %4838 = vst.msk [vmem:[#allocation2 + $0x18] sm:$0xff] %vm830, %v4806
      %4839 = vst.msk [vmem:[#allocation2 + $0x20] sm:$0xff] %vm830, %v4807
      %4840 = vst.msk [vmem:[#allocation2 + $0x28] sm:$0xff] %vm830, %v4808
      %4841 = vst.msk [vmem:[#allocation2 + $0x30] sm:$0xff] %vm830, %v4809
      %4842 = vst.msk [vmem:[#allocation2 + $0x38] sm:$0xff] %vm830, %v4810
      %4843 = vst.msk [vmem:[#allocation2 + $0x40] sm:$0xff] %vm830, %v4811
      %4844 = vst.msk [vmem:[#allocation2 + $0x48] sm:$0xff] %vm830, %v4812
      %4845 = vst.msk [vmem:[#allocation2 + $0x50] sm:$0xff] %vm830, %v4813
      %4846 = vst.msk [vmem:[#allocation2 + $0x58] sm:$0xff] %vm830, %v4814
      %4847 = vst.msk [vmem:[#allocation2 + $0x60] sm:$0xff] %vm830, %v4815
      %4848 = vst.msk [vmem:[#allocation2 + $0x68] sm:$0xff] %vm830, %v4816
      %4849 = vst.msk [vmem:[#allocation2 + $0x70] sm:$0xff] %vm830, %v4817
      %4850 = vst.msk [vmem:[#allocation2 + $0x78] sm:$0xff] %vm830, %v4818
      %4851 = vst.msk [vmem:[#allocation2 + $0x80] sm:$0xff] %vm830, %v4819
      %4852 = vst.msk [vmem:[#allocation2 + $0x88] sm:$0xff] %vm830, %v4820
      %4853 = vst.msk [vmem:[#allocation2 + $0x90] sm:$0xff] %vm830, %v4821
      %4854 = vst.msk [vmem:[#allocation2 + $0x98] sm:$0xff] %vm830, %v4822
      %4855 = vst.msk [vmem:[#allocation2 + $0xa0] sm:$0xff] %vm830, %v4823
      %4856 = vst.msk [vmem:[#allocation2 + $0xa8] sm:$0xff] %vm830, %v4824
      %4857 = vst.msk [vmem:[#allocation2 + $0xb0] sm:$0xff] %vm830, %v4825
      %4858 = vst.msk [vmem:[#allocation2 + $0xb8] sm:$0xff] %vm830, %v4826
      %4859 = vst.msk [vmem:[#allocation2 + $0xc0] sm:$0xff] %vm830, %v4827
      %4860 = vst.msk [vmem:[#allocation2 + $0xc8] sm:$0xff] %vm830, %v4828
      %4861 = vst.msk [vmem:[#allocation2 + $0xd0] sm:$0xff] %vm830, %v4829
      %4862 = vst.msk [vmem:[#allocation2 + $0xd8] sm:$0xff] %vm830, %v4830
      %4863 = vst.msk [vmem:[#allocation2 + $0xe0] sm:$0xff] %vm830, %v4831
      %4864 = vst.msk [vmem:[#allocation2 + $0xe8] sm:$0xff] %vm830, %v4832
      %4865 = vst.msk [vmem:[#allocation2 + $0xf0] sm:$0xff] %vm830, %v4833
      %4866 = vst.msk [vmem:[#allocation2 + $0xf8] sm:$0xff] %vm830, %v4834
      %4867 = vst.msk [vmem:[#allocation2 + $0x100] sm:$0xff] %vm830, %v4835
      %4868 = vst.msk [vmem:[#allocation2 + $0x108] sm:$0xff] %vm830, %v4836
      %4869 = vst.msk [vmem:[#allocation2 + $0x110] sm:$0xff] %vm830, %v4837
      %v4870 = vld [vmem:[%s19] sm:$0x1]
      %v4872 = vlaneseq
      %v4873 = vshrl.u32 %v4872, 7
      %v4874 = vsub.s32 0, %v4873
      %v4875 = vrot.slane %v4870, %v4874
      %v4877 = vld [vmem:[#allocation2 + $0x7] sm:$0xff]
      %v4878 = vld [vmem:[#allocation2 + $0xf] sm:$0xff]
      %v4879 = vld [vmem:[#allocation2 + $0x17] sm:$0xff]
      %v4880 = vld [vmem:[#allocation2 + $0x1f] sm:$0xff]
      %v4881 = vld [vmem:[#allocation2 + $0x27] sm:$0xff]
      %v4882 = vld [vmem:[#allocation2 + $0x2f] sm:$0xff]
      %v4883 = vld [vmem:[#allocation2 + $0x37] sm:$0xff]
      %v4884 = vld [vmem:[#allocation2 + $0x3f] sm:$0xff]
      %v4885 = vld [vmem:[#allocation2 + $0x47] sm:$0xff]
      %v4886 = vld [vmem:[#allocation2 + $0x4f] sm:$0xff]
      %v4887 = vld [vmem:[#allocation2 + $0x57] sm:$0xff]
      %v4888 = vld [vmem:[#allocation2 + $0x5f] sm:$0xff]
      %v4889 = vld [vmem:[#allocation2 + $0x67] sm:$0xff]
      %v4890 = vld [vmem:[#allocation2 + $0x6f] sm:$0xff]
      %v4891 = vld [vmem:[#allocation2 + $0x77] sm:$0xff]
      %v4892 = vld [vmem:[#allocation2 + $0x7f] sm:$0xff]
      %v4893 = vld [vmem:[#allocation2 + $0x87] sm:$0xff]
      %v4894 = vld [vmem:[#allocation2 + $0x8f] sm:$0xff]
      %v4895 = vld [vmem:[#allocation2 + $0x97] sm:$0xff]
      %v4896 = vld [vmem:[#allocation2 + $0x9f] sm:$0xff]
      %v4897 = vld [vmem:[#allocation2 + $0xa7] sm:$0xff]
      %v4898 = vld [vmem:[#allocation2 + $0xaf] sm:$0xff]
      %v4899 = vld [vmem:[#allocation2 + $0xb7] sm:$0xff]
      %v4900 = vld [vmem:[#allocation2 + $0xbf] sm:$0xff]
      %v4901 = vld [vmem:[#allocation2 + $0xc7] sm:$0xff]
      %v4902 = vld [vmem:[#allocation2 + $0xcf] sm:$0xff]
      %v4903 = vld [vmem:[#allocation2 + $0xd7] sm:$0xff]
      %v4904 = vld [vmem:[#allocation2 + $0xdf] sm:$0xff]
      %v4905 = vld [vmem:[#allocation2 + $0xe7] sm:$0xff]
      %v4906 = vld [vmem:[#allocation2 + $0xef] sm:$0xff]
      %v4907 = vld [vmem:[#allocation2 + $0xf7] sm:$0xff]
      %v4908 = vld [vmem:[#allocation2 + $0xff] sm:$0xff]
      %v4909 = vpack.c.bf16 %v4878, %v4877
      %v4910 = vpack.c.bf16 %v4880, %v4879
      %v4911 = vpack.c.bf16 %v4882, %v4881
      %v4912 = vpack.c.bf16 %v4884, %v4883
      %v4913 = vpack.c.bf16 %v4886, %v4885
      %v4914 = vpack.c.bf16 %v4888, %v4887
      %v4915 = vpack.c.bf16 %v4890, %v4889
      %v4916 = vpack.c.bf16 %v4892, %v4891
      %v4917 = vpack.c.bf16 %v4894, %v4893
      %v4918 = vpack.c.bf16 %v4896, %v4895
      %v4919 = vpack.c.bf16 %v4898, %v4897
      %v4920 = vpack.c.bf16 %v4900, %v4899
      %v4921 = vpack.c.bf16 %v4902, %v4901
      %v4922 = vpack.c.bf16 %v4904, %v4903
      %v4923 = vpack.c.bf16 %v4906, %v4905
      %v4924 = vpack.c.bf16 %v4908, %v4907
      %v4925 = vld [vmem:[%s18] sm:$0xf]
      %v4926 = vld [vmem:[%s18 + $0x4] sm:$0xf]
      %v4927 = vld [vmem:[#allocation2 + $0x107] sm:$0xff]
      %v4928 = vld [vmem:[#allocation2 + $0x10f] sm:$0xff]
      %v4929 = vpack.c.bf16 %v4928, %v4927
      %v4930 = vld [vmem:[%s18 + $0x18] sm:$0xf]
      %v4931 = vld [vmem:[%s18 + $0x1c] sm:$0xf]
      %v4934 = vunpack.c.l.b16 %v4930
      %v4935 = vunpack.c.l.b16 %v4931
      %v4936 = vpack.c.b16 %v4935, %v4934
      %v4939 = vsel %vm830, %v4910, 0
      %v4942 = vsel %vm830, %v4911, 0
      %v4945 = vsel %vm830, %v4912, 0
      %v4948 = vsel %vm830, %v4913, 0
      %v4951 = vsel %vm830, %v4914, 0
      %v4954 = vsel %vm830, %v4915, 0
      %v4957 = vsel %vm830, %v4916, 0
      %v4960 = vsel %vm830, %v4917, 0
      %v4963 = vsel %vm830, %v4918, 0
      %v4966 = vsel %vm830, %v4919, 0
      %v4969 = vsel %vm830, %v4920, 0
      %v4972 = vsel %vm830, %v4921, 0
      %v4975 = vsel %vm830, %v4922, 0
      %v4978 = vsel %vm830, %v4923, 0
      %v4981 = vsel %vm830, %v4924, 0
      %v4984 = vsel %vm830, %v4929, 0
      %4986 = vmatprep.subr.bf16.mxu0 0
      %4987 = vmatpush1.bf16.msra.mxu0 0
      %4988 = vmatprep.subr.bf16.mxu0 0
      %4989 = vmatpush1.bf16.msra.mxu0 0
      %4990 = vmatprep.subr.bf16.mxu0 0
      %4991 = vmatpush1.bf16.msra.mxu0 0
      %4992 = vmatprep.subr.bf16.mxu0 0
      %4993 = vmatpush1.bf16.msra.mxu0 0
      %4994 = vmatprep.subr.bf16.mxu0 0
      %4995 = vmatpush1.bf16.msra.mxu0 0
      %4996 = vmatprep.subr.bf16.mxu0 0
      %4997 = vmatpush1.bf16.msra.mxu0 0
      %4998 = vmatprep.subr.bf16.mxu0 0
      %4999 = vmatpush1.bf16.msra.mxu0 0
      %5000 = vmatprep.subr.bf16.mxu0 0
      %5001 = vmatpush1.bf16.msra.mxu0 %v4936
      %5002 = vmatprep.subr.bf16.mxu0 0
      %5003 = vmatpush2.bf16.msra.mxu0 0
      %5004 = vmatprep.subr.bf16.mxu0 0
      %5005 = vmatpush2.bf16.msra.mxu0 0
      %5006 = vmatprep.subr.bf16.mxu0 0
      %5007 = vmatpush2.bf16.msra.mxu0 0
      %5008 = vmatprep.subr.bf16.mxu0 0
      %5009 = vmatpush2.bf16.msra.mxu0 0
      %5010 = vmatprep.subr.bf16.mxu0 0
      %5011 = vmatpush2.bf16.msra.mxu0 0
      %5012 = vmatprep.subr.bf16.mxu0 0
      %5013 = vmatpush2.bf16.msra.mxu0 0
      %5014 = vmatprep.subr.bf16.mxu0 0
      %5015 = vmatpush2.bf16.msra.mxu0 0
      %5016 = vmatprep.subr.bf16.mxu0 0
      %5017 = vmatpush2.bf16.msra.mxu0 0
      %5018 = vmatprep.mubr.bf16.mxu0 0
      %5019 = vmatmul.mubr.bf16.gmra.mxu0 %v4939
      %v5020 = vpop.f32.mrf.mxu0
      %v5021 = vadd.f32 0.0, %v5020
      %v5022 = vpop.f32.mrf.mxu0
      %v5023 = vpop.f32.mrf.mxu0
      %v5024 = vadd.f32 0.0, %v5023
      %v5025 = vpop.f32.mrf.mxu0
      %5026 = vmatprep.mubr.bf16.mxu0 0
      %5027 = vmatmul.mubr.bf16.gmra.mxu0 %v4942
      %v5028 = vpop.f32.mrf.mxu0
      %v5029 = vadd.f32 0.0, %v5028
      %v5030 = vpop.f32.mrf.mxu0
      %v5031 = vpop.f32.mrf.mxu0
      %v5032 = vadd.f32 0.0, %v5031
      %v5033 = vpop.f32.mrf.mxu0
      %5034 = vmatprep.mubr.bf16.mxu0 0
      %5035 = vmatmul.mubr.bf16.gmra.mxu0 %v4945
      %v5036 = vpop.f32.mrf.mxu0
      %v5037 = vadd.f32 0.0, %v5036
      %v5038 = vpop.f32.mrf.mxu0
      %v5039 = vpop.f32.mrf.mxu0
      %v5040 = vadd.f32 0.0, %v5039
      %v5041 = vpop.f32.mrf.mxu0
      %5042 = vmatprep.mubr.bf16.mxu0 0
      %5043 = vmatmul.mubr.bf16.gmra.mxu0 %v4948
      %v5044 = vpop.f32.mrf.mxu0
      %v5045 = vadd.f32 0.0, %v5044
      %v5046 = vpop.f32.mrf.mxu0
      %v5047 = vpop.f32.mrf.mxu0
      %v5048 = vadd.f32 0.0, %v5047
      %v5049 = vpop.f32.mrf.mxu0
      %5050 = vmatprep.mubr.bf16.mxu0 0
      %5051 = vmatmul.mubr.bf16.gmra.mxu0 %v4951
      %v5052 = vpop.f32.mrf.mxu0
      %v5053 = vadd.f32 0.0, %v5052
      %v5054 = vpop.f32.mrf.mxu0
      %v5055 = vpop.f32.mrf.mxu0
      %v5056 = vadd.f32 0.0, %v5055
      %v5057 = vpop.f32.mrf.mxu0
      %5058 = vmatprep.mubr.bf16.mxu0 0
      %5059 = vmatmul.mubr.bf16.gmra.mxu0 %v4954
      %v5060 = vpop.f32.mrf.mxu0
      %v5061 = vadd.f32 0.0, %v5060
      %v5062 = vpop.f32.mrf.mxu0
      %v5063 = vpop.f32.mrf.mxu0
      %v5064 = vadd.f32 0.0, %v5063
      %v5065 = vpop.f32.mrf.mxu0
      %5066 = vmatprep.mubr.bf16.mxu0 0
      %5067 = vmatmul.mubr.bf16.gmra.mxu0 %v4957
      %v5068 = vpop.f32.mrf.mxu0
      %v5069 = vadd.f32 0.0, %v5068
      %v5070 = vpop.f32.mrf.mxu0
      %v5071 = vpop.f32.mrf.mxu0
      %v5072 = vadd.f32 0.0, %v5071
      %v5073 = vpop.f32.mrf.mxu0
      %5074 = vmatprep.mubr.bf16.mxu0 0
      %5075 = vmatmul.mubr.bf16.gmra.mxu0 %v4960
      %v5076 = vpop.f32.mrf.mxu0
      %v5077 = vadd.f32 0.0, %v5076
      %v5078 = vpop.f32.mrf.mxu0
      %v5079 = vpop.f32.mrf.mxu0
      %v5080 = vadd.f32 0.0, %v5079
      %v5081 = vpop.f32.mrf.mxu0
      %5082 = vmatprep.mubr.bf16.mxu0 0
      %5083 = vmatmul.mubr.bf16.gmra.mxu0 %v4963
      %v5084 = vpop.f32.mrf.mxu0
      %v5085 = vadd.f32 0.0, %v5084
      %v5086 = vpop.f32.mrf.mxu0
      %v5087 = vpop.f32.mrf.mxu0
      %v5088 = vadd.f32 0.0, %v5087
      %v5089 = vpop.f32.mrf.mxu0
      %5090 = vmatprep.mubr.bf16.mxu0 0
      %5091 = vmatmul.mubr.bf16.gmra.mxu0 %v4966
      %v5092 = vpop.f32.mrf.mxu0
      %v5093 = vadd.f32 0.0, %v5092
      %v5094 = vpop.f32.mrf.mxu0
      %v5095 = vpop.f32.mrf.mxu0
      %v5096 = vadd.f32 0.0, %v5095
      %v5097 = vpop.f32.mrf.mxu0
      %5098 = vmatprep.mubr.bf16.mxu0 0
      %5099 = vmatmul.mubr.bf16.gmra.mxu0 %v4969
      %v5100 = vpop.f32.mrf.mxu0
      %v5101 = vadd.f32 0.0, %v5100
      %v5102 = vpop.f32.mrf.mxu0
      %v5103 = vpop.f32.mrf.mxu0
      %v5104 = vadd.f32 0.0, %v5103
      %v5105 = vpop.f32.mrf.mxu0
      %5106 = vmatprep.mubr.bf16.mxu0 0
      %5107 = vmatmul.mubr.bf16.gmra.mxu0 %v4972
      %v5108 = vpop.f32.mrf.mxu0
      %v5109 = vadd.f32 0.0, %v5108
      %v5110 = vpop.f32.mrf.mxu0
      %v5111 = vpop.f32.mrf.mxu0
      %v5112 = vadd.f32 0.0, %v5111
      %v5113 = vpop.f32.mrf.mxu0
      %5114 = vmatprep.mubr.bf16.mxu0 0
      %5115 = vmatmul.mubr.bf16.gmra.mxu0 %v4975
      %v5116 = vpop.f32.mrf.mxu0
      %v5117 = vadd.f32 0.0, %v5116
      %v5118 = vpop.f32.mrf.mxu0
      %v5119 = vpop.f32.mrf.mxu0
      %v5120 = vadd.f32 0.0, %v5119
      %v5121 = vpop.f32.mrf.mxu0
      %5122 = vmatprep.mubr.bf16.mxu0 0
      %5123 = vmatmul.mubr.bf16.gmra.mxu0 %v4978
      %v5124 = vpop.f32.mrf.mxu0
      %v5125 = vadd.f32 0.0, %v5124
      %v5126 = vpop.f32.mrf.mxu0
      %v5127 = vpop.f32.mrf.mxu0
      %v5128 = vadd.f32 0.0, %v5127
      %v5129 = vpop.f32.mrf.mxu0
      %5130 = vmatprep.mubr.bf16.mxu0 0
      %5131 = vmatmul.mubr.bf16.gmra.mxu0 %v4981
      %v5132 = vpop.f32.mrf.mxu0
      %v5133 = vadd.f32 0.0, %v5132
      %v5134 = vpop.f32.mrf.mxu0
      %v5135 = vpop.f32.mrf.mxu0
      %v5136 = vadd.f32 0.0, %v5135
      %v5137 = vpop.f32.mrf.mxu0
      %5138 = vmatprep.mubr.bf16.mxu0 0
      %5139 = vmatmul.mubr.bf16.gmra.mxu0 %v4984
      %v5140 = vpop.f32.mrf.mxu0
      %v5141 = vadd.f32 0.0, %v5140
      %v5142 = vpop.f32.mrf.mxu0
      %v5143 = vpop.f32.mrf.mxu0
      %v5144 = vadd.f32 0.0, %v5143
      %v5145 = vpop.f32.mrf.mxu0
      %5146 = vdwg.mxu0
      %v5149 = vunpack.c.l.b16 %v4925
      %v5150 = vunpack.c.l.b16 %v4926
      %v5151 = vpack.c.b16 %v5150, %v5149
      %v5154 = vsel %vm830, %v4909, 0
      %5156 = vmatprep.subr.bf16.mxu0 0
      %5157 = vmatpush1.bf16.msra.mxu0 0
      %5158 = vmatprep.subr.bf16.mxu0 0
      %5159 = vmatpush1.bf16.msra.mxu0 0
      %5160 = vmatprep.subr.bf16.mxu0 0
      %5161 = vmatpush1.bf16.msra.mxu0 0
      %5162 = vmatprep.subr.bf16.mxu0 0
      %5163 = vmatpush1.bf16.msra.mxu0 0
      %5164 = vmatprep.subr.bf16.mxu0 0
      %5165 = vmatpush1.bf16.msra.mxu0 0
      %5166 = vmatprep.subr.bf16.mxu0 0
      %5167 = vmatpush1.bf16.msra.mxu0 0
      %5168 = vmatprep.subr.bf16.mxu0 0
      %5169 = vmatpush1.bf16.msra.mxu0 0
      %5170 = vmatprep.subr.bf16.mxu0 0
      %5171 = vmatpush1.bf16.msra.mxu0 %v5151
      %5172 = vmatprep.subr.bf16.mxu0 0
      %5173 = vmatpush2.bf16.msra.mxu0 0
      %5174 = vmatprep.subr.bf16.mxu0 0
      %5175 = vmatpush2.bf16.msra.mxu0 0
      %5176 = vmatprep.subr.bf16.mxu0 0
      %5177 = vmatpush2.bf16.msra.mxu0 0
      %5178 = vmatprep.subr.bf16.mxu0 0
      %5179 = vmatpush2.bf16.msra.mxu0 0
      %5180 = vmatprep.subr.bf16.mxu0 0
      %5181 = vmatpush2.bf16.msra.mxu0 0
      %5182 = vmatprep.subr.bf16.mxu0 0
      %5183 = vmatpush2.bf16.msra.mxu0 0
      %5184 = vmatprep.subr.bf16.mxu0 0
      %5185 = vmatpush2.bf16.msra.mxu0 0
      %5186 = vmatprep.subr.bf16.mxu0 0
      %5187 = vmatpush2.bf16.msra.mxu0 0
      %5188 = vmatprep.mubr.bf16.mxu0 0
      %5189 = vmatmul.mubr.bf16.gmra.mxu0 %v5154
      %v5190 = vpop.f32.mrf.mxu0
      %v5191 = vadd.f32 %v5021, %v5190
      %v5192 = vpop.f32.mrf.mxu0
      %v5193 = vpop.f32.mrf.mxu0
      %v5194 = vadd.f32 %v5024, %v5193
      %v5195 = vpop.f32.mrf.mxu0
      %5196 = vmatprep.mubr.bf16.mxu0 0
      %5197 = vmatmul.mubr.bf16.gmra.mxu0 %v4939
      %v5198 = vpop.f32.mrf.mxu0
      %v5199 = vadd.f32 %v5029, %v5198
      %v5200 = vpop.f32.mrf.mxu0
      %v5201 = vpop.f32.mrf.mxu0
      %v5202 = vadd.f32 %v5032, %v5201
      %v5203 = vpop.f32.mrf.mxu0
      %5204 = vmatprep.mubr.bf16.mxu0 0
      %5205 = vmatmul.mubr.bf16.gmra.mxu0 %v4942
      %v5206 = vpop.f32.mrf.mxu0
      %v5207 = vadd.f32 %v5037, %v5206
      %v5208 = vpop.f32.mrf.mxu0
      %v5209 = vpop.f32.mrf.mxu0
      %v5210 = vadd.f32 %v5040, %v5209
      %v5211 = vpop.f32.mrf.mxu0
      %5212 = vmatprep.mubr.bf16.mxu0 0
      %5213 = vmatmul.mubr.bf16.gmra.mxu0 %v4945
      %v5214 = vpop.f32.mrf.mxu0
      %v5215 = vadd.f32 %v5045, %v5214
      %v5216 = vpop.f32.mrf.mxu0
      %v5217 = vpop.f32.mrf.mxu0
      %v5218 = vadd.f32 %v5048, %v5217
      %v5219 = vpop.f32.mrf.mxu0
      %5220 = vmatprep.mubr.bf16.mxu0 0
      %5221 = vmatmul.mubr.bf16.gmra.mxu0 %v4948
      %v5222 = vpop.f32.mrf.mxu0
      %v5223 = vadd.f32 %v5053, %v5222
      %v5224 = vpop.f32.mrf.mxu0
      %v5225 = vpop.f32.mrf.mxu0
      %v5226 = vadd.f32 %v5056, %v5225
      %v5227 = vpop.f32.mrf.mxu0
      %5228 = vmatprep.mubr.bf16.mxu0 0
      %5229 = vmatmul.mubr.bf16.gmra.mxu0 %v4951
      %v5230 = vpop.f32.mrf.mxu0
      %v5231 = vadd.f32 %v5061, %v5230
      %v5232 = vpop.f32.mrf.mxu0
      %v5233 = vpop.f32.mrf.mxu0
      %v5234 = vadd.f32 %v5064, %v5233
      %v5235 = vpop.f32.mrf.mxu0
      %5236 = vmatprep.mubr.bf16.mxu0 0
      %5237 = vmatmul.mubr.bf16.gmra.mxu0 %v4954
      %v5238 = vpop.f32.mrf.mxu0
      %v5239 = vadd.f32 %v5069, %v5238
      %v5240 = vpop.f32.mrf.mxu0
      %v5241 = vpop.f32.mrf.mxu0
      %v5242 = vadd.f32 %v5072, %v5241
      %v5243 = vpop.f32.mrf.mxu0
      %5244 = vmatprep.mubr.bf16.mxu0 0
      %5245 = vmatmul.mubr.bf16.gmra.mxu0 %v4957
      %v5246 = vpop.f32.mrf.mxu0
      %v5247 = vadd.f32 %v5077, %v5246
      %v5248 = vpop.f32.mrf.mxu0
      %v5249 = vpop.f32.mrf.mxu0
      %v5250 = vadd.f32 %v5080, %v5249
      %v5251 = vpop.f32.mrf.mxu0
      %5252 = vmatprep.mubr.bf16.mxu0 0
      %5253 = vmatmul.mubr.bf16.gmra.mxu0 %v4960
      %v5254 = vpop.f32.mrf.mxu0
      %v5255 = vadd.f32 %v5085, %v5254
      %v5256 = vpop.f32.mrf.mxu0
      %v5257 = vpop.f32.mrf.mxu0
      %v5258 = vadd.f32 %v5088, %v5257
      %v5259 = vpop.f32.mrf.mxu0
      %5260 = vmatprep.mubr.bf16.mxu0 0
      %5261 = vmatmul.mubr.bf16.gmra.mxu0 %v4963
      %v5262 = vpop.f32.mrf.mxu0
      %v5263 = vadd.f32 %v5093, %v5262
      %v5264 = vpop.f32.mrf.mxu0
      %v5265 = vpop.f32.mrf.mxu0
      %v5266 = vadd.f32 %v5096, %v5265
      %v5267 = vpop.f32.mrf.mxu0
      %5268 = vmatprep.mubr.bf16.mxu0 0
      %5269 = vmatmul.mubr.bf16.gmra.mxu0 %v4966
      %v5270 = vpop.f32.mrf.mxu0
      %v5271 = vadd.f32 %v5101, %v5270
      %v5272 = vpop.f32.mrf.mxu0
      %v5273 = vpop.f32.mrf.mxu0
      %v5274 = vadd.f32 %v5104, %v5273
      %v5275 = vpop.f32.mrf.mxu0
      %5276 = vmatprep.mubr.bf16.mxu0 0
      %5277 = vmatmul.mubr.bf16.gmra.mxu0 %v4969
      %v5278 = vpop.f32.mrf.mxu0
      %v5279 = vadd.f32 %v5109, %v5278
      %v5280 = vpop.f32.mrf.mxu0
      %v5281 = vpop.f32.mrf.mxu0
      %v5282 = vadd.f32 %v5112, %v5281
      %v5283 = vpop.f32.mrf.mxu0
      %5284 = vmatprep.mubr.bf16.mxu0 0
      %5285 = vmatmul.mubr.bf16.gmra.mxu0 %v4972
      %v5286 = vpop.f32.mrf.mxu0
      %v5287 = vadd.f32 %v5117, %v5286
      %v5288 = vpop.f32.mrf.mxu0
      %v5289 = vpop.f32.mrf.mxu0
      %v5290 = vadd.f32 %v5120, %v5289
      %v5291 = vpop.f32.mrf.mxu0
      %5292 = vmatprep.mubr.bf16.mxu0 0
      %5293 = vmatmul.mubr.bf16.gmra.mxu0 %v4975
      %v5294 = vpop.f32.mrf.mxu0
      %v5295 = vadd.f32 %v5125, %v5294
      %v5296 = vpop.f32.mrf.mxu0
      %v5297 = vpop.f32.mrf.mxu0
      %v5298 = vadd.f32 %v5128, %v5297
      %v5299 = vpop.f32.mrf.mxu0
      %5300 = vmatprep.mubr.bf16.mxu0 0
      %5301 = vmatmul.mubr.bf16.gmra.mxu0 %v4978
      %v5302 = vpop.f32.mrf.mxu0
      %v5303 = vadd.f32 %v5133, %v5302
      %v5304 = vpop.f32.mrf.mxu0
      %v5305 = vpop.f32.mrf.mxu0
      %v5306 = vadd.f32 %v5136, %v5305
      %v5307 = vpop.f32.mrf.mxu0
      %5308 = vmatprep.mubr.bf16.mxu0 0
      %5309 = vmatmul.mubr.bf16.gmra.mxu0 %v4981
      %v5310 = vpop.f32.mrf.mxu0
      %v5311 = vadd.f32 %v5141, %v5310
      %v5312 = vpop.f32.mrf.mxu0
      %v5313 = vpop.f32.mrf.mxu0
      %v5314 = vadd.f32 %v5144, %v5313
      %v5315 = vpop.f32.mrf.mxu0
      %5316 = vdwg.mxu0
      %v5317 = vld [vmem:[#allocation2 + $0x27] sm:$0xff]
      %v5318 = vld [vmem:[#allocation2 + $0x2f] sm:$0xff]
      %v5319 = vld [vmem:[#allocation2 + $0x37] sm:$0xff]
      %v5320 = vld [vmem:[#allocation2 + $0x3f] sm:$0xff]
      %v5321 = vld [vmem:[#allocation2 + $0x47] sm:$0xff]
      %v5322 = vld [vmem:[#allocation2 + $0x4f] sm:$0xff]
      %v5323 = vld [vmem:[#allocation2 + $0x57] sm:$0xff]
      %v5324 = vld [vmem:[#allocation2 + $0x5f] sm:$0xff]
      %v5325 = vld [vmem:[#allocation2 + $0x67] sm:$0xff]
      %v5326 = vld [vmem:[#allocation2 + $0x6f] sm:$0xff]
      %v5327 = vld [vmem:[#allocation2 + $0x77] sm:$0xff]
      %v5328 = vld [vmem:[#allocation2 + $0x7f] sm:$0xff]
      %v5329 = vld [vmem:[#allocation2 + $0x87] sm:$0xff]
      %v5330 = vld [vmem:[#allocation2 + $0x8f] sm:$0xff]
      %v5331 = vld [vmem:[#allocation2 + $0x97] sm:$0xff]
      %v5332 = vld [vmem:[#allocation2 + $0x9f] sm:$0xff]
      %v5333 = vld [vmem:[#allocation2 + $0xa7] sm:$0xff]
      %v5334 = vld [vmem:[#allocation2 + $0xaf] sm:$0xff]
      %v5335 = vld [vmem:[#allocation2 + $0xb7] sm:$0xff]
      %v5336 = vld [vmem:[#allocation2 + $0xbf] sm:$0xff]
      %v5337 = vld [vmem:[#allocation2 + $0xc7] sm:$0xff]
      %v5338 = vld [vmem:[#allocation2 + $0xcf] sm:$0xff]
      %v5339 = vld [vmem:[#allocation2 + $0xd7] sm:$0xff]
      %v5340 = vld [vmem:[#allocation2 + $0xdf] sm:$0xff]
      %v5341 = vld [vmem:[#allocation2 + $0xe7] sm:$0xff]
      %v5342 = vld [vmem:[#allocation2 + $0xef] sm:$0xff]
      %v5343 = vld [vmem:[#allocation2 + $0xf7] sm:$0xff]
      %v5344 = vld [vmem:[#allocation2 + $0xff] sm:$0xff]
      %v5345 = vld [vmem:[#allocation2 + $0x107] sm:$0xff]
      %v5346 = vld [vmem:[#allocation2 + $0x10f] sm:$0xff]
      %v5347 = vld [vmem:[#allocation2 + $0x117] sm:$0xff]
      %v5348 = vld [vmem:[#allocation2 + $0x11f] sm:$0xff]
      %v5349 = vpack.c.bf16 %v5318, %v5317
      %v5350 = vpack.c.bf16 %v5320, %v5319
      %v5351 = vpack.c.bf16 %v5322, %v5321
      %v5352 = vpack.c.bf16 %v5324, %v5323
      %v5353 = vpack.c.bf16 %v5326, %v5325
      %v5354 = vpack.c.bf16 %v5328, %v5327
      %v5355 = vpack.c.bf16 %v5330, %v5329
      %v5356 = vpack.c.bf16 %v5332, %v5331
      %v5357 = vpack.c.bf16 %v5334, %v5333
      %v5358 = vpack.c.bf16 %v5336, %v5335
      %v5359 = vpack.c.bf16 %v5338, %v5337
      %v5360 = vpack.c.bf16 %v5340, %v5339
      %v5361 = vpack.c.bf16 %v5342, %v5341
      %v5362 = vpack.c.bf16 %v5344, %v5343
      %v5363 = vpack.c.bf16 %v5346, %v5345
      %v5364 = vpack.c.bf16 %v5348, %v5347
      %v5365 = vld [vmem:[%s18 + $0x30] sm:$0xf]
      %v5366 = vld [vmem:[%s18 + $0x34] sm:$0xf]
      %v5369 = vunpack.c.l.b16 %v5365
      %v5370 = vunpack.c.l.b16 %v5366
      %v5371 = vpack.c.b16 %v5370, %v5369
      %v5374 = vsel %vm830, %v5349, 0
      %v5377 = vsel %vm830, %v5350, 0
      %v5380 = vsel %vm830, %v5351, 0
      %v5383 = vsel %vm830, %v5352, 0
      %v5386 = vsel %vm830, %v5353, 0
      %v5389 = vsel %vm830, %v5354, 0
      %v5392 = vsel %vm830, %v5355, 0
      %v5395 = vsel %vm830, %v5356, 0
      %v5398 = vsel %vm830, %v5357, 0
      %v5401 = vsel %vm830, %v5358, 0
      %v5404 = vsel %vm830, %v5359, 0
      %v5407 = vsel %vm830, %v5360, 0
      %v5410 = vsel %vm830, %v5361, 0
      %v5413 = vsel %vm830, %v5362, 0
      %v5416 = vsel %vm830, %v5363, 0
      %v5419 = vsel %vm830, %v5364, 0
      %5421 = vmatprep.subr.bf16.mxu0 0
      %5422 = vmatpush1.bf16.msra.mxu0 0
      %5423 = vmatprep.subr.bf16.mxu0 0
      %5424 = vmatpush1.bf16.msra.mxu0 0
      %5425 = vmatprep.subr.bf16.mxu0 0
      %5426 = vmatpush1.bf16.msra.mxu0 0
      %5427 = vmatprep.subr.bf16.mxu0 0
      %5428 = vmatpush1.bf16.msra.mxu0 0
      %5429 = vmatprep.subr.bf16.mxu0 0
      %5430 = vmatpush1.bf16.msra.mxu0 0
      %5431 = vmatprep.subr.bf16.mxu0 0
      %5432 = vmatpush1.bf16.msra.mxu0 0
      %5433 = vmatprep.subr.bf16.mxu0 0
      %5434 = vmatpush1.bf16.msra.mxu0 0
      %5435 = vmatprep.subr.bf16.mxu0 0
      %5436 = vmatpush1.bf16.msra.mxu0 %v5371
      %5437 = vmatprep.subr.bf16.mxu0 0
      %5438 = vmatpush2.bf16.msra.mxu0 0
      %5439 = vmatprep.subr.bf16.mxu0 0
      %5440 = vmatpush2.bf16.msra.mxu0 0
      %5441 = vmatprep.subr.bf16.mxu0 0
      %5442 = vmatpush2.bf16.msra.mxu0 0
      %5443 = vmatprep.subr.bf16.mxu0 0
      %5444 = vmatpush2.bf16.msra.mxu0 0
      %5445 = vmatprep.subr.bf16.mxu0 0
      %5446 = vmatpush2.bf16.msra.mxu0 0
      %5447 = vmatprep.subr.bf16.mxu0 0
      %5448 = vmatpush2.bf16.msra.mxu0 0
      %5449 = vmatprep.subr.bf16.mxu0 0
      %5450 = vmatpush2.bf16.msra.mxu0 0
      %5451 = vmatprep.subr.bf16.mxu0 0
      %5452 = vmatpush2.bf16.msra.mxu0 0
      %5453 = vmatprep.mubr.bf16.mxu0 0
      %5454 = vmatmul.mubr.bf16.gmra.mxu0 %v5374
      %v5455 = vpop.f32.mrf.mxu0
      %v5456 = vadd.f32 0.0, %v5455
      %v5457 = vpop.f32.mrf.mxu0
      %v5458 = vpop.f32.mrf.mxu0
      %v5459 = vadd.f32 0.0, %v5458
      %v5460 = vpop.f32.mrf.mxu0
      %5461 = vmatprep.mubr.bf16.mxu0 0
      %5462 = vmatmul.mubr.bf16.gmra.mxu0 %v5377
      %v5463 = vpop.f32.mrf.mxu0
      %v5464 = vadd.f32 0.0, %v5463
      %v5465 = vpop.f32.mrf.mxu0
      %v5466 = vpop.f32.mrf.mxu0
      %v5467 = vadd.f32 0.0, %v5466
      %v5468 = vpop.f32.mrf.mxu0
      %5469 = vmatprep.mubr.bf16.mxu0 0
      %5470 = vmatmul.mubr.bf16.gmra.mxu0 %v5380
      %v5471 = vpop.f32.mrf.mxu0
      %v5472 = vadd.f32 0.0, %v5471
      %v5473 = vpop.f32.mrf.mxu0
      %v5474 = vpop.f32.mrf.mxu0
      %v5475 = vadd.f32 0.0, %v5474
      %v5476 = vpop.f32.mrf.mxu0
      %5477 = vmatprep.mubr.bf16.mxu0 0
      %5478 = vmatmul.mubr.bf16.gmra.mxu0 %v5383
      %v5479 = vpop.f32.mrf.mxu0
      %v5480 = vadd.f32 0.0, %v5479
      %v5481 = vpop.f32.mrf.mxu0
      %v5482 = vpop.f32.mrf.mxu0
      %v5483 = vadd.f32 0.0, %v5482
      %v5484 = vpop.f32.mrf.mxu0
      %5485 = vmatprep.mubr.bf16.mxu0 0
      %5486 = vmatmul.mubr.bf16.gmra.mxu0 %v5386
      %v5487 = vpop.f32.mrf.mxu0
      %v5488 = vadd.f32 0.0, %v5487
      %v5489 = vpop.f32.mrf.mxu0
      %v5490 = vpop.f32.mrf.mxu0
      %v5491 = vadd.f32 0.0, %v5490
      %v5492 = vpop.f32.mrf.mxu0
      %5493 = vmatprep.mubr.bf16.mxu0 0
      %5494 = vmatmul.mubr.bf16.gmra.mxu0 %v5389
      %v5495 = vpop.f32.mrf.mxu0
      %v5496 = vadd.f32 0.0, %v5495
      %v5497 = vpop.f32.mrf.mxu0
      %v5498 = vpop.f32.mrf.mxu0
      %v5499 = vadd.f32 0.0, %v5498
      %v5500 = vpop.f32.mrf.mxu0
      %5501 = vmatprep.mubr.bf16.mxu0 0
      %5502 = vmatmul.mubr.bf16.gmra.mxu0 %v5392
      %v5503 = vpop.f32.mrf.mxu0
      %v5504 = vadd.f32 0.0, %v5503
      %v5505 = vpop.f32.mrf.mxu0
      %v5506 = vpop.f32.mrf.mxu0
      %v5507 = vadd.f32 0.0, %v5506
      %v5508 = vpop.f32.mrf.mxu0
      %5509 = vmatprep.mubr.bf16.mxu0 0
      %5510 = vmatmul.mubr.bf16.gmra.mxu0 %v5395
      %v5511 = vpop.f32.mrf.mxu0
      %v5512 = vadd.f32 0.0, %v5511
      %v5513 = vpop.f32.mrf.mxu0
      %v5514 = vpop.f32.mrf.mxu0
      %v5515 = vadd.f32 0.0, %v5514
      %v5516 = vpop.f32.mrf.mxu0
      %5517 = vmatprep.mubr.bf16.mxu0 0
      %5518 = vmatmul.mubr.bf16.gmra.mxu0 %v5398
      %v5519 = vpop.f32.mrf.mxu0
      %v5520 = vadd.f32 0.0, %v5519
      %v5521 = vpop.f32.mrf.mxu0
      %v5522 = vpop.f32.mrf.mxu0
      %v5523 = vadd.f32 0.0, %v5522
      %v5524 = vpop.f32.mrf.mxu0
      %5525 = vmatprep.mubr.bf16.mxu0 0
      %5526 = vmatmul.mubr.bf16.gmra.mxu0 %v5401
      %v5527 = vpop.f32.mrf.mxu0
      %v5528 = vadd.f32 0.0, %v5527
      %v5529 = vpop.f32.mrf.mxu0
      %v5530 = vpop.f32.mrf.mxu0
      %v5531 = vadd.f32 0.0, %v5530
      %v5532 = vpop.f32.mrf.mxu0
      %5533 = vmatprep.mubr.bf16.mxu0 0
      %5534 = vmatmul.mubr.bf16.gmra.mxu0 %v5404
      %v5535 = vpop.f32.mrf.mxu0
      %v5536 = vadd.f32 0.0, %v5535
      %v5537 = vpop.f32.mrf.mxu0
      %v5538 = vpop.f32.mrf.mxu0
      %v5539 = vadd.f32 0.0, %v5538
      %v5540 = vpop.f32.mrf.mxu0
      %5541 = vmatprep.mubr.bf16.mxu0 0
      %5542 = vmatmul.mubr.bf16.gmra.mxu0 %v5407
      %v5543 = vpop.f32.mrf.mxu0
      %v5544 = vadd.f32 0.0, %v5543
      %v5545 = vpop.f32.mrf.mxu0
      %v5546 = vpop.f32.mrf.mxu0
      %v5547 = vadd.f32 0.0, %v5546
      %v5548 = vpop.f32.mrf.mxu0
      %5549 = vmatprep.mubr.bf16.mxu0 0
      %5550 = vmatmul.mubr.bf16.gmra.mxu0 %v5410
      %v5551 = vpop.f32.mrf.mxu0
      %v5552 = vadd.f32 0.0, %v5551
      %v5553 = vpop.f32.mrf.mxu0
      %v5554 = vpop.f32.mrf.mxu0
      %v5555 = vadd.f32 0.0, %v5554
      %v5556 = vpop.f32.mrf.mxu0
      %5557 = vmatprep.mubr.bf16.mxu0 0
      %5558 = vmatmul.mubr.bf16.gmra.mxu0 %v5413
      %v5559 = vpop.f32.mrf.mxu0
      %v5560 = vadd.f32 0.0, %v5559
      %v5561 = vpop.f32.mrf.mxu0
      %v5562 = vpop.f32.mrf.mxu0
      %v5563 = vadd.f32 0.0, %v5562
      %v5564 = vpop.f32.mrf.mxu0
      %5565 = vmatprep.mubr.bf16.mxu0 0
      %5566 = vmatmul.mubr.bf16.gmra.mxu0 %v5416
      %v5567 = vpop.f32.mrf.mxu0
      %v5568 = vadd.f32 0.0, %v5567
      %v5569 = vpop.f32.mrf.mxu0
      %v5570 = vpop.f32.mrf.mxu0
      %v5571 = vadd.f32 0.0, %v5570
      %v5572 = vpop.f32.mrf.mxu0
      %5573 = vmatprep.mubr.bf16.mxu0 0
      %5574 = vmatmul.mubr.bf16.gmra.mxu0 %v5419
      %v5575 = vpop.f32.mrf.mxu0
      %v5576 = vadd.f32 0.0, %v5575
      %v5577 = vpop.f32.mrf.mxu0
      %v5578 = vpop.f32.mrf.mxu0
      %v5579 = vadd.f32 0.0, %v5578
      %v5580 = vpop.f32.mrf.mxu0
      %5581 = vdwg.mxu0
      %v5582 = vadd.f32 %v5191, %v5456
      %v5583 = vadd.f32 %v5194, %v5459
      %v5584 = vadd.f32 %v5199, %v5464
      %v5585 = vadd.f32 %v5202, %v5467
      %v5586 = vadd.f32 %v5207, %v5472
      %v5587 = vadd.f32 %v5210, %v5475
      %v5588 = vadd.f32 %v5215, %v5480
      %v5589 = vadd.f32 %v5218, %v5483
      %v5590 = vadd.f32 %v5223, %v5488
      %v5591 = vadd.f32 %v5226, %v5491
      %v5592 = vadd.f32 %v5231, %v5496
      %v5593 = vadd.f32 %v5234, %v5499
      %v5594 = vadd.f32 %v5239, %v5504
      %v5595 = vadd.f32 %v5242, %v5507
      %v5596 = vadd.f32 %v5247, %v5512
      %v5597 = vadd.f32 %v5250, %v5515
      %v5598 = vadd.f32 %v5255, %v5520
      %v5599 = vadd.f32 %v5258, %v5523
      %v5600 = vadd.f32 %v5263, %v5528
      %v5601 = vadd.f32 %v5266, %v5531
      %v5602 = vadd.f32 %v5271, %v5536
      %v5603 = vadd.f32 %v5274, %v5539
      %v5604 = vadd.f32 %v5279, %v5544
      %v5605 = vadd.f32 %v5282, %v5547
      %v5606 = vadd.f32 %v5287, %v5552
      %v5607 = vadd.f32 %v5290, %v5555
      %v5608 = vadd.f32 %v5295, %v5560
      %v5609 = vadd.f32 %v5298, %v5563
      %v5610 = vadd.f32 %v5303, %v5568
      %v5611 = vadd.f32 %v5306, %v5571
      %v5612 = vadd.f32 %v5311, %v5576
      %v5613 = vadd.f32 %v5314, %v5579
      %v5614 = vmul.f32 %v5582, %v2099
      %v5615 = vmul.f32 %v5583, %v2104
      %v5616 = vmul.f32 %v5584, %v2109
      %v5617 = vmul.f32 %v5585, %v2114
      %v5618 = vmul.f32 %v5586, %v2119
      %v5619 = vmul.f32 %v5587, %v2124
      %v5620 = vmul.f32 %v5588, %v2129
      %v5621 = vmul.f32 %v5589, %v2134
      %v5622 = vmul.f32 %v5590, %v2139
      %v5623 = vmul.f32 %v5591, %v2144
      %v5624 = vmul.f32 %v5592, %v2149
      %v5625 = vmul.f32 %v5593, %v2154
      %v5626 = vmul.f32 %v5594, %v2159
      %v5627 = vmul.f32 %v5595, %v2164
      %v5628 = vmul.f32 %v5596, %v2169
      %v5629 = vmul.f32 %v5597, %v2174
      %v5630 = vmul.f32 %v5598, %v2179
      %v5631 = vmul.f32 %v5599, %v2184
      %v5632 = vmul.f32 %v5600, %v2189
      %v5633 = vmul.f32 %v5601, %v2194
      %v5634 = vmul.f32 %v5602, %v2199
      %v5635 = vmul.f32 %v5603, %v2204
      %v5636 = vmul.f32 %v5604, %v2209
      %v5637 = vmul.f32 %v5605, %v2214
      %v5638 = vmul.f32 %v5606, %v2219
      %v5639 = vmul.f32 %v5607, %v2224
      %v5640 = vmul.f32 %v5608, %v2229
      %v5641 = vmul.f32 %v5609, %v2234
      %v5642 = vmul.f32 %v5610, %v2239
      %v5643 = vmul.f32 %v5611, %v2244
      %v5644 = vmul.f32 %v5612, %v2249
      %v5645 = vmul.f32 %v5613, %v2254
      %v5646 = vadd.f32 %v4875, %v5614
      %v5647 = vadd.f32 %v4875, %v5615
      %v5648 = vadd.f32 %v4875, %v5616
      %v5649 = vadd.f32 %v4875, %v5617
      %v5650 = vadd.f32 %v4875, %v5618
      %v5651 = vadd.f32 %v4875, %v5619
      %v5652 = vadd.f32 %v4875, %v5620
      %v5653 = vadd.f32 %v4875, %v5621
      %v5654 = vadd.f32 %v4875, %v5622
      %v5655 = vadd.f32 %v4875, %v5623
      %v5656 = vadd.f32 %v4875, %v5624
      %v5657 = vadd.f32 %v4875, %v5625
      %v5658 = vadd.f32 %v4875, %v5626
      %v5659 = vadd.f32 %v4875, %v5627
      %v5660 = vadd.f32 %v4875, %v5628
      %v5661 = vadd.f32 %v4875, %v5629
      %v5662 = vadd.f32 %v4875, %v5630
      %v5663 = vadd.f32 %v4875, %v5631
      %v5664 = vadd.f32 %v4875, %v5632
      %v5665 = vadd.f32 %v4875, %v5633
      %v5666 = vadd.f32 %v4875, %v5634
      %v5667 = vadd.f32 %v4875, %v5635
      %v5668 = vadd.f32 %v4875, %v5636
      %v5669 = vadd.f32 %v4875, %v5637
      %v5670 = vadd.f32 %v4875, %v5638
      %v5671 = vadd.f32 %v4875, %v5639
      %v5672 = vadd.f32 %v4875, %v5640
      %v5673 = vadd.f32 %v4875, %v5641
      %v5674 = vadd.f32 %v4875, %v5642
      %v5675 = vadd.f32 %v4875, %v5643
      %v5676 = vadd.f32 %v4875, %v5644
      %v5677 = vadd.f32 %v4875, %v5645
      %v5678 = vld [vmem:[#allocation2 + $0x8] sm:$0xff]
      %v5679 = vld [vmem:[#allocation2 + $0x10] sm:$0xff]
      %v5680 = vld [vmem:[#allocation2 + $0x18] sm:$0xff]
      %v5681 = vld [vmem:[#allocation2 + $0x20] sm:$0xff]
      %v5682 = vld [vmem:[#allocation2 + $0x28] sm:$0xff]
      %v5683 = vld [vmem:[#allocation2 + $0x30] sm:$0xff]
      %v5684 = vld [vmem:[#allocation2 + $0x38] sm:$0xff]
      %v5685 = vld [vmem:[#allocation2 + $0x40] sm:$0xff]
      %v5686 = vld [vmem:[#allocation2 + $0x48] sm:$0xff]
      %v5687 = vld [vmem:[#allocation2 + $0x50] sm:$0xff]
      %v5688 = vld [vmem:[#allocation2 + $0x58] sm:$0xff]
      %v5689 = vld [vmem:[#allocation2 + $0x60] sm:$0xff]
      %v5690 = vld [vmem:[#allocation2 + $0x68] sm:$0xff]
      %v5691 = vld [vmem:[#allocation2 + $0x70] sm:$0xff]
      %v5692 = vld [vmem:[#allocation2 + $0x78] sm:$0xff]
      %v5693 = vld [vmem:[#allocation2 + $0x80] sm:$0xff]
      %v5694 = vld [vmem:[#allocation2 + $0x88] sm:$0xff]
      %v5695 = vld [vmem:[#allocation2 + $0x90] sm:$0xff]
      %v5696 = vld [vmem:[#allocation2 + $0x98] sm:$0xff]
      %v5697 = vld [vmem:[#allocation2 + $0xa0] sm:$0xff]
      %v5698 = vld [vmem:[#allocation2 + $0xa8] sm:$0xff]
      %v5699 = vld [vmem:[#allocation2 + $0xb0] sm:$0xff]
      %v5700 = vld [vmem:[#allocation2 + $0xb8] sm:$0xff]
      %v5701 = vld [vmem:[#allocation2 + $0xc0] sm:$0xff]
      %v5702 = vld [vmem:[#allocation2 + $0xc8] sm:$0xff]
      %v5703 = vld [vmem:[#allocation2 + $0xd0] sm:$0xff]
      %v5704 = vld [vmem:[#allocation2 + $0xd8] sm:$0xff]
      %v5705 = vld [vmem:[#allocation2 + $0xe0] sm:$0xff]
      %v5706 = vld [vmem:[#allocation2 + $0xe8] sm:$0xff]
      %v5707 = vld [vmem:[#allocation2 + $0xf0] sm:$0xff]
      %v5708 = vld [vmem:[#allocation2 + $0xf8] sm:$0xff]
      %v5709 = vld [vmem:[#allocation2 + $0x100] sm:$0xff]
      %v5710 = vpack.c.bf16 %v5679, %v5678
      %v5711 = vpack.c.bf16 %v5681, %v5680
      %v5712 = vpack.c.bf16 %v5683, %v5682
      %v5713 = vpack.c.bf16 %v5685, %v5684
      %v5714 = vpack.c.bf16 %v5687, %v5686
      %v5715 = vpack.c.bf16 %v5689, %v5688
      %v5716 = vpack.c.bf16 %v5691, %v5690
      %v5717 = vpack.c.bf16 %v5693, %v5692
      %v5718 = vpack.c.bf16 %v5695, %v5694
      %v5719 = vpack.c.bf16 %v5697, %v5696
      %v5720 = vpack.c.bf16 %v5699, %v5698
      %v5721 = vpack.c.bf16 %v5701, %v5700
      %v5722 = vpack.c.bf16 %v5703, %v5702
      %v5723 = vpack.c.bf16 %v5705, %v5704
      %v5724 = vpack.c.bf16 %v5707, %v5706
      %v5725 = vpack.c.bf16 %v5709, %v5708
      %v5726 = vld [vmem:[%s18 + $0x8] sm:$0xf]
      %v5727 = vld [vmem:[%s18 + $0xc] sm:$0xf]
      %v5728 = vld [vmem:[#allocation2 + $0x108] sm:$0xff]
      %v5729 = vld [vmem:[#allocation2 + $0x110] sm:$0xff]
      %v5730 = vpack.c.bf16 %v5729, %v5728
      %v5731 = vld [vmem:[%s18 + $0x20] sm:$0xf]
      %v5732 = vld [vmem:[%s18 + $0x24] sm:$0xf]
      %v5735 = vunpack.c.l.b16 %v5731
      %v5736 = vunpack.c.l.b16 %v5732
      %v5737 = vpack.c.b16 %v5736, %v5735
      %v5740 = vsel %vm830, %v5711, 0
      %v5743 = vsel %vm830, %v5712, 0
      %v5746 = vsel %vm830, %v5713, 0
      %v5749 = vsel %vm830, %v5714, 0
      %v5752 = vsel %vm830, %v5715, 0
      %v5755 = vsel %vm830, %v5716, 0
      %v5758 = vsel %vm830, %v5717, 0
      %v5761 = vsel %vm830, %v5718, 0
      %v5764 = vsel %vm830, %v5719, 0
      %v5767 = vsel %vm830, %v5720, 0
      %v5770 = vsel %vm830, %v5721, 0
      %v5773 = vsel %vm830, %v5722, 0
      %v5776 = vsel %vm830, %v5723, 0
      %v5779 = vsel %vm830, %v5724, 0
      %v5782 = vsel %vm830, %v5725, 0
      %v5785 = vsel %vm830, %v5730, 0
      %5787 = vmatprep.subr.bf16.mxu0 0
      %5788 = vmatpush1.bf16.msra.mxu0 0
      %5789 = vmatprep.subr.bf16.mxu0 0
      %5790 = vmatpush1.bf16.msra.mxu0 0
      %5791 = vmatprep.subr.bf16.mxu0 0
      %5792 = vmatpush1.bf16.msra.mxu0 0
      %5793 = vmatprep.subr.bf16.mxu0 0
      %5794 = vmatpush1.bf16.msra.mxu0 0
      %5795 = vmatprep.subr.bf16.mxu0 0
      %5796 = vmatpush1.bf16.msra.mxu0 0
      %5797 = vmatprep.subr.bf16.mxu0 0
      %5798 = vmatpush1.bf16.msra.mxu0 0
      %5799 = vmatprep.subr.bf16.mxu0 0
      %5800 = vmatpush1.bf16.msra.mxu0 0
      %5801 = vmatprep.subr.bf16.mxu0 0
      %5802 = vmatpush1.bf16.msra.mxu0 %v5737
      %5803 = vmatprep.subr.bf16.mxu0 0
      %5804 = vmatpush2.bf16.msra.mxu0 0
      %5805 = vmatprep.subr.bf16.mxu0 0
      %5806 = vmatpush2.bf16.msra.mxu0 0
      %5807 = vmatprep.subr.bf16.mxu0 0
      %5808 = vmatpush2.bf16.msra.mxu0 0
      %5809 = vmatprep.subr.bf16.mxu0 0
      %5810 = vmatpush2.bf16.msra.mxu0 0
      %5811 = vmatprep.subr.bf16.mxu0 0
      %5812 = vmatpush2.bf16.msra.mxu0 0
      %5813 = vmatprep.subr.bf16.mxu0 0
      %5814 = vmatpush2.bf16.msra.mxu0 0
      %5815 = vmatprep.subr.bf16.mxu0 0
      %5816 = vmatpush2.bf16.msra.mxu0 0
      %5817 = vmatprep.subr.bf16.mxu0 0
      %5818 = vmatpush2.bf16.msra.mxu0 0
      %5819 = vmatprep.mubr.bf16.mxu0 0
      %5820 = vmatmul.mubr.bf16.gmra.mxu0 %v5740
      %v5821 = vpop.f32.mrf.mxu0
      %v5822 = vadd.f32 0.0, %v5821
      %v5823 = vpop.f32.mrf.mxu0
      %v5824 = vpop.f32.mrf.mxu0
      %v5825 = vadd.f32 0.0, %v5824
      %v5826 = vpop.f32.mrf.mxu0
      %5827 = vmatprep.mubr.bf16.mxu0 0
      %5828 = vmatmul.mubr.bf16.gmra.mxu0 %v5743
      %v5829 = vpop.f32.mrf.mxu0
      %v5830 = vadd.f32 0.0, %v5829
      %v5831 = vpop.f32.mrf.mxu0
      %v5832 = vpop.f32.mrf.mxu0
      %v5833 = vadd.f32 0.0, %v5832
      %v5834 = vpop.f32.mrf.mxu0
      %5835 = vmatprep.mubr.bf16.mxu0 0
      %5836 = vmatmul.mubr.bf16.gmra.mxu0 %v5746
      %v5837 = vpop.f32.mrf.mxu0
      %v5838 = vadd.f32 0.0, %v5837
      %v5839 = vpop.f32.mrf.mxu0
      %v5840 = vpop.f32.mrf.mxu0
      %v5841 = vadd.f32 0.0, %v5840
      %v5842 = vpop.f32.mrf.mxu0
      %5843 = vmatprep.mubr.bf16.mxu0 0
      %5844 = vmatmul.mubr.bf16.gmra.mxu0 %v5749
      %v5845 = vpop.f32.mrf.mxu0
      %v5846 = vadd.f32 0.0, %v5845
      %v5847 = vpop.f32.mrf.mxu0
      %v5848 = vpop.f32.mrf.mxu0
      %v5849 = vadd.f32 0.0, %v5848
      %v5850 = vpop.f32.mrf.mxu0
      %5851 = vmatprep.mubr.bf16.mxu0 0
      %5852 = vmatmul.mubr.bf16.gmra.mxu0 %v5752
      %v5853 = vpop.f32.mrf.mxu0
      %v5854 = vadd.f32 0.0, %v5853
      %v5855 = vpop.f32.mrf.mxu0
      %v5856 = vpop.f32.mrf.mxu0
      %v5857 = vadd.f32 0.0, %v5856
      %v5858 = vpop.f32.mrf.mxu0
      %5859 = vmatprep.mubr.bf16.mxu0 0
      %5860 = vmatmul.mubr.bf16.gmra.mxu0 %v5755
      %v5861 = vpop.f32.mrf.mxu0
      %v5862 = vadd.f32 0.0, %v5861
      %v5863 = vpop.f32.mrf.mxu0
      %v5864 = vpop.f32.mrf.mxu0
      %v5865 = vadd.f32 0.0, %v5864
      %v5866 = vpop.f32.mrf.mxu0
      %5867 = vmatprep.mubr.bf16.mxu0 0
      %5868 = vmatmul.mubr.bf16.gmra.mxu0 %v5758
      %v5869 = vpop.f32.mrf.mxu0
      %v5870 = vadd.f32 0.0, %v5869
      %v5871 = vpop.f32.mrf.mxu0
      %v5872 = vpop.f32.mrf.mxu0
      %v5873 = vadd.f32 0.0, %v5872
      %v5874 = vpop.f32.mrf.mxu0
      %5875 = vmatprep.mubr.bf16.mxu0 0
      %5876 = vmatmul.mubr.bf16.gmra.mxu0 %v5761
      %v5877 = vpop.f32.mrf.mxu0
      %v5878 = vadd.f32 0.0, %v5877
      %v5879 = vpop.f32.mrf.mxu0
      %v5880 = vpop.f32.mrf.mxu0
      %v5881 = vadd.f32 0.0, %v5880
      %v5882 = vpop.f32.mrf.mxu0
      %5883 = vmatprep.mubr.bf16.mxu0 0
      %5884 = vmatmul.mubr.bf16.gmra.mxu0 %v5764
      %v5885 = vpop.f32.mrf.mxu0
      %v5886 = vadd.f32 0.0, %v5885
      %v5887 = vpop.f32.mrf.mxu0
      %v5888 = vpop.f32.mrf.mxu0
      %v5889 = vadd.f32 0.0, %v5888
      %v5890 = vpop.f32.mrf.mxu0
      %5891 = vmatprep.mubr.bf16.mxu0 0
      %5892 = vmatmul.mubr.bf16.gmra.mxu0 %v5767
      %v5893 = vpop.f32.mrf.mxu0
      %v5894 = vadd.f32 0.0, %v5893
      %v5895 = vpop.f32.mrf.mxu0
      %v5896 = vpop.f32.mrf.mxu0
      %v5897 = vadd.f32 0.0, %v5896
      %v5898 = vpop.f32.mrf.mxu0
      %5899 = vmatprep.mubr.bf16.mxu0 0
      %5900 = vmatmul.mubr.bf16.gmra.mxu0 %v5770
      %v5901 = vpop.f32.mrf.mxu0
      %v5902 = vadd.f32 0.0, %v5901
      %v5903 = vpop.f32.mrf.mxu0
      %v5904 = vpop.f32.mrf.mxu0
      %v5905 = vadd.f32 0.0, %v5904
      %v5906 = vpop.f32.mrf.mxu0
      %5907 = vmatprep.mubr.bf16.mxu0 0
      %5908 = vmatmul.mubr.bf16.gmra.mxu0 %v5773
      %v5909 = vpop.f32.mrf.mxu0
      %v5910 = vadd.f32 0.0, %v5909
      %v5911 = vpop.f32.mrf.mxu0
      %v5912 = vpop.f32.mrf.mxu0
      %v5913 = vadd.f32 0.0, %v5912
      %v5914 = vpop.f32.mrf.mxu0
      %5915 = vmatprep.mubr.bf16.mxu0 0
      %5916 = vmatmul.mubr.bf16.gmra.mxu0 %v5776
      %v5917 = vpop.f32.mrf.mxu0
      %v5918 = vadd.f32 0.0, %v5917
      %v5919 = vpop.f32.mrf.mxu0
      %v5920 = vpop.f32.mrf.mxu0
      %v5921 = vadd.f32 0.0, %v5920
      %v5922 = vpop.f32.mrf.mxu0
      %5923 = vmatprep.mubr.bf16.mxu0 0
      %5924 = vmatmul.mubr.bf16.gmra.mxu0 %v5779
      %v5925 = vpop.f32.mrf.mxu0
      %v5926 = vadd.f32 0.0, %v5925
      %v5927 = vpop.f32.mrf.mxu0
      %v5928 = vpop.f32.mrf.mxu0
      %v5929 = vadd.f32 0.0, %v5928
      %v5930 = vpop.f32.mrf.mxu0
      %5931 = vmatprep.mubr.bf16.mxu0 0
      %5932 = vmatmul.mubr.bf16.gmra.mxu0 %v5782
      %v5933 = vpop.f32.mrf.mxu0
      %v5934 = vadd.f32 0.0, %v5933
      %v5935 = vpop.f32.mrf.mxu0
      %v5936 = vpop.f32.mrf.mxu0
      %v5937 = vadd.f32 0.0, %v5936
      %v5938 = vpop.f32.mrf.mxu0
      %5939 = vmatprep.mubr.bf16.mxu0 0
      %5940 = vmatmul.mubr.bf16.gmra.mxu0 %v5785
      %v5941 = vpop.f32.mrf.mxu0
      %v5942 = vadd.f32 0.0, %v5941
      %v5943 = vpop.f32.mrf.mxu0
      %v5944 = vpop.f32.mrf.mxu0
      %v5945 = vadd.f32 0.0, %v5944
      %v5946 = vpop.f32.mrf.mxu0
      %5947 = vdwg.mxu0
      %v5950 = vunpack.c.l.b16 %v5726
      %v5951 = vunpack.c.l.b16 %v5727
      %v5952 = vpack.c.b16 %v5951, %v5950
      %v5955 = vsel %vm830, %v5710, 0
      %5957 = vmatprep.subr.bf16.mxu0 0
      %5958 = vmatpush1.bf16.msra.mxu0 0
      %5959 = vmatprep.subr.bf16.mxu0 0
      %5960 = vmatpush1.bf16.msra.mxu0 0
      %5961 = vmatprep.subr.bf16.mxu0 0
      %5962 = vmatpush1.bf16.msra.mxu0 0
      %5963 = vmatprep.subr.bf16.mxu0 0
      %5964 = vmatpush1.bf16.msra.mxu0 0
      %5965 = vmatprep.subr.bf16.mxu0 0
      %5966 = vmatpush1.bf16.msra.mxu0 0
      %5967 = vmatprep.subr.bf16.mxu0 0
      %5968 = vmatpush1.bf16.msra.mxu0 0
      %5969 = vmatprep.subr.bf16.mxu0 0
      %5970 = vmatpush1.bf16.msra.mxu0 0
      %5971 = vmatprep.subr.bf16.mxu0 0
      %5972 = vmatpush1.bf16.msra.mxu0 %v5952
      %5973 = vmatprep.subr.bf16.mxu0 0
      %5974 = vmatpush2.bf16.msra.mxu0 0
      %5975 = vmatprep.subr.bf16.mxu0 0
      %5976 = vmatpush2.bf16.msra.mxu0 0
      %5977 = vmatprep.subr.bf16.mxu0 0
      %5978 = vmatpush2.bf16.msra.mxu0 0
      %5979 = vmatprep.subr.bf16.mxu0 0
      %5980 = vmatpush2.bf16.msra.mxu0 0
      %5981 = vmatprep.subr.bf16.mxu0 0
      %5982 = vmatpush2.bf16.msra.mxu0 0
      %5983 = vmatprep.subr.bf16.mxu0 0
      %5984 = vmatpush2.bf16.msra.mxu0 0
      %5985 = vmatprep.subr.bf16.mxu0 0
      %5986 = vmatpush2.bf16.msra.mxu0 0
      %5987 = vmatprep.subr.bf16.mxu0 0
      %5988 = vmatpush2.bf16.msra.mxu0 0
      %5989 = vmatprep.mubr.bf16.mxu0 0
      %5990 = vmatmul.mubr.bf16.gmra.mxu0 %v5955
      %v5991 = vpop.f32.mrf.mxu0
      %v5992 = vadd.f32 %v5822, %v5991
      %v5993 = vpop.f32.mrf.mxu0
      %v5994 = vpop.f32.mrf.mxu0
      %v5995 = vadd.f32 %v5825, %v5994
      %v5996 = vpop.f32.mrf.mxu0
      %5997 = vmatprep.mubr.bf16.mxu0 0
      %5998 = vmatmul.mubr.bf16.gmra.mxu0 %v5740
      %v5999 = vpop.f32.mrf.mxu0
      %v6000 = vadd.f32 %v5830, %v5999
      %v6001 = vpop.f32.mrf.mxu0
      %v6002 = vpop.f32.mrf.mxu0
      %v6003 = vadd.f32 %v5833, %v6002
      %v6004 = vpop.f32.mrf.mxu0
      %6005 = vmatprep.mubr.bf16.mxu0 0
      %6006 = vmatmul.mubr.bf16.gmra.mxu0 %v5743
      %v6007 = vpop.f32.mrf.mxu0
      %v6008 = vadd.f32 %v5838, %v6007
      %v6009 = vpop.f32.mrf.mxu0
      %v6010 = vpop.f32.mrf.mxu0
      %v6011 = vadd.f32 %v5841, %v6010
      %v6012 = vpop.f32.mrf.mxu0
      %6013 = vmatprep.mubr.bf16.mxu0 0
      %6014 = vmatmul.mubr.bf16.gmra.mxu0 %v5746
      %v6015 = vpop.f32.mrf.mxu0
      %v6016 = vadd.f32 %v5846, %v6015
      %v6017 = vpop.f32.mrf.mxu0
      %v6018 = vpop.f32.mrf.mxu0
      %v6019 = vadd.f32 %v5849, %v6018
      %v6020 = vpop.f32.mrf.mxu0
      %6021 = vmatprep.mubr.bf16.mxu0 0
      %6022 = vmatmul.mubr.bf16.gmra.mxu0 %v5749
      %v6023 = vpop.f32.mrf.mxu0
      %v6024 = vadd.f32 %v5854, %v6023
      %v6025 = vpop.f32.mrf.mxu0
      %v6026 = vpop.f32.mrf.mxu0
      %v6027 = vadd.f32 %v5857, %v6026
      %v6028 = vpop.f32.mrf.mxu0
      %6029 = vmatprep.mubr.bf16.mxu0 0
      %6030 = vmatmul.mubr.bf16.gmra.mxu0 %v5752
      %v6031 = vpop.f32.mrf.mxu0
      %v6032 = vadd.f32 %v5862, %v6031
      %v6033 = vpop.f32.mrf.mxu0
      %v6034 = vpop.f32.mrf.mxu0
      %v6035 = vadd.f32 %v5865, %v6034
      %v6036 = vpop.f32.mrf.mxu0
      %6037 = vmatprep.mubr.bf16.mxu0 0
      %6038 = vmatmul.mubr.bf16.gmra.mxu0 %v5755
      %v6039 = vpop.f32.mrf.mxu0
      %v6040 = vadd.f32 %v5870, %v6039
      %v6041 = vpop.f32.mrf.mxu0
      %v6042 = vpop.f32.mrf.mxu0
      %v6043 = vadd.f32 %v5873, %v6042
      %v6044 = vpop.f32.mrf.mxu0
      %6045 = vmatprep.mubr.bf16.mxu0 0
      %6046 = vmatmul.mubr.bf16.gmra.mxu0 %v5758
      %v6047 = vpop.f32.mrf.mxu0
      %v6048 = vadd.f32 %v5878, %v6047
      %v6049 = vpop.f32.mrf.mxu0
      %v6050 = vpop.f32.mrf.mxu0
      %v6051 = vadd.f32 %v5881, %v6050
      %v6052 = vpop.f32.mrf.mxu0
      %6053 = vmatprep.mubr.bf16.mxu0 0
      %6054 = vmatmul.mubr.bf16.gmra.mxu0 %v5761
      %v6055 = vpop.f32.mrf.mxu0
      %v6056 = vadd.f32 %v5886, %v6055
      %v6057 = vpop.f32.mrf.mxu0
      %v6058 = vpop.f32.mrf.mxu0
      %v6059 = vadd.f32 %v5889, %v6058
      %v6060 = vpop.f32.mrf.mxu0
      %6061 = vmatprep.mubr.bf16.mxu0 0
      %6062 = vmatmul.mubr.bf16.gmra.mxu0 %v5764
      %v6063 = vpop.f32.mrf.mxu0
      %v6064 = vadd.f32 %v5894, %v6063
      %v6065 = vpop.f32.mrf.mxu0
      %v6066 = vpop.f32.mrf.mxu0
      %v6067 = vadd.f32 %v5897, %v6066
      %v6068 = vpop.f32.mrf.mxu0
      %6069 = vmatprep.mubr.bf16.mxu0 0
      %6070 = vmatmul.mubr.bf16.gmra.mxu0 %v5767
      %v6071 = vpop.f32.mrf.mxu0
      %v6072 = vadd.f32 %v5902, %v6071
      %v6073 = vpop.f32.mrf.mxu0
      %v6074 = vpop.f32.mrf.mxu0
      %v6075 = vadd.f32 %v5905, %v6074
      %v6076 = vpop.f32.mrf.mxu0
      %6077 = vmatprep.mubr.bf16.mxu0 0
      %6078 = vmatmul.mubr.bf16.gmra.mxu0 %v5770
      %v6079 = vpop.f32.mrf.mxu0
      %v6080 = vadd.f32 %v5910, %v6079
      %v6081 = vpop.f32.mrf.mxu0
      %v6082 = vpop.f32.mrf.mxu0
      %v6083 = vadd.f32 %v5913, %v6082
      %v6084 = vpop.f32.mrf.mxu0
      %6085 = vmatprep.mubr.bf16.mxu0 0
      %6086 = vmatmul.mubr.bf16.gmra.mxu0 %v5773
      %v6087 = vpop.f32.mrf.mxu0
      %v6088 = vadd.f32 %v5918, %v6087
      %v6089 = vpop.f32.mrf.mxu0
      %v6090 = vpop.f32.mrf.mxu0
      %v6091 = vadd.f32 %v5921, %v6090
      %v6092 = vpop.f32.mrf.mxu0
      %6093 = vmatprep.mubr.bf16.mxu0 0
      %6094 = vmatmul.mubr.bf16.gmra.mxu0 %v5776
      %v6095 = vpop.f32.mrf.mxu0
      %v6096 = vadd.f32 %v5926, %v6095
      %v6097 = vpop.f32.mrf.mxu0
      %v6098 = vpop.f32.mrf.mxu0
      %v6099 = vadd.f32 %v5929, %v6098
      %v6100 = vpop.f32.mrf.mxu0
      %6101 = vmatprep.mubr.bf16.mxu0 0
      %6102 = vmatmul.mubr.bf16.gmra.mxu0 %v5779
      %v6103 = vpop.f32.mrf.mxu0
      %v6104 = vadd.f32 %v5934, %v6103
      %v6105 = vpop.f32.mrf.mxu0
      %v6106 = vpop.f32.mrf.mxu0
      %v6107 = vadd.f32 %v5937, %v6106
      %v6108 = vpop.f32.mrf.mxu0
      %6109 = vmatprep.mubr.bf16.mxu0 0
      %6110 = vmatmul.mubr.bf16.gmra.mxu0 %v5782
      %v6111 = vpop.f32.mrf.mxu0
      %v6112 = vadd.f32 %v5942, %v6111
      %v6113 = vpop.f32.mrf.mxu0
      %v6114 = vpop.f32.mrf.mxu0
      %v6115 = vadd.f32 %v5945, %v6114
      %v6116 = vpop.f32.mrf.mxu0
      %6117 = vdwg.mxu0
      %v6118 = vld [vmem:[#allocation2 + $0x28] sm:$0xff]
      %v6119 = vld [vmem:[#allocation2 + $0x30] sm:$0xff]
      %v6120 = vld [vmem:[#allocation2 + $0x38] sm:$0xff]
      %v6121 = vld [vmem:[#allocation2 + $0x40] sm:$0xff]
      %v6122 = vld [vmem:[#allocation2 + $0x48] sm:$0xff]
      %v6123 = vld [vmem:[#allocation2 + $0x50] sm:$0xff]
      %v6124 = vld [vmem:[#allocation2 + $0x58] sm:$0xff]
      %v6125 = vld [vmem:[#allocation2 + $0x60] sm:$0xff]
      %v6126 = vld [vmem:[#allocation2 + $0x68] sm:$0xff]
      %v6127 = vld [vmem:[#allocation2 + $0x70] sm:$0xff]
      %v6128 = vld [vmem:[#allocation2 + $0x78] sm:$0xff]
      %v6129 = vld [vmem:[#allocation2 + $0x80] sm:$0xff]
      %v6130 = vld [vmem:[#allocation2 + $0x88] sm:$0xff]
      %v6131 = vld [vmem:[#allocation2 + $0x90] sm:$0xff]
      %v6132 = vld [vmem:[#allocation2 + $0x98] sm:$0xff]
      %v6133 = vld [vmem:[#allocation2 + $0xa0] sm:$0xff]
      %v6134 = vld [vmem:[#allocation2 + $0xa8] sm:$0xff]
      %v6135 = vld [vmem:[#allocation2 + $0xb0] sm:$0xff]
      %v6136 = vld [vmem:[#allocation2 + $0xb8] sm:$0xff]
      %v6137 = vld [vmem:[#allocation2 + $0xc0] sm:$0xff]
      %v6138 = vld [vmem:[#allocation2 + $0xc8] sm:$0xff]
      %v6139 = vld [vmem:[#allocation2 + $0xd0] sm:$0xff]
      %v6140 = vld [vmem:[#allocation2 + $0xd8] sm:$0xff]
      %v6141 = vld [vmem:[#allocation2 + $0xe0] sm:$0xff]
      %v6142 = vld [vmem:[#allocation2 + $0xe8] sm:$0xff]
      %v6143 = vld [vmem:[#allocation2 + $0xf0] sm:$0xff]
      %v6144 = vld [vmem:[#allocation2 + $0xf8] sm:$0xff]
      %v6145 = vld [vmem:[#allocation2 + $0x100] sm:$0xff]
      %v6146 = vld [vmem:[#allocation2 + $0x108] sm:$0xff]
      %v6147 = vld [vmem:[#allocation2 + $0x110] sm:$0xff]
      %v6148 = vld [vmem:[#allocation2 + $0x118] sm:$0xff]
      %v6149 = vld [vmem:[#allocation2 + $0x120] sm:$0xff]
      %v6150 = vpack.c.bf16 %v6119, %v6118
      %v6151 = vpack.c.bf16 %v6121, %v6120
      %v6152 = vpack.c.bf16 %v6123, %v6122
      %v6153 = vpack.c.bf16 %v6125, %v6124
      %v6154 = vpack.c.bf16 %v6127, %v6126
      %v6155 = vpack.c.bf16 %v6129, %v6128
      %v6156 = vpack.c.bf16 %v6131, %v6130
      %v6157 = vpack.c.bf16 %v6133, %v6132
      %v6158 = vpack.c.bf16 %v6135, %v6134
      %v6159 = vpack.c.bf16 %v6137, %v6136
      %v6160 = vpack.c.bf16 %v6139, %v6138
      %v6161 = vpack.c.bf16 %v6141, %v6140
      %v6162 = vpack.c.bf16 %v6143, %v6142
      %v6163 = vpack.c.bf16 %v6145, %v6144
      %v6164 = vpack.c.bf16 %v6147, %v6146
      %v6165 = vpack.c.bf16 %v6149, %v6148
      %v6166 = vld [vmem:[%s18 + $0x38] sm:$0xf]
      %v6167 = vld [vmem:[%s18 + $0x3c] sm:$0xf]
      %v6170 = vunpack.c.l.b16 %v6166
      %v6171 = vunpack.c.l.b16 %v6167
      %v6172 = vpack.c.b16 %v6171, %v6170
      %v6175 = vsel %vm830, %v6150, 0
      %v6178 = vsel %vm830, %v6151, 0
      %v6181 = vsel %vm830, %v6152, 0
      %v6184 = vsel %vm830, %v6153, 0
      %v6187 = vsel %vm830, %v6154, 0
      %v6190 = vsel %vm830, %v6155, 0
      %v6193 = vsel %vm830, %v6156, 0
      %v6196 = vsel %vm830, %v6157, 0
      %v6199 = vsel %vm830, %v6158, 0
      %v6202 = vsel %vm830, %v6159, 0
      %v6205 = vsel %vm830, %v6160, 0
      %v6208 = vsel %vm830, %v6161, 0
      %v6211 = vsel %vm830, %v6162, 0
      %v6214 = vsel %vm830, %v6163, 0
      %v6217 = vsel %vm830, %v6164, 0
      %v6220 = vsel %vm830, %v6165, 0
      %6222 = vmatprep.subr.bf16.mxu0 0
      %6223 = vmatpush1.bf16.msra.mxu0 0
      %6224 = vmatprep.subr.bf16.mxu0 0
      %6225 = vmatpush1.bf16.msra.mxu0 0
      %6226 = vmatprep.subr.bf16.mxu0 0
      %6227 = vmatpush1.bf16.msra.mxu0 0
      %6228 = vmatprep.subr.bf16.mxu0 0
      %6229 = vmatpush1.bf16.msra.mxu0 0
      %6230 = vmatprep.subr.bf16.mxu0 0
      %6231 = vmatpush1.bf16.msra.mxu0 0
      %6232 = vmatprep.subr.bf16.mxu0 0
      %6233 = vmatpush1.bf16.msra.mxu0 0
      %6234 = vmatprep.subr.bf16.mxu0 0
      %6235 = vmatpush1.bf16.msra.mxu0 0
      %6236 = vmatprep.subr.bf16.mxu0 0
      %6237 = vmatpush1.bf16.msra.mxu0 %v6172
      %6238 = vmatprep.subr.bf16.mxu0 0
      %6239 = vmatpush2.bf16.msra.mxu0 0
      %6240 = vmatprep.subr.bf16.mxu0 0
      %6241 = vmatpush2.bf16.msra.mxu0 0
      %6242 = vmatprep.subr.bf16.mxu0 0
      %6243 = vmatpush2.bf16.msra.mxu0 0
      %6244 = vmatprep.subr.bf16.mxu0 0
      %6245 = vmatpush2.bf16.msra.mxu0 0
      %6246 = vmatprep.subr.bf16.mxu0 0
      %6247 = vmatpush2.bf16.msra.mxu0 0
      %6248 = vmatprep.subr.bf16.mxu0 0
      %6249 = vmatpush2.bf16.msra.mxu0 0
      %6250 = vmatprep.subr.bf16.mxu0 0
      %6251 = vmatpush2.bf16.msra.mxu0 0
      %6252 = vmatprep.subr.bf16.mxu0 0
      %6253 = vmatpush2.bf16.msra.mxu0 0
      %6254 = vmatprep.mubr.bf16.mxu0 0
      %6255 = vmatmul.mubr.bf16.gmra.mxu0 %v6175
      %v6256 = vpop.f32.mrf.mxu0
      %v6257 = vadd.f32 0.0, %v6256
      %v6258 = vpop.f32.mrf.mxu0
      %v6259 = vpop.f32.mrf.mxu0
      %v6260 = vadd.f32 0.0, %v6259
      %v6261 = vpop.f32.mrf.mxu0
      %6262 = vmatprep.mubr.bf16.mxu0 0
      %6263 = vmatmul.mubr.bf16.gmra.mxu0 %v6178
      %v6264 = vpop.f32.mrf.mxu0
      %v6265 = vadd.f32 0.0, %v6264
      %v6266 = vpop.f32.mrf.mxu0
      %v6267 = vpop.f32.mrf.mxu0
      %v6268 = vadd.f32 0.0, %v6267
      %v6269 = vpop.f32.mrf.mxu0
      %6270 = vmatprep.mubr.bf16.mxu0 0
      %6271 = vmatmul.mubr.bf16.gmra.mxu0 %v6181
      %v6272 = vpop.f32.mrf.mxu0
      %v6273 = vadd.f32 0.0, %v6272
      %v6274 = vpop.f32.mrf.mxu0
      %v6275 = vpop.f32.mrf.mxu0
      %v6276 = vadd.f32 0.0, %v6275
      %v6277 = vpop.f32.mrf.mxu0
      %6278 = vmatprep.mubr.bf16.mxu0 0
      %6279 = vmatmul.mubr.bf16.gmra.mxu0 %v6184
      %v6280 = vpop.f32.mrf.mxu0
      %v6281 = vadd.f32 0.0, %v6280
      %v6282 = vpop.f32.mrf.mxu0
      %v6283 = vpop.f32.mrf.mxu0
      %v6284 = vadd.f32 0.0, %v6283
      %v6285 = vpop.f32.mrf.mxu0
      %6286 = vmatprep.mubr.bf16.mxu0 0
      %6287 = vmatmul.mubr.bf16.gmra.mxu0 %v6187
      %v6288 = vpop.f32.mrf.mxu0
      %v6289 = vadd.f32 0.0, %v6288
      %v6290 = vpop.f32.mrf.mxu0
      %v6291 = vpop.f32.mrf.mxu0
      %v6292 = vadd.f32 0.0, %v6291
      %v6293 = vpop.f32.mrf.mxu0
      %6294 = vmatprep.mubr.bf16.mxu0 0
      %6295 = vmatmul.mubr.bf16.gmra.mxu0 %v6190
      %v6296 = vpop.f32.mrf.mxu0
      %v6297 = vadd.f32 0.0, %v6296
      %v6298 = vpop.f32.mrf.mxu0
      %v6299 = vpop.f32.mrf.mxu0
      %v6300 = vadd.f32 0.0, %v6299
      %v6301 = vpop.f32.mrf.mxu0
      %6302 = vmatprep.mubr.bf16.mxu0 0
      %6303 = vmatmul.mubr.bf16.gmra.mxu0 %v6193
      %v6304 = vpop.f32.mrf.mxu0
      %v6305 = vadd.f32 0.0, %v6304
      %v6306 = vpop.f32.mrf.mxu0
      %v6307 = vpop.f32.mrf.mxu0
      %v6308 = vadd.f32 0.0, %v6307
      %v6309 = vpop.f32.mrf.mxu0
      %6310 = vmatprep.mubr.bf16.mxu0 0
      %6311 = vmatmul.mubr.bf16.gmra.mxu0 %v6196
      %v6312 = vpop.f32.mrf.mxu0
      %v6313 = vadd.f32 0.0, %v6312
      %v6314 = vpop.f32.mrf.mxu0
      %v6315 = vpop.f32.mrf.mxu0
      %v6316 = vadd.f32 0.0, %v6315
      %v6317 = vpop.f32.mrf.mxu0
      %6318 = vmatprep.mubr.bf16.mxu0 0
      %6319 = vmatmul.mubr.bf16.gmra.mxu0 %v6199
      %v6320 = vpop.f32.mrf.mxu0
      %v6321 = vadd.f32 0.0, %v6320
      %v6322 = vpop.f32.mrf.mxu0
      %v6323 = vpop.f32.mrf.mxu0
      %v6324 = vadd.f32 0.0, %v6323
      %v6325 = vpop.f32.mrf.mxu0
      %6326 = vmatprep.mubr.bf16.mxu0 0
      %6327 = vmatmul.mubr.bf16.gmra.mxu0 %v6202
      %v6328 = vpop.f32.mrf.mxu0
      %v6329 = vadd.f32 0.0, %v6328
      %v6330 = vpop.f32.mrf.mxu0
      %v6331 = vpop.f32.mrf.mxu0
      %v6332 = vadd.f32 0.0, %v6331
      %v6333 = vpop.f32.mrf.mxu0
      %6334 = vmatprep.mubr.bf16.mxu0 0
      %6335 = vmatmul.mubr.bf16.gmra.mxu0 %v6205
      %v6336 = vpop.f32.mrf.mxu0
      %v6337 = vadd.f32 0.0, %v6336
      %v6338 = vpop.f32.mrf.mxu0
      %v6339 = vpop.f32.mrf.mxu0
      %v6340 = vadd.f32 0.0, %v6339
      %v6341 = vpop.f32.mrf.mxu0
      %6342 = vmatprep.mubr.bf16.mxu0 0
      %6343 = vmatmul.mubr.bf16.gmra.mxu0 %v6208
      %v6344 = vpop.f32.mrf.mxu0
      %v6345 = vadd.f32 0.0, %v6344
      %v6346 = vpop.f32.mrf.mxu0
      %v6347 = vpop.f32.mrf.mxu0
      %v6348 = vadd.f32 0.0, %v6347
      %v6349 = vpop.f32.mrf.mxu0
      %6350 = vmatprep.mubr.bf16.mxu0 0
      %6351 = vmatmul.mubr.bf16.gmra.mxu0 %v6211
      %v6352 = vpop.f32.mrf.mxu0
      %v6353 = vadd.f32 0.0, %v6352
      %v6354 = vpop.f32.mrf.mxu0
      %v6355 = vpop.f32.mrf.mxu0
      %v6356 = vadd.f32 0.0, %v6355
      %v6357 = vpop.f32.mrf.mxu0
      %6358 = vmatprep.mubr.bf16.mxu0 0
      %6359 = vmatmul.mubr.bf16.gmra.mxu0 %v6214
      %v6360 = vpop.f32.mrf.mxu0
      %v6361 = vadd.f32 0.0, %v6360
      %v6362 = vpop.f32.mrf.mxu0
      %v6363 = vpop.f32.mrf.mxu0
      %v6364 = vadd.f32 0.0, %v6363
      %v6365 = vpop.f32.mrf.mxu0
      %6366 = vmatprep.mubr.bf16.mxu0 0
      %6367 = vmatmul.mubr.bf16.gmra.mxu0 %v6217
      %v6368 = vpop.f32.mrf.mxu0
      %v6369 = vadd.f32 0.0, %v6368
      %v6370 = vpop.f32.mrf.mxu0
      %v6371 = vpop.f32.mrf.mxu0
      %v6372 = vadd.f32 0.0, %v6371
      %v6373 = vpop.f32.mrf.mxu0
      %6374 = vmatprep.mubr.bf16.mxu0 0
      %6375 = vmatmul.mubr.bf16.gmra.mxu0 %v6220
      %v6376 = vpop.f32.mrf.mxu0
      %v6377 = vadd.f32 0.0, %v6376
      %v6378 = vpop.f32.mrf.mxu0
      %v6379 = vpop.f32.mrf.mxu0
      %v6380 = vadd.f32 0.0, %v6379
      %v6381 = vpop.f32.mrf.mxu0
      %6382 = vdwg.mxu0
      %v6383 = vadd.f32 %v5992, %v6257
      %v6384 = vadd.f32 %v5995, %v6260
      %v6385 = vadd.f32 %v6000, %v6265
      %v6386 = vadd.f32 %v6003, %v6268
      %v6387 = vadd.f32 %v6008, %v6273
      %v6388 = vadd.f32 %v6011, %v6276
      %v6389 = vadd.f32 %v6016, %v6281
      %v6390 = vadd.f32 %v6019, %v6284
      %v6391 = vadd.f32 %v6024, %v6289
      %v6392 = vadd.f32 %v6027, %v6292
      %v6393 = vadd.f32 %v6032, %v6297
      %v6394 = vadd.f32 %v6035, %v6300
      %v6395 = vadd.f32 %v6040, %v6305
      %v6396 = vadd.f32 %v6043, %v6308
      %v6397 = vadd.f32 %v6048, %v6313
      %v6398 = vadd.f32 %v6051, %v6316
      %v6399 = vadd.f32 %v6056, %v6321
      %v6400 = vadd.f32 %v6059, %v6324
      %v6401 = vadd.f32 %v6064, %v6329
      %v6402 = vadd.f32 %v6067, %v6332
      %v6403 = vadd.f32 %v6072, %v6337
      %v6404 = vadd.f32 %v6075, %v6340
      %v6405 = vadd.f32 %v6080, %v6345
      %v6406 = vadd.f32 %v6083, %v6348
      %v6407 = vadd.f32 %v6088, %v6353
      %v6408 = vadd.f32 %v6091, %v6356
      %v6409 = vadd.f32 %v6096, %v6361
      %v6410 = vadd.f32 %v6099, %v6364
      %v6411 = vadd.f32 %v6104, %v6369
      %v6412 = vadd.f32 %v6107, %v6372
      %v6413 = vadd.f32 %v6112, %v6377
      %v6414 = vadd.f32 %v6115, %v6380
      %v6415 = vadd.f32 %v5646, %v6383
      %v6416 = vadd.f32 %v5647, %v6384
      %v6417 = vadd.f32 %v5648, %v6385
      %v6418 = vadd.f32 %v5649, %v6386
      %v6419 = vadd.f32 %v5650, %v6387
      %v6420 = vadd.f32 %v5651, %v6388
      %v6421 = vadd.f32 %v5652, %v6389
      %v6422 = vadd.f32 %v5653, %v6390
      %v6423 = vadd.f32 %v5654, %v6391
      %v6424 = vadd.f32 %v5655, %v6392
      %v6425 = vadd.f32 %v5656, %v6393
      %v6426 = vadd.f32 %v5657, %v6394
      %v6427 = vadd.f32 %v5658, %v6395
      %v6428 = vadd.f32 %v5659, %v6396
      %v6429 = vadd.f32 %v5660, %v6397
      %v6430 = vadd.f32 %v5661, %v6398
      %v6431 = vadd.f32 %v5662, %v6399
      %v6432 = vadd.f32 %v5663, %v6400
      %v6433 = vadd.f32 %v5664, %v6401
      %v6434 = vadd.f32 %v5665, %v6402
      %v6435 = vadd.f32 %v5666, %v6403
      %v6436 = vadd.f32 %v5667, %v6404
      %v6437 = vadd.f32 %v5668, %v6405
      %v6438 = vadd.f32 %v5669, %v6406
      %v6439 = vadd.f32 %v5670, %v6407
      %v6440 = vadd.f32 %v5671, %v6408
      %v6441 = vadd.f32 %v5672, %v6409
      %v6442 = vadd.f32 %v5673, %v6410
      %v6443 = vadd.f32 %v5674, %v6411
      %v6444 = vadd.f32 %v5675, %v6412
      %v6445 = vadd.f32 %v5676, %v6413
      %v6446 = vadd.f32 %v5677, %v6414
      %v6447 = vld [vmem:[#allocation2 + $0x9] sm:$0xff]
      %v6448 = vld [vmem:[#allocation2 + $0x11] sm:$0xff]
      %v6449 = vld [vmem:[#allocation2 + $0x19] sm:$0xff]
      %v6450 = vld [vmem:[#allocation2 + $0x21] sm:$0xff]
      %v6451 = vld [vmem:[#allocation2 + $0x29] sm:$0xff]
      %v6452 = vld [vmem:[#allocation2 + $0x31] sm:$0xff]
      %v6453 = vld [vmem:[#allocation2 + $0x39] sm:$0xff]
      %v6454 = vld [vmem:[#allocation2 + $0x41] sm:$0xff]
      %v6455 = vld [vmem:[#allocation2 + $0x49] sm:$0xff]
      %v6456 = vld [vmem:[#allocation2 + $0x51] sm:$0xff]
      %v6457 = vld [vmem:[#allocation2 + $0x59] sm:$0xff]
      %v6458 = vld [vmem:[#allocation2 + $0x61] sm:$0xff]
      %v6459 = vld [vmem:[#allocation2 + $0x69] sm:$0xff]
      %v6460 = vld [vmem:[#allocation2 + $0x71] sm:$0xff]
      %v6461 = vld [vmem:[#allocation2 + $0x79] sm:$0xff]
      %v6462 = vld [vmem:[#allocation2 + $0x81] sm:$0xff]
      %v6463 = vld [vmem:[#allocation2 + $0x89] sm:$0xff]
      %v6464 = vld [vmem:[#allocation2 + $0x91] sm:$0xff]
      %v6465 = vld [vmem:[#allocation2 + $0x99] sm:$0xff]
      %v6466 = vld [vmem:[#allocation2 + $0xa1] sm:$0xff]
      %v6467 = vld [vmem:[#allocation2 + $0xa9] sm:$0xff]
      %v6468 = vld [vmem:[#allocation2 + $0xb1] sm:$0xff]
      %v6469 = vld [vmem:[#allocation2 + $0xb9] sm:$0xff]
      %v6470 = vld [vmem:[#allocation2 + $0xc1] sm:$0xff]
      %v6471 = vld [vmem:[#allocation2 + $0xc9] sm:$0xff]
      %v6472 = vld [vmem:[#allocation2 + $0xd1] sm:$0xff]
      %v6473 = vld [vmem:[#allocation2 + $0xd9] sm:$0xff]
      %v6474 = vld [vmem:[#allocation2 + $0xe1] sm:$0xff]
      %v6475 = vld [vmem:[#allocation2 + $0xe9] sm:$0xff]
      %v6476 = vld [vmem:[#allocation2 + $0xf1] sm:$0xff]
      %v6477 = vld [vmem:[#allocation2 + $0xf9] sm:$0xff]
      %v6478 = vld [vmem:[#allocation2 + $0x101] sm:$0xff]
      %v6479 = vpack.c.bf16 %v6448, %v6447
      %v6480 = vpack.c.bf16 %v6450, %v6449
      %v6481 = vpack.c.bf16 %v6452, %v6451
      %v6482 = vpack.c.bf16 %v6454, %v6453
      %v6483 = vpack.c.bf16 %v6456, %v6455
      %v6484 = vpack.c.bf16 %v6458, %v6457
      %v6485 = vpack.c.bf16 %v6460, %v6459
      %v6486 = vpack.c.bf16 %v6462, %v6461
      %v6487 = vpack.c.bf16 %v6464, %v6463
      %v6488 = vpack.c.bf16 %v6466, %v6465
      %v6489 = vpack.c.bf16 %v6468, %v6467
      %v6490 = vpack.c.bf16 %v6470, %v6469
      %v6491 = vpack.c.bf16 %v6472, %v6471
      %v6492 = vpack.c.bf16 %v6474, %v6473
      %v6493 = vpack.c.bf16 %v6476, %v6475
      %v6494 = vpack.c.bf16 %v6478, %v6477
      %v6495 = vld [vmem:[%s18 + $0x10] sm:$0xf]
      %v6496 = vld [vmem:[%s18 + $0x14] sm:$0xf]
      %v6497 = vld [vmem:[#allocation2 + $0x109] sm:$0xff]
      %v6498 = vld [vmem:[#allocation2 + $0x111] sm:$0xff]
      %v6499 = vpack.c.bf16 %v6498, %v6497
      %v6500 = vld [vmem:[%s18 + $0x28] sm:$0xf]
      %v6501 = vld [vmem:[%s18 + $0x2c] sm:$0xf]
      %v6504 = vunpack.c.l.b16 %v6500
      %v6505 = vunpack.c.l.b16 %v6501
      %v6506 = vpack.c.b16 %v6505, %v6504
      %v6509 = vsel %vm830, %v6480, 0
      %v6512 = vsel %vm830, %v6481, 0
      %v6515 = vsel %vm830, %v6482, 0
      %v6518 = vsel %vm830, %v6483, 0
      %v6521 = vsel %vm830, %v6484, 0
      %v6524 = vsel %vm830, %v6485, 0
      %v6527 = vsel %vm830, %v6486, 0
      %v6530 = vsel %vm830, %v6487, 0
      %v6533 = vsel %vm830, %v6488, 0
      %v6536 = vsel %vm830, %v6489, 0
      %v6539 = vsel %vm830, %v6490, 0
      %v6542 = vsel %vm830, %v6491, 0
      %v6545 = vsel %vm830, %v6492, 0
      %v6548 = vsel %vm830, %v6493, 0
      %v6551 = vsel %vm830, %v6494, 0
      %v6554 = vsel %vm830, %v6499, 0
      %6556 = vmatprep.subr.bf16.mxu0 0
      %6557 = vmatpush1.bf16.msra.mxu0 0
      %6558 = vmatprep.subr.bf16.mxu0 0
      %6559 = vmatpush1.bf16.msra.mxu0 0
      %6560 = vmatprep.subr.bf16.mxu0 0
      %6561 = vmatpush1.bf16.msra.mxu0 0
      %6562 = vmatprep.subr.bf16.mxu0 0
      %6563 = vmatpush1.bf16.msra.mxu0 0
      %6564 = vmatprep.subr.bf16.mxu0 0
      %6565 = vmatpush1.bf16.msra.mxu0 0
      %6566 = vmatprep.subr.bf16.mxu0 0
      %6567 = vmatpush1.bf16.msra.mxu0 0
      %6568 = vmatprep.subr.bf16.mxu0 0
      %6569 = vmatpush1.bf16.msra.mxu0 0
      %6570 = vmatprep.subr.bf16.mxu0 0
      %6571 = vmatpush1.bf16.msra.mxu0 %v6506
      %6572 = vmatprep.subr.bf16.mxu0 0
      %6573 = vmatpush2.bf16.msra.mxu0 0
      %6574 = vmatprep.subr.bf16.mxu0 0
      %6575 = vmatpush2.bf16.msra.mxu0 0
      %6576 = vmatprep.subr.bf16.mxu0 0
      %6577 = vmatpush2.bf16.msra.mxu0 0
      %6578 = vmatprep.subr.bf16.mxu0 0
      %6579 = vmatpush2.bf16.msra.mxu0 0
      %6580 = vmatprep.subr.bf16.mxu0 0
      %6581 = vmatpush2.bf16.msra.mxu0 0
      %6582 = vmatprep.subr.bf16.mxu0 0
      %6583 = vmatpush2.bf16.msra.mxu0 0
      %6584 = vmatprep.subr.bf16.mxu0 0
      %6585 = vmatpush2.bf16.msra.mxu0 0
      %6586 = vmatprep.subr.bf16.mxu0 0
      %6587 = vmatpush2.bf16.msra.mxu0 0
      %6588 = vmatprep.mubr.bf16.mxu0 0
      %6589 = vmatmul.mubr.bf16.gmra.mxu0 %v6509
      %v6590 = vpop.f32.mrf.mxu0
      %v6591 = vadd.f32 0.0, %v6590
      %v6592 = vpop.f32.mrf.mxu0
      %v6593 = vpop.f32.mrf.mxu0
      %v6594 = vadd.f32 0.0, %v6593
      %v6595 = vpop.f32.mrf.mxu0
      %6596 = vmatprep.mubr.bf16.mxu0 0
      %6597 = vmatmul.mubr.bf16.gmra.mxu0 %v6512
      %v6598 = vpop.f32.mrf.mxu0
      %v6599 = vadd.f32 0.0, %v6598
      %v6600 = vpop.f32.mrf.mxu0
      %v6601 = vpop.f32.mrf.mxu0
      %v6602 = vadd.f32 0.0, %v6601
      %v6603 = vpop.f32.mrf.mxu0
      %6604 = vmatprep.mubr.bf16.mxu0 0
      %6605 = vmatmul.mubr.bf16.gmra.mxu0 %v6515
      %v6606 = vpop.f32.mrf.mxu0
      %v6607 = vadd.f32 0.0, %v6606
      %v6608 = vpop.f32.mrf.mxu0
      %v6609 = vpop.f32.mrf.mxu0
      %v6610 = vadd.f32 0.0, %v6609
      %v6611 = vpop.f32.mrf.mxu0
      %6612 = vmatprep.mubr.bf16.mxu0 0
      %6613 = vmatmul.mubr.bf16.gmra.mxu0 %v6518
      %v6614 = vpop.f32.mrf.mxu0
      %v6615 = vadd.f32 0.0, %v6614
      %v6616 = vpop.f32.mrf.mxu0
      %v6617 = vpop.f32.mrf.mxu0
      %v6618 = vadd.f32 0.0, %v6617
      %v6619 = vpop.f32.mrf.mxu0
      %6620 = vmatprep.mubr.bf16.mxu0 0
      %6621 = vmatmul.mubr.bf16.gmra.mxu0 %v6521
      %v6622 = vpop.f32.mrf.mxu0
      %v6623 = vadd.f32 0.0, %v6622
      %v6624 = vpop.f32.mrf.mxu0
      %v6625 = vpop.f32.mrf.mxu0
      %v6626 = vadd.f32 0.0, %v6625
      %v6627 = vpop.f32.mrf.mxu0
      %6628 = vmatprep.mubr.bf16.mxu0 0
      %6629 = vmatmul.mubr.bf16.gmra.mxu0 %v6524
      %v6630 = vpop.f32.mrf.mxu0
      %v6631 = vadd.f32 0.0, %v6630
      %v6632 = vpop.f32.mrf.mxu0
      %v6633 = vpop.f32.mrf.mxu0
      %v6634 = vadd.f32 0.0, %v6633
      %v6635 = vpop.f32.mrf.mxu0
      %6636 = vmatprep.mubr.bf16.mxu0 0
      %6637 = vmatmul.mubr.bf16.gmra.mxu0 %v6527
      %v6638 = vpop.f32.mrf.mxu0
      %v6639 = vadd.f32 0.0, %v6638
      %v6640 = vpop.f32.mrf.mxu0
      %v6641 = vpop.f32.mrf.mxu0
      %v6642 = vadd.f32 0.0, %v6641
      %v6643 = vpop.f32.mrf.mxu0
      %6644 = vmatprep.mubr.bf16.mxu0 0
      %6645 = vmatmul.mubr.bf16.gmra.mxu0 %v6530
      %v6646 = vpop.f32.mrf.mxu0
      %v6647 = vadd.f32 0.0, %v6646
      %v6648 = vpop.f32.mrf.mxu0
      %v6649 = vpop.f32.mrf.mxu0
      %v6650 = vadd.f32 0.0, %v6649
      %v6651 = vpop.f32.mrf.mxu0
      %6652 = vmatprep.mubr.bf16.mxu0 0
      %6653 = vmatmul.mubr.bf16.gmra.mxu0 %v6533
      %v6654 = vpop.f32.mrf.mxu0
      %v6655 = vadd.f32 0.0, %v6654
      %v6656 = vpop.f32.mrf.mxu0
      %v6657 = vpop.f32.mrf.mxu0
      %v6658 = vadd.f32 0.0, %v6657
      %v6659 = vpop.f32.mrf.mxu0
      %6660 = vmatprep.mubr.bf16.mxu0 0
      %6661 = vmatmul.mubr.bf16.gmra.mxu0 %v6536
      %v6662 = vpop.f32.mrf.mxu0
      %v6663 = vadd.f32 0.0, %v6662
      %v6664 = vpop.f32.mrf.mxu0
      %v6665 = vpop.f32.mrf.mxu0
      %v6666 = vadd.f32 0.0, %v6665
      %v6667 = vpop.f32.mrf.mxu0
      %6668 = vmatprep.mubr.bf16.mxu0 0
      %6669 = vmatmul.mubr.bf16.gmra.mxu0 %v6539
      %v6670 = vpop.f32.mrf.mxu0
      %v6671 = vadd.f32 0.0, %v6670
      %v6672 = vpop.f32.mrf.mxu0
      %v6673 = vpop.f32.mrf.mxu0
      %v6674 = vadd.f32 0.0, %v6673
      %v6675 = vpop.f32.mrf.mxu0
      %6676 = vmatprep.mubr.bf16.mxu0 0
      %6677 = vmatmul.mubr.bf16.gmra.mxu0 %v6542
      %v6678 = vpop.f32.mrf.mxu0
      %v6679 = vadd.f32 0.0, %v6678
      %v6680 = vpop.f32.mrf.mxu0
      %v6681 = vpop.f32.mrf.mxu0
      %v6682 = vadd.f32 0.0, %v6681
      %v6683 = vpop.f32.mrf.mxu0
      %6684 = vmatprep.mubr.bf16.mxu0 0
      %6685 = vmatmul.mubr.bf16.gmra.mxu0 %v6545
      %v6686 = vpop.f32.mrf.mxu0
      %v6687 = vadd.f32 0.0, %v6686
      %v6688 = vpop.f32.mrf.mxu0
      %v6689 = vpop.f32.mrf.mxu0
      %v6690 = vadd.f32 0.0, %v6689
      %v6691 = vpop.f32.mrf.mxu0
      %6692 = vmatprep.mubr.bf16.mxu0 0
      %6693 = vmatmul.mubr.bf16.gmra.mxu0 %v6548
      %v6694 = vpop.f32.mrf.mxu0
      %v6695 = vadd.f32 0.0, %v6694
      %v6696 = vpop.f32.mrf.mxu0
      %v6697 = vpop.f32.mrf.mxu0
      %v6698 = vadd.f32 0.0, %v6697
      %v6699 = vpop.f32.mrf.mxu0
      %6700 = vmatprep.mubr.bf16.mxu0 0
      %6701 = vmatmul.mubr.bf16.gmra.mxu0 %v6551
      %v6702 = vpop.f32.mrf.mxu0
      %v6703 = vadd.f32 0.0, %v6702
      %v6704 = vpop.f32.mrf.mxu0
      %v6705 = vpop.f32.mrf.mxu0
      %v6706 = vadd.f32 0.0, %v6705
      %v6707 = vpop.f32.mrf.mxu0
      %6708 = vmatprep.mubr.bf16.mxu0 0
      %6709 = vmatmul.mubr.bf16.gmra.mxu0 %v6554
      %v6710 = vpop.f32.mrf.mxu0
      %v6711 = vadd.f32 0.0, %v6710
      %v6712 = vpop.f32.mrf.mxu0
      %v6713 = vpop.f32.mrf.mxu0
      %v6714 = vadd.f32 0.0, %v6713
      %v6715 = vpop.f32.mrf.mxu0
      %6716 = vdwg.mxu0
      %v6719 = vunpack.c.l.b16 %v6495
      %v6720 = vunpack.c.l.b16 %v6496
      %v6721 = vpack.c.b16 %v6720, %v6719
      %v6724 = vsel %vm830, %v6479, 0
      %6726 = vmatprep.subr.bf16.mxu0 0
      %6727 = vmatpush1.bf16.msra.mxu0 0
      %6728 = vmatprep.subr.bf16.mxu0 0
      %6729 = vmatpush1.bf16.msra.mxu0 0
      %6730 = vmatprep.subr.bf16.mxu0 0
      %6731 = vmatpush1.bf16.msra.mxu0 0
      %6732 = vmatprep.subr.bf16.mxu0 0
      %6733 = vmatpush1.bf16.msra.mxu0 0
      %6734 = vmatprep.subr.bf16.mxu0 0
      %6735 = vmatpush1.bf16.msra.mxu0 0
      %6736 = vmatprep.subr.bf16.mxu0 0
      %6737 = vmatpush1.bf16.msra.mxu0 0
      %6738 = vmatprep.subr.bf16.mxu0 0
      %6739 = vmatpush1.bf16.msra.mxu0 0
      %6740 = vmatprep.subr.bf16.mxu0 0
      %6741 = vmatpush1.bf16.msra.mxu0 %v6721
      %6742 = vmatprep.subr.bf16.mxu0 0
      %6743 = vmatpush2.bf16.msra.mxu0 0
      %6744 = vmatprep.subr.bf16.mxu0 0
      %6745 = vmatpush2.bf16.msra.mxu0 0
      %6746 = vmatprep.subr.bf16.mxu0 0
      %6747 = vmatpush2.bf16.msra.mxu0 0
      %6748 = vmatprep.subr.bf16.mxu0 0
      %6749 = vmatpush2.bf16.msra.mxu0 0
      %6750 = vmatprep.subr.bf16.mxu0 0
      %6751 = vmatpush2.bf16.msra.mxu0 0
      %6752 = vmatprep.subr.bf16.mxu0 0
      %6753 = vmatpush2.bf16.msra.mxu0 0
      %6754 = vmatprep.subr.bf16.mxu0 0
      %6755 = vmatpush2.bf16.msra.mxu0 0
      %6756 = vmatprep.subr.bf16.mxu0 0
      %6757 = vmatpush2.bf16.msra.mxu0 0
      %6758 = vmatprep.mubr.bf16.mxu0 0
      %6759 = vmatmul.mubr.bf16.gmra.mxu0 %v6724
      %v6760 = vpop.f32.mrf.mxu0
      %v6761 = vadd.f32 %v6591, %v6760
      %v6762 = vpop.f32.mrf.mxu0
      %v6763 = vpop.f32.mrf.mxu0
      %v6764 = vadd.f32 %v6594, %v6763
      %v6765 = vpop.f32.mrf.mxu0
      %6766 = vmatprep.mubr.bf16.mxu0 0
      %6767 = vmatmul.mubr.bf16.gmra.mxu0 %v6509
      %v6768 = vpop.f32.mrf.mxu0
      %v6769 = vadd.f32 %v6599, %v6768
      %v6770 = vpop.f32.mrf.mxu0
      %v6771 = vpop.f32.mrf.mxu0
      %v6772 = vadd.f32 %v6602, %v6771
      %v6773 = vpop.f32.mrf.mxu0
      %6774 = vmatprep.mubr.bf16.mxu0 0
      %6775 = vmatmul.mubr.bf16.gmra.mxu0 %v6512
      %v6776 = vpop.f32.mrf.mxu0
      %v6777 = vadd.f32 %v6607, %v6776
      %v6778 = vpop.f32.mrf.mxu0
      %v6779 = vpop.f32.mrf.mxu0
      %v6780 = vadd.f32 %v6610, %v6779
      %v6781 = vpop.f32.mrf.mxu0
      %6782 = vmatprep.mubr.bf16.mxu0 0
      %6783 = vmatmul.mubr.bf16.gmra.mxu0 %v6515
      %v6784 = vpop.f32.mrf.mxu0
      %v6785 = vadd.f32 %v6615, %v6784
      %v6786 = vpop.f32.mrf.mxu0
      %v6787 = vpop.f32.mrf.mxu0
      %v6788 = vadd.f32 %v6618, %v6787
      %v6789 = vpop.f32.mrf.mxu0
      %6790 = vmatprep.mubr.bf16.mxu0 0
      %6791 = vmatmul.mubr.bf16.gmra.mxu0 %v6518
      %v6792 = vpop.f32.mrf.mxu0
      %v6793 = vadd.f32 %v6623, %v6792
      %v6794 = vpop.f32.mrf.mxu0
      %v6795 = vpop.f32.mrf.mxu0
      %v6796 = vadd.f32 %v6626, %v6795
      %v6797 = vpop.f32.mrf.mxu0
      %6798 = vmatprep.mubr.bf16.mxu0 0
      %6799 = vmatmul.mubr.bf16.gmra.mxu0 %v6521
      %v6800 = vpop.f32.mrf.mxu0
      %v6801 = vadd.f32 %v6631, %v6800
      %v6802 = vpop.f32.mrf.mxu0
      %v6803 = vpop.f32.mrf.mxu0
      %v6804 = vadd.f32 %v6634, %v6803
      %v6805 = vpop.f32.mrf.mxu0
      %6806 = vmatprep.mubr.bf16.mxu0 0
      %6807 = vmatmul.mubr.bf16.gmra.mxu0 %v6524
      %v6808 = vpop.f32.mrf.mxu0
      %v6809 = vadd.f32 %v6639, %v6808
      %v6810 = vpop.f32.mrf.mxu0
      %v6811 = vpop.f32.mrf.mxu0
      %v6812 = vadd.f32 %v6642, %v6811
      %v6813 = vpop.f32.mrf.mxu0
      %6814 = vmatprep.mubr.bf16.mxu0 0
      %6815 = vmatmul.mubr.bf16.gmra.mxu0 %v6527
      %v6816 = vpop.f32.mrf.mxu0
      %v6817 = vadd.f32 %v6647, %v6816
      %v6818 = vpop.f32.mrf.mxu0
      %v6819 = vpop.f32.mrf.mxu0
      %v6820 = vadd.f32 %v6650, %v6819
      %v6821 = vpop.f32.mrf.mxu0
      %6822 = vmatprep.mubr.bf16.mxu0 0
      %6823 = vmatmul.mubr.bf16.gmra.mxu0 %v6530
      %v6824 = vpop.f32.mrf.mxu0
      %v6825 = vadd.f32 %v6655, %v6824
      %v6826 = vpop.f32.mrf.mxu0
      %v6827 = vpop.f32.mrf.mxu0
      %v6828 = vadd.f32 %v6658, %v6827
      %v6829 = vpop.f32.mrf.mxu0
      %6830 = vmatprep.mubr.bf16.mxu0 0
      %6831 = vmatmul.mubr.bf16.gmra.mxu0 %v6533
      %v6832 = vpop.f32.mrf.mxu0
      %v6833 = vadd.f32 %v6663, %v6832
      %v6834 = vpop.f32.mrf.mxu0
      %v6835 = vpop.f32.mrf.mxu0
      %v6836 = vadd.f32 %v6666, %v6835
      %v6837 = vpop.f32.mrf.mxu0
      %6838 = vmatprep.mubr.bf16.mxu0 0
      %6839 = vmatmul.mubr.bf16.gmra.mxu0 %v6536
      %v6840 = vpop.f32.mrf.mxu0
      %v6841 = vadd.f32 %v6671, %v6840
      %v6842 = vpop.f32.mrf.mxu0
      %v6843 = vpop.f32.mrf.mxu0
      %v6844 = vadd.f32 %v6674, %v6843
      %v6845 = vpop.f32.mrf.mxu0
      %6846 = vmatprep.mubr.bf16.mxu0 0
      %6847 = vmatmul.mubr.bf16.gmra.mxu0 %v6539
      %v6848 = vpop.f32.mrf.mxu0
      %v6849 = vadd.f32 %v6679, %v6848
      %v6850 = vpop.f32.mrf.mxu0
      %v6851 = vpop.f32.mrf.mxu0
      %v6852 = vadd.f32 %v6682, %v6851
      %v6853 = vpop.f32.mrf.mxu0
      %6854 = vmatprep.mubr.bf16.mxu0 0
      %6855 = vmatmul.mubr.bf16.gmra.mxu0 %v6542
      %v6856 = vpop.f32.mrf.mxu0
      %v6857 = vadd.f32 %v6687, %v6856
      %v6858 = vpop.f32.mrf.mxu0
      %v6859 = vpop.f32.mrf.mxu0
      %v6860 = vadd.f32 %v6690, %v6859
      %v6861 = vpop.f32.mrf.mxu0
      %6862 = vmatprep.mubr.bf16.mxu0 0
      %6863 = vmatmul.mubr.bf16.gmra.mxu0 %v6545
      %v6864 = vpop.f32.mrf.mxu0
      %v6865 = vadd.f32 %v6695, %v6864
      %v6866 = vpop.f32.mrf.mxu0
      %v6867 = vpop.f32.mrf.mxu0
      %v6868 = vadd.f32 %v6698, %v6867
      %v6869 = vpop.f32.mrf.mxu0
      %6870 = vmatprep.mubr.bf16.mxu0 0
      %6871 = vmatmul.mubr.bf16.gmra.mxu0 %v6548
      %v6872 = vpop.f32.mrf.mxu0
      %v6873 = vadd.f32 %v6703, %v6872
      %v6874 = vpop.f32.mrf.mxu0
      %v6875 = vpop.f32.mrf.mxu0
      %v6876 = vadd.f32 %v6706, %v6875
      %v6877 = vpop.f32.mrf.mxu0
      %6878 = vmatprep.mubr.bf16.mxu0 0
      %6879 = vmatmul.mubr.bf16.gmra.mxu0 %v6551
      %v6880 = vpop.f32.mrf.mxu0
      %v6881 = vadd.f32 %v6711, %v6880
      %v6882 = vpop.f32.mrf.mxu0
      %v6883 = vpop.f32.mrf.mxu0
      %v6884 = vadd.f32 %v6714, %v6883
      %v6885 = vpop.f32.mrf.mxu0
      %6886 = vdwg.mxu0
      %v6887 = vld [vmem:[#allocation2 + $0x29] sm:$0xff]
      %v6888 = vld [vmem:[#allocation2 + $0x31] sm:$0xff]
      %v6889 = vld [vmem:[#allocation2 + $0x39] sm:$0xff]
      %v6890 = vld [vmem:[#allocation2 + $0x41] sm:$0xff]
      %v6891 = vld [vmem:[#allocation2 + $0x49] sm:$0xff]
      %v6892 = vld [vmem:[#allocation2 + $0x51] sm:$0xff]
      %v6893 = vld [vmem:[#allocation2 + $0x59] sm:$0xff]
      %v6894 = vld [vmem:[#allocation2 + $0x61] sm:$0xff]
      %v6895 = vld [vmem:[#allocation2 + $0x69] sm:$0xff]
      %v6896 = vld [vmem:[#allocation2 + $0x71] sm:$0xff]
      %v6897 = vld [vmem:[#allocation2 + $0x79] sm:$0xff]
      %v6898 = vld [vmem:[#allocation2 + $0x81] sm:$0xff]
      %v6899 = vld [vmem:[#allocation2 + $0x89] sm:$0xff]
      %v6900 = vld [vmem:[#allocation2 + $0x91] sm:$0xff]
      %v6901 = vld [vmem:[#allocation2 + $0x99] sm:$0xff]
      %v6902 = vld [vmem:[#allocation2 + $0xa1] sm:$0xff]
      %v6903 = vld [vmem:[#allocation2 + $0xa9] sm:$0xff]
      %v6904 = vld [vmem:[#allocation2 + $0xb1] sm:$0xff]
      %v6905 = vld [vmem:[#allocation2 + $0xb9] sm:$0xff]
      %v6906 = vld [vmem:[#allocation2 + $0xc1] sm:$0xff]
      %v6907 = vld [vmem:[#allocation2 + $0xc9] sm:$0xff]
      %v6908 = vld [vmem:[#allocation2 + $0xd1] sm:$0xff]
      %v6909 = vld [vmem:[#allocation2 + $0xd9] sm:$0xff]
      %v6910 = vld [vmem:[#allocation2 + $0xe1] sm:$0xff]
      %v6911 = vld [vmem:[#allocation2 + $0xe9] sm:$0xff]
      %v6912 = vld [vmem:[#allocation2 + $0xf1] sm:$0xff]
      %v6913 = vld [vmem:[#allocation2 + $0xf9] sm:$0xff]
      %v6914 = vld [vmem:[#allocation2 + $0x101] sm:$0xff]
      %v6915 = vld [vmem:[#allocation2 + $0x109] sm:$0xff]
      %v6916 = vld [vmem:[#allocation2 + $0x111] sm:$0xff]
      %v6917 = vld [vmem:[#allocation2 + $0x119] sm:$0xff]
      %v6918 = vld [vmem:[#allocation2 + $0x121] sm:$0xff]
      %v6919 = vpack.c.bf16 %v6888, %v6887
      %v6920 = vpack.c.bf16 %v6890, %v6889
      %v6921 = vpack.c.bf16 %v6892, %v6891
      %v6922 = vpack.c.bf16 %v6894, %v6893
      %v6923 = vpack.c.bf16 %v6896, %v6895
      %v6924 = vpack.c.bf16 %v6898, %v6897
      %v6925 = vpack.c.bf16 %v6900, %v6899
      %v6926 = vpack.c.bf16 %v6902, %v6901
      %v6927 = vpack.c.bf16 %v6904, %v6903
      %v6928 = vpack.c.bf16 %v6906, %v6905
      %v6929 = vpack.c.bf16 %v6908, %v6907
      %v6930 = vpack.c.bf16 %v6910, %v6909
      %v6931 = vpack.c.bf16 %v6912, %v6911
      %v6932 = vpack.c.bf16 %v6914, %v6913
      %v6933 = vpack.c.bf16 %v6916, %v6915
      %v6934 = vpack.c.bf16 %v6918, %v6917
      %v6935 = vld [vmem:[%s18 + $0x40] sm:$0xf]
      %v6936 = vld [vmem:[%s18 + $0x44] sm:$0xf]
      %v6939 = vunpack.c.l.b16 %v6935
      %v6940 = vunpack.c.l.b16 %v6936
      %v6941 = vpack.c.b16 %v6940, %v6939
      %v6944 = vsel %vm830, %v6919, 0
      %v6947 = vsel %vm830, %v6920, 0
      %v6950 = vsel %vm830, %v6921, 0
      %v6953 = vsel %vm830, %v6922, 0
      %v6956 = vsel %vm830, %v6923, 0
      %v6959 = vsel %vm830, %v6924, 0
      %v6962 = vsel %vm830, %v6925, 0
      %v6965 = vsel %vm830, %v6926, 0
      %v6968 = vsel %vm830, %v6927, 0
      %v6971 = vsel %vm830, %v6928, 0
      %v6974 = vsel %vm830, %v6929, 0
      %v6977 = vsel %vm830, %v6930, 0
      %v6980 = vsel %vm830, %v6931, 0
      %v6983 = vsel %vm830, %v6932, 0
      %v6986 = vsel %vm830, %v6933, 0
      %v6989 = vsel %vm830, %v6934, 0
      %6991 = vmatprep.subr.bf16.mxu0 0
      %6992 = vmatpush1.bf16.msra.mxu0 0
      %6993 = vmatprep.subr.bf16.mxu0 0
      %6994 = vmatpush1.bf16.msra.mxu0 0
      %6995 = vmatprep.subr.bf16.mxu0 0
      %6996 = vmatpush1.bf16.msra.mxu0 0
      %6997 = vmatprep.subr.bf16.mxu0 0
      %6998 = vmatpush1.bf16.msra.mxu0 0
      %6999 = vmatprep.subr.bf16.mxu0 0
      %7000 = vmatpush1.bf16.msra.mxu0 0
      %7001 = vmatprep.subr.bf16.mxu0 0
      %7002 = vmatpush1.bf16.msra.mxu0 0
      %7003 = vmatprep.subr.bf16.mxu0 0
      %7004 = vmatpush1.bf16.msra.mxu0 0
      %7005 = vmatprep.subr.bf16.mxu0 0
      %7006 = vmatpush1.bf16.msra.mxu0 %v6941
      %7007 = vmatprep.subr.bf16.mxu0 0
      %7008 = vmatpush2.bf16.msra.mxu0 0
      %7009 = vmatprep.subr.bf16.mxu0 0
      %7010 = vmatpush2.bf16.msra.mxu0 0
      %7011 = vmatprep.subr.bf16.mxu0 0
      %7012 = vmatpush2.bf16.msra.mxu0 0
      %7013 = vmatprep.subr.bf16.mxu0 0
      %7014 = vmatpush2.bf16.msra.mxu0 0
      %7015 = vmatprep.subr.bf16.mxu0 0
      %7016 = vmatpush2.bf16.msra.mxu0 0
      %7017 = vmatprep.subr.bf16.mxu0 0
      %7018 = vmatpush2.bf16.msra.mxu0 0
      %7019 = vmatprep.subr.bf16.mxu0 0
      %7020 = vmatpush2.bf16.msra.mxu0 0
      %7021 = vmatprep.subr.bf16.mxu0 0
      %7022 = vmatpush2.bf16.msra.mxu0 0
      %7023 = vmatprep.mubr.bf16.mxu0 0
      %7024 = vmatmul.mubr.bf16.gmra.mxu0 %v6944
      %v7025 = vpop.f32.mrf.mxu0
      %v7026 = vadd.f32 0.0, %v7025
      %v7027 = vpop.f32.mrf.mxu0
      %v7028 = vpop.f32.mrf.mxu0
      %v7029 = vadd.f32 0.0, %v7028
      %v7030 = vpop.f32.mrf.mxu0
      %7031 = vmatprep.mubr.bf16.mxu0 0
      %7032 = vmatmul.mubr.bf16.gmra.mxu0 %v6947
      %v7033 = vpop.f32.mrf.mxu0
      %v7034 = vadd.f32 0.0, %v7033
      %v7035 = vpop.f32.mrf.mxu0
      %v7036 = vpop.f32.mrf.mxu0
      %v7037 = vadd.f32 0.0, %v7036
      %v7038 = vpop.f32.mrf.mxu0
      %7039 = vmatprep.mubr.bf16.mxu0 0
      %7040 = vmatmul.mubr.bf16.gmra.mxu0 %v6950
      %v7041 = vpop.f32.mrf.mxu0
      %v7042 = vadd.f32 0.0, %v7041
      %v7043 = vpop.f32.mrf.mxu0
      %v7044 = vpop.f32.mrf.mxu0
      %v7045 = vadd.f32 0.0, %v7044
      %v7046 = vpop.f32.mrf.mxu0
      %7047 = vmatprep.mubr.bf16.mxu0 0
      %7048 = vmatmul.mubr.bf16.gmra.mxu0 %v6953
      %v7049 = vpop.f32.mrf.mxu0
      %v7050 = vadd.f32 0.0, %v7049
      %v7051 = vpop.f32.mrf.mxu0
      %v7052 = vpop.f32.mrf.mxu0
      %v7053 = vadd.f32 0.0, %v7052
      %v7054 = vpop.f32.mrf.mxu0
      %7055 = vmatprep.mubr.bf16.mxu0 0
      %7056 = vmatmul.mubr.bf16.gmra.mxu0 %v6956
      %v7057 = vpop.f32.mrf.mxu0
      %v7058 = vadd.f32 0.0, %v7057
      %v7059 = vpop.f32.mrf.mxu0
      %v7060 = vpop.f32.mrf.mxu0
      %v7061 = vadd.f32 0.0, %v7060
      %v7062 = vpop.f32.mrf.mxu0
      %7063 = vmatprep.mubr.bf16.mxu0 0
      %7064 = vmatmul.mubr.bf16.gmra.mxu0 %v6959
      %v7065 = vpop.f32.mrf.mxu0
      %v7066 = vadd.f32 0.0, %v7065
      %v7067 = vpop.f32.mrf.mxu0
      %v7068 = vpop.f32.mrf.mxu0
      %v7069 = vadd.f32 0.0, %v7068
      %v7070 = vpop.f32.mrf.mxu0
      %7071 = vmatprep.mubr.bf16.mxu0 0
      %7072 = vmatmul.mubr.bf16.gmra.mxu0 %v6962
      %v7073 = vpop.f32.mrf.mxu0
      %v7074 = vadd.f32 0.0, %v7073
      %v7075 = vpop.f32.mrf.mxu0
      %v7076 = vpop.f32.mrf.mxu0
      %v7077 = vadd.f32 0.0, %v7076
      %v7078 = vpop.f32.mrf.mxu0
      %7079 = vmatprep.mubr.bf16.mxu0 0
      %7080 = vmatmul.mubr.bf16.gmra.mxu0 %v6965
      %v7081 = vpop.f32.mrf.mxu0
      %v7082 = vadd.f32 0.0, %v7081
      %v7083 = vpop.f32.mrf.mxu0
      %v7084 = vpop.f32.mrf.mxu0
      %v7085 = vadd.f32 0.0, %v7084
      %v7086 = vpop.f32.mrf.mxu0
      %7087 = vmatprep.mubr.bf16.mxu0 0
      %7088 = vmatmul.mubr.bf16.gmra.mxu0 %v6968
      %v7089 = vpop.f32.mrf.mxu0
      %v7090 = vadd.f32 0.0, %v7089
      %v7091 = vpop.f32.mrf.mxu0
      %v7092 = vpop.f32.mrf.mxu0
      %v7093 = vadd.f32 0.0, %v7092
      %v7094 = vpop.f32.mrf.mxu0
      %7095 = vmatprep.mubr.bf16.mxu0 0
      %7096 = vmatmul.mubr.bf16.gmra.mxu0 %v6971
      %v7097 = vpop.f32.mrf.mxu0
      %v7098 = vadd.f32 0.0, %v7097
      %v7099 = vpop.f32.mrf.mxu0
      %v7100 = vpop.f32.mrf.mxu0
      %v7101 = vadd.f32 0.0, %v7100
      %v7102 = vpop.f32.mrf.mxu0
      %7103 = vmatprep.mubr.bf16.mxu0 0
      %7104 = vmatmul.mubr.bf16.gmra.mxu0 %v6974
      %v7105 = vpop.f32.mrf.mxu0
      %v7106 = vadd.f32 0.0, %v7105
      %v7107 = vpop.f32.mrf.mxu0
      %v7108 = vpop.f32.mrf.mxu0
      %v7109 = vadd.f32 0.0, %v7108
      %v7110 = vpop.f32.mrf.mxu0
      %7111 = vmatprep.mubr.bf16.mxu0 0
      %7112 = vmatmul.mubr.bf16.gmra.mxu0 %v6977
      %v7113 = vpop.f32.mrf.mxu0
      %v7114 = vadd.f32 0.0, %v7113
      %v7115 = vpop.f32.mrf.mxu0
      %v7116 = vpop.f32.mrf.mxu0
      %v7117 = vadd.f32 0.0, %v7116
      %v7118 = vpop.f32.mrf.mxu0
      %7119 = vmatprep.mubr.bf16.mxu0 0
      %7120 = vmatmul.mubr.bf16.gmra.mxu0 %v6980
      %v7121 = vpop.f32.mrf.mxu0
      %v7122 = vadd.f32 0.0, %v7121
      %v7123 = vpop.f32.mrf.mxu0
      %v7124 = vpop.f32.mrf.mxu0
      %v7125 = vadd.f32 0.0, %v7124
      %v7126 = vpop.f32.mrf.mxu0
      %7127 = vmatprep.mubr.bf16.mxu0 0
      %7128 = vmatmul.mubr.bf16.gmra.mxu0 %v6983
      %v7129 = vpop.f32.mrf.mxu0
      %v7130 = vadd.f32 0.0, %v7129
      %v7131 = vpop.f32.mrf.mxu0
      %v7132 = vpop.f32.mrf.mxu0
      %v7133 = vadd.f32 0.0, %v7132
      %v7134 = vpop.f32.mrf.mxu0
      %7135 = vmatprep.mubr.bf16.mxu0 0
      %7136 = vmatmul.mubr.bf16.gmra.mxu0 %v6986
      %v7137 = vpop.f32.mrf.mxu0
      %v7138 = vadd.f32 0.0, %v7137
      %v7139 = vpop.f32.mrf.mxu0
      %v7140 = vpop.f32.mrf.mxu0
      %v7141 = vadd.f32 0.0, %v7140
      %v7142 = vpop.f32.mrf.mxu0
      %7143 = vmatprep.mubr.bf16.mxu0 0
      %7144 = vmatmul.mubr.bf16.gmra.mxu0 %v6989
      %v7145 = vpop.f32.mrf.mxu0
      %v7146 = vadd.f32 0.0, %v7145
      %v7147 = vpop.f32.mrf.mxu0
      %v7148 = vpop.f32.mrf.mxu0
      %v7149 = vadd.f32 0.0, %v7148
      %v7150 = vpop.f32.mrf.mxu0
      %7151 = vdwg.mxu0
      %v7152 = vadd.f32 %v6761, %v7026
      %v7153 = vadd.f32 %v6764, %v7029
      %v7154 = vadd.f32 %v6769, %v7034
      %v7155 = vadd.f32 %v6772, %v7037
      %v7156 = vadd.f32 %v6777, %v7042
      %v7157 = vadd.f32 %v6780, %v7045
      %v7158 = vadd.f32 %v6785, %v7050
      %v7159 = vadd.f32 %v6788, %v7053
      %v7160 = vadd.f32 %v6793, %v7058
      %v7161 = vadd.f32 %v6796, %v7061
      %v7162 = vadd.f32 %v6801, %v7066
      %v7163 = vadd.f32 %v6804, %v7069
      %v7164 = vadd.f32 %v6809, %v7074
      %v7165 = vadd.f32 %v6812, %v7077
      %v7166 = vadd.f32 %v6817, %v7082
      %v7167 = vadd.f32 %v6820, %v7085
      %v7168 = vadd.f32 %v6825, %v7090
      %v7169 = vadd.f32 %v6828, %v7093
      %v7170 = vadd.f32 %v6833, %v7098
      %v7171 = vadd.f32 %v6836, %v7101
      %v7172 = vadd.f32 %v6841, %v7106
      %v7173 = vadd.f32 %v6844, %v7109
      %v7174 = vadd.f32 %v6849, %v7114
      %v7175 = vadd.f32 %v6852, %v7117
      %v7176 = vadd.f32 %v6857, %v7122
      %v7177 = vadd.f32 %v6860, %v7125
      %v7178 = vadd.f32 %v6865, %v7130
      %v7179 = vadd.f32 %v6868, %v7133
      %v7180 = vadd.f32 %v6873, %v7138
      %v7181 = vadd.f32 %v6876, %v7141
      %v7182 = vadd.f32 %v6881, %v7146
      %v7183 = vadd.f32 %v6884, %v7149
      %v7184 = vmul.f32 %v7152, %v3829
      %v7185 = vmul.f32 %v7153, %v3834
      %v7186 = vmul.f32 %v7154, %v3839
      %v7187 = vmul.f32 %v7155, %v3844
      %v7188 = vmul.f32 %v7156, %v3849
      %v7189 = vmul.f32 %v7157, %v3854
      %v7190 = vmul.f32 %v7158, %v3859
      %v7191 = vmul.f32 %v7159, %v3864
      %v7192 = vmul.f32 %v7160, %v3869
      %v7193 = vmul.f32 %v7161, %v3874
      %v7194 = vmul.f32 %v7162, %v3879
      %v7195 = vmul.f32 %v7163, %v3884
      %v7196 = vmul.f32 %v7164, %v3889
      %v7197 = vmul.f32 %v7165, %v3894
      %v7198 = vmul.f32 %v7166, %v3899
      %v7199 = vmul.f32 %v7167, %v3904
      %v7200 = vmul.f32 %v7168, %v3909
      %v7201 = vmul.f32 %v7169, %v3914
      %v7202 = vmul.f32 %v7170, %v3919
      %v7203 = vmul.f32 %v7171, %v3924
      %v7204 = vmul.f32 %v7172, %v3929
      %v7205 = vmul.f32 %v7173, %v3934
      %v7206 = vmul.f32 %v7174, %v3939
      %v7207 = vmul.f32 %v7175, %v3944
      %v7208 = vmul.f32 %v7176, %v3949
      %v7209 = vmul.f32 %v7177, %v3954
      %v7210 = vmul.f32 %v7178, %v3959
      %v7211 = vmul.f32 %v7179, %v3964
      %v7212 = vmul.f32 %v7180, %v3969
      %v7213 = vmul.f32 %v7181, %v3974
      %v7214 = vmul.f32 %v7182, %v3979
      %v7215 = vmul.f32 %v7183, %v3984
      %v7216 = vadd.f32 %v6415, %v7184
      %v7217 = vadd.f32 %v6416, %v7185
      %v7218 = vadd.f32 %v6417, %v7186
      %v7219 = vadd.f32 %v6418, %v7187
      %v7220 = vadd.f32 %v6419, %v7188
      %v7221 = vadd.f32 %v6420, %v7189
      %v7222 = vadd.f32 %v6421, %v7190
      %v7223 = vadd.f32 %v6422, %v7191
      %v7224 = vadd.f32 %v6423, %v7192
      %v7225 = vadd.f32 %v6424, %v7193
      %v7226 = vadd.f32 %v6425, %v7194
      %v7227 = vadd.f32 %v6426, %v7195
      %v7228 = vadd.f32 %v6427, %v7196
      %v7229 = vadd.f32 %v6428, %v7197
      %v7230 = vadd.f32 %v6429, %v7198
      %v7231 = vadd.f32 %v6430, %v7199
      %v7232 = vadd.f32 %v6431, %v7200
      %v7233 = vadd.f32 %v6432, %v7201
      %v7234 = vadd.f32 %v6433, %v7202
      %v7235 = vadd.f32 %v6434, %v7203
      %v7236 = vadd.f32 %v6435, %v7204
      %v7237 = vadd.f32 %v6436, %v7205
      %v7238 = vadd.f32 %v6437, %v7206
      %v7239 = vadd.f32 %v6438, %v7207
      %v7240 = vadd.f32 %v6439, %v7208
      %v7241 = vadd.f32 %v6440, %v7209
      %v7242 = vadd.f32 %v6441, %v7210
      %v7243 = vadd.f32 %v6442, %v7211
      %v7244 = vadd.f32 %v6443, %v7212
      %v7245 = vadd.f32 %v6444, %v7213
      %v7246 = vadd.f32 %v6445, %v7214
      %v7247 = vadd.f32 %v6446, %v7215
      %v7248 = vpack.c.bf16 %v838, %v837
      %v7249 = vpack.c.bf16 %v840, %v839
      %v7250 = vpack.c.bf16 %v842, %v841
      %v7251 = vpack.c.bf16 %v844, %v843
      %v7252 = vpack.c.bf16 %v846, %v845
      %v7253 = vpack.c.bf16 %v848, %v847
      %v7254 = vpack.c.bf16 %v850, %v849
      %v7255 = vpack.c.bf16 %v852, %v851
      %v7256 = vpack.c.bf16 %v854, %v853
      %v7257 = vpack.c.bf16 %v856, %v855
      %v7258 = vpack.c.bf16 %v858, %v857
      %v7259 = vpack.c.bf16 %v860, %v859
      %v7260 = vpack.c.bf16 %v862, %v861
      %v7261 = vpack.c.bf16 %v864, %v863
      %v7262 = vpack.c.bf16 %v866, %v865
      %v7263 = vpack.c.bf16 %v868, %v867
      %v7264 = vld [vmem:[%s20] sm:$0x3]
      %v7265 = vpack.c.bf16 %v4019, %v4018
      %v7266 = vpack.c.bf16 %v4021, %v4020
      %v7267 = vpack.c.bf16 %v4023, %v4022
      %v7268 = vpack.c.bf16 %v4025, %v4024
      %v7269 = vpack.c.bf16 %v4027, %v4026
      %v7270 = vpack.c.bf16 %v4029, %v4028
      %v7271 = vpack.c.bf16 %v4031, %v4030
      %v7272 = vpack.c.bf16 %v4033, %v4032
      %v7273 = vpack.c.bf16 %v4035, %v4034
      %v7274 = vpack.c.bf16 %v4037, %v4036
      %v7275 = vpack.c.bf16 %v4039, %v4038
      %v7276 = vpack.c.bf16 %v4041, %v4040
      %v7277 = vpack.c.bf16 %v4043, %v4042
      %v7278 = vpack.c.bf16 %v4045, %v4044
      %v7279 = vpack.c.bf16 %v4047, %v4046
      %v7280 = vpack.c.bf16 %v4049, %v4048
      %v7281 = vld [vmem:[%s21] sm:$0x3]
      %v7283 = vsel %vm996, %v7265, 0
      %v7286 = vsel %vm996, %v7266, 0
      %v7289 = vsel %vm996, %v7267, 0
      %v7292 = vsel %vm996, %v7268, 0
      %v7295 = vsel %vm996, %v7269, 0
      %v7298 = vsel %vm996, %v7270, 0
      %v7301 = vsel %vm996, %v7271, 0
      %v7304 = vsel %vm996, %v7272, 0
      %v7307 = vsel %vm996, %v7273, 0
      %v7310 = vsel %vm996, %v7274, 0
      %v7313 = vsel %vm996, %v7275, 0
      %v7316 = vsel %vm996, %v7276, 0
      %v7319 = vsel %vm996, %v7277, 0
      %v7322 = vsel %vm996, %v7278, 0
      %v7325 = vsel %vm996, %v7279, 0
      %v7328 = vsel %vm996, %v7280, 0
      %v7331 = vsel %vm1045, %v7281, 0
      %7333 = vmatprep.subr.bf16.mxu0 0
      %7334 = vmatpush1.bf16.msra.mxu0 0
      %7335 = vmatprep.subr.bf16.mxu0 0
      %7336 = vmatpush1.bf16.msra.mxu0 0
      %7337 = vmatprep.subr.bf16.mxu0 0
      %7338 = vmatpush1.bf16.msra.mxu0 0
      %7339 = vmatprep.subr.bf16.mxu0 0
      %7340 = vmatpush1.bf16.msra.mxu0 0
      %7341 = vmatprep.subr.bf16.mxu0 0
      %7342 = vmatpush1.bf16.msra.mxu0 0
      %7343 = vmatprep.subr.bf16.mxu0 0
      %7344 = vmatpush1.bf16.msra.mxu0 0
      %7345 = vmatprep.subr.bf16.mxu0 0
      %7346 = vmatpush1.bf16.msra.mxu0 0
      %7347 = vmatprep.subr.bf16.mxu0 0
      %7348 = vmatpush1.bf16.msra.mxu0 %v7331
      %7349 = vmatprep.subr.bf16.mxu0 0
      %7350 = vmatpush2.bf16.msra.mxu0 0
      %7351 = vmatprep.subr.bf16.mxu0 0
      %7352 = vmatpush2.bf16.msra.mxu0 0
      %7353 = vmatprep.subr.bf16.mxu0 0
      %7354 = vmatpush2.bf16.msra.mxu0 0
      %7355 = vmatprep.subr.bf16.mxu0 0
      %7356 = vmatpush2.bf16.msra.mxu0 0
      %7357 = vmatprep.subr.bf16.mxu0 0
      %7358 = vmatpush2.bf16.msra.mxu0 0
      %7359 = vmatprep.subr.bf16.mxu0 0
      %7360 = vmatpush2.bf16.msra.mxu0 0
      %7361 = vmatprep.subr.bf16.mxu0 0
      %7362 = vmatpush2.bf16.msra.mxu0 0
      %7363 = vmatprep.subr.bf16.mxu0 0
      %7364 = vmatpush2.bf16.msra.mxu0 0
      %7365 = vmatprep.mubr.bf16.mxu0 0
      %7366 = vmatmul.mubr.bf16.gmra.mxu0 %v7283
      %v7367 = vpop.f32.mrf.mxu0
      %v7368 = vadd.f32 0.0, %v7367
      %v7369 = vpop.f32.mrf.mxu0
      %v7370 = vpop.f32.mrf.mxu0
      %v7371 = vadd.f32 0.0, %v7370
      %v7372 = vpop.f32.mrf.mxu0
      %7373 = vmatprep.mubr.bf16.mxu0 0
      %7374 = vmatmul.mubr.bf16.gmra.mxu0 %v7286
      %v7375 = vpop.f32.mrf.mxu0
      %v7376 = vadd.f32 0.0, %v7375
      %v7377 = vpop.f32.mrf.mxu0
      %v7378 = vpop.f32.mrf.mxu0
      %v7379 = vadd.f32 0.0, %v7378
      %v7380 = vpop.f32.mrf.mxu0
      %7381 = vmatprep.mubr.bf16.mxu0 0
      %7382 = vmatmul.mubr.bf16.gmra.mxu0 %v7289
      %v7383 = vpop.f32.mrf.mxu0
      %v7384 = vadd.f32 0.0, %v7383
      %v7385 = vpop.f32.mrf.mxu0
      %v7386 = vpop.f32.mrf.mxu0
      %v7387 = vadd.f32 0.0, %v7386
      %v7388 = vpop.f32.mrf.mxu0
      %7389 = vmatprep.mubr.bf16.mxu0 0
      %7390 = vmatmul.mubr.bf16.gmra.mxu0 %v7292
      %v7391 = vpop.f32.mrf.mxu0
      %v7392 = vadd.f32 0.0, %v7391
      %v7393 = vpop.f32.mrf.mxu0
      %v7394 = vpop.f32.mrf.mxu0
      %v7395 = vadd.f32 0.0, %v7394
      %v7396 = vpop.f32.mrf.mxu0
      %7397 = vmatprep.mubr.bf16.mxu0 0
      %7398 = vmatmul.mubr.bf16.gmra.mxu0 %v7295
      %v7399 = vpop.f32.mrf.mxu0
      %v7400 = vadd.f32 0.0, %v7399
      %v7401 = vpop.f32.mrf.mxu0
      %v7402 = vpop.f32.mrf.mxu0
      %v7403 = vadd.f32 0.0, %v7402
      %v7404 = vpop.f32.mrf.mxu0
      %7405 = vmatprep.mubr.bf16.mxu0 0
      %7406 = vmatmul.mubr.bf16.gmra.mxu0 %v7298
      %v7407 = vpop.f32.mrf.mxu0
      %v7408 = vadd.f32 0.0, %v7407
      %v7409 = vpop.f32.mrf.mxu0
      %v7410 = vpop.f32.mrf.mxu0
      %v7411 = vadd.f32 0.0, %v7410
      %v7412 = vpop.f32.mrf.mxu0
      %7413 = vmatprep.mubr.bf16.mxu0 0
      %7414 = vmatmul.mubr.bf16.gmra.mxu0 %v7301
      %v7415 = vpop.f32.mrf.mxu0
      %v7416 = vadd.f32 0.0, %v7415
      %v7417 = vpop.f32.mrf.mxu0
      %v7418 = vpop.f32.mrf.mxu0
      %v7419 = vadd.f32 0.0, %v7418
      %v7420 = vpop.f32.mrf.mxu0
      %7421 = vmatprep.mubr.bf16.mxu0 0
      %7422 = vmatmul.mubr.bf16.gmra.mxu0 %v7304
      %v7423 = vpop.f32.mrf.mxu0
      %v7424 = vadd.f32 0.0, %v7423
      %v7425 = vpop.f32.mrf.mxu0
      %v7426 = vpop.f32.mrf.mxu0
      %v7427 = vadd.f32 0.0, %v7426
      %v7428 = vpop.f32.mrf.mxu0
      %7429 = vmatprep.mubr.bf16.mxu0 0
      %7430 = vmatmul.mubr.bf16.gmra.mxu0 %v7307
      %v7431 = vpop.f32.mrf.mxu0
      %v7432 = vadd.f32 0.0, %v7431
      %v7433 = vpop.f32.mrf.mxu0
      %v7434 = vpop.f32.mrf.mxu0
      %v7435 = vadd.f32 0.0, %v7434
      %v7436 = vpop.f32.mrf.mxu0
      %7437 = vmatprep.mubr.bf16.mxu0 0
      %7438 = vmatmul.mubr.bf16.gmra.mxu0 %v7310
      %v7439 = vpop.f32.mrf.mxu0
      %v7440 = vadd.f32 0.0, %v7439
      %v7441 = vpop.f32.mrf.mxu0
      %v7442 = vpop.f32.mrf.mxu0
      %v7443 = vadd.f32 0.0, %v7442
      %v7444 = vpop.f32.mrf.mxu0
      %7445 = vmatprep.mubr.bf16.mxu0 0
      %7446 = vmatmul.mubr.bf16.gmra.mxu0 %v7313
      %v7447 = vpop.f32.mrf.mxu0
      %v7448 = vadd.f32 0.0, %v7447
      %v7449 = vpop.f32.mrf.mxu0
      %v7450 = vpop.f32.mrf.mxu0
      %v7451 = vadd.f32 0.0, %v7450
      %v7452 = vpop.f32.mrf.mxu0
      %7453 = vmatprep.mubr.bf16.mxu0 0
      %7454 = vmatmul.mubr.bf16.gmra.mxu0 %v7316
      %v7455 = vpop.f32.mrf.mxu0
      %v7456 = vadd.f32 0.0, %v7455
      %v7457 = vpop.f32.mrf.mxu0
      %v7458 = vpop.f32.mrf.mxu0
      %v7459 = vadd.f32 0.0, %v7458
      %v7460 = vpop.f32.mrf.mxu0
      %7461 = vmatprep.mubr.bf16.mxu0 0
      %7462 = vmatmul.mubr.bf16.gmra.mxu0 %v7319
      %v7463 = vpop.f32.mrf.mxu0
      %v7464 = vadd.f32 0.0, %v7463
      %v7465 = vpop.f32.mrf.mxu0
      %v7466 = vpop.f32.mrf.mxu0
      %v7467 = vadd.f32 0.0, %v7466
      %v7468 = vpop.f32.mrf.mxu0
      %7469 = vmatprep.mubr.bf16.mxu0 0
      %7470 = vmatmul.mubr.bf16.gmra.mxu0 %v7322
      %v7471 = vpop.f32.mrf.mxu0
      %v7472 = vadd.f32 0.0, %v7471
      %v7473 = vpop.f32.mrf.mxu0
      %v7474 = vpop.f32.mrf.mxu0
      %v7475 = vadd.f32 0.0, %v7474
      %v7476 = vpop.f32.mrf.mxu0
      %7477 = vmatprep.mubr.bf16.mxu0 0
      %7478 = vmatmul.mubr.bf16.gmra.mxu0 %v7325
      %v7479 = vpop.f32.mrf.mxu0
      %v7480 = vadd.f32 0.0, %v7479
      %v7481 = vpop.f32.mrf.mxu0
      %v7482 = vpop.f32.mrf.mxu0
      %v7483 = vadd.f32 0.0, %v7482
      %v7484 = vpop.f32.mrf.mxu0
      %7485 = vmatprep.mubr.bf16.mxu0 0
      %7486 = vmatmul.mubr.bf16.gmra.mxu0 %v7328
      %v7487 = vpop.f32.mrf.mxu0
      %v7488 = vadd.f32 0.0, %v7487
      %v7489 = vpop.f32.mrf.mxu0
      %v7490 = vpop.f32.mrf.mxu0
      %v7491 = vadd.f32 0.0, %v7490
      %v7492 = vpop.f32.mrf.mxu0
      %7493 = vdwg.mxu0
      %v7495 = vsel %vm996, %v7248, 0
      %v7498 = vsel %vm996, %v7249, 0
      %v7501 = vsel %vm996, %v7250, 0
      %v7504 = vsel %vm996, %v7251, 0
      %v7507 = vsel %vm996, %v7252, 0
      %v7510 = vsel %vm996, %v7253, 0
      %v7513 = vsel %vm996, %v7254, 0
      %v7516 = vsel %vm996, %v7255, 0
      %v7519 = vsel %vm996, %v7256, 0
      %v7522 = vsel %vm996, %v7257, 0
      %v7525 = vsel %vm996, %v7258, 0
      %v7528 = vsel %vm996, %v7259, 0
      %v7531 = vsel %vm996, %v7260, 0
      %v7534 = vsel %vm996, %v7261, 0
      %v7537 = vsel %vm996, %v7262, 0
      %v7540 = vsel %vm996, %v7263, 0
      %v7543 = vsel %vm1045, %v7264, 0
      %7545 = vmatprep.subr.bf16.mxu0 0
      %7546 = vmatpush1.bf16.msra.mxu0 0
      %7547 = vmatprep.subr.bf16.mxu0 0
      %7548 = vmatpush1.bf16.msra.mxu0 0
      %7549 = vmatprep.subr.bf16.mxu0 0
      %7550 = vmatpush1.bf16.msra.mxu0 0
      %7551 = vmatprep.subr.bf16.mxu0 0
      %7552 = vmatpush1.bf16.msra.mxu0 0
      %7553 = vmatprep.subr.bf16.mxu0 0
      %7554 = vmatpush1.bf16.msra.mxu0 0
      %7555 = vmatprep.subr.bf16.mxu0 0
      %7556 = vmatpush1.bf16.msra.mxu0 0
      %7557 = vmatprep.subr.bf16.mxu0 0
      %7558 = vmatpush1.bf16.msra.mxu0 0
      %7559 = vmatprep.subr.bf16.mxu0 0
      %7560 = vmatpush1.bf16.msra.mxu0 %v7543
      %7561 = vmatprep.subr.bf16.mxu0 0
      %7562 = vmatpush2.bf16.msra.mxu0 0
      %7563 = vmatprep.subr.bf16.mxu0 0
      %7564 = vmatpush2.bf16.msra.mxu0 0
      %7565 = vmatprep.subr.bf16.mxu0 0
      %7566 = vmatpush2.bf16.msra.mxu0 0
      %7567 = vmatprep.subr.bf16.mxu0 0
      %7568 = vmatpush2.bf16.msra.mxu0 0
      %7569 = vmatprep.subr.bf16.mxu0 0
      %7570 = vmatpush2.bf16.msra.mxu0 0
      %7571 = vmatprep.subr.bf16.mxu0 0
      %7572 = vmatpush2.bf16.msra.mxu0 0
      %7573 = vmatprep.subr.bf16.mxu0 0
      %7574 = vmatpush2.bf16.msra.mxu0 0
      %7575 = vmatprep.subr.bf16.mxu0 0
      %7576 = vmatpush2.bf16.msra.mxu0 0
      %7577 = vmatprep.mubr.bf16.mxu0 0
      %7578 = vmatmul.mubr.bf16.gmra.mxu0 %v7495
      %v7579 = vpop.f32.mrf.mxu0
      %v7580 = vadd.f32 %v7368, %v7579
      %v7581 = vpop.f32.mrf.mxu0
      %v7582 = vpop.f32.mrf.mxu0
      %v7583 = vadd.f32 %v7371, %v7582
      %v7584 = vpop.f32.mrf.mxu0
      %7585 = vmatprep.mubr.bf16.mxu0 0
      %7586 = vmatmul.mubr.bf16.gmra.mxu0 %v7498
      %v7587 = vpop.f32.mrf.mxu0
      %v7588 = vadd.f32 %v7376, %v7587
      %v7589 = vpop.f32.mrf.mxu0
      %v7590 = vpop.f32.mrf.mxu0
      %v7591 = vadd.f32 %v7379, %v7590
      %v7592 = vpop.f32.mrf.mxu0
      %7593 = vmatprep.mubr.bf16.mxu0 0
      %7594 = vmatmul.mubr.bf16.gmra.mxu0 %v7501
      %v7595 = vpop.f32.mrf.mxu0
      %v7596 = vadd.f32 %v7384, %v7595
      %v7597 = vpop.f32.mrf.mxu0
      %v7598 = vpop.f32.mrf.mxu0
      %v7599 = vadd.f32 %v7387, %v7598
      %v7600 = vpop.f32.mrf.mxu0
      %7601 = vmatprep.mubr.bf16.mxu0 0
      %7602 = vmatmul.mubr.bf16.gmra.mxu0 %v7504
      %v7603 = vpop.f32.mrf.mxu0
      %v7604 = vadd.f32 %v7392, %v7603
      %v7605 = vpop.f32.mrf.mxu0
      %v7606 = vpop.f32.mrf.mxu0
      %v7607 = vadd.f32 %v7395, %v7606
      %v7608 = vpop.f32.mrf.mxu0
      %7609 = vmatprep.mubr.bf16.mxu0 0
      %7610 = vmatmul.mubr.bf16.gmra.mxu0 %v7507
      %v7611 = vpop.f32.mrf.mxu0
      %v7612 = vadd.f32 %v7400, %v7611
      %v7613 = vpop.f32.mrf.mxu0
      %v7614 = vpop.f32.mrf.mxu0
      %v7615 = vadd.f32 %v7403, %v7614
      %v7616 = vpop.f32.mrf.mxu0
      %7617 = vmatprep.mubr.bf16.mxu0 0
      %7618 = vmatmul.mubr.bf16.gmra.mxu0 %v7510
      %v7619 = vpop.f32.mrf.mxu0
      %v7620 = vadd.f32 %v7408, %v7619
      %v7621 = vpop.f32.mrf.mxu0
      %v7622 = vpop.f32.mrf.mxu0
      %v7623 = vadd.f32 %v7411, %v7622
      %v7624 = vpop.f32.mrf.mxu0
      %7625 = vmatprep.mubr.bf16.mxu0 0
      %7626 = vmatmul.mubr.bf16.gmra.mxu0 %v7513
      %v7627 = vpop.f32.mrf.mxu0
      %v7628 = vadd.f32 %v7416, %v7627
      %v7629 = vpop.f32.mrf.mxu0
      %v7630 = vpop.f32.mrf.mxu0
      %v7631 = vadd.f32 %v7419, %v7630
      %v7632 = vpop.f32.mrf.mxu0
      %7633 = vmatprep.mubr.bf16.mxu0 0
      %7634 = vmatmul.mubr.bf16.gmra.mxu0 %v7516
      %v7635 = vpop.f32.mrf.mxu0
      %v7636 = vadd.f32 %v7424, %v7635
      %v7637 = vpop.f32.mrf.mxu0
      %v7638 = vpop.f32.mrf.mxu0
      %v7639 = vadd.f32 %v7427, %v7638
      %v7640 = vpop.f32.mrf.mxu0
      %7641 = vmatprep.mubr.bf16.mxu0 0
      %7642 = vmatmul.mubr.bf16.gmra.mxu0 %v7519
      %v7643 = vpop.f32.mrf.mxu0
      %v7644 = vadd.f32 %v7432, %v7643
      %v7645 = vpop.f32.mrf.mxu0
      %v7646 = vpop.f32.mrf.mxu0
      %v7647 = vadd.f32 %v7435, %v7646
      %v7648 = vpop.f32.mrf.mxu0
      %7649 = vmatprep.mubr.bf16.mxu0 0
      %7650 = vmatmul.mubr.bf16.gmra.mxu0 %v7522
      %v7651 = vpop.f32.mrf.mxu0
      %v7652 = vadd.f32 %v7440, %v7651
      %v7653 = vpop.f32.mrf.mxu0
      %v7654 = vpop.f32.mrf.mxu0
      %v7655 = vadd.f32 %v7443, %v7654
      %v7656 = vpop.f32.mrf.mxu0
      %7657 = vmatprep.mubr.bf16.mxu0 0
      %7658 = vmatmul.mubr.bf16.gmra.mxu0 %v7525
      %v7659 = vpop.f32.mrf.mxu0
      %v7660 = vadd.f32 %v7448, %v7659
      %v7661 = vpop.f32.mrf.mxu0
      %v7662 = vpop.f32.mrf.mxu0
      %v7663 = vadd.f32 %v7451, %v7662
      %v7664 = vpop.f32.mrf.mxu0
      %7665 = vmatprep.mubr.bf16.mxu0 0
      %7666 = vmatmul.mubr.bf16.gmra.mxu0 %v7528
      %v7667 = vpop.f32.mrf.mxu0
      %v7668 = vadd.f32 %v7456, %v7667
      %v7669 = vpop.f32.mrf.mxu0
      %v7670 = vpop.f32.mrf.mxu0
      %v7671 = vadd.f32 %v7459, %v7670
      %v7672 = vpop.f32.mrf.mxu0
      %7673 = vmatprep.mubr.bf16.mxu0 0
      %7674 = vmatmul.mubr.bf16.gmra.mxu0 %v7531
      %v7675 = vpop.f32.mrf.mxu0
      %v7676 = vadd.f32 %v7464, %v7675
      %v7677 = vpop.f32.mrf.mxu0
      %v7678 = vpop.f32.mrf.mxu0
      %v7679 = vadd.f32 %v7467, %v7678
      %v7680 = vpop.f32.mrf.mxu0
      %7681 = vmatprep.mubr.bf16.mxu0 0
      %7682 = vmatmul.mubr.bf16.gmra.mxu0 %v7534
      %v7683 = vpop.f32.mrf.mxu0
      %v7684 = vadd.f32 %v7472, %v7683
      %v7685 = vpop.f32.mrf.mxu0
      %v7686 = vpop.f32.mrf.mxu0
      %v7687 = vadd.f32 %v7475, %v7686
      %v7688 = vpop.f32.mrf.mxu0
      %7689 = vmatprep.mubr.bf16.mxu0 0
      %7690 = vmatmul.mubr.bf16.gmra.mxu0 %v7537
      %v7691 = vpop.f32.mrf.mxu0
      %v7692 = vadd.f32 %v7480, %v7691
      %v7693 = vpop.f32.mrf.mxu0
      %v7694 = vpop.f32.mrf.mxu0
      %v7695 = vadd.f32 %v7483, %v7694
      %v7696 = vpop.f32.mrf.mxu0
      %7697 = vmatprep.mubr.bf16.mxu0 0
      %7698 = vmatmul.mubr.bf16.gmra.mxu0 %v7540
      %v7699 = vpop.f32.mrf.mxu0
      %v7700 = vadd.f32 %v7488, %v7699
      %v7701 = vpop.f32.mrf.mxu0
      %v7702 = vpop.f32.mrf.mxu0
      %v7703 = vadd.f32 %v7491, %v7702
      %v7704 = vpop.f32.mrf.mxu0
      %7705 = vdwg.mxu0
      %v7706 = vpack.c.bf16 %v7217, %v7216
      %v7707 = vpack.c.bf16 %v7219, %v7218
      %v7708 = vpack.c.bf16 %v7221, %v7220
      %v7709 = vpack.c.bf16 %v7223, %v7222
      %v7710 = vpack.c.bf16 %v7225, %v7224
      %v7711 = vpack.c.bf16 %v7227, %v7226
      %v7712 = vpack.c.bf16 %v7229, %v7228
      %v7713 = vpack.c.bf16 %v7231, %v7230
      %v7714 = vpack.c.bf16 %v7233, %v7232
      %v7715 = vpack.c.bf16 %v7235, %v7234
      %v7716 = vpack.c.bf16 %v7237, %v7236
      %v7717 = vpack.c.bf16 %v7239, %v7238
      %v7718 = vpack.c.bf16 %v7241, %v7240
      %v7719 = vpack.c.bf16 %v7243, %v7242
      %v7720 = vpack.c.bf16 %v7245, %v7244
      %v7721 = vpack.c.bf16 %v7247, %v7246
      %v7722 = vld [vmem:[%s22] sm:$0x3]
      %v7724 = vsel %vm996, %v7706, 0
      %v7727 = vsel %vm996, %v7707, 0
      %v7730 = vsel %vm996, %v7708, 0
      %v7733 = vsel %vm996, %v7709, 0
      %v7736 = vsel %vm996, %v7710, 0
      %v7739 = vsel %vm996, %v7711, 0
      %v7742 = vsel %vm996, %v7712, 0
      %v7745 = vsel %vm996, %v7713, 0
      %v7748 = vsel %vm996, %v7714, 0
      %v7751 = vsel %vm996, %v7715, 0
      %v7754 = vsel %vm996, %v7716, 0
      %v7757 = vsel %vm996, %v7717, 0
      %v7760 = vsel %vm996, %v7718, 0
      %v7763 = vsel %vm996, %v7719, 0
      %v7766 = vsel %vm996, %v7720, 0
      %v7769 = vsel %vm996, %v7721, 0
      %v7772 = vsel %vm1045, %v7722, 0
      %7774 = vmatprep.subr.bf16.mxu0 0
      %7775 = vmatpush1.bf16.msra.mxu0 0
      %7776 = vmatprep.subr.bf16.mxu0 0
      %7777 = vmatpush1.bf16.msra.mxu0 0
      %7778 = vmatprep.subr.bf16.mxu0 0
      %7779 = vmatpush1.bf16.msra.mxu0 0
      %7780 = vmatprep.subr.bf16.mxu0 0
      %7781 = vmatpush1.bf16.msra.mxu0 0
      %7782 = vmatprep.subr.bf16.mxu0 0
      %7783 = vmatpush1.bf16.msra.mxu0 0
      %7784 = vmatprep.subr.bf16.mxu0 0
      %7785 = vmatpush1.bf16.msra.mxu0 0
      %7786 = vmatprep.subr.bf16.mxu0 0
      %7787 = vmatpush1.bf16.msra.mxu0 0
      %7788 = vmatprep.subr.bf16.mxu0 0
      %7789 = vmatpush1.bf16.msra.mxu0 %v7772
      %7790 = vmatprep.subr.bf16.mxu0 0
      %7791 = vmatpush2.bf16.msra.mxu0 0
      %7792 = vmatprep.subr.bf16.mxu0 0
      %7793 = vmatpush2.bf16.msra.mxu0 0
      %7794 = vmatprep.subr.bf16.mxu0 0
      %7795 = vmatpush2.bf16.msra.mxu0 0
      %7796 = vmatprep.subr.bf16.mxu0 0
      %7797 = vmatpush2.bf16.msra.mxu0 0
      %7798 = vmatprep.subr.bf16.mxu0 0
      %7799 = vmatpush2.bf16.msra.mxu0 0
      %7800 = vmatprep.subr.bf16.mxu0 0
      %7801 = vmatpush2.bf16.msra.mxu0 0
      %7802 = vmatprep.subr.bf16.mxu0 0
      %7803 = vmatpush2.bf16.msra.mxu0 0
      %7804 = vmatprep.subr.bf16.mxu0 0
      %7805 = vmatpush2.bf16.msra.mxu0 0
      %7806 = vmatprep.mubr.bf16.mxu0 0
      %7807 = vmatmul.mubr.bf16.gmra.mxu0 %v7724
      %v7808 = vpop.f32.mrf.mxu0
      %v7809 = vadd.f32 0.0, %v7808
      %v7810 = vpop.f32.mrf.mxu0
      %v7811 = vpop.f32.mrf.mxu0
      %v7812 = vadd.f32 0.0, %v7811
      %v7813 = vpop.f32.mrf.mxu0
      %7814 = vmatprep.mubr.bf16.mxu0 0
      %7815 = vmatmul.mubr.bf16.gmra.mxu0 %v7727
      %v7816 = vpop.f32.mrf.mxu0
      %v7817 = vadd.f32 0.0, %v7816
      %v7818 = vpop.f32.mrf.mxu0
      %v7819 = vpop.f32.mrf.mxu0
      %v7820 = vadd.f32 0.0, %v7819
      %v7821 = vpop.f32.mrf.mxu0
      %7822 = vmatprep.mubr.bf16.mxu0 0
      %7823 = vmatmul.mubr.bf16.gmra.mxu0 %v7730
      %v7824 = vpop.f32.mrf.mxu0
      %v7825 = vadd.f32 0.0, %v7824
      %v7826 = vpop.f32.mrf.mxu0
      %v7827 = vpop.f32.mrf.mxu0
      %v7828 = vadd.f32 0.0, %v7827
      %v7829 = vpop.f32.mrf.mxu0
      %7830 = vmatprep.mubr.bf16.mxu0 0
      %7831 = vmatmul.mubr.bf16.gmra.mxu0 %v7733
      %v7832 = vpop.f32.mrf.mxu0
      %v7833 = vadd.f32 0.0, %v7832
      %v7834 = vpop.f32.mrf.mxu0
      %v7835 = vpop.f32.mrf.mxu0
      %v7836 = vadd.f32 0.0, %v7835
      %v7837 = vpop.f32.mrf.mxu0
      %7838 = vmatprep.mubr.bf16.mxu0 0
      %7839 = vmatmul.mubr.bf16.gmra.mxu0 %v7736
      %v7840 = vpop.f32.mrf.mxu0
      %v7841 = vadd.f32 0.0, %v7840
      %v7842 = vpop.f32.mrf.mxu0
      %v7843 = vpop.f32.mrf.mxu0
      %v7844 = vadd.f32 0.0, %v7843
      %v7845 = vpop.f32.mrf.mxu0
      %7846 = vmatprep.mubr.bf16.mxu0 0
      %7847 = vmatmul.mubr.bf16.gmra.mxu0 %v7739
      %v7848 = vpop.f32.mrf.mxu0
      %v7849 = vadd.f32 0.0, %v7848
      %v7850 = vpop.f32.mrf.mxu0
      %v7851 = vpop.f32.mrf.mxu0
      %v7852 = vadd.f32 0.0, %v7851
      %v7853 = vpop.f32.mrf.mxu0
      %7854 = vmatprep.mubr.bf16.mxu0 0
      %7855 = vmatmul.mubr.bf16.gmra.mxu0 %v7742
      %v7856 = vpop.f32.mrf.mxu0
      %v7857 = vadd.f32 0.0, %v7856
      %v7858 = vpop.f32.mrf.mxu0
      %v7859 = vpop.f32.mrf.mxu0
      %v7860 = vadd.f32 0.0, %v7859
      %v7861 = vpop.f32.mrf.mxu0
      %7862 = vmatprep.mubr.bf16.mxu0 0
      %7863 = vmatmul.mubr.bf16.gmra.mxu0 %v7745
      %v7864 = vpop.f32.mrf.mxu0
      %v7865 = vadd.f32 0.0, %v7864
      %v7866 = vpop.f32.mrf.mxu0
      %v7867 = vpop.f32.mrf.mxu0
      %v7868 = vadd.f32 0.0, %v7867
      %v7869 = vpop.f32.mrf.mxu0
      %7870 = vmatprep.mubr.bf16.mxu0 0
      %7871 = vmatmul.mubr.bf16.gmra.mxu0 %v7748
      %v7872 = vpop.f32.mrf.mxu0
      %v7873 = vadd.f32 0.0, %v7872
      %v7874 = vpop.f32.mrf.mxu0
      %v7875 = vpop.f32.mrf.mxu0
      %v7876 = vadd.f32 0.0, %v7875
      %v7877 = vpop.f32.mrf.mxu0
      %7878 = vmatprep.mubr.bf16.mxu0 0
      %7879 = vmatmul.mubr.bf16.gmra.mxu0 %v7751
      %v7880 = vpop.f32.mrf.mxu0
      %v7881 = vadd.f32 0.0, %v7880
      %v7882 = vpop.f32.mrf.mxu0
      %v7883 = vpop.f32.mrf.mxu0
      %v7884 = vadd.f32 0.0, %v7883
      %v7885 = vpop.f32.mrf.mxu0
      %7886 = vmatprep.mubr.bf16.mxu0 0
      %7887 = vmatmul.mubr.bf16.gmra.mxu0 %v7754
      %v7888 = vpop.f32.mrf.mxu0
      %v7889 = vadd.f32 0.0, %v7888
      %v7890 = vpop.f32.mrf.mxu0
      %v7891 = vpop.f32.mrf.mxu0
      %v7892 = vadd.f32 0.0, %v7891
      %v7893 = vpop.f32.mrf.mxu0
      %7894 = vmatprep.mubr.bf16.mxu0 0
      %7895 = vmatmul.mubr.bf16.gmra.mxu0 %v7757
      %v7896 = vpop.f32.mrf.mxu0
      %v7897 = vadd.f32 0.0, %v7896
      %v7898 = vpop.f32.mrf.mxu0
      %v7899 = vpop.f32.mrf.mxu0
      %v7900 = vadd.f32 0.0, %v7899
      %v7901 = vpop.f32.mrf.mxu0
      %7902 = vmatprep.mubr.bf16.mxu0 0
      %7903 = vmatmul.mubr.bf16.gmra.mxu0 %v7760
      %v7904 = vpop.f32.mrf.mxu0
      %v7905 = vadd.f32 0.0, %v7904
      %v7906 = vpop.f32.mrf.mxu0
      %v7907 = vpop.f32.mrf.mxu0
      %v7908 = vadd.f32 0.0, %v7907
      %v7909 = vpop.f32.mrf.mxu0
      %7910 = vmatprep.mubr.bf16.mxu0 0
      %7911 = vmatmul.mubr.bf16.gmra.mxu0 %v7763
      %v7912 = vpop.f32.mrf.mxu0
      %v7913 = vadd.f32 0.0, %v7912
      %v7914 = vpop.f32.mrf.mxu0
      %v7915 = vpop.f32.mrf.mxu0
      %v7916 = vadd.f32 0.0, %v7915
      %v7917 = vpop.f32.mrf.mxu0
      %7918 = vmatprep.mubr.bf16.mxu0 0
      %7919 = vmatmul.mubr.bf16.gmra.mxu0 %v7766
      %v7920 = vpop.f32.mrf.mxu0
      %v7921 = vadd.f32 0.0, %v7920
      %v7922 = vpop.f32.mrf.mxu0
      %v7923 = vpop.f32.mrf.mxu0
      %v7924 = vadd.f32 0.0, %v7923
      %v7925 = vpop.f32.mrf.mxu0
      %7926 = vmatprep.mubr.bf16.mxu0 0
      %7927 = vmatmul.mubr.bf16.gmra.mxu0 %v7769
      %v7928 = vpop.f32.mrf.mxu0
      %v7929 = vadd.f32 0.0, %v7928
      %v7930 = vpop.f32.mrf.mxu0
      %v7931 = vpop.f32.mrf.mxu0
      %v7932 = vadd.f32 0.0, %v7931
      %v7933 = vpop.f32.mrf.mxu0
      %7934 = vdwg.mxu0
      %v7935 = vadd.f32 %v7580, %v7809
      %v7936 = vadd.f32 %v7583, %v7812
      %v7937 = vadd.f32 %v7588, %v7817
      %v7938 = vadd.f32 %v7591, %v7820
      %v7939 = vadd.f32 %v7596, %v7825
      %v7940 = vadd.f32 %v7599, %v7828
      %v7941 = vadd.f32 %v7604, %v7833
      %v7942 = vadd.f32 %v7607, %v7836
      %v7943 = vadd.f32 %v7612, %v7841
      %v7944 = vadd.f32 %v7615, %v7844
      %v7945 = vadd.f32 %v7620, %v7849
      %v7946 = vadd.f32 %v7623, %v7852
      %v7947 = vadd.f32 %v7628, %v7857
      %v7948 = vadd.f32 %v7631, %v7860
      %v7949 = vadd.f32 %v7636, %v7865
      %v7950 = vadd.f32 %v7639, %v7868
      %v7951 = vadd.f32 %v7644, %v7873
      %v7952 = vadd.f32 %v7647, %v7876
      %v7953 = vadd.f32 %v7652, %v7881
      %v7954 = vadd.f32 %v7655, %v7884
      %v7955 = vadd.f32 %v7660, %v7889
      %v7956 = vadd.f32 %v7663, %v7892
      %v7957 = vadd.f32 %v7668, %v7897
      %v7958 = vadd.f32 %v7671, %v7900
      %v7959 = vadd.f32 %v7676, %v7905
      %v7960 = vadd.f32 %v7679, %v7908
      %v7961 = vadd.f32 %v7684, %v7913
      %v7962 = vadd.f32 %v7687, %v7916
      %v7963 = vadd.f32 %v7692, %v7921
      %v7964 = vadd.f32 %v7695, %v7924
      %v7965 = vadd.f32 %v7700, %v7929
      %v7966 = vadd.f32 %v7703, %v7932
      %v7967 = vld [vmem:[%s23] sm:$0x1]
      %v7969 = vlaneseq
      %v7970 = vshrl.u32 %v7969, 7
      %v7971 = vsub.s32 0, %v7970
      %v7972 = vrot.slane %v7967, %v7971
      %v7974 = vmul.f32 %v7935, %v7972
      %v7975 = vmul.f32 %v7936, %v7972
      %v7976 = vmul.f32 %v7937, %v7972
      %v7977 = vmul.f32 %v7938, %v7972
      %v7978 = vmul.f32 %v7939, %v7972
      %v7979 = vmul.f32 %v7940, %v7972
      %v7980 = vmul.f32 %v7941, %v7972
      %v7981 = vmul.f32 %v7942, %v7972
      %v7982 = vmul.f32 %v7943, %v7972
      %v7983 = vmul.f32 %v7944, %v7972
      %v7984 = vmul.f32 %v7945, %v7972
      %v7985 = vmul.f32 %v7946, %v7972
      %v7986 = vmul.f32 %v7947, %v7972
      %v7987 = vmul.f32 %v7948, %v7972
      %v7988 = vmul.f32 %v7949, %v7972
      %v7989 = vmul.f32 %v7950, %v7972
      %v7990 = vmul.f32 %v7951, %v7972
      %v7991 = vmul.f32 %v7952, %v7972
      %v7992 = vmul.f32 %v7953, %v7972
      %v7993 = vmul.f32 %v7954, %v7972
      %v7994 = vmul.f32 %v7955, %v7972
      %v7995 = vmul.f32 %v7956, %v7972
      %v7996 = vmul.f32 %v7957, %v7972
      %v7997 = vmul.f32 %v7958, %v7972
      %v7998 = vmul.f32 %v7959, %v7972
      %v7999 = vmul.f32 %v7960, %v7972
      %v8000 = vmul.f32 %v7961, %v7972
      %v8001 = vmul.f32 %v7962, %v7972
      %v8002 = vmul.f32 %v7963, %v7972
      %v8003 = vmul.f32 %v7964, %v7972
      %v8004 = vmul.f32 %v7965, %v7972
      %v8005 = vmul.f32 %v7966, %v7972
      %v8006 = vld [vmem:[%s24] sm:$0x1]
      %v8008 = vlaneseq
      %v8009 = vshrl.u32 %v8008, 7
      %v8010 = vsub.s32 0, %v8009
      %v8011 = vrot.slane %v8006, %v8010
      %v8013 = vadd.f32 %v7974, %v8011
      %v8014 = vadd.f32 %v7975, %v8011
      %v8015 = vadd.f32 %v7976, %v8011
      %v8016 = vadd.f32 %v7977, %v8011
      %v8017 = vadd.f32 %v7978, %v8011
      %v8018 = vadd.f32 %v7979, %v8011
      %v8019 = vadd.f32 %v7980, %v8011
      %v8020 = vadd.f32 %v7981, %v8011
      %v8021 = vadd.f32 %v7982, %v8011
      %v8022 = vadd.f32 %v7983, %v8011
      %v8023 = vadd.f32 %v7984, %v8011
      %v8024 = vadd.f32 %v7985, %v8011
      %v8025 = vadd.f32 %v7986, %v8011
      %v8026 = vadd.f32 %v7987, %v8011
      %v8027 = vadd.f32 %v7988, %v8011
      %v8028 = vadd.f32 %v7989, %v8011
      %v8029 = vadd.f32 %v7990, %v8011
      %v8030 = vadd.f32 %v7991, %v8011
      %v8031 = vadd.f32 %v7992, %v8011
      %v8032 = vadd.f32 %v7993, %v8011
      %v8033 = vadd.f32 %v7994, %v8011
      %v8034 = vadd.f32 %v7995, %v8011
      %v8035 = vadd.f32 %v7996, %v8011
      %v8036 = vadd.f32 %v7997, %v8011
      %v8037 = vadd.f32 %v7998, %v8011
      %v8038 = vadd.f32 %v7999, %v8011
      %v8039 = vadd.f32 %v8000, %v8011
      %v8040 = vadd.f32 %v8001, %v8011
      %v8041 = vadd.f32 %v8002, %v8011
      %v8042 = vadd.f32 %v8003, %v8011
      %v8043 = vadd.f32 %v8004, %v8011
      %v8044 = vadd.f32 %v8005, %v8011
      %v8045 = vmax.f32 %v8013, 0.0
      %v8046 = vmax.f32 %v8014, 0.0
      %v8047 = vmax.f32 %v8015, 0.0
      %v8048 = vmax.f32 %v8016, 0.0
      %v8049 = vmax.f32 %v8017, 0.0
      %v8050 = vmax.f32 %v8018, 0.0
      %v8051 = vmax.f32 %v8019, 0.0
      %v8052 = vmax.f32 %v8020, 0.0
      %v8053 = vmax.f32 %v8021, 0.0
      %v8054 = vmax.f32 %v8022, 0.0
      %v8055 = vmax.f32 %v8023, 0.0
      %v8056 = vmax.f32 %v8024, 0.0
      %v8057 = vmax.f32 %v8025, 0.0
      %v8058 = vmax.f32 %v8026, 0.0
      %v8059 = vmax.f32 %v8027, 0.0
      %v8060 = vmax.f32 %v8028, 0.0
      %v8061 = vmax.f32 %v8029, 0.0
      %v8062 = vmax.f32 %v8030, 0.0
      %v8063 = vmax.f32 %v8031, 0.0
      %v8064 = vmax.f32 %v8032, 0.0
      %v8065 = vmax.f32 %v8033, 0.0
      %v8066 = vmax.f32 %v8034, 0.0
      %v8067 = vmax.f32 %v8035, 0.0
      %v8068 = vmax.f32 %v8036, 0.0
      %v8069 = vmax.f32 %v8037, 0.0
      %v8070 = vmax.f32 %v8038, 0.0
      %v8071 = vmax.f32 %v8039, 0.0
      %v8072 = vmax.f32 %v8040, 0.0
      %v8073 = vmax.f32 %v8041, 0.0
      %v8074 = vmax.f32 %v8042, 0.0
      %v8075 = vmax.f32 %v8043, 0.0
      %v8076 = vmax.f32 %v8044, 0.0
      %vm8077 = vcmask 64512
      %8078 = vst.msk [vmem:[%s764] sm:$0xff] %vm8077, %v8045
      %8079 = vst.msk [vmem:[%s764 + $0x8] sm:$0xff] %vm8077, %v8046
      %8080 = vst.msk [vmem:[%s764 + $0x10] sm:$0xff] %vm8077, %v8047
      %8081 = vst.msk [vmem:[%s764 + $0x18] sm:$0xff] %vm8077, %v8048
      %8082 = vst.msk [vmem:[%s764 + $0x20] sm:$0xff] %vm8077, %v8049
      %8083 = vst.msk [vmem:[%s764 + $0x28] sm:$0xff] %vm8077, %v8050
      %8084 = vst.msk [vmem:[%s764 + $0x30] sm:$0xff] %vm8077, %v8051
      %8085 = vst.msk [vmem:[%s764 + $0x38] sm:$0xff] %vm8077, %v8052
      %8086 = vst.msk [vmem:[%s764 + $0x40] sm:$0xff] %vm8077, %v8053
      %8087 = vst.msk [vmem:[%s764 + $0x48] sm:$0xff] %vm8077, %v8054
      %8088 = vst.msk [vmem:[%s764 + $0x50] sm:$0xff] %vm8077, %v8055
      %8089 = vst.msk [vmem:[%s764 + $0x58] sm:$0xff] %vm8077, %v8056
      %8090 = vst.msk [vmem:[%s764 + $0x60] sm:$0xff] %vm8077, %v8057
      %8091 = vst.msk [vmem:[%s764 + $0x68] sm:$0xff] %vm8077, %v8058
      %8092 = vst.msk [vmem:[%s764 + $0x70] sm:$0xff] %vm8077, %v8059
      %8093 = vst.msk [vmem:[%s764 + $0x78] sm:$0xff] %vm8077, %v8060
      %8094 = vst.msk [vmem:[%s764 + $0x80] sm:$0xff] %vm8077, %v8061
      %8095 = vst.msk [vmem:[%s764 + $0x88] sm:$0xff] %vm8077, %v8062
      %8096 = vst.msk [vmem:[%s764 + $0x90] sm:$0xff] %vm8077, %v8063
      %8097 = vst.msk [vmem:[%s764 + $0x98] sm:$0xff] %vm8077, %v8064
      %8098 = vst.msk [vmem:[%s764 + $0xa0] sm:$0xff] %vm8077, %v8065
      %8099 = vst.msk [vmem:[%s764 + $0xa8] sm:$0xff] %vm8077, %v8066
      %8100 = vst.msk [vmem:[%s764 + $0xb0] sm:$0xff] %vm8077, %v8067
      %8101 = vst.msk [vmem:[%s764 + $0xb8] sm:$0xff] %vm8077, %v8068
      %8102 = vst.msk [vmem:[%s764 + $0xc0] sm:$0xff] %vm8077, %v8069
      %8103 = vst.msk [vmem:[%s764 + $0xc8] sm:$0xff] %vm8077, %v8070
      %8104 = vst.msk [vmem:[%s764 + $0xd0] sm:$0xff] %vm8077, %v8071
      %8105 = vst.msk [vmem:[%s764 + $0xd8] sm:$0xff] %vm8077, %v8072
      %8106 = vst.msk [vmem:[%s764 + $0xe0] sm:$0xff] %vm8077, %v8073
      %8107 = vst.msk [vmem:[%s764 + $0xe8] sm:$0xff] %vm8077, %v8074
      %8108 = vst.msk [vmem:[%s764 + $0xf0] sm:$0xff] %vm8077, %v8075
      %8109 = vst.msk [vmem:[%s764 + $0xf8] sm:$0xff] %vm8077, %v8076
      %p8110 = scmp.lt.s32.totalorder %s36, 1
      %s8111 = scalar_select %p8110, %s36, 1
      %s8112 = smul.addr %s8111, 32
      %s8113 = smul.addr %s8112, 8
      %s8114 = scalar_lea.vmem %s25, %s8113
      // Predicated region
      $region121: #{tpu_custom_call.1} parent=119 // pred_check
        %p8115 = pneg %p584
      $region122: #{tpu_custom_call.1} parent=119 // pred_check_branch
        %8117 = sbr.rel (%p8115) target = $region124
      $region123: #{tpu_custom_call.1} parent=119 // pred_region
        _
      $region124: #{tpu_custom_call.1} parent=119 // pred_fallthru
        _
    $region120: #{tpu_custom_call.1} parent=5 // pred_fallthru
      _
    %p8118 = scmp.le.s32.totalorder 2, %s31
    // Predicated region
    $region125: #{tpu_custom_call.1} parent=5 // pred_check
      %p8119 = pneg %p8118
    $region126: #{tpu_custom_call.1} parent=5 // pred_check_branch
      %8121 = sbr.rel (%p8119) target = $region128
    $region127: #{tpu_custom_call.1} parent=5 // pred_region
      %s8122 = ssub.s32 %s31, 2
      // Predicated region
      $region129: #{tpu_custom_call.1} parent=127 // pred_check
        %p8123 = pneg %p590
      $region130: #{tpu_custom_call.1} parent=127 // pred_check_branch
        %8125 = sbr.rel (%p8123) target = $region132
      $region131: #{tpu_custom_call.1} parent=127 // pred_region
        %p8126 = scmp.lt.s32.totalorder %s37, 1
        %s8127 = scalar_select %p8126, %s37, 1
        %s8128 = smul.addr %s8127, 32
        %s8129 = smul.addr %s8128, 8
        %s8130 = scalar_lea.vmem %s25, %s8129
      $region132: #{tpu_custom_call.1} parent=127 // pred_fallthru
        _
    $region128: #{tpu_custom_call.1} parent=5 // pred_fallthru
      _
  $region6: #{tpu_custom_call.1} parent=0 // loop_footer
    %s35 = sadd.s32 1, %s31
  $region7: #{tpu_custom_call.1} parent=0 // loop_footer_branch
    %30 = sbr.rel target = $region3
  $region8: #{tpu_custom_call.1} parent=0 // loop_exit
    _

</llo_original>
